<compile_context>
chip_gen: v5e
topology: v5e:2x2
jax: 0.10.0
libtpu: 0.0.40
codegen_flags: <defaults>
</compile_context>

<pallas_src>
import jax
import jax.numpy as jnp
import numpy as np
from jax.experimental import pallas as pl
from jax.experimental.pallas import tpu as pltpu

EPS = 1e-5


# ----------------------------- fused Pallas kernel -----------------------------

def _make_resblock_kernel(depth, Bb, H, W, Cf, cins, Cmax):
    """Build the fused kernel for static depth / geometry (Bb images per step)."""
    M = Bb * H * W

    def kernel(*refs):
        x_ref, alpha_ref = refs[0], refs[1]
        layer_refs = [refs[2 + 4 * l: 2 + 4 * (l + 1)] for l in range(depth)]
        out_ref = refs[2 + 4 * depth]
        pad_ref = refs[2 + 4 * depth + 1]       # (Bb, H+2, W+2, Cmax) padded act.

        alpha = alpha_ref[0]                    # shared PReLU slope (SMEM scalar)

        # Zero ONLY the 1-pixel halo; the interior is fully rewritten each layer.
        # Runs every grid step (each v7x TensorCore must init its own scratch).
        zrow = jnp.zeros((Bb, 1, W + 2, Cmax), jnp.float32)
        zcol = jnp.zeros((Bb, H, 1, Cmax), jnp.float32)
        pad_ref[:, 0:1, :, :] = zrow
        pad_ref[:, H + 1:H + 2, :, :] = zrow
        pad_ref[:, 1:H + 1, 0:1, :] = zcol
        pad_ref[:, 1:H + 1, W + 1:W + 2, :] = zcol

        def prelu(y):
            return jnp.where(y > 0, y, alpha * y)

        def conv3x3(cin, w_ref, b_ref):
            # 9 accumulating f32 MXU dots on shifted views of the padded tile
            # (no im2col scratch traffic; kernel is ld/st-bound, not MXU-bound).
            acc = None
            for dh in range(3):
                for dw in range(3):
                    win = pad_ref[:, dh:dh + H, dw:dw + W, :cin].reshape(M, cin)
                    d = jnp.dot(win, w_ref[dh, dw],
                                preferred_element_type=jnp.float32)
                    acc = d if acc is None else acc + d
            return acc + b_ref[...]                     # (M, Cf) f32

        # ---- layer 1: out = conv1(prelu(bn1(x))) ----
        scale_ref, shift_ref, w_ref, b_ref = layer_refs[0]
        c0 = cins[0]
        y0 = prelu(x_ref[...] * scale_ref[...] + shift_ref[...])   # (Bb,H,W,c0)
        pad_ref[:, 1:H + 1, 1:W + 1, :c0] = y0
        cur = conv3x3(c0, w_ref, b_ref)                            # (M, Cf) f32

        # ---- layers 2..depth: out += conv_l(prelu(bn_l(out))) ----
        for l in range(1, depth):
            scale_ref, shift_ref, w_ref, b_ref = layer_refs[l]
            y = prelu(cur * scale_ref[...] + shift_ref[...])       # (M, Cf)
            pad_ref[:, 1:H + 1, 1:W + 1, :Cf] = y.reshape(Bb, H, W, Cf)
            cur = cur + conv3x3(Cf, w_ref, b_ref)

        out_ref[...] = cur                                         # aligned store

    return kernel


# ----------------------------- wrapper -----------------------------

def _pick_batch_block(n):
    """Images per grid step: prefer exactly 2 grid steps (one per v7x TC),
    capped at 8 images/step so per-step VMEM stays small; always divides n."""
    bb = n // 2 if (n % 2 == 0 and n >= 2) else n
    bb = max(1, min(bb, 8))
    while n % bb:
        bb -= 1
    return bb


def fully_preactivated_resblock_forward(params, x_nchw, depth):
    """x_nchw: (N, num_channels + concat_extra, H, W) f32; depth: static int 1..4."""
    if depth > 4:
        raise Exception('Depth more than 4 does not supported!!!')
    if depth < 1:
        raise Exception('Depth must be at least 1.')

    N, Cin, H, W = x_nchw.shape
    Cf = int(params['b'][0].shape[0])
    cins = [int(params['w'][l].shape[2]) for l in range(depth)]
    assert cins[0] == Cin, (cins[0], Cin)
    assert all(c == Cf for c in cins[1:]), "num_filters must equal num_channels"
    Cmax = max(cins)

    Bb = _pick_batch_block(N)
    grid = (N // Bb,)

    x_nhwc = jnp.transpose(x_nchw, (0, 2, 3, 1)).astype(jnp.float32)   # NCHW -> NHWC
    alpha = jnp.asarray(params['prelu_alpha'], jnp.float32).reshape(1)

    inputs = [x_nhwc, alpha]
    in_specs = [
        pl.BlockSpec((Bb, H, W, Cin), lambda n: (n, 0, 0, 0)),
        pl.BlockSpec(memory_space=pltpu.MemorySpace.SMEM),             # PReLU slope
    ]
    for l in range(depth):
        C = cins[l]
        g, b, m, v = params['bn'][l]
        inv = g * jax.lax.rsqrt(v + EPS)                  # fold BN into scale/shift
        scale = inv.reshape(1, C).astype(jnp.float32)
        shift = (b - m * inv).reshape(1, C).astype(jnp.float32)
        w = params['w'][l].astype(jnp.float32)            # (3,3,C,Cf) f32 MXU weights
        bias = params['b'][l].reshape(1, Cf).astype(jnp.float32)
        inputs += [scale, shift, w, bias]
        in_specs += [
            pl.BlockSpec((1, C), lambda n: (0, 0)),
            pl.BlockSpec((1, C), lambda n: (0, 0)),
            pl.BlockSpec((3, 3, C, Cf), lambda n: (0, 0, 0, 0)),
            pl.BlockSpec((1, Cf), lambda n: (0, 0)),
        ]

    out = pl.pallas_call(
        _make_resblock_kernel(depth, Bb, H, W, Cf, cins, Cmax),
        out_shape=jax.ShapeDtypeStruct((N * H * W, Cf), jnp.float32),
        grid=grid,
        in_specs=in_specs,
        out_specs=pl.BlockSpec((Bb * H * W, Cf), lambda n: (n, 0)),
        scratch_shapes=[
            pltpu.VMEM((Bb, H + 2, W + 2, Cmax), jnp.float32),   # padded activation
        ],
        compiler_params=pltpu.CompilerParams(
            dimension_semantics=("parallel",)),                   # v7x: split batch
    )(*inputs)

    # (N*H*W, Cf) -> NCHW; the sublane->lane relayout is folded into this single
    # XLA transpose instead of being paid inside the kernel.
    return jnp.transpose(out.reshape(N, H, W, Cf), (0, 3, 1, 2))


# ----------------------------- params / reference -----------------------------

def init_params(key, num_channels=32, num_filters=32, concat_extra=8):
    input_size = num_channels + concat_extra
    cins = [input_size, num_channels, num_channels, num_channels]
    ks = jax.random.split(key, 8)

    def bn_params(C):
        r = jnp.arange(C, dtype=jnp.float32) / max(C - 1, 1)
        return (1.0 + 0.1 * r,        # gamma
                0.05 * r - 0.02,      # beta
                0.05 * r - 0.03,      # running mean
                1.0 + 0.1 * r)        # running var

    return {
        'w': [0.05 * jax.random.normal(ks[2 * l], (3, 3, cins[l], num_filters),
                                       jnp.float32) for l in range(4)],
        'b': [0.05 * jax.random.normal(ks[2 * l + 1], (num_filters,), jnp.float32)
              for l in range(4)],
        'bn': [bn_params(cins[l]) for l in range(4)],
        'prelu_alpha': jnp.float32(0.25),   # nn.PReLU() default, shared slope
    }


def reference_forward(params, x, depth):
    """Plain-JAX f32 reference with identical semantics (for verification)."""
    a = params['prelu_alpha']

    def bn(t, p):
        g, b, m, v = [u[None, :, None, None] for u in p]
        return g * (t - m) / jnp.sqrt(v + EPS) + b

    def prelu(t):
        return jnp.where(t > 0, t, a * t)

    def conv(t, w, bias):
        y = jax.lax.conv_general_dilated(
            t, w, (1, 1), [(1, 1), (1, 1)],
            dimension_numbers=('NCHW', 'HWIO', 'NCHW'),
            precision=jax.lax.Precision.HIGHEST)
        return y + bias[None, :, None, None]

    out = conv(prelu(bn(x, params['bn'][0])), params['w'][0], params['b'][0])
    for l in range(1, depth):
        out = out + conv(prelu(bn(out, params['bn'][l])),
                         params['w'][l], params['b'][l])
    return out


# ----------------------------- main -----------------------------

if __name__ == "__main__":
    key = jax.random.PRNGKey(0)
    k_x, k_p = jax.random.split(key)

    N, num_channels, num_filters, concat_extra = 2, 32, 32, 8
    H = W = 16
    depth = 4
    input_size = num_channels + concat_extra        # 40

    x = jax.random.normal(k_x, (N, input_size, H, W), jnp.float32)
    params = init_params(k_p, num_channels, num_filters, concat_extra)

    out = fully_preactivated_resblock_forward(params, x, depth=depth)
    out = jax.block_until_ready(out)
    assert out.shape == (N, num_filters, H, W), out.shape

    ref = reference_forward(params, x, depth)
    np.testing.assert_allclose(np.asarray(out), np.asarray(ref),
                               atol=1e-2, rtol=1e-2)
    print("KERNEL_OK")
</pallas_src>

<mosaic_0001>
module attributes {stable_mosaic.version = 11 : i64} {
  func.func @kernel(%arg0: i32, %arg1: memref<1x16x16x40xf32, #tpu.memory_space<vmem>>, %arg2: memref<1xf32, #tpu.memory_space<smem>>, %arg3: memref<1x40xf32, #tpu.memory_space<vmem>>, %arg4: memref<1x40xf32, #tpu.memory_space<vmem>>, %arg5: memref<3x3x40x32xf32, #tpu.memory_space<vmem>>, %arg6: memref<1x32xf32, #tpu.memory_space<vmem>>, %arg7: memref<1x32xf32, #tpu.memory_space<vmem>>, %arg8: memref<1x32xf32, #tpu.memory_space<vmem>>, %arg9: memref<3x3x32x32xf32, #tpu.memory_space<vmem>>, %arg10: memref<1x32xf32, #tpu.memory_space<vmem>>, %arg11: memref<1x32xf32, #tpu.memory_space<vmem>>, %arg12: memref<1x32xf32, #tpu.memory_space<vmem>>, %arg13: memref<3x3x32x32xf32, #tpu.memory_space<vmem>>, %arg14: memref<1x32xf32, #tpu.memory_space<vmem>>, %arg15: memref<1x32xf32, #tpu.memory_space<vmem>>, %arg16: memref<1x32xf32, #tpu.memory_space<vmem>>, %arg17: memref<3x3x32x32xf32, #tpu.memory_space<vmem>>, %arg18: memref<1x32xf32, #tpu.memory_space<vmem>>, %arg19: memref<256x32xf32, #tpu.memory_space<vmem>>, %arg20: memref<1x18x18x40xf32, #tpu.memory_space<vmem>>) attributes {dimension_semantics = [#tpu.dimension_semantics<parallel>], iteration_bounds = array<i64: 2>, scalar_prefetch = 0 : i64, scratch_operands = 1 : i64, tpu.core_type = #tpu.core_type<tc>, window_params = [{transform_indices = @transform_0, window_bounds = array<i64: 1, 16, 16, 40>}, {transform_indices = @transform_1, window_bounds = array<i64: 1>}, {pipeline_mode = #tpu.pipeline_mode<synchronous>, transform_indices = @transform_2, window_bounds = array<i64: 1, 40>}, {pipeline_mode = #tpu.pipeline_mode<synchronous>, transform_indices = @transform_3, window_bounds = array<i64: 1, 40>}, {pipeline_mode = #tpu.pipeline_mode<synchronous>, transform_indices = @transform_4, window_bounds = array<i64: 3, 3, 40, 32>}, {pipeline_mode = #tpu.pipeline_mode<synchronous>, transform_indices = @transform_5, window_bounds = array<i64: 1, 32>}, {pipeline_mode = #tpu.pipeline_mode<synchronous>, transform_indices = @transform_6, window_bounds = array<i64: 1, 32>}, {pipeline_mode = #tpu.pipeline_mode<synchronous>, transform_indices = @transform_7, window_bounds = array<i64: 1, 32>}, {pipeline_mode = #tpu.pipeline_mode<synchronous>, transform_indices = @transform_8, window_bounds = array<i64: 3, 3, 32, 32>}, {pipeline_mode = #tpu.pipeline_mode<synchronous>, transform_indices = @transform_9, window_bounds = array<i64: 1, 32>}, {pipeline_mode = #tpu.pipeline_mode<synchronous>, transform_indices = @transform_10, window_bounds = array<i64: 1, 32>}, {pipeline_mode = #tpu.pipeline_mode<synchronous>, transform_indices = @transform_11, window_bounds = array<i64: 1, 32>}, {pipeline_mode = #tpu.pipeline_mode<synchronous>, transform_indices = @transform_12, window_bounds = array<i64: 3, 3, 32, 32>}, {pipeline_mode = #tpu.pipeline_mode<synchronous>, transform_indices = @transform_13, window_bounds = array<i64: 1, 32>}, {pipeline_mode = #tpu.pipeline_mode<synchronous>, transform_indices = @transform_14, window_bounds = array<i64: 1, 32>}, {pipeline_mode = #tpu.pipeline_mode<synchronous>, transform_indices = @transform_15, window_bounds = array<i64: 1, 32>}, {pipeline_mode = #tpu.pipeline_mode<synchronous>, transform_indices = @transform_16, window_bounds = array<i64: 3, 3, 32, 32>}, {pipeline_mode = #tpu.pipeline_mode<synchronous>, transform_indices = @transform_17, window_bounds = array<i64: 1, 32>}, {transform_indices = @transform_18, window_bounds = array<i64: 256, 32>}]} {
    %c0 = arith.constant 0 : index
    %0 = memref.load %arg2[%c0] : memref<1xf32, #tpu.memory_space<smem>>
    %cst = arith.constant 0.000000e+00 : f32
    %1 = vector.broadcast %cst : f32 to vector<1x1x18x40xf32>
    %cst_0 = arith.constant 0.000000e+00 : f32
    %2 = vector.broadcast %cst_0 : f32 to vector<1x16x1x40xf32>
    %c0_1 = arith.constant 0 : index
    %c0_2 = arith.constant 0 : index
    %c0_3 = arith.constant 0 : index
    %c0_4 = arith.constant 0 : index
    %3 = vector.load %arg20[%c0_1, %c0_2, %c0_3, %c0_4] : memref<1x18x18x40xf32, #tpu.memory_space<vmem>>, vector<1x1x18x40xf32>
    tpu.vector_store %arg20[%c0_1, %c0_2, %c0_3, %c0_4], %1 {strides = array<i32>} : memref<1x18x18x40xf32, #tpu.memory_space<vmem>>, vector<1x1x18x40xf32>,
    %c0_5 = arith.constant 0 : index
    %c17 = arith.constant 17 : index
    %c0_6 = arith.constant 0 : index
    %c0_7 = arith.constant 0 : index
    %4 = vector.load %arg20[%c0_5, %c17, %c0_6, %c0_7] : memref<1x18x18x40xf32, #tpu.memory_space<vmem>>, vector<1x1x18x40xf32>
    tpu.vector_store %arg20[%c0_5, %c17, %c0_6, %c0_7], %1 {strides = array<i32>} : memref<1x18x18x40xf32, #tpu.memory_space<vmem>>, vector<1x1x18x40xf32>,
    %c0_8 = arith.constant 0 : index
    %c1 = arith.constant 1 : index
    %c0_9 = arith.constant 0 : index
    %c0_10 = arith.constant 0 : index
    %5 = vector.load %arg20[%c0_8, %c1, %c0_9, %c0_10] : memref<1x18x18x40xf32, #tpu.memory_space<vmem>>, vector<1x16x1x40xf32>
    tpu.vector_store %arg20[%c0_8, %c1, %c0_9, %c0_10], %2 {strides = array<i32>} : memref<1x18x18x40xf32, #tpu.memory_space<vmem>>, vector<1x16x1x40xf32>,
    %c0_11 = arith.constant 0 : index
    %c1_12 = arith.constant 1 : index
    %c17_13 = arith.constant 17 : index
    %c0_14 = arith.constant 0 : index
    %6 = vector.load %arg20[%c0_11, %c1_12, %c17_13, %c0_14] : memref<1x18x18x40xf32, #tpu.memory_space<vmem>>, vector<1x16x1x40xf32>
    tpu.vector_store %arg20[%c0_11, %c1_12, %c17_13, %c0_14], %2 {strides = array<i32>} : memref<1x18x18x40xf32, #tpu.memory_space<vmem>>, vector<1x16x1x40xf32>,
    %c0_15 = arith.constant 0 : index
    %c0_16 = arith.constant 0 : index
    %c0_17 = arith.constant 0 : index
    %c0_18 = arith.constant 0 : index
    %7 = vector.load %arg1[%c0_15, %c0_16, %c0_17, %c0_18] : memref<1x16x16x40xf32, #tpu.memory_space<vmem>>, vector<1x16x16x40xf32>
    %c0_19 = arith.constant 0 : index
    %c0_20 = arith.constant 0 : index
    %8 = vector.load %arg3[%c0_19, %c0_20] : memref<1x40xf32, #tpu.memory_space<vmem>>, vector<1x40xf32>
    %9 = vector.shape_cast %8 : vector<1x40xf32> to vector<1x1x1x40xf32>
    %10 = vector.broadcast %9 : vector<1x1x1x40xf32> to vector<1x16x16x40xf32>
    %11 = arith.mulf %7, %10 : vector<1x16x16x40xf32>
    %c0_21 = arith.constant 0 : index
    %c0_22 = arith.constant 0 : index
    %12 = vector.load %arg4[%c0_21, %c0_22] : memref<1x40xf32, #tpu.memory_space<vmem>>, vector<1x40xf32>
    %13 = vector.shape_cast %12 : vector<1x40xf32> to vector<1x1x1x40xf32>
    %14 = vector.broadcast %13 : vector<1x1x1x40xf32> to vector<1x16x16x40xf32>
    %15 = arith.addf %11, %14 : vector<1x16x16x40xf32>
    %cst_23 = arith.constant 0.000000e+00 : f32
    %16 = vector.broadcast %cst_23 : f32 to vector<1x16x16x40xf32>
    %17 = arith.cmpf ogt, %15, %16 : vector<1x16x16x40xf32>
    %18 = vector.broadcast %0 : f32 to vector<1x16x16x40xf32>
    %19 = arith.mulf %18, %15 : vector<1x16x16x40xf32>
    %20 = arith.select %17, %15, %19 : vector<1x16x16x40xi1>, vector<1x16x16x40xf32>
    %c0_24 = arith.constant 0 : index
    %c1_25 = arith.constant 1 : index
    %c1_26 = arith.constant 1 : index
    %c0_27 = arith.constant 0 : index
    %21 = vector.load %arg20[%c0_24, %c1_25, %c1_26, %c0_27] : memref<1x18x18x40xf32, #tpu.memory_space<vmem>>, vector<1x16x16x40xf32>
    tpu.vector_store %arg20[%c0_24, %c1_25, %c1_26, %c0_27], %20 {strides = array<i32>} : memref<1x18x18x40xf32, #tpu.memory_space<vmem>>, vector<1x16x16x40xf32>,
    %c0_28 = arith.constant 0 : index
    %c0_29 = arith.constant 0 : index
    %c0_30 = arith.constant 0 : index
    %c0_31 = arith.constant 0 : index
    %22 = vector.load %arg20[%c0_28, %c0_29, %c0_30, %c0_31] : memref<1x18x18x40xf32, #tpu.memory_space<vmem>>, vector<1x16x16x40xf32>
    %23 = vector.shape_cast %22 : vector<1x16x16x40xf32> to vector<256x40xf32>
    %c0_32 = arith.constant 0 : index
    %c0_33 = arith.constant 0 : index
    %c0_34 = arith.constant 0 : index
    %c0_35 = arith.constant 0 : index
    %24 = vector.load %arg5[%c0_32, %c0_33, %c0_34, %c0_35] : memref<3x3x40x32xf32, #tpu.memory_space<vmem>>, vector<1x1x40x32xf32>
    %25 = vector.shape_cast %24 : vector<1x1x40x32xf32> to vector<40x32xf32>
    %cst_36 = arith.constant dense<0.000000e+00> : vector<256x32xf32>
    %26 = tpu.matmul %23, %25, %cst_36 {dimension_numbers = #tpu.dot_dimension_numbers<[1], [0], [0], [1], [0, 0, 1, 1], [], []>} : vector<256x40xf32>, vector<40x32xf32>, vector<256x32xf32> -> vector<256x32xf32>
    %c0_37 = arith.constant 0 : index
    %c0_38 = arith.constant 0 : index
    %c1_39 = arith.constant 1 : index
    %c0_40 = arith.constant 0 : index
    %27 = vector.load %arg20[%c0_37, %c0_38, %c1_39, %c0_40] : memref<1x18x18x40xf32, #tpu.memory_space<vmem>>, vector<1x16x16x40xf32>
    %28 = vector.shape_cast %27 : vector<1x16x16x40xf32> to vector<256x40xf32>
    %c0_41 = arith.constant 0 : index
    %c1_42 = arith.constant 1 : index
    %c0_43 = arith.constant 0 : index
    %c0_44 = arith.constant 0 : index
    %29 = vector.load %arg5[%c0_41, %c1_42, %c0_43, %c0_44] : memref<3x3x40x32xf32, #tpu.memory_space<vmem>>, vector<1x1x40x32xf32>
    %30 = vector.shape_cast %29 : vector<1x1x40x32xf32> to vector<40x32xf32>
    %cst_45 = arith.constant dense<0.000000e+00> : vector<256x32xf32>
    %31 = tpu.matmul %28, %30, %cst_45 {dimension_numbers = #tpu.dot_dimension_numbers<[1], [0], [0], [1], [0, 0, 1, 1], [], []>} : vector<256x40xf32>, vector<40x32xf32>, vector<256x32xf32> -> vector<256x32xf32>
    %32 = arith.addf %26, %31 : vector<256x32xf32>
    %c0_46 = arith.constant 0 : index
    %c0_47 = arith.constant 0 : index
    %c2 = arith.constant 2 : index
    %c0_48 = arith.constant 0 : index
    %33 = vector.load %arg20[%c0_46, %c0_47, %c2, %c0_48] : memref<1x18x18x40xf32, #tpu.memory_space<vmem>>, vector<1x16x16x40xf32>
    %34 = vector.shape_cast %33 : vector<1x16x16x40xf32> to vector<256x40xf32>
    %c0_49 = arith.constant 0 : index
    %c2_50 = arith.constant 2 : index
    %c0_51 = arith.constant 0 : index
    %c0_52 = arith.constant 0 : index
    %35 = vector.load %arg5[%c0_49, %c2_50, %c0_51, %c0_52] : memref<3x3x40x32xf32, #tpu.memory_space<vmem>>, vector<1x1x40x32xf32>
    %36 = vector.shape_cast %35 : vector<1x1x40x32xf32> to vector<40x32xf32>
    %cst_53 = arith.constant dense<0.000000e+00> : vector<256x32xf32>
    %37 = tpu.matmul %34, %36, %cst_53 {dimension_numbers = #tpu.dot_dimension_numbers<[1], [0], [0], [1], [0, 0, 1, 1], [], []>} : vector<256x40xf32>, vector<40x32xf32>, vector<256x32xf32> -> vector<256x32xf32>
    %38 = arith.addf %32, %37 : vector<256x32xf32>
    %c0_54 = arith.constant 0 : index
    %c1_55 = arith.constant 1 : index
    %c0_56 = arith.constant 0 : index
    %c0_57 = arith.constant 0 : index
    %39 = vector.load %arg20[%c0_54, %c1_55, %c0_56, %c0_57] : memref<1x18x18x40xf32, #tpu.memory_space<vmem>>, vector<1x16x16x40xf32>
    %40 = vector.shape_cast %39 : vector<1x16x16x40xf32> to vector<256x40xf32>
    %c1_58 = arith.constant 1 : index
    %c0_59 = arith.constant 0 : index
    %c0_60 = arith.constant 0 : index
    %c0_61 = arith.constant 0 : index
    %41 = vector.load %arg5[%c1_58, %c0_59, %c0_60, %c0_61] : memref<3x3x40x32xf32, #tpu.memory_space<vmem>>, vector<1x1x40x32xf32>
    %42 = vector.shape_cast %41 : vector<1x1x40x32xf32> to vector<40x32xf32>
    %cst_62 = arith.constant dense<0.000000e+00> : vector<256x32xf32>
    %43 = tpu.matmul %40, %42, %cst_62 {dimension_numbers = #tpu.dot_dimension_numbers<[1], [0], [0], [1], [0, 0, 1, 1], [], []>} : vector<256x40xf32>, vector<40x32xf32>, vector<256x32xf32> -> vector<256x32xf32>
    %44 = arith.addf %38, %43 : vector<256x32xf32>
    %c0_63 = arith.constant 0 : index
    %c1_64 = arith.constant 1 : index
    %c1_65 = arith.constant 1 : index
    %c0_66 = arith.constant 0 : index
    %45 = vector.load %arg20[%c0_63, %c1_64, %c1_65, %c0_66] : memref<1x18x18x40xf32, #tpu.memory_space<vmem>>, vector<1x16x16x40xf32>
    %46 = vector.shape_cast %45 : vector<1x16x16x40xf32> to vector<256x40xf32>
    %c1_67 = arith.constant 1 : index
    %c1_68 = arith.constant 1 : index
    %c0_69 = arith.constant 0 : index
    %c0_70 = arith.constant 0 : index
    %47 = vector.load %arg5[%c1_67, %c1_68, %c0_69, %c0_70] : memref<3x3x40x32xf32, #tpu.memory_space<vmem>>, vector<1x1x40x32xf32>
    %48 = vector.shape_cast %47 : vector<1x1x40x32xf32> to vector<40x32xf32>
    %cst_71 = arith.constant dense<0.000000e+00> : vector<256x32xf32>
    %49 = tpu.matmul %46, %48, %cst_71 {dimension_numbers = #tpu.dot_dimension_numbers<[1], [0], [0], [1], [0, 0, 1, 1], [], []>} : vector<256x40xf32>, vector<40x32xf32>, vector<256x32xf32> -> vector<256x32xf32>
    %50 = arith.addf %44, %49 : vector<256x32xf32>
    %c0_72 = arith.constant 0 : index
    %c1_73 = arith.constant 1 : index
    %c2_74 = arith.constant 2 : index
    %c0_75 = arith.constant 0 : index
    %51 = vector.load %arg20[%c0_72, %c1_73, %c2_74, %c0_75] : memref<1x18x18x40xf32, #tpu.memory_space<vmem>>, vector<1x16x16x40xf32>
    %52 = vector.shape_cast %51 : vector<1x16x16x40xf32> to vector<256x40xf32>
    %c1_76 = arith.constant 1 : index
    %c2_77 = arith.constant 2 : index
    %c0_78 = arith.constant 0 : index
    %c0_79 = arith.constant 0 : index
    %53 = vector.load %arg5[%c1_76, %c2_77, %c0_78, %c0_79] : memref<3x3x40x32xf32, #tpu.memory_space<vmem>>, vector<1x1x40x32xf32>
    %54 = vector.shape_cast %53 : vector<1x1x40x32xf32> to vector<40x32xf32>
    %cst_80 = arith.constant dense<0.000000e+00> : vector<256x32xf32>
    %55 = tpu.matmul %52, %54, %cst_80 {dimension_numbers = #tpu.dot_dimension_numbers<[1], [0], [0], [1], [0, 0, 1, 1], [], []>} : vector<256x40xf32>, vector<40x32xf32>, vector<256x32xf32> -> vector<256x32xf32>
    %56 = arith.addf %50, %55 : vector<256x32xf32>
    %c0_81 = arith.constant 0 : index
    %c2_82 = arith.constant 2 : index
    %c0_83 = arith.constant 0 : index
    %c0_84 = arith.constant 0 : index
    %57 = vector.load %arg20[%c0_81, %c2_82, %c0_83, %c0_84] : memref<1x18x18x40xf32, #tpu.memory_space<vmem>>, vector<1x16x16x40xf32>
    %58 = vector.shape_cast %57 : vector<1x16x16x40xf32> to vector<256x40xf32>
    %c2_85 = arith.constant 2 : index
    %c0_86 = arith.constant 0 : index
    %c0_87 = arith.constant 0 : index
    %c0_88 = arith.constant 0 : index
    %59 = vector.load %arg5[%c2_85, %c0_86, %c0_87, %c0_88] : memref<3x3x40x32xf32, #tpu.memory_space<vmem>>, vector<1x1x40x32xf32>
    %60 = vector.shape_cast %59 : vector<1x1x40x32xf32> to vector<40x32xf32>
    %cst_89 = arith.constant dense<0.000000e+00> : vector<256x32xf32>
    %61 = tpu.matmul %58, %60, %cst_89 {dimension_numbers = #tpu.dot_dimension_numbers<[1], [0], [0], [1], [0, 0, 1, 1], [], []>} : vector<256x40xf32>, vector<40x32xf32>, vector<256x32xf32> -> vector<256x32xf32>
    %62 = arith.addf %56, %61 : vector<256x32xf32>
    %c0_90 = arith.constant 0 : index
    %c2_91 = arith.constant 2 : index
    %c1_92 = arith.constant 1 : index
    %c0_93 = arith.constant 0 : index
    %63 = vector.load %arg20[%c0_90, %c2_91, %c1_92, %c0_93] : memref<1x18x18x40xf32, #tpu.memory_space<vmem>>, vector<1x16x16x40xf32>
    %64 = vector.shape_cast %63 : vector<1x16x16x40xf32> to vector<256x40xf32>
    %c2_94 = arith.constant 2 : index
    %c1_95 = arith.constant 1 : index
    %c0_96 = arith.constant 0 : index
    %c0_97 = arith.constant 0 : index
    %65 = vector.load %arg5[%c2_94, %c1_95, %c0_96, %c0_97] : memref<3x3x40x32xf32, #tpu.memory_space<vmem>>, vector<1x1x40x32xf32>
    %66 = vector.shape_cast %65 : vector<1x1x40x32xf32> to vector<40x32xf32>
    %cst_98 = arith.constant dense<0.000000e+00> : vector<256x32xf32>
    %67 = tpu.matmul %64, %66, %cst_98 {dimension_numbers = #tpu.dot_dimension_numbers<[1], [0], [0], [1], [0, 0, 1, 1], [], []>} : vector<256x40xf32>, vector<40x32xf32>, vector<256x32xf32> -> vector<256x32xf32>
    %68 = arith.addf %62, %67 : vector<256x32xf32>
    %c0_99 = arith.constant 0 : index
    %c2_100 = arith.constant 2 : index
    %c2_101 = arith.constant 2 : index
    %c0_102 = arith.constant 0 : index
    %69 = vector.load %arg20[%c0_99, %c2_100, %c2_101, %c0_102] : memref<1x18x18x40xf32, #tpu.memory_space<vmem>>, vector<1x16x16x40xf32>
    %70 = vector.shape_cast %69 : vector<1x16x16x40xf32> to vector<256x40xf32>
    %c2_103 = arith.constant 2 : index
    %c2_104 = arith.constant 2 : index
    %c0_105 = arith.constant 0 : index
    %c0_106 = arith.constant 0 : index
    %71 = vector.load %arg5[%c2_103, %c2_104, %c0_105, %c0_106] : memref<3x3x40x32xf32, #tpu.memory_space<vmem>>, vector<1x1x40x32xf32>
    %72 = vector.shape_cast %71 : vector<1x1x40x32xf32> to vector<40x32xf32>
    %cst_107 = arith.constant dense<0.000000e+00> : vector<256x32xf32>
    %73 = tpu.matmul %70, %72, %cst_107 {dimension_numbers = #tpu.dot_dimension_numbers<[1], [0], [0], [1], [0, 0, 1, 1], [], []>} : vector<256x40xf32>, vector<40x32xf32>, vector<256x32xf32> -> vector<256x32xf32>
    %74 = arith.addf %68, %73 : vector<256x32xf32>
    %c0_108 = arith.constant 0 : index
    %c0_109 = arith.constant 0 : index
    %75 = vector.load %arg6[%c0_108, %c0_109] : memref<1x32xf32, #tpu.memory_space<vmem>>, vector<1x32xf32>
    %76 = vector.broadcast %75 : vector<1x32xf32> to vector<256x32xf32>
    %77 = arith.addf %74, %76 : vector<256x32xf32>
    %c0_110 = arith.constant 0 : index
    %c0_111 = arith.constant 0 : index
    %78 = vector.load %arg7[%c0_110, %c0_111] : memref<1x32xf32, #tpu.memory_space<vmem>>, vector<1x32xf32>
    %79 = vector.broadcast %78 : vector<1x32xf32> to vector<256x32xf32>
    %80 = arith.mulf %77, %79 : vector<256x32xf32>
    %c0_112 = arith.constant 0 : index
    %c0_113 = arith.constant 0 : index
    %81 = vector.load %arg8[%c0_112, %c0_113] : memref<1x32xf32, #tpu.memory_space<vmem>>, vector<1x32xf32>
    %82 = vector.broadcast %81 : vector<1x32xf32> to vector<256x32xf32>
    %83 = arith.addf %80, %82 : vector<256x32xf32>
    %cst_114 = arith.constant 0.000000e+00 : f32
    %84 = vector.broadcast %cst_114 : f32 to vector<256x32xf32>
    %85 = arith.cmpf ogt, %83, %84 : vector<256x32xf32>
    %86 = vector.broadcast %0 : f32 to vector<256x32xf32>
    %87 = arith.mulf %86, %83 : vector<256x32xf32>
    %88 = arith.select %85, %83, %87 : vector<256x32xi1>, vector<256x32xf32>
    %89 = vector.shape_cast %88 : vector<256x32xf32> to vector<1x16x16x32xf32>
    %c0_115 = arith.constant 0 : index
    %c1_116 = arith.constant 1 : index
    %c1_117 = arith.constant 1 : index
    %c0_118 = arith.constant 0 : index
    %90 = vector.load %arg20[%c0_115, %c1_116, %c1_117, %c0_118] : memref<1x18x18x40xf32, #tpu.memory_space<vmem>>, vector<1x16x16x32xf32>
    tpu.vector_store %arg20[%c0_115, %c1_116, %c1_117, %c0_118], %89 {strides = array<i32>} : memref<1x18x18x40xf32, #tpu.memory_space<vmem>>, vector<1x16x16x32xf32>,
    %c0_119 = arith.constant 0 : index
    %c0_120 = arith.constant 0 : index
    %c0_121 = arith.constant 0 : index
    %c0_122 = arith.constant 0 : index
    %91 = vector.load %arg20[%c0_119, %c0_120, %c0_121, %c0_122] : memref<1x18x18x40xf32, #tpu.memory_space<vmem>>, vector<1x16x16x32xf32>
    %92 = vector.shape_cast %91 : vector<1x16x16x32xf32> to vector<256x32xf32>
    %c0_123 = arith.constant 0 : index
    %c0_124 = arith.constant 0 : index
    %c0_125 = arith.constant 0 : index
    %c0_126 = arith.constant 0 : index
    %93 = vector.load %arg9[%c0_123, %c0_124, %c0_125, %c0_126] : memref<3x3x32x32xf32, #tpu.memory_space<vmem>>, vector<1x1x32x32xf32>
    %94 = vector.shape_cast %93 : vector<1x1x32x32xf32> to vector<32x32xf32>
    %cst_127 = arith.constant dense<0.000000e+00> : vector<256x32xf32>
    %95 = tpu.matmul %92, %94, %cst_127 {dimension_numbers = #tpu.dot_dimension_numbers<[1], [0], [0], [1], [0, 0, 1, 1], [], []>} : vector<256x32xf32>, vector<32x32xf32>, vector<256x32xf32> -> vector<256x32xf32>
    %c0_128 = arith.constant 0 : index
    %c0_129 = arith.constant 0 : index
    %c1_130 = arith.constant 1 : index
    %c0_131 = arith.constant 0 : index
    %96 = vector.load %arg20[%c0_128, %c0_129, %c1_130, %c0_131] : memref<1x18x18x40xf32, #tpu.memory_space<vmem>>, vector<1x16x16x32xf32>
    %97 = vector.shape_cast %96 : vector<1x16x16x32xf32> to vector<256x32xf32>
    %c0_132 = arith.constant 0 : index
    %c1_133 = arith.constant 1 : index
    %c0_134 = arith.constant 0 : index
    %c0_135 = arith.constant 0 : index
    %98 = vector.load %arg9[%c0_132, %c1_133, %c0_134, %c0_135] : memref<3x3x32x32xf32, #tpu.memory_space<vmem>>, vector<1x1x32x32xf32>
    %99 = vector.shape_cast %98 : vector<1x1x32x32xf32> to vector<32x32xf32>
    %cst_136 = arith.constant dense<0.000000e+00> : vector<256x32xf32>
    %100 = tpu.matmul %97, %99, %cst_136 {dimension_numbers = #tpu.dot_dimension_numbers<[1], [0], [0], [1], [0, 0, 1, 1], [], []>} : vector<256x32xf32>, vector<32x32xf32>, vector<256x32xf32> -> vector<256x32xf32>
    %101 = arith.addf %95, %100 : vector<256x32xf32>
    %c0_137 = arith.constant 0 : index
    %c0_138 = arith.constant 0 : index
    %c2_139 = arith.constant 2 : index
    %c0_140 = arith.constant 0 : index
    %102 = vector.load %arg20[%c0_137, %c0_138, %c2_139, %c0_140] : memref<1x18x18x40xf32, #tpu.memory_space<vmem>>, vector<1x16x16x32xf32>
    %103 = vector.shape_cast %102 : vector<1x16x16x32xf32> to vector<256x32xf32>
    %c0_141 = arith.constant 0 : index
    %c2_142 = arith.constant 2 : index
    %c0_143 = arith.constant 0 : index
    %c0_144 = arith.constant 0 : index
    %104 = vector.load %arg9[%c0_141, %c2_142, %c0_143, %c0_144] : memref<3x3x32x32xf32, #tpu.memory_space<vmem>>, vector<1x1x32x32xf32>
    %105 = vector.shape_cast %104 : vector<1x1x32x32xf32> to vector<32x32xf32>
    %cst_145 = arith.constant dense<0.000000e+00> : vector<256x32xf32>
    %106 = tpu.matmul %103, %105, %cst_145 {dimension_numbers = #tpu.dot_dimension_numbers<[1], [0], [0], [1], [0, 0, 1, 1], [], []>} : vector<256x32xf32>, vector<32x32xf32>, vector<256x32xf32> -> vector<256x32xf32>
    %107 = arith.addf %101, %106 : vector<256x32xf32>
    %c0_146 = arith.constant 0 : index
    %c1_147 = arith.constant 1 : index
    %c0_148 = arith.constant 0 : index
    %c0_149 = arith.constant 0 : index
    %108 = vector.load %arg20[%c0_146, %c1_147, %c0_148, %c0_149] : memref<1x18x18x40xf32, #tpu.memory_space<vmem>>, vector<1x16x16x32xf32>
    %109 = vector.shape_cast %108 : vector<1x16x16x32xf32> to vector<256x32xf32>
    %c1_150 = arith.constant 1 : index
    %c0_151 = arith.constant 0 : index
    %c0_152 = arith.constant 0 : index
    %c0_153 = arith.constant 0 : index
    %110 = vector.load %arg9[%c1_150, %c0_151, %c0_152, %c0_153] : memref<3x3x32x32xf32, #tpu.memory_space<vmem>>, vector<1x1x32x32xf32>
    %111 = vector.shape_cast %110 : vector<1x1x32x32xf32> to vector<32x32xf32>
    %cst_154 = arith.constant dense<0.000000e+00> : vector<256x32xf32>
    %112 = tpu.matmul %109, %111, %cst_154 {dimension_numbers = #tpu.dot_dimension_numbers<[1], [0], [0], [1], [0, 0, 1, 1], [], []>} : vector<256x32xf32>, vector<32x32xf32>, vector<256x32xf32> -> vector<256x32xf32>
    %113 = arith.addf %107, %112 : vector<256x32xf32>
    %c0_155 = arith.constant 0 : index
    %c1_156 = arith.constant 1 : index
    %c1_157 = arith.constant 1 : index
    %c0_158 = arith.constant 0 : index
    %114 = vector.load %arg20[%c0_155, %c1_156, %c1_157, %c0_158] : memref<1x18x18x40xf32, #tpu.memory_space<vmem>>, vector<1x16x16x32xf32>
    %115 = vector.shape_cast %114 : vector<1x16x16x32xf32> to vector<256x32xf32>
    %c1_159 = arith.constant 1 : index
    %c1_160 = arith.constant 1 : index
    %c0_161 = arith.constant 0 : index
    %c0_162 = arith.constant 0 : index
    %116 = vector.load %arg9[%c1_159, %c1_160, %c0_161, %c0_162] : memref<3x3x32x32xf32, #tpu.memory_space<vmem>>, vector<1x1x32x32xf32>
    %117 = vector.shape_cast %116 : vector<1x1x32x32xf32> to vector<32x32xf32>
    %cst_163 = arith.constant dense<0.000000e+00> : vector<256x32xf32>
    %118 = tpu.matmul %115, %117, %cst_163 {dimension_numbers = #tpu.dot_dimension_numbers<[1], [0], [0], [1], [0, 0, 1, 1], [], []>} : vector<256x32xf32>, vector<32x32xf32>, vector<256x32xf32> -> vector<256x32xf32>
    %119 = arith.addf %113, %118 : vector<256x32xf32>
    %c0_164 = arith.constant 0 : index
    %c1_165 = arith.constant 1 : index
    %c2_166 = arith.constant 2 : index
    %c0_167 = arith.constant 0 : index
    %120 = vector.load %arg20[%c0_164, %c1_165, %c2_166, %c0_167] : memref<1x18x18x40xf32, #tpu.memory_space<vmem>>, vector<1x16x16x32xf32>
    %121 = vector.shape_cast %120 : vector<1x16x16x32xf32> to vector<256x32xf32>
    %c1_168 = arith.constant 1 : index
    %c2_169 = arith.constant 2 : index
    %c0_170 = arith.constant 0 : index
    %c0_171 = arith.constant 0 : index
    %122 = vector.load %arg9[%c1_168, %c2_169, %c0_170, %c0_171] : memref<3x3x32x32xf32, #tpu.memory_space<vmem>>, vector<1x1x32x32xf32>
    %123 = vector.shape_cast %122 : vector<1x1x32x32xf32> to vector<32x32xf32>
    %cst_172 = arith.constant dense<0.000000e+00> : vector<256x32xf32>
    %124 = tpu.matmul %121, %123, %cst_172 {dimension_numbers = #tpu.dot_dimension_numbers<[1], [0], [0], [1], [0, 0, 1, 1], [], []>} : vector<256x32xf32>, vector<32x32xf32>, vector<256x32xf32> -> vector<256x32xf32>
    %125 = arith.addf %119, %124 : vector<256x32xf32>
    %c0_173 = arith.constant 0 : index
    %c2_174 = arith.constant 2 : index
    %c0_175 = arith.constant 0 : index
    %c0_176 = arith.constant 0 : index
    %126 = vector.load %arg20[%c0_173, %c2_174, %c0_175, %c0_176] : memref<1x18x18x40xf32, #tpu.memory_space<vmem>>, vector<1x16x16x32xf32>
    %127 = vector.shape_cast %126 : vector<1x16x16x32xf32> to vector<256x32xf32>
    %c2_177 = arith.constant 2 : index
    %c0_178 = arith.constant 0 : index
    %c0_179 = arith.constant 0 : index
    %c0_180 = arith.constant 0 : index
    %128 = vector.load %arg9[%c2_177, %c0_178, %c0_179, %c0_180] : memref<3x3x32x32xf32, #tpu.memory_space<vmem>>, vector<1x1x32x32xf32>
    %129 = vector.shape_cast %128 : vector<1x1x32x32xf32> to vector<32x32xf32>
    %cst_181 = arith.constant dense<0.000000e+00> : vector<256x32xf32>
    %130 = tpu.matmul %127, %129, %cst_181 {dimension_numbers = #tpu.dot_dimension_numbers<[1], [0], [0], [1], [0, 0, 1, 1], [], []>} : vector<256x32xf32>, vector<32x32xf32>, vector<256x32xf32> -> vector<256x32xf32>
    %131 = arith.addf %125, %130 : vector<256x32xf32>
    %c0_182 = arith.constant 0 : index
    %c2_183 = arith.constant 2 : index
    %c1_184 = arith.constant 1 : index
    %c0_185 = arith.constant 0 : index
    %132 = vector.load %arg20[%c0_182, %c2_183, %c1_184, %c0_185] : memref<1x18x18x40xf32, #tpu.memory_space<vmem>>, vector<1x16x16x32xf32>
    %133 = vector.shape_cast %132 : vector<1x16x16x32xf32> to vector<256x32xf32>
    %c2_186 = arith.constant 2 : index
    %c1_187 = arith.constant 1 : index
    %c0_188 = arith.constant 0 : index
    %c0_189 = arith.constant 0 : index
    %134 = vector.load %arg9[%c2_186, %c1_187, %c0_188, %c0_189] : memref<3x3x32x32xf32, #tpu.memory_space<vmem>>, vector<1x1x32x32xf32>
    %135 = vector.shape_cast %134 : vector<1x1x32x32xf32> to vector<32x32xf32>
    %cst_190 = arith.constant dense<0.000000e+00> : vector<256x32xf32>
    %136 = tpu.matmul %133, %135, %cst_190 {dimension_numbers = #tpu.dot_dimension_numbers<[1], [0], [0], [1], [0, 0, 1, 1], [], []>} : vector<256x32xf32>, vector<32x32xf32>, vector<256x32xf32> -> vector<256x32xf32>
    %137 = arith.addf %131, %136 : vector<256x32xf32>
    %c0_191 = arith.constant 0 : index
    %c2_192 = arith.constant 2 : index
    %c2_193 = arith.constant 2 : index
    %c0_194 = arith.constant 0 : index
    %138 = vector.load %arg20[%c0_191, %c2_192, %c2_193, %c0_194] : memref<1x18x18x40xf32, #tpu.memory_space<vmem>>, vector<1x16x16x32xf32>
    %139 = vector.shape_cast %138 : vector<1x16x16x32xf32> to vector<256x32xf32>
    %c2_195 = arith.constant 2 : index
    %c2_196 = arith.constant 2 : index
    %c0_197 = arith.constant 0 : index
    %c0_198 = arith.constant 0 : index
    %140 = vector.load %arg9[%c2_195, %c2_196, %c0_197, %c0_198] : memref<3x3x32x32xf32, #tpu.memory_space<vmem>>, vector<1x1x32x32xf32>
    %141 = vector.shape_cast %140 : vector<1x1x32x32xf32> to vector<32x32xf32>
    %cst_199 = arith.constant dense<0.000000e+00> : vector<256x32xf32>
    %142 = tpu.matmul %139, %141, %cst_199 {dimension_numbers = #tpu.dot_dimension_numbers<[1], [0], [0], [1], [0, 0, 1, 1], [], []>} : vector<256x32xf32>, vector<32x32xf32>, vector<256x32xf32> -> vector<256x32xf32>
    %143 = arith.addf %137, %142 : vector<256x32xf32>
    %c0_200 = arith.constant 0 : index
    %c0_201 = arith.constant 0 : index
    %144 = vector.load %arg10[%c0_200, %c0_201] : memref<1x32xf32, #tpu.memory_space<vmem>>, vector<1x32xf32>
    %145 = vector.broadcast %144 : vector<1x32xf32> to vector<256x32xf32>
    %146 = arith.addf %143, %145 : vector<256x32xf32>
    %147 = arith.addf %77, %146 : vector<256x32xf32>
    %c0_202 = arith.constant 0 : index
    %c0_203 = arith.constant 0 : index
    %148 = vector.load %arg11[%c0_202, %c0_203] : memref<1x32xf32, #tpu.memory_space<vmem>>, vector<1x32xf32>
    %149 = vector.broadcast %148 : vector<1x32xf32> to vector<256x32xf32>
    %150 = arith.mulf %147, %149 : vector<256x32xf32>
    %c0_204 = arith.constant 0 : index
    %c0_205 = arith.constant 0 : index
    %151 = vector.load %arg12[%c0_204, %c0_205] : memref<1x32xf32, #tpu.memory_space<vmem>>, vector<1x32xf32>
    %152 = vector.broadcast %151 : vector<1x32xf32> to vector<256x32xf32>
    %153 = arith.addf %150, %152 : vector<256x32xf32>
    %cst_206 = arith.constant 0.000000e+00 : f32
    %154 = vector.broadcast %cst_206 : f32 to vector<256x32xf32>
    %155 = arith.cmpf ogt, %153, %154 : vector<256x32xf32>
    %156 = vector.broadcast %0 : f32 to vector<256x32xf32>
    %157 = arith.mulf %156, %153 : vector<256x32xf32>
    %158 = arith.select %155, %153, %157 : vector<256x32xi1>, vector<256x32xf32>
    %159 = vector.shape_cast %158 : vector<256x32xf32> to vector<1x16x16x32xf32>
    %c0_207 = arith.constant 0 : index
    %c1_208 = arith.constant 1 : index
    %c1_209 = arith.constant 1 : index
    %c0_210 = arith.constant 0 : index
    %160 = vector.load %arg20[%c0_207, %c1_208, %c1_209, %c0_210] : memref<1x18x18x40xf32, #tpu.memory_space<vmem>>, vector<1x16x16x32xf32>
    tpu.vector_store %arg20[%c0_207, %c1_208, %c1_209, %c0_210], %159 {strides = array<i32>} : memref<1x18x18x40xf32, #tpu.memory_space<vmem>>, vector<1x16x16x32xf32>,
    %c0_211 = arith.constant 0 : index
    %c0_212 = arith.constant 0 : index
    %c0_213 = arith.constant 0 : index
    %c0_214 = arith.constant 0 : index
    %161 = vector.load %arg20[%c0_211, %c0_212, %c0_213, %c0_214] : memref<1x18x18x40xf32, #tpu.memory_space<vmem>>, vector<1x16x16x32xf32>
    %162 = vector.shape_cast %161 : vector<1x16x16x32xf32> to vector<256x32xf32>
    %c0_215 = arith.constant 0 : index
    %c0_216 = arith.constant 0 : index
    %c0_217 = arith.constant 0 : index
    %c0_218 = arith.constant 0 : index
    %163 = vector.load %arg13[%c0_215, %c0_216, %c0_217, %c0_218] : memref<3x3x32x32xf32, #tpu.memory_space<vmem>>, vector<1x1x32x32xf32>
    %164 = vector.shape_cast %163 : vector<1x1x32x32xf32> to vector<32x32xf32>
    %cst_219 = arith.constant dense<0.000000e+00> : vector<256x32xf32>
    %165 = tpu.matmul %162, %164, %cst_219 {dimension_numbers = #tpu.dot_dimension_numbers<[1], [0], [0], [1], [0, 0, 1, 1], [], []>} : vector<256x32xf32>, vector<32x32xf32>, vector<256x32xf32> -> vector<256x32xf32>
    %c0_220 = arith.constant 0 : index
    %c0_221 = arith.constant 0 : index
    %c1_222 = arith.constant 1 : index
    %c0_223 = arith.constant 0 : index
    %166 = vector.load %arg20[%c0_220, %c0_221, %c1_222, %c0_223] : memref<1x18x18x40xf32, #tpu.memory_space<vmem>>, vector<1x16x16x32xf32>
    %167 = vector.shape_cast %166 : vector<1x16x16x32xf32> to vector<256x32xf32>
    %c0_224 = arith.constant 0 : index
    %c1_225 = arith.constant 1 : index
    %c0_226 = arith.constant 0 : index
    %c0_227 = arith.constant 0 : index
    %168 = vector.load %arg13[%c0_224, %c1_225, %c0_226, %c0_227] : memref<3x3x32x32xf32, #tpu.memory_space<vmem>>, vector<1x1x32x32xf32>
    %169 = vector.shape_cast %168 : vector<1x1x32x32xf32> to vector<32x32xf32>
    %cst_228 = arith.constant dense<0.000000e+00> : vector<256x32xf32>
    %170 = tpu.matmul %167, %169, %cst_228 {dimension_numbers = #tpu.dot_dimension_numbers<[1], [0], [0], [1], [0, 0, 1, 1], [], []>} : vector<256x32xf32>, vector<32x32xf32>, vector<256x32xf32> -> vector<256x32xf32>
    %171 = arith.addf %165, %170 : vector<256x32xf32>
    %c0_229 = arith.constant 0 : index
    %c0_230 = arith.constant 0 : index
    %c2_231 = arith.constant 2 : index
    %c0_232 = arith.constant 0 : index
    %172 = vector.load %arg20[%c0_229, %c0_230, %c2_231, %c0_232] : memref<1x18x18x40xf32, #tpu.memory_space<vmem>>, vector<1x16x16x32xf32>
    %173 = vector.shape_cast %172 : vector<1x16x16x32xf32> to vector<256x32xf32>
    %c0_233 = arith.constant 0 : index
    %c2_234 = arith.constant 2 : index
    %c0_235 = arith.constant 0 : index
    %c0_236 = arith.constant 0 : index
    %174 = vector.load %arg13[%c0_233, %c2_234, %c0_235, %c0_236] : memref<3x3x32x32xf32, #tpu.memory_space<vmem>>, vector<1x1x32x32xf32>
    %175 = vector.shape_cast %174 : vector<1x1x32x32xf32> to vector<32x32xf32>
    %cst_237 = arith.constant dense<0.000000e+00> : vector<256x32xf32>
    %176 = tpu.matmul %173, %175, %cst_237 {dimension_numbers = #tpu.dot_dimension_numbers<[1], [0], [0], [1], [0, 0, 1, 1], [], []>} : vector<256x32xf32>, vector<32x32xf32>, vector<256x32xf32> -> vector<256x32xf32>
    %177 = arith.addf %171, %176 : vector<256x32xf32>
    %c0_238 = arith.constant 0 : index
    %c1_239 = arith.constant 1 : index
    %c0_240 = arith.constant 0 : index
    %c0_241 = arith.constant 0 : index
    %178 = vector.load %arg20[%c0_238, %c1_239, %c0_240, %c0_241] : memref<1x18x18x40xf32, #tpu.memory_space<vmem>>, vector<1x16x16x32xf32>
    %179 = vector.shape_cast %178 : vector<1x16x16x32xf32> to vector<256x32xf32>
    %c1_242 = arith.constant 1 : index
    %c0_243 = arith.constant 0 : index
    %c0_244 = arith.constant 0 : index
    %c0_245 = arith.constant 0 : index
    %180 = vector.load %arg13[%c1_242, %c0_243, %c0_244, %c0_245] : memref<3x3x32x32xf32, #tpu.memory_space<vmem>>, vector<1x1x32x32xf32>
    %181 = vector.shape_cast %180 : vector<1x1x32x32xf32> to vector<32x32xf32>
    %cst_246 = arith.constant dense<0.000000e+00> : vector<256x32xf32>
    %182 = tpu.matmul %179, %181, %cst_246 {dimension_numbers = #tpu.dot_dimension_numbers<[1], [0], [0], [1], [0, 0, 1, 1], [], []>} : vector<256x32xf32>, vector<32x32xf32>, vector<256x32xf32> -> vector<256x32xf32>
    %183 = arith.addf %177, %182 : vector<256x32xf32>
    %c0_247 = arith.constant 0 : index
    %c1_248 = arith.constant 1 : index
    %c1_249 = arith.constant 1 : index
    %c0_250 = arith.constant 0 : index
    %184 = vector.load %arg20[%c0_247, %c1_248, %c1_249, %c0_250] : memref<1x18x18x40xf32, #tpu.memory_space<vmem>>, vector<1x16x16x32xf32>
    %185 = vector.shape_cast %184 : vector<1x16x16x32xf32> to vector<256x32xf32>
    %c1_251 = arith.constant 1 : index
    %c1_252 = arith.constant 1 : index
    %c0_253 = arith.constant 0 : index
    %c0_254 = arith.constant 0 : index
    %186 = vector.load %arg13[%c1_251, %c1_252, %c0_253, %c0_254] : memref<3x3x32x32xf32, #tpu.memory_space<vmem>>, vector<1x1x32x32xf32>
    %187 = vector.shape_cast %186 : vector<1x1x32x32xf32> to vector<32x32xf32>
    %cst_255 = arith.constant dense<0.000000e+00> : vector<256x32xf32>
    %188 = tpu.matmul %185, %187, %cst_255 {dimension_numbers = #tpu.dot_dimension_numbers<[1], [0], [0], [1], [0, 0, 1, 1], [], []>} : vector<256x32xf32>, vector<32x32xf32>, vector<256x32xf32> -> vector<256x32xf32>
    %189 = arith.addf %183, %188 : vector<256x32xf32>
    %c0_256 = arith.constant 0 : index
    %c1_257 = arith.constant 1 : index
    %c2_258 = arith.constant 2 : index
    %c0_259 = arith.constant 0 : index
    %190 = vector.load %arg20[%c0_256, %c1_257, %c2_258, %c0_259] : memref<1x18x18x40xf32, #tpu.memory_space<vmem>>, vector<1x16x16x32xf32>
    %191 = vector.shape_cast %190 : vector<1x16x16x32xf32> to vector<256x32xf32>
    %c1_260 = arith.constant 1 : index
    %c2_261 = arith.constant 2 : index
    %c0_262 = arith.constant 0 : index
    %c0_263 = arith.constant 0 : index
    %192 = vector.load %arg13[%c1_260, %c2_261, %c0_262, %c0_263] : memref<3x3x32x32xf32, #tpu.memory_space<vmem>>, vector<1x1x32x32xf32>
    %193 = vector.shape_cast %192 : vector<1x1x32x32xf32> to vector<32x32xf32>
    %cst_264 = arith.constant dense<0.000000e+00> : vector<256x32xf32>
    %194 = tpu.matmul %191, %193, %cst_264 {dimension_numbers = #tpu.dot_dimension_numbers<[1], [0], [0], [1], [0, 0, 1, 1], [], []>} : vector<256x32xf32>, vector<32x32xf32>, vector<256x32xf32> -> vector<256x32xf32>
    %195 = arith.addf %189, %194 : vector<256x32xf32>
    %c0_265 = arith.constant 0 : index
    %c2_266 = arith.constant 2 : index
    %c0_267 = arith.constant 0 : index
    %c0_268 = arith.constant 0 : index
    %196 = vector.load %arg20[%c0_265, %c2_266, %c0_267, %c0_268] : memref<1x18x18x40xf32, #tpu.memory_space<vmem>>, vector<1x16x16x32xf32>
    %197 = vector.shape_cast %196 : vector<1x16x16x32xf32> to vector<256x32xf32>
    %c2_269 = arith.constant 2 : index
    %c0_270 = arith.constant 0 : index
    %c0_271 = arith.constant 0 : index
    %c0_272 = arith.constant 0 : index
    %198 = vector.load %arg13[%c2_269, %c0_270, %c0_271, %c0_272] : memref<3x3x32x32xf32, #tpu.memory_space<vmem>>, vector<1x1x32x32xf32>
    %199 = vector.shape_cast %198 : vector<1x1x32x32xf32> to vector<32x32xf32>
    %cst_273 = arith.constant dense<0.000000e+00> : vector<256x32xf32>
    %200 = tpu.matmul %197, %199, %cst_273 {dimension_numbers = #tpu.dot_dimension_numbers<[1], [0], [0], [1], [0, 0, 1, 1], [], []>} : vector<256x32xf32>, vector<32x32xf32>, vector<256x32xf32> -> vector<256x32xf32>
    %201 = arith.addf %195, %200 : vector<256x32xf32>
    %c0_274 = arith.constant 0 : index
    %c2_275 = arith.constant 2 : index
    %c1_276 = arith.constant 1 : index
    %c0_277 = arith.constant 0 : index
    %202 = vector.load %arg20[%c0_274, %c2_275, %c1_276, %c0_277] : memref<1x18x18x40xf32, #tpu.memory_space<vmem>>, vector<1x16x16x32xf32>
    %203 = vector.shape_cast %202 : vector<1x16x16x32xf32> to vector<256x32xf32>
    %c2_278 = arith.constant 2 : index
    %c1_279 = arith.constant 1 : index
    %c0_280 = arith.constant 0 : index
    %c0_281 = arith.constant 0 : index
    %204 = vector.load %arg13[%c2_278, %c1_279, %c0_280, %c0_281] : memref<3x3x32x32xf32, #tpu.memory_space<vmem>>, vector<1x1x32x32xf32>
    %205 = vector.shape_cast %204 : vector<1x1x32x32xf32> to vector<32x32xf32>
    %cst_282 = arith.constant dense<0.000000e+00> : vector<256x32xf32>
    %206 = tpu.matmul %203, %205, %cst_282 {dimension_numbers = #tpu.dot_dimension_numbers<[1], [0], [0], [1], [0, 0, 1, 1], [], []>} : vector<256x32xf32>, vector<32x32xf32>, vector<256x32xf32> -> vector<256x32xf32>
    %207 = arith.addf %201, %206 : vector<256x32xf32>
    %c0_283 = arith.constant 0 : index
    %c2_284 = arith.constant 2 : index
    %c2_285 = arith.constant 2 : index
    %c0_286 = arith.constant 0 : index
    %208 = vector.load %arg20[%c0_283, %c2_284, %c2_285, %c0_286] : memref<1x18x18x40xf32, #tpu.memory_space<vmem>>, vector<1x16x16x32xf32>
    %209 = vector.shape_cast %208 : vector<1x16x16x32xf32> to vector<256x32xf32>
    %c2_287 = arith.constant 2 : index
    %c2_288 = arith.constant 2 : index
    %c0_289 = arith.constant 0 : index
    %c0_290 = arith.constant 0 : index
    %210 = vector.load %arg13[%c2_287, %c2_288, %c0_289, %c0_290] : memref<3x3x32x32xf32, #tpu.memory_space<vmem>>, vector<1x1x32x32xf32>
    %211 = vector.shape_cast %210 : vector<1x1x32x32xf32> to vector<32x32xf32>
    %cst_291 = arith.constant dense<0.000000e+00> : vector<256x32xf32>
    %212 = tpu.matmul %209, %211, %cst_291 {dimension_numbers = #tpu.dot_dimension_numbers<[1], [0], [0], [1], [0, 0, 1, 1], [], []>} : vector<256x32xf32>, vector<32x32xf32>, vector<256x32xf32> -> vector<256x32xf32>
    %213 = arith.addf %207, %212 : vector<256x32xf32>
    %c0_292 = arith.constant 0 : index
    %c0_293 = arith.constant 0 : index
    %214 = vector.load %arg14[%c0_292, %c0_293] : memref<1x32xf32, #tpu.memory_space<vmem>>, vector<1x32xf32>
    %215 = vector.broadcast %214 : vector<1x32xf32> to vector<256x32xf32>
    %216 = arith.addf %213, %215 : vector<256x32xf32>
    %217 = arith.addf %147, %216 : vector<256x32xf32>
    %c0_294 = arith.constant 0 : index
    %c0_295 = arith.constant 0 : index
    %218 = vector.load %arg15[%c0_294, %c0_295] : memref<1x32xf32, #tpu.memory_space<vmem>>, vector<1x32xf32>
    %219 = vector.broadcast %218 : vector<1x32xf32> to vector<256x32xf32>
    %220 = arith.mulf %217, %219 : vector<256x32xf32>
    %c0_296 = arith.constant 0 : index
    %c0_297 = arith.constant 0 : index
    %221 = vector.load %arg16[%c0_296, %c0_297] : memref<1x32xf32, #tpu.memory_space<vmem>>, vector<1x32xf32>
    %222 = vector.broadcast %221 : vector<1x32xf32> to vector<256x32xf32>
    %223 = arith.addf %220, %222 : vector<256x32xf32>
    %cst_298 = arith.constant 0.000000e+00 : f32
    %224 = vector.broadcast %cst_298 : f32 to vector<256x32xf32>
    %225 = arith.cmpf ogt, %223, %224 : vector<256x32xf32>
    %226 = vector.broadcast %0 : f32 to vector<256x32xf32>
    %227 = arith.mulf %226, %223 : vector<256x32xf32>
    %228 = arith.select %225, %223, %227 : vector<256x32xi1>, vector<256x32xf32>
    %229 = vector.shape_cast %228 : vector<256x32xf32> to vector<1x16x16x32xf32>
    %c0_299 = arith.constant 0 : index
    %c1_300 = arith.constant 1 : index
    %c1_301 = arith.constant 1 : index
    %c0_302 = arith.constant 0 : index
    %230 = vector.load %arg20[%c0_299, %c1_300, %c1_301, %c0_302] : memref<1x18x18x40xf32, #tpu.memory_space<vmem>>, vector<1x16x16x32xf32>
    tpu.vector_store %arg20[%c0_299, %c1_300, %c1_301, %c0_302], %229 {strides = array<i32>} : memref<1x18x18x40xf32, #tpu.memory_space<vmem>>, vector<1x16x16x32xf32>,
    %c0_303 = arith.constant 0 : index
    %c0_304 = arith.constant 0 : index
    %c0_305 = arith.constant 0 : index
    %c0_306 = arith.constant 0 : index
    %231 = vector.load %arg20[%c0_303, %c0_304, %c0_305, %c0_306] : memref<1x18x18x40xf32, #tpu.memory_space<vmem>>, vector<1x16x16x32xf32>
    %232 = vector.shape_cast %231 : vector<1x16x16x32xf32> to vector<256x32xf32>
    %c0_307 = arith.constant 0 : index
    %c0_308 = arith.constant 0 : index
    %c0_309 = arith.constant 0 : index
    %c0_310 = arith.constant 0 : index
    %233 = vector.load %arg17[%c0_307, %c0_308, %c0_309, %c0_310] : memref<3x3x32x32xf32, #tpu.memory_space<vmem>>, vector<1x1x32x32xf32>
    %234 = vector.shape_cast %233 : vector<1x1x32x32xf32> to vector<32x32xf32>
    %cst_311 = arith.constant dense<0.000000e+00> : vector<256x32xf32>
    %235 = tpu.matmul %232, %234, %cst_311 {dimension_numbers = #tpu.dot_dimension_numbers<[1], [0], [0], [1], [0, 0, 1, 1], [], []>} : vector<256x32xf32>, vector<32x32xf32>, vector<256x32xf32> -> vector<256x32xf32>
    %c0_312 = arith.constant 0 : index
    %c0_313 = arith.constant 0 : index
    %c1_314 = arith.constant 1 : index
    %c0_315 = arith.constant 0 : index
    %236 = vector.load %arg20[%c0_312, %c0_313, %c1_314, %c0_315] : memref<1x18x18x40xf32, #tpu.memory_space<vmem>>, vector<1x16x16x32xf32>
    %237 = vector.shape_cast %236 : vector<1x16x16x32xf32> to vector<256x32xf32>
    %c0_316 = arith.constant 0 : index
    %c1_317 = arith.constant 1 : index
    %c0_318 = arith.constant 0 : index
    %c0_319 = arith.constant 0 : index
    %238 = vector.load %arg17[%c0_316, %c1_317, %c0_318, %c0_319] : memref<3x3x32x32xf32, #tpu.memory_space<vmem>>, vector<1x1x32x32xf32>
    %239 = vector.shape_cast %238 : vector<1x1x32x32xf32> to vector<32x32xf32>
    %cst_320 = arith.constant dense<0.000000e+00> : vector<256x32xf32>
    %240 = tpu.matmul %237, %239, %cst_320 {dimension_numbers = #tpu.dot_dimension_numbers<[1], [0], [0], [1], [0, 0, 1, 1], [], []>} : vector<256x32xf32>, vector<32x32xf32>, vector<256x32xf32> -> vector<256x32xf32>
    %241 = arith.addf %235, %240 : vector<256x32xf32>
    %c0_321 = arith.constant 0 : index
    %c0_322 = arith.constant 0 : index
    %c2_323 = arith.constant 2 : index
    %c0_324 = arith.constant 0 : index
    %242 = vector.load %arg20[%c0_321, %c0_322, %c2_323, %c0_324] : memref<1x18x18x40xf32, #tpu.memory_space<vmem>>, vector<1x16x16x32xf32>
    %243 = vector.shape_cast %242 : vector<1x16x16x32xf32> to vector<256x32xf32>
    %c0_325 = arith.constant 0 : index
    %c2_326 = arith.constant 2 : index
    %c0_327 = arith.constant 0 : index
    %c0_328 = arith.constant 0 : index
    %244 = vector.load %arg17[%c0_325, %c2_326, %c0_327, %c0_328] : memref<3x3x32x32xf32, #tpu.memory_space<vmem>>, vector<1x1x32x32xf32>
    %245 = vector.shape_cast %244 : vector<1x1x32x32xf32> to vector<32x32xf32>
    %cst_329 = arith.constant dense<0.000000e+00> : vector<256x32xf32>
    %246 = tpu.matmul %243, %245, %cst_329 {dimension_numbers = #tpu.dot_dimension_numbers<[1], [0], [0], [1], [0, 0, 1, 1], [], []>} : vector<256x32xf32>, vector<32x32xf32>, vector<256x32xf32> -> vector<256x32xf32>
    %247 = arith.addf %241, %246 : vector<256x32xf32>
    %c0_330 = arith.constant 0 : index
    %c1_331 = arith.constant 1 : index
    %c0_332 = arith.constant 0 : index
    %c0_333 = arith.constant 0 : index
    %248 = vector.load %arg20[%c0_330, %c1_331, %c0_332, %c0_333] : memref<1x18x18x40xf32, #tpu.memory_space<vmem>>, vector<1x16x16x32xf32>
    %249 = vector.shape_cast %248 : vector<1x16x16x32xf32> to vector<256x32xf32>
    %c1_334 = arith.constant 1 : index
    %c0_335 = arith.constant 0 : index
    %c0_336 = arith.constant 0 : index
    %c0_337 = arith.constant 0 : index
    %250 = vector.load %arg17[%c1_334, %c0_335, %c0_336, %c0_337] : memref<3x3x32x32xf32, #tpu.memory_space<vmem>>, vector<1x1x32x32xf32>
    %251 = vector.shape_cast %250 : vector<1x1x32x32xf32> to vector<32x32xf32>
    %cst_338 = arith.constant dense<0.000000e+00> : vector<256x32xf32>
    %252 = tpu.matmul %249, %251, %cst_338 {dimension_numbers = #tpu.dot_dimension_numbers<[1], [0], [0], [1], [0, 0, 1, 1], [], []>} : vector<256x32xf32>, vector<32x32xf32>, vector<256x32xf32> -> vector<256x32xf32>
    %253 = arith.addf %247, %252 : vector<256x32xf32>
    %c0_339 = arith.constant 0 : index
    %c1_340 = arith.constant 1 : index
    %c1_341 = arith.constant 1 : index
    %c0_342 = arith.constant 0 : index
    %254 = vector.load %arg20[%c0_339, %c1_340, %c1_341, %c0_342] : memref<1x18x18x40xf32, #tpu.memory_space<vmem>>, vector<1x16x16x32xf32>
    %255 = vector.shape_cast %254 : vector<1x16x16x32xf32> to vector<256x32xf32>
    %c1_343 = arith.constant 1 : index
    %c1_344 = arith.constant 1 : index
    %c0_345 = arith.constant 0 : index
    %c0_346 = arith.constant 0 : index
    %256 = vector.load %arg17[%c1_343, %c1_344, %c0_345, %c0_346] : memref<3x3x32x32xf32, #tpu.memory_space<vmem>>, vector<1x1x32x32xf32>
    %257 = vector.shape_cast %256 : vector<1x1x32x32xf32> to vector<32x32xf32>
    %cst_347 = arith.constant dense<0.000000e+00> : vector<256x32xf32>
    %258 = tpu.matmul %255, %257, %cst_347 {dimension_numbers = #tpu.dot_dimension_numbers<[1], [0], [0], [1], [0, 0, 1, 1], [], []>} : vector<256x32xf32>, vector<32x32xf32>, vector<256x32xf32> -> vector<256x32xf32>
    %259 = arith.addf %253, %258 : vector<256x32xf32>
    %c0_348 = arith.constant 0 : index
    %c1_349 = arith.constant 1 : index
    %c2_350 = arith.constant 2 : index
    %c0_351 = arith.constant 0 : index
    %260 = vector.load %arg20[%c0_348, %c1_349, %c2_350, %c0_351] : memref<1x18x18x40xf32, #tpu.memory_space<vmem>>, vector<1x16x16x32xf32>
    %261 = vector.shape_cast %260 : vector<1x16x16x32xf32> to vector<256x32xf32>
    %c1_352 = arith.constant 1 : index
    %c2_353 = arith.constant 2 : index
    %c0_354 = arith.constant 0 : index
    %c0_355 = arith.constant 0 : index
    %262 = vector.load %arg17[%c1_352, %c2_353, %c0_354, %c0_355] : memref<3x3x32x32xf32, #tpu.memory_space<vmem>>, vector<1x1x32x32xf32>
    %263 = vector.shape_cast %262 : vector<1x1x32x32xf32> to vector<32x32xf32>
    %cst_356 = arith.constant dense<0.000000e+00> : vector<256x32xf32>
    %264 = tpu.matmul %261, %263, %cst_356 {dimension_numbers = #tpu.dot_dimension_numbers<[1], [0], [0], [1], [0, 0, 1, 1], [], []>} : vector<256x32xf32>, vector<32x32xf32>, vector<256x32xf32> -> vector<256x32xf32>
    %265 = arith.addf %259, %264 : vector<256x32xf32>
    %c0_357 = arith.constant 0 : index
    %c2_358 = arith.constant 2 : index
    %c0_359 = arith.constant 0 : index
    %c0_360 = arith.constant 0 : index
    %266 = vector.load %arg20[%c0_357, %c2_358, %c0_359, %c0_360] : memref<1x18x18x40xf32, #tpu.memory_space<vmem>>, vector<1x16x16x32xf32>
    %267 = vector.shape_cast %266 : vector<1x16x16x32xf32> to vector<256x32xf32>
    %c2_361 = arith.constant 2 : index
    %c0_362 = arith.constant 0 : index
    %c0_363 = arith.constant 0 : index
    %c0_364 = arith.constant 0 : index
    %268 = vector.load %arg17[%c2_361, %c0_362, %c0_363, %c0_364] : memref<3x3x32x32xf32, #tpu.memory_space<vmem>>, vector<1x1x32x32xf32>
    %269 = vector.shape_cast %268 : vector<1x1x32x32xf32> to vector<32x32xf32>
    %cst_365 = arith.constant dense<0.000000e+00> : vector<256x32xf32>
    %270 = tpu.matmul %267, %269, %cst_365 {dimension_numbers = #tpu.dot_dimension_numbers<[1], [0], [0], [1], [0, 0, 1, 1], [], []>} : vector<256x32xf32>, vector<32x32xf32>, vector<256x32xf32> -> vector<256x32xf32>
    %271 = arith.addf %265, %270 : vector<256x32xf32>
    %c0_366 = arith.constant 0 : index
    %c2_367 = arith.constant 2 : index
    %c1_368 = arith.constant 1 : index
    %c0_369 = arith.constant 0 : index
    %272 = vector.load %arg20[%c0_366, %c2_367, %c1_368, %c0_369] : memref<1x18x18x40xf32, #tpu.memory_space<vmem>>, vector<1x16x16x32xf32>
    %273 = vector.shape_cast %272 : vector<1x16x16x32xf32> to vector<256x32xf32>
    %c2_370 = arith.constant 2 : index
    %c1_371 = arith.constant 1 : index
    %c0_372 = arith.constant 0 : index
    %c0_373 = arith.constant 0 : index
    %274 = vector.load %arg17[%c2_370, %c1_371, %c0_372, %c0_373] : memref<3x3x32x32xf32, #tpu.memory_space<vmem>>, vector<1x1x32x32xf32>
    %275 = vector.shape_cast %274 : vector<1x1x32x32xf32> to vector<32x32xf32>
    %cst_374 = arith.constant dense<0.000000e+00> : vector<256x32xf32>
    %276 = tpu.matmul %273, %275, %cst_374 {dimension_numbers = #tpu.dot_dimension_numbers<[1], [0], [0], [1], [0, 0, 1, 1], [], []>} : vector<256x32xf32>, vector<32x32xf32>, vector<256x32xf32> -> vector<256x32xf32>
    %277 = arith.addf %271, %276 : vector<256x32xf32>
    %c0_375 = arith.constant 0 : index
    %c2_376 = arith.constant 2 : index
    %c2_377 = arith.constant 2 : index
    %c0_378 = arith.constant 0 : index
    %278 = vector.load %arg20[%c0_375, %c2_376, %c2_377, %c0_378] : memref<1x18x18x40xf32, #tpu.memory_space<vmem>>, vector<1x16x16x32xf32>
    %279 = vector.shape_cast %278 : vector<1x16x16x32xf32> to vector<256x32xf32>
    %c2_379 = arith.constant 2 : index
    %c2_380 = arith.constant 2 : index
    %c0_381 = arith.constant 0 : index
    %c0_382 = arith.constant 0 : index
    %280 = vector.load %arg17[%c2_379, %c2_380, %c0_381, %c0_382] : memref<3x3x32x32xf32, #tpu.memory_space<vmem>>, vector<1x1x32x32xf32>
    %281 = vector.shape_cast %280 : vector<1x1x32x32xf32> to vector<32x32xf32>
    %cst_383 = arith.constant dense<0.000000e+00> : vector<256x32xf32>
    %282 = tpu.matmul %279, %281, %cst_383 {dimension_numbers = #tpu.dot_dimension_numbers<[1], [0], [0], [1], [0, 0, 1, 1], [], []>} : vector<256x32xf32>, vector<32x32xf32>, vector<256x32xf32> -> vector<256x32xf32>
    %283 = arith.addf %277, %282 : vector<256x32xf32>
    %c0_384 = arith.constant 0 : index
    %c0_385 = arith.constant 0 : index
    %284 = vector.load %arg18[%c0_384, %c0_385] : memref<1x32xf32, #tpu.memory_space<vmem>>, vector<1x32xf32>
    %285 = vector.broadcast %284 : vector<1x32xf32> to vector<256x32xf32>
    %286 = arith.addf %283, %285 : vector<256x32xf32>
    %287 = arith.addf %217, %286 : vector<256x32xf32>
    %c0_386 = arith.constant 0 : index
    %c0_387 = arith.constant 0 : index
    %288 = vector.load %arg19[%c0_386, %c0_387] : memref<256x32xf32, #tpu.memory_space<vmem>>, vector<256x32xf32>
    tpu.vector_store %arg19[%c0_386, %c0_387], %287 {strides = array<i32>} : memref<256x32xf32, #tpu.memory_space<vmem>>, vector<256x32xf32>,
    return
  }
  func.func @transform_0(%arg0: i32) -> (i32, i32, i32, i32) {
    %c0_i32 = arith.constant 0 : i32
    %c0_i32_0 = arith.constant 0 : i32
    %c0_i32_1 = arith.constant 0 : i32
    %c0_i32_2 = arith.constant 0 : i32
    return %arg0, %c0_i32, %c0_i32_0, %c0_i32_1 : i32, i32, i32, i32
  }
  func.func @transform_1(%arg0: i32) -> i32 {
    %c0_i32 = arith.constant 0 : i32
    %c0_i32_0 = arith.constant 0 : i32
    return %c0_i32 : i32
  }
  func.func @transform_2(%arg0: i32) -> (i32, i32) {
    %c0_i32 = arith.constant 0 : i32
    %c0_i32_0 = arith.constant 0 : i32
    %c0_i32_1 = arith.constant 0 : i32
    return %c0_i32, %c0_i32_0 : i32, i32
  }
  func.func @transform_3(%arg0: i32) -> (i32, i32) {
    %c0_i32 = arith.constant 0 : i32
    %c0_i32_0 = arith.constant 0 : i32
    %c0_i32_1 = arith.constant 0 : i32
    return %c0_i32, %c0_i32_0 : i32, i32
  }
  func.func @transform_4(%arg0: i32) -> (i32, i32, i32, i32) {
    %c0_i32 = arith.constant 0 : i32
    %c0_i32_0 = arith.constant 0 : i32
    %c0_i32_1 = arith.constant 0 : i32
    %c0_i32_2 = arith.constant 0 : i32
    %c0_i32_3 = arith.constant 0 : i32
    return %c0_i32, %c0_i32_0, %c0_i32_1, %c0_i32_2 : i32, i32, i32, i32
  }
  func.func @transform_5(%arg0: i32) -> (i32, i32) {
    %c0_i32 = arith.constant 0 : i32
    %c0_i32_0 = arith.constant 0 : i32
    %c0_i32_1 = arith.constant 0 : i32
    return %c0_i32, %c0_i32_0 : i32, i32
  }
  func.func @transform_6(%arg0: i32) -> (i32, i32) {
    %c0_i32 = arith.constant 0 : i32
    %c0_i32_0 = arith.constant 0 : i32
    %c0_i32_1 = arith.constant 0 : i32
    return %c0_i32, %c0_i32_0 : i32, i32
  }
  func.func @transform_7(%arg0: i32) -> (i32, i32) {
    %c0_i32 = arith.constant 0 : i32
    %c0_i32_0 = arith.constant 0 : i32
    %c0_i32_1 = arith.constant 0 : i32
    return %c0_i32, %c0_i32_0 : i32, i32
  }
  func.func @transform_8(%arg0: i32) -> (i32, i32, i32, i32) {
    %c0_i32 = arith.constant 0 : i32
    %c0_i32_0 = arith.constant 0 : i32
    %c0_i32_1 = arith.constant 0 : i32
    %c0_i32_2 = arith.constant 0 : i32
    %c0_i32_3 = arith.constant 0 : i32
    return %c0_i32, %c0_i32_0, %c0_i32_1, %c0_i32_2 : i32, i32, i32, i32
  }
  func.func @transform_9(%arg0: i32) -> (i32, i32) {
    %c0_i32 = arith.constant 0 : i32
    %c0_i32_0 = arith.constant 0 : i32
    %c0_i32_1 = arith.constant 0 : i32
    return %c0_i32, %c0_i32_0 : i32, i32
  }
  func.func @transform_10(%arg0: i32) -> (i32, i32) {
    %c0_i32 = arith.constant 0 : i32
    %c0_i32_0 = arith.constant 0 : i32
    %c0_i32_1 = arith.constant 0 : i32
    return %c0_i32, %c0_i32_0 : i32, i32
  }
  func.func @transform_11(%arg0: i32) -> (i32, i32) {
    %c0_i32 = arith.constant 0 : i32
    %c0_i32_0 = arith.constant 0 : i32
    %c0_i32_1 = arith.constant 0 : i32
    return %c0_i32, %c0_i32_0 : i32, i32
  }
  func.func @transform_12(%arg0: i32) -> (i32, i32, i32, i32) {
    %c0_i32 = arith.constant 0 : i32
    %c0_i32_0 = arith.constant 0 : i32
    %c0_i32_1 = arith.constant 0 : i32
    %c0_i32_2 = arith.constant 0 : i32
    %c0_i32_3 = arith.constant 0 : i32
    return %c0_i32, %c0_i32_0, %c0_i32_1, %c0_i32_2 : i32, i32, i32, i32
  }
  func.func @transform_13(%arg0: i32) -> (i32, i32) {
    %c0_i32 = arith.constant 0 : i32
    %c0_i32_0 = arith.constant 0 : i32
    %c0_i32_1 = arith.constant 0 : i32
    return %c0_i32, %c0_i32_0 : i32, i32
  }
  func.func @transform_14(%arg0: i32) -> (i32, i32) {
    %c0_i32 = arith.constant 0 : i32
    %c0_i32_0 = arith.constant 0 : i32
    %c0_i32_1 = arith.constant 0 : i32
    return %c0_i32, %c0_i32_0 : i32, i32
  }
  func.func @transform_15(%arg0: i32) -> (i32, i32) {
    %c0_i32 = arith.constant 0 : i32
    %c0_i32_0 = arith.constant 0 : i32
    %c0_i32_1 = arith.constant 0 : i32
    return %c0_i32, %c0_i32_0 : i32, i32
  }
  func.func @transform_16(%arg0: i32) -> (i32, i32, i32, i32) {
    %c0_i32 = arith.constant 0 : i32
    %c0_i32_0 = arith.constant 0 : i32
    %c0_i32_1 = arith.constant 0 : i32
    %c0_i32_2 = arith.constant 0 : i32
    %c0_i32_3 = arith.constant 0 : i32
    return %c0_i32, %c0_i32_0, %c0_i32_1, %c0_i32_2 : i32, i32, i32, i32
  }
  func.func @transform_17(%arg0: i32) -> (i32, i32) {
    %c0_i32 = arith.constant 0 : i32
    %c0_i32_0 = arith.constant 0 : i32
    %c0_i32_1 = arith.constant 0 : i32
    return %c0_i32, %c0_i32_0 : i32, i32
  }
  func.func @transform_18(%arg0: i32) -> (i32, i32) {
    %c0_i32 = arith.constant 0 : i32
    %c0_i32_0 = arith.constant 0 : i32
    return %arg0, %c0_i32 : i32, i32
  }
}

</mosaic_0001>

<llo_original>
// kernel: tpu_custom_call.1
$region0: #{tpu_custom_call.1}
  #allocation0 [shape = 'u32[]', space=smem, size = 0x4, offset = 0x4, fixed_abs, tag = 'smem constant byte address 0x4 - core index']
  #allocation1 [shape = 'u32[72,128]{1,0:T(1,128)}', space=vmem, size = 0x9000, scoped, tag = 'internal scratch']
  #allocation2 [shape = 'f32[1,18,18,40]{3,2,1,0:T(8,128)}', space=vmem, size = 0x36000, scoped, tag = 'scratch operand']
  #allocation3 [shape = 'f32[1]{0:T(128)S(6)}', space=smem, size = 0x200, scoped, tag = 'scoped memory for tpu_custom_call.1']
  %s0 = inlined_call_operand.vmem [shape: f32[2,16,16,40], index: 0, kind: input, shape index: {}]
  %s1 = inlined_call_operand.<no memory space> [shape: f32[1], index: 1, kind: input, shape index: {}]
  %s2 = inlined_call_operand.vmem [shape: f32[1,40], index: 2, kind: input, shape index: {}]
  %s3 = inlined_call_operand.vmem [shape: f32[1,40], index: 3, kind: input, shape index: {}]
  %s4 = inlined_call_operand.vmem [shape: f32[3,3,40,32], index: 4, kind: input, shape index: {}]
  %s5 = inlined_call_operand.vmem [shape: f32[1,32], index: 5, kind: input, shape index: {}]
  %s6 = inlined_call_operand.vmem [shape: f32[1,32], index: 6, kind: input, shape index: {}]
  %s7 = inlined_call_operand.vmem [shape: f32[1,32], index: 7, kind: input, shape index: {}]
  %s8 = inlined_call_operand.hbm [shape: f32[3,3,32,32], index: 8, kind: input, shape index: {}]
  %s9 = inlined_call_operand.vmem [shape: f32[1,32], index: 9, kind: input, shape index: {}]
  %s10 = inlined_call_operand.vmem [shape: f32[1,32], index: 10, kind: input, shape index: {}]
  %s11 = inlined_call_operand.vmem [shape: f32[1,32], index: 11, kind: input, shape index: {}]
  %s12 = inlined_call_operand.hbm [shape: f32[3,3,32,32], index: 12, kind: input, shape index: {}]
  %s13 = inlined_call_operand.vmem [shape: f32[1,32], index: 13, kind: input, shape index: {}]
  %s14 = inlined_call_operand.vmem [shape: f32[1,32], index: 14, kind: input, shape index: {}]
  %s15 = inlined_call_operand.vmem [shape: f32[1,32], index: 15, kind: input, shape index: {}]
  %s16 = inlined_call_operand.hbm [shape: f32[3,3,32,32], index: 16, kind: input, shape index: {}]
  %s17 = inlined_call_operand.vmem [shape: f32[1,32], index: 17, kind: input, shape index: {}]
  %s18 = inlined_call_operand.vmem [shape: f32[512,32], index: 18, kind: output, shape index: {}]
  %s19 = sld [smem:[#allocation0]]
  $region117: #{tpu_custom_call.1} parent=0
    _
  %s21 = ssub.s32 1, %s19
  %s22 = scalar_select 0, %s21, %s19
  %23 = sst [smem:[#allocation3]] %s1
  $region1: #{tpu_custom_call.1} parent=0
    #allocation4 [shape = 'u8[147456]{0}', space=vmem, size = 0x24000, scoped, tag = 'input window, operand 8, single buffered']
    #allocation5 [shape = 's32[2]{0}', space=sflag, size = 0x8, scoped, tag = 'scoped memory for tpu_custom_call.1']
    #allocation6 [shape = 'u8[147456]{0}', space=vmem, size = 0x24000, scoped, tag = 'input window, operand 12, single buffered']
    #allocation7 [shape = 's32[1]{0}', space=sflag, size = 0x4, scoped, tag = 'scoped memory for tpu_custom_call.1']
    #allocation8 [shape = 'u8[147456]{0}', space=vmem, size = 0x24000, scoped, tag = 'input window, operand 16, single buffered']
    %24 = vsyncpa [#allocation5], 0
    %25 = vsyncpa [#allocation7], 0
    loop: start=0, step=1, limit=4
    $region2: #{tpu_custom_call.1} parent=1 // loop_pre_header
      _
    $region3: #{tpu_custom_call.1} parent=1 // loop_header
      %s27 = sphi 0, %s31
      %p28 = scmp.ge.s32.totalorder %s27, 4
      %s37 = sphi 0, %s39
      %s40 = sphi 0, %s37
      %s41 = sphi 0, %s40
      %s57 = sphi 0, %s41
      %s61 = sphi 0, %s61
      %s63 = sphi 0, %s61
      %s64 = sphi 0, %s63
      %s78 = sphi 0, %s64
      %s82 = sphi 0, %s82
      %s84 = sphi 0, %s82
      %s85 = sphi 0, %s84
      %s99 = sphi 0, %s85
      %s103 = sphi 0, %s103
      %s105 = sphi 0, %s103
      %s106 = sphi 0, %s105
      %s120 = sphi 0, %s106
      %s124 = sphi 0, %s124
      %s126 = sphi 0, %s124
      %s127 = sphi 0, %s126
      %s141 = sphi 0, %s127
      %s145 = sphi 0, %s145
      %s147 = sphi 0, %s145
      %s148 = sphi 0, %s147
      %s162 = sphi 0, %s148
      %s166 = sphi 0, %s166
      %s168 = sphi 0, %s166
      %s169 = sphi 0, %s168
      %s183 = sphi 0, %s169
      %s187 = sphi 0, %s187
      %s189 = sphi 0, %s187
      %s190 = sphi 0, %s189
      %s204 = sphi 0, %s190
      %s208 = sphi 0, %s208
      %s210 = sphi 0, %s208
      %s211 = sphi 0, %s210
      %s225 = sphi 0, %s211
      %s229 = sphi 0, %s229
      %s231 = sphi 0, %s229
      %s232 = sphi 0, %s231
      %s246 = sphi 0, %s232
      %s250 = sphi 0, %s250
      %s252 = sphi 0, %s250
      %s253 = sphi 0, %s252
      %s267 = sphi 0, %s253
      %s271 = sphi 0, %s271
      %s273 = sphi 0, %s271
      %s274 = sphi 0, %s273
      %s288 = sphi 0, %s274
      %s292 = sphi 0, %s292
      %s294 = sphi 0, %s292
      %s295 = sphi 0, %s294
      %s309 = sphi 0, %s295
      %s313 = sphi 0, %s313
      %s315 = sphi 0, %s313
      %s316 = sphi 0, %s315
      %s330 = sphi 0, %s316
      %s334 = sphi 0, %s334
      %s336 = sphi 0, %s334
      %s337 = sphi 0, %s336
      %s351 = sphi 0, %s337
      %s355 = sphi 0, %s355
      %s357 = sphi 0, %s355
      %s358 = sphi 0, %s357
      %s372 = sphi 0, %s358
      %s376 = sphi 0, %s376
      %s378 = sphi 0, %s376
      %s379 = sphi 0, %s378
      %s393 = sphi 0, %s379
      %s397 = sphi 0, %s397
      %s399 = sphi 0, %s397
      %s400 = sphi 0, %s399
      %s414 = sphi 0, %s400
      %s420 = sphi 0, %s422
      %s423 = sphi 0, %s420
      %s424 = sphi 0, %s423
      %s440 = sphi 0, %s424
    $region4: #{tpu_custom_call.1} parent=1 // loop_header_branch
      %30 = sbr.rel (%p28) target = $region8
    $region5: #{tpu_custom_call.1} parent=1 // loop_body
      %s32 = ssub.s32 %s27, 1
      %s33 = ssub.s32 %s27, 2
      %s34 = sadd.s32 %s27, 1
      %s35 = ssub.s32 %s27, %s34
      %p36 = scmp.eq.s32.totalorder %s35, 0
      %s38 = sadd.s32 %s37, 1
      %s39 = scalar_select %p36, %s37, %s38
      %p42 = pneg %p36
      %p43 = scmp.eq.s32.totalorder %s27, 1
      %p44 = por %p42, %p43
      %p45 = scmp.ne.s32.totalorder %s37, %s40
      %p46 = scmp.eq.s32.totalorder %s27, 0
      %p47 = por %p45, %p46
      %p48 = scmp.ne.s32.totalorder %s37, %s40
      %p49 = scmp.eq.s32.totalorder %s32, 1
      %p50 = por %p48, %p49
      %p51 = scmp.ne.s32.totalorder %s40, %s41
      %p52 = scmp.eq.s32.totalorder %s32, 0
      %p53 = por %p51, %p52
      %p54 = scmp.ne.s32.totalorder %s40, %s41
      %p55 = scmp.eq.s32.totalorder %s33, 1
      %p56 = por %p54, %p55
      %p58 = scmp.ne.s32.totalorder %s41, %s57
      %p59 = scmp.eq.s32.totalorder %s33, 0
      %p60 = por %p58, %p59
      %s62 = sadd.s32 %s61, 1
      %p65 = scmp.eq.s32.totalorder %s27, 1
      %p66 = scmp.ne.s32.totalorder %s61, %s63
      %p67 = scmp.eq.s32.totalorder %s27, 0
      %p68 = por %p66, %p67
      %p69 = scmp.ne.s32.totalorder %s61, %s63
      %p70 = scmp.eq.s32.totalorder %s32, 1
      %p71 = por %p69, %p70
      %p72 = scmp.ne.s32.totalorder %s63, %s64
      %p73 = scmp.eq.s32.totalorder %s32, 0
      %p74 = por %p72, %p73
      %p75 = scmp.ne.s32.totalorder %s63, %s64
      %p76 = scmp.eq.s32.totalorder %s33, 1
      %p77 = por %p75, %p76
      %p79 = scmp.ne.s32.totalorder %s64, %s78
      %p80 = scmp.eq.s32.totalorder %s33, 0
      %p81 = por %p79, %p80
      %s83 = sadd.s32 %s82, 1
      %p86 = scmp.eq.s32.totalorder %s27, 1
      %p87 = scmp.ne.s32.totalorder %s82, %s84
      %p88 = scmp.eq.s32.totalorder %s27, 0
      %p89 = por %p87, %p88
      %p90 = scmp.ne.s32.totalorder %s82, %s84
      %p91 = scmp.eq.s32.totalorder %s32, 1
      %p92 = por %p90, %p91
      %p93 = scmp.ne.s32.totalorder %s84, %s85
      %p94 = scmp.eq.s32.totalorder %s32, 0
      %p95 = por %p93, %p94
      %p96 = scmp.ne.s32.totalorder %s84, %s85
      %p97 = scmp.eq.s32.totalorder %s33, 1
      %p98 = por %p96, %p97
      %p100 = scmp.ne.s32.totalorder %s85, %s99
      %p101 = scmp.eq.s32.totalorder %s33, 0
      %p102 = por %p100, %p101
      %s104 = sadd.s32 %s103, 1
      %p107 = scmp.eq.s32.totalorder %s27, 1
      %p108 = scmp.ne.s32.totalorder %s103, %s105
      %p109 = scmp.eq.s32.totalorder %s27, 0
      %p110 = por %p108, %p109
      %p111 = scmp.ne.s32.totalorder %s103, %s105
      %p112 = scmp.eq.s32.totalorder %s32, 1
      %p113 = por %p111, %p112
      %p114 = scmp.ne.s32.totalorder %s105, %s106
      %p115 = scmp.eq.s32.totalorder %s32, 0
      %p116 = por %p114, %p115
      %p117 = scmp.ne.s32.totalorder %s105, %s106
      %p118 = scmp.eq.s32.totalorder %s33, 1
      %p119 = por %p117, %p118
      %p121 = scmp.ne.s32.totalorder %s106, %s120
      %p122 = scmp.eq.s32.totalorder %s33, 0
      %p123 = por %p121, %p122
      %s125 = sadd.s32 %s124, 1
      %p128 = scmp.eq.s32.totalorder %s27, 1
      %p129 = scmp.ne.s32.totalorder %s124, %s126
      %p130 = scmp.eq.s32.totalorder %s27, 0
      %p131 = por %p129, %p130
      %p132 = scmp.ne.s32.totalorder %s124, %s126
      %p133 = scmp.eq.s32.totalorder %s32, 1
      %p134 = por %p132, %p133
      %p135 = scmp.ne.s32.totalorder %s126, %s127
      %p136 = scmp.eq.s32.totalorder %s32, 0
      %p137 = por %p135, %p136
      %p138 = scmp.ne.s32.totalorder %s126, %s127
      %p139 = scmp.eq.s32.totalorder %s33, 1
      %p140 = por %p138, %p139
      %p142 = scmp.ne.s32.totalorder %s127, %s141
      %p143 = scmp.eq.s32.totalorder %s33, 0
      %p144 = por %p142, %p143
      %s146 = sadd.s32 %s145, 1
      %p149 = scmp.eq.s32.totalorder %s27, 1
      %p150 = scmp.ne.s32.totalorder %s145, %s147
      %p151 = scmp.eq.s32.totalorder %s27, 0
      %p152 = por %p150, %p151
      %p153 = scmp.ne.s32.totalorder %s145, %s147
      %p154 = scmp.eq.s32.totalorder %s32, 1
      %p155 = por %p153, %p154
      %p156 = scmp.ne.s32.totalorder %s147, %s148
      %p157 = scmp.eq.s32.totalorder %s32, 0
      %p158 = por %p156, %p157
      %p159 = scmp.ne.s32.totalorder %s147, %s148
      %p160 = scmp.eq.s32.totalorder %s33, 1
      %p161 = por %p159, %p160
      %p163 = scmp.ne.s32.totalorder %s148, %s162
      %p164 = scmp.eq.s32.totalorder %s33, 0
      %p165 = por %p163, %p164
      %s167 = sadd.s32 %s166, 1
      %p170 = scmp.eq.s32.totalorder %s27, 1
      %p171 = scmp.ne.s32.totalorder %s166, %s168
      %p172 = scmp.eq.s32.totalorder %s27, 0
      %p173 = por %p171, %p172
      %p174 = scmp.ne.s32.totalorder %s166, %s168
      %p175 = scmp.eq.s32.totalorder %s32, 1
      %p176 = por %p174, %p175
      %p177 = scmp.ne.s32.totalorder %s168, %s169
      %p178 = scmp.eq.s32.totalorder %s32, 0
      %p179 = por %p177, %p178
      %p180 = scmp.ne.s32.totalorder %s168, %s169
      %p181 = scmp.eq.s32.totalorder %s33, 1
      %p182 = por %p180, %p181
      %p184 = scmp.ne.s32.totalorder %s169, %s183
      %p185 = scmp.eq.s32.totalorder %s33, 0
      %p186 = por %p184, %p185
      %s188 = sadd.s32 %s187, 1
      %p191 = scmp.eq.s32.totalorder %s27, 1
      %p192 = scmp.ne.s32.totalorder %s187, %s189
      %p193 = scmp.eq.s32.totalorder %s27, 0
      %p194 = por %p192, %p193
      %p195 = scmp.ne.s32.totalorder %s187, %s189
      %p196 = scmp.eq.s32.totalorder %s32, 1
      %p197 = por %p195, %p196
      %p198 = scmp.ne.s32.totalorder %s189, %s190
      %p199 = scmp.eq.s32.totalorder %s32, 0
      %p200 = por %p198, %p199
      %p201 = scmp.ne.s32.totalorder %s189, %s190
      %p202 = scmp.eq.s32.totalorder %s33, 1
      %p203 = por %p201, %p202
      %p205 = scmp.ne.s32.totalorder %s190, %s204
      %p206 = scmp.eq.s32.totalorder %s33, 0
      %p207 = por %p205, %p206
      %s209 = sadd.s32 %s208, 1
      %p212 = scmp.eq.s32.totalorder %s27, 1
      %p213 = scmp.ne.s32.totalorder %s208, %s210
      %p214 = scmp.eq.s32.totalorder %s27, 0
      %p215 = por %p213, %p214
      %p216 = scmp.ne.s32.totalorder %s208, %s210
      %p217 = scmp.eq.s32.totalorder %s32, 1
      %p218 = por %p216, %p217
      %p219 = scmp.ne.s32.totalorder %s210, %s211
      %p220 = scmp.eq.s32.totalorder %s32, 0
      %p221 = por %p219, %p220
      %p222 = scmp.ne.s32.totalorder %s210, %s211
      %p223 = scmp.eq.s32.totalorder %s33, 1
      %p224 = por %p222, %p223
      %p226 = scmp.ne.s32.totalorder %s211, %s225
      %p227 = scmp.eq.s32.totalorder %s33, 0
      %p228 = por %p226, %p227
      %s230 = sadd.s32 %s229, 1
      %p233 = scmp.eq.s32.totalorder %s27, 1
      %p234 = scmp.ne.s32.totalorder %s229, %s231
      %p235 = scmp.eq.s32.totalorder %s27, 0
      %p236 = por %p234, %p235
      %p237 = scmp.ne.s32.totalorder %s229, %s231
      %p238 = scmp.eq.s32.totalorder %s32, 1
      %p239 = por %p237, %p238
      %p240 = scmp.ne.s32.totalorder %s231, %s232
      %p241 = scmp.eq.s32.totalorder %s32, 0
      %p242 = por %p240, %p241
      %p243 = scmp.ne.s32.totalorder %s231, %s232
      %p244 = scmp.eq.s32.totalorder %s33, 1
      %p245 = por %p243, %p244
      %p247 = scmp.ne.s32.totalorder %s232, %s246
      %p248 = scmp.eq.s32.totalorder %s33, 0
      %p249 = por %p247, %p248
      %s251 = sadd.s32 %s250, 1
      %p254 = scmp.eq.s32.totalorder %s27, 1
      %p255 = scmp.ne.s32.totalorder %s250, %s252
      %p256 = scmp.eq.s32.totalorder %s27, 0
      %p257 = por %p255, %p256
      %p258 = scmp.ne.s32.totalorder %s250, %s252
      %p259 = scmp.eq.s32.totalorder %s32, 1
      %p260 = por %p258, %p259
      %p261 = scmp.ne.s32.totalorder %s252, %s253
      %p262 = scmp.eq.s32.totalorder %s32, 0
      %p263 = por %p261, %p262
      %p264 = scmp.ne.s32.totalorder %s252, %s253
      %p265 = scmp.eq.s32.totalorder %s33, 1
      %p266 = por %p264, %p265
      %p268 = scmp.ne.s32.totalorder %s253, %s267
      %p269 = scmp.eq.s32.totalorder %s33, 0
      %p270 = por %p268, %p269
      %s272 = sadd.s32 %s271, 1
      %p275 = scmp.eq.s32.totalorder %s27, 1
      %p276 = scmp.ne.s32.totalorder %s271, %s273
      %p277 = scmp.eq.s32.totalorder %s27, 0
      %p278 = por %p276, %p277
      %p279 = scmp.ne.s32.totalorder %s271, %s273
      %p280 = scmp.eq.s32.totalorder %s32, 1
      %p281 = por %p279, %p280
      %p282 = scmp.ne.s32.totalorder %s273, %s274
      %p283 = scmp.eq.s32.totalorder %s32, 0
      %p284 = por %p282, %p283
      %p285 = scmp.ne.s32.totalorder %s273, %s274
      %p286 = scmp.eq.s32.totalorder %s33, 1
      %p287 = por %p285, %p286
      %p289 = scmp.ne.s32.totalorder %s274, %s288
      %p290 = scmp.eq.s32.totalorder %s33, 0
      %p291 = por %p289, %p290
      %s293 = sadd.s32 %s292, 1
      %p296 = scmp.eq.s32.totalorder %s27, 1
      %p297 = scmp.ne.s32.totalorder %s292, %s294
      %p298 = scmp.eq.s32.totalorder %s27, 0
      %p299 = por %p297, %p298
      %p300 = scmp.ne.s32.totalorder %s292, %s294
      %p301 = scmp.eq.s32.totalorder %s32, 1
      %p302 = por %p300, %p301
      %p303 = scmp.ne.s32.totalorder %s294, %s295
      %p304 = scmp.eq.s32.totalorder %s32, 0
      %p305 = por %p303, %p304
      %p306 = scmp.ne.s32.totalorder %s294, %s295
      %p307 = scmp.eq.s32.totalorder %s33, 1
      %p308 = por %p306, %p307
      %p310 = scmp.ne.s32.totalorder %s295, %s309
      %p311 = scmp.eq.s32.totalorder %s33, 0
      %p312 = por %p310, %p311
      %s314 = sadd.s32 %s313, 1
      %p317 = scmp.eq.s32.totalorder %s27, 1
      %p318 = scmp.ne.s32.totalorder %s313, %s315
      %p319 = scmp.eq.s32.totalorder %s27, 0
      %p320 = por %p318, %p319
      %p321 = scmp.ne.s32.totalorder %s313, %s315
      %p322 = scmp.eq.s32.totalorder %s32, 1
      %p323 = por %p321, %p322
      %p324 = scmp.ne.s32.totalorder %s315, %s316
      %p325 = scmp.eq.s32.totalorder %s32, 0
      %p326 = por %p324, %p325
      %p327 = scmp.ne.s32.totalorder %s315, %s316
      %p328 = scmp.eq.s32.totalorder %s33, 1
      %p329 = por %p327, %p328
      %p331 = scmp.ne.s32.totalorder %s316, %s330
      %p332 = scmp.eq.s32.totalorder %s33, 0
      %p333 = por %p331, %p332
      %s335 = sadd.s32 %s334, 1
      %p338 = scmp.eq.s32.totalorder %s27, 1
      %p339 = scmp.ne.s32.totalorder %s334, %s336
      %p340 = scmp.eq.s32.totalorder %s27, 0
      %p341 = por %p339, %p340
      %p342 = scmp.ne.s32.totalorder %s334, %s336
      %p343 = scmp.eq.s32.totalorder %s32, 1
      %p344 = por %p342, %p343
      %p345 = scmp.ne.s32.totalorder %s336, %s337
      %p346 = scmp.eq.s32.totalorder %s32, 0
      %p347 = por %p345, %p346
      %p348 = scmp.ne.s32.totalorder %s336, %s337
      %p349 = scmp.eq.s32.totalorder %s33, 1
      %p350 = por %p348, %p349
      %p352 = scmp.ne.s32.totalorder %s337, %s351
      %p353 = scmp.eq.s32.totalorder %s33, 0
      %p354 = por %p352, %p353
      %s356 = sadd.s32 %s355, 1
      %p359 = scmp.eq.s32.totalorder %s27, 1
      %p360 = scmp.ne.s32.totalorder %s355, %s357
      %p361 = scmp.eq.s32.totalorder %s27, 0
      %p362 = por %p360, %p361
      %p363 = scmp.ne.s32.totalorder %s355, %s357
      %p364 = scmp.eq.s32.totalorder %s32, 1
      %p365 = por %p363, %p364
      %p366 = scmp.ne.s32.totalorder %s357, %s358
      %p367 = scmp.eq.s32.totalorder %s32, 0
      %p368 = por %p366, %p367
      %p369 = scmp.ne.s32.totalorder %s357, %s358
      %p370 = scmp.eq.s32.totalorder %s33, 1
      %p371 = por %p369, %p370
      %p373 = scmp.ne.s32.totalorder %s358, %s372
      %p374 = scmp.eq.s32.totalorder %s33, 0
      %p375 = por %p373, %p374
      %s377 = sadd.s32 %s376, 1
      %p380 = scmp.eq.s32.totalorder %s27, 1
      %p381 = scmp.ne.s32.totalorder %s376, %s378
      %p382 = scmp.eq.s32.totalorder %s27, 0
      %p383 = por %p381, %p382
      %p384 = scmp.ne.s32.totalorder %s376, %s378
      %p385 = scmp.eq.s32.totalorder %s32, 1
      %p386 = por %p384, %p385
      %p387 = scmp.ne.s32.totalorder %s378, %s379
      %p388 = scmp.eq.s32.totalorder %s32, 0
      %p389 = por %p387, %p388
      %p390 = scmp.ne.s32.totalorder %s378, %s379
      %p391 = scmp.eq.s32.totalorder %s33, 1
      %p392 = por %p390, %p391
      %p394 = scmp.ne.s32.totalorder %s379, %s393
      %p395 = scmp.eq.s32.totalorder %s33, 0
      %p396 = por %p394, %p395
      %s398 = sadd.s32 %s397, 1
      %p401 = scmp.eq.s32.totalorder %s27, 1
      %p402 = scmp.ne.s32.totalorder %s397, %s399
      %p403 = scmp.eq.s32.totalorder %s27, 0
      %p404 = por %p402, %p403
      %p405 = scmp.ne.s32.totalorder %s397, %s399
      %p406 = scmp.eq.s32.totalorder %s32, 1
      %p407 = por %p405, %p406
      %p408 = scmp.ne.s32.totalorder %s399, %s400
      %p409 = scmp.eq.s32.totalorder %s32, 0
      %p410 = por %p408, %p409
      %p411 = scmp.ne.s32.totalorder %s399, %s400
      %p412 = scmp.eq.s32.totalorder %s33, 1
      %p413 = por %p411, %p412
      %p415 = scmp.ne.s32.totalorder %s400, %s414
      %p416 = scmp.eq.s32.totalorder %s33, 0
      %p417 = por %p415, %p416
      %s418 = ssub.s32 %s27, %s34
      %p419 = scmp.eq.s32.totalorder %s418, 0
      %s421 = sadd.s32 %s420, 1
      %s422 = scalar_select %p419, %s420, %s421
      %p425 = pneg %p419
      %p426 = scmp.eq.s32.totalorder %s27, 1
      %p427 = por %p425, %p426
      %p428 = scmp.ne.s32.totalorder %s420, %s423
      %p429 = scmp.eq.s32.totalorder %s27, 0
      %p430 = por %p428, %p429
      %p431 = scmp.ne.s32.totalorder %s420, %s423
      %p432 = scmp.eq.s32.totalorder %s32, 1
      %p433 = por %p431, %p432
      %p434 = scmp.ne.s32.totalorder %s423, %s424
      %p435 = scmp.eq.s32.totalorder %s32, 0
      %p436 = por %p434, %p435
      %p437 = scmp.ne.s32.totalorder %s423, %s424
      %p438 = scmp.eq.s32.totalorder %s33, 1
      %p439 = por %p437, %p438
      %p441 = scmp.ne.s32.totalorder %s424, %s440
      %p442 = scmp.eq.s32.totalorder %s33, 0
      %p443 = por %p441, %p442
      %p444 = scmp.le.s32.totalorder 1, %s27
      %p445 = scmp.lt.s32.totalorder %s27, 3
      %p446 = pnand %p444, %p445
      %p447 = pneg %p446
      // Predicated region
      $region9: #{tpu_custom_call.1} parent=5 // pred_check
        _
      $region10: #{tpu_custom_call.1} parent=5 // pred_check_branch
        %449 = sbr.rel (%p446) target = $region12
      $region11: #{tpu_custom_call.1} parent=5 // pred_region
        %s450 = ssub.s32 %s27, 1
        // Predicated region
        $region13: #{tpu_custom_call.1} parent=11 // pred_check
          %p451 = pneg %p74
        $region14: #{tpu_custom_call.1} parent=11 // pred_check_branch
          %453 = sbr.rel (%p451) target = $region16
        $region15: #{tpu_custom_call.1} parent=11 // pred_region
          _
        $region16: #{tpu_custom_call.1} parent=11 // pred_fallthru
          _
        // Predicated region
        $region17: #{tpu_custom_call.1} parent=11 // pred_check
          %p454 = pneg %p95
        $region18: #{tpu_custom_call.1} parent=11 // pred_check_branch
          %456 = sbr.rel (%p454) target = $region20
        $region19: #{tpu_custom_call.1} parent=11 // pred_region
          _
        $region20: #{tpu_custom_call.1} parent=11 // pred_fallthru
          _
        // Predicated region
        $region21: #{tpu_custom_call.1} parent=11 // pred_check
          %p457 = pneg %p116
        $region22: #{tpu_custom_call.1} parent=11 // pred_check_branch
          %459 = sbr.rel (%p457) target = $region24
        $region23: #{tpu_custom_call.1} parent=11 // pred_region
          _
        $region24: #{tpu_custom_call.1} parent=11 // pred_fallthru
          _
        // Predicated region
        $region25: #{tpu_custom_call.1} parent=11 // pred_check
          %p460 = pneg %p137
        $region26: #{tpu_custom_call.1} parent=11 // pred_check_branch
          %462 = sbr.rel (%p460) target = $region28
        $region27: #{tpu_custom_call.1} parent=11 // pred_region
          _
        $region28: #{tpu_custom_call.1} parent=11 // pred_fallthru
          _
        // Predicated region
        $region29: #{tpu_custom_call.1} parent=11 // pred_check
          %p463 = pneg %p158
        $region30: #{tpu_custom_call.1} parent=11 // pred_check_branch
          %465 = sbr.rel (%p463) target = $region32
        $region31: #{tpu_custom_call.1} parent=11 // pred_region
          _
        $region32: #{tpu_custom_call.1} parent=11 // pred_fallthru
          _
        // Predicated region
        $region33: #{tpu_custom_call.1} parent=11 // pred_check
          %p466 = pneg %p179
        $region34: #{tpu_custom_call.1} parent=11 // pred_check_branch
          %468 = sbr.rel (%p466) target = $region36
        $region35: #{tpu_custom_call.1} parent=11 // pred_region
          _
        $region36: #{tpu_custom_call.1} parent=11 // pred_fallthru
          _
        // Predicated region
        $region37: #{tpu_custom_call.1} parent=11 // pred_check
          %p469 = pneg %p200
        $region38: #{tpu_custom_call.1} parent=11 // pred_check_branch
          %471 = sbr.rel (%p469) target = $region40
        $region39: #{tpu_custom_call.1} parent=11 // pred_region
          _
        $region40: #{tpu_custom_call.1} parent=11 // pred_fallthru
          _
        // Predicated region
        $region41: #{tpu_custom_call.1} parent=11 // pred_check
          %p472 = pneg %p221
        $region42: #{tpu_custom_call.1} parent=11 // pred_check_branch
          %474 = sbr.rel (%p472) target = $region44
        $region43: #{tpu_custom_call.1} parent=11 // pred_region
          %476 = vsyncadd [#allocation5], 0
          %s477 = sshll.u32 %s8, 4
          %s478 = int_to_ptr.hbm [resolvable:$true] %s477
          %s479 = sshll.u32 [#allocation4], 4
          %s480 = int_to_ptr.vmem [resolvable:$true] %s479
          %485 = dma.hbm_to_vmem [thread:$0]  %s478, 4608, %s480, [#allocation5], 128, 128, 8
        $region44: #{tpu_custom_call.1} parent=11 // pred_fallthru
          _
        // Predicated region
        $region45: #{tpu_custom_call.1} parent=11 // pred_check
          %p486 = pneg %p242
        $region46: #{tpu_custom_call.1} parent=11 // pred_check_branch
          %488 = sbr.rel (%p486) target = $region48
        $region47: #{tpu_custom_call.1} parent=11 // pred_region
          _
        $region48: #{tpu_custom_call.1} parent=11 // pred_fallthru
          _
        // Predicated region
        $region49: #{tpu_custom_call.1} parent=11 // pred_check
          %p489 = pneg %p263
        $region50: #{tpu_custom_call.1} parent=11 // pred_check_branch
          %491 = sbr.rel (%p489) target = $region52
        $region51: #{tpu_custom_call.1} parent=11 // pred_region
          _
        $region52: #{tpu_custom_call.1} parent=11 // pred_fallthru
          _
        // Predicated region
        $region53: #{tpu_custom_call.1} parent=11 // pred_check
          %p492 = pneg %p284
        $region54: #{tpu_custom_call.1} parent=11 // pred_check_branch
          %494 = sbr.rel (%p492) target = $region56
        $region55: #{tpu_custom_call.1} parent=11 // pred_region
          _
        $region56: #{tpu_custom_call.1} parent=11 // pred_fallthru
          _
        // Predicated region
        $region57: #{tpu_custom_call.1} parent=11 // pred_check
          %p495 = pneg %p305
        $region58: #{tpu_custom_call.1} parent=11 // pred_check_branch
          %497 = sbr.rel (%p495) target = $region60
        $region59: #{tpu_custom_call.1} parent=11 // pred_region
          %499 = vsyncadd [#allocation7], 0
          %s500 = sshll.u32 %s12, 4
          %s501 = int_to_ptr.hbm [resolvable:$true] %s500
          %s502 = sshll.u32 [#allocation6], 4
          %s503 = int_to_ptr.vmem [resolvable:$true] %s502
          %508 = dma.hbm_to_vmem [thread:$0]  %s501, 4608, %s503, [#allocation7], 128, 128, 8
        $region60: #{tpu_custom_call.1} parent=11 // pred_fallthru
          _
        // Predicated region
        $region61: #{tpu_custom_call.1} parent=11 // pred_check
          %p509 = pneg %p326
        $region62: #{tpu_custom_call.1} parent=11 // pred_check_branch
          %511 = sbr.rel (%p509) target = $region64
        $region63: #{tpu_custom_call.1} parent=11 // pred_region
          _
        $region64: #{tpu_custom_call.1} parent=11 // pred_fallthru
          _
        // Predicated region
        $region65: #{tpu_custom_call.1} parent=11 // pred_check
          %p512 = pneg %p347
        $region66: #{tpu_custom_call.1} parent=11 // pred_check_branch
          %514 = sbr.rel (%p512) target = $region68
        $region67: #{tpu_custom_call.1} parent=11 // pred_region
          _
        $region68: #{tpu_custom_call.1} parent=11 // pred_fallthru
          _
        // Predicated region
        $region69: #{tpu_custom_call.1} parent=11 // pred_check
          %p515 = pneg %p368
        $region70: #{tpu_custom_call.1} parent=11 // pred_check_branch
          %517 = sbr.rel (%p515) target = $region72
        $region71: #{tpu_custom_call.1} parent=11 // pred_region
          _
        $region72: #{tpu_custom_call.1} parent=11 // pred_fallthru
          _
        // Predicated region
        $region73: #{tpu_custom_call.1} parent=11 // pred_check
          %p518 = pneg %p389
        $region74: #{tpu_custom_call.1} parent=11 // pred_check_branch
          %520 = sbr.rel (%p518) target = $region76
        $region75: #{tpu_custom_call.1} parent=11 // pred_region
          %522 = vsyncadd [#allocation7], 0
          %s523 = sshll.u32 %s16, 4
          %s524 = int_to_ptr.hbm [resolvable:$true] %s523
          %s525 = sshll.u32 [#allocation8], 4
          %s526 = int_to_ptr.vmem [resolvable:$true] %s525
          %531 = dma.hbm_to_vmem [thread:$0]  %s524, 4608, %s526, [#allocation7], 128, 128, 8
        $region76: #{tpu_custom_call.1} parent=11 // pred_fallthru
          _
        // Predicated region
        $region77: #{tpu_custom_call.1} parent=11 // pred_check
          %p532 = pneg %p410
        $region78: #{tpu_custom_call.1} parent=11 // pred_check_branch
          %534 = sbr.rel (%p532) target = $region80
        $region79: #{tpu_custom_call.1} parent=11 // pred_region
          _
        $region80: #{tpu_custom_call.1} parent=11 // pred_fallthru
          _
      $region12: #{tpu_custom_call.1} parent=5 // pred_fallthru
        _
      %p535 = scmp.lt.s32.totalorder %s27, 2
      // Predicated region
      $region81: #{tpu_custom_call.1} parent=5 // pred_check
        %p536 = pneg %p535
      $region82: #{tpu_custom_call.1} parent=5 // pred_check_branch
        %538 = sbr.rel (%p536) target = $region84
      $region83: #{tpu_custom_call.1} parent=5 // pred_region
        // Predicated region
        $region85: #{tpu_custom_call.1} parent=83 // pred_check
          %p539 = pneg %p47
        $region86: #{tpu_custom_call.1} parent=83 // pred_check_branch
          %541 = sbr.rel (%p539) target = $region88
        $region87: #{tpu_custom_call.1} parent=83 // pred_region
          %p542 = scmp.lt.s32.totalorder %s27, 1
          %s543 = scalar_select %p542, %s27, 1
          %s544 = smul.addr %s543, 32
          %s545 = smul.addr %s544, 8
          %s546 = scalar_lea.vmem %s0, %s545
        $region88: #{tpu_custom_call.1} parent=83 // pred_fallthru
          _
      $region84: #{tpu_custom_call.1} parent=5 // pred_fallthru
        _
      %p547 = scmp.le.s32.totalorder 1, %s27
      %p548 = scmp.lt.s32.totalorder %s27, 3
      %p549 = pnand %p547, %p548
      %p550 = pneg %p549
      // Predicated region
      $region89: #{tpu_custom_call.1} parent=5 // pred_check
        _
      $region90: #{tpu_custom_call.1} parent=5 // pred_check_branch
        %552 = sbr.rel (%p549) target = $region92
      $region91: #{tpu_custom_call.1} parent=5 // pred_region
        %s553 = ssub.s32 %s27, 1
        // Predicated region
        $region93: #{tpu_custom_call.1} parent=91 // pred_check
          %p554 = pneg %p221
        $region94: #{tpu_custom_call.1} parent=91 // pred_check_branch
          %556 = sbr.rel (%p554) target = $region96
        $region95: #{tpu_custom_call.1} parent=91 // pred_region
          %558 = dma.done [#allocation5], 4608
        $region96: #{tpu_custom_call.1} parent=91 // pred_fallthru
          _
        // Predicated region
        $region97: #{tpu_custom_call.1} parent=91 // pred_check
          %p559 = pneg %p305
        $region98: #{tpu_custom_call.1} parent=91 // pred_check_branch
          %561 = sbr.rel (%p559) target = $region100
        $region99: #{tpu_custom_call.1} parent=91 // pred_region
          %563 = dma.done [#allocation7], 4608
        $region100: #{tpu_custom_call.1} parent=91 // pred_fallthru
          _
        // Predicated region
        $region101: #{tpu_custom_call.1} parent=91 // pred_check
          %p564 = pneg %p389
        $region102: #{tpu_custom_call.1} parent=91 // pred_check_branch
          %566 = sbr.rel (%p564) target = $region104
        $region103: #{tpu_custom_call.1} parent=91 // pred_region
          %568 = dma.done [#allocation7], 4608
        $region104: #{tpu_custom_call.1} parent=91 // pred_fallthru
          _
        %p569 = scmp.lt.s32.totalorder %s32, 1
        %s570 = scalar_select %p569, %s32, 1
        %s571 = smul.addr %s570, 32
        %s572 = smul.addr %s571, 8
        %s573 = scalar_lea.vmem %s0, %s572
        %p574 = pneg %p53
        %p575 = pneg %p50
        %p576 = pneg %p74
        %p577 = pneg %p71
        %p578 = pneg %p95
        %p579 = pneg %p92
        %p580 = pneg %p116
        %p581 = pneg %p113
        %p582 = pneg %p137
        %p583 = pneg %p134
        %p584 = pneg %p158
        %p585 = pneg %p155
        %p586 = pneg %p179
        %p587 = pneg %p176
        %p588 = pneg %p200
        %p589 = pneg %p197
        %p590 = pneg %p221
        %p591 = pneg %p218
        %p592 = pneg %p242
        %p593 = pneg %p239
        %p594 = pneg %p263
        %p595 = pneg %p260
        %p596 = pneg %p284
        %p597 = pneg %p281
        %p598 = pneg %p305
        %p599 = pneg %p302
        %p600 = pneg %p326
        %p601 = pneg %p323
        %p602 = pneg %p347
        %p603 = pneg %p344
        %p604 = pneg %p368
        %p605 = pneg %p365
        %p606 = pneg %p389
        %p607 = pneg %p386
        %p608 = pneg %p410
        %p609 = pneg %p407
        %p610 = pneg %p436
        %p611 = pneg %p433
        %s612 = smul.u32 32, %s32
        %p613 = scmp.lt.s32.totalorder %s612, 63
        %s614 = scalar_select %p613, %s612, 63
        %s615 = smul.addr %s614, 8
        %s616 = scalar_lea.vmem %s18, %s615
        %p617 = scmp.lt.s32.totalorder %s32, 1
        %s618 = scalar_select %p617, %s32, 1
        %s619 = smul.addr %s618, 32
        %s620 = smul.addr %s619, 8
        %s621 = scalar_lea.vmem %s0, %s620
        %s622 = smul.u32 32, %s32
        %p623 = scmp.lt.s32.totalorder %s622, 63
        %s624 = scalar_select %p623, %s622, 63
        %s625 = smul.addr %s624, 8
        %s626 = scalar_lea.vmem %s18, %s625
        %s627 = smul.u32 32, %s32
        %s628 = sld [smem:[#allocation3]]
        %vm629 = vcmask 326656
        %630 = vst.msk [vmem:[#allocation2] sm:$0xff] %vm629, 0.0
        %631 = vst.msk [vmem:[#allocation2 + $0x8] sm:$0xff] %vm629, 0.0
        %vm632 = vcmask 320512
        %633 = vst.msk [vmem:[#allocation2 + $0x10] sm:$0x3] %vm632, 0.0
        %s634 = scalar_lea.vmem [#allocation2], 408
        %635 = vst.msk [vmem:[%s634] sm:$0xff] %vm629, 0.0
        %636 = vst.msk [vmem:[%s634 + $0x8] sm:$0xff] %vm629, 0.0
        %637 = vst.msk [vmem:[%s634 + $0x10] sm:$0x3] %vm632, 0.0
        %s638 = scalar_lea.vmem [#allocation2], 24
        %vm639 = vcmask 319488
        %640 = vst.msk [vmem:[%s638] sm:$0x1] %vm639, 0.0
        %641 = vst.msk [vmem:[%s638 + $0x18] sm:$0x1] %vm639, 0.0
        %642 = vst.msk [vmem:[%s638 + $0x30] sm:$0x1] %vm639, 0.0
        %643 = vst.msk [vmem:[%s638 + $0x48] sm:$0x1] %vm639, 0.0
        %644 = vst.msk [vmem:[%s638 + $0x60] sm:$0x1] %vm639, 0.0
        %645 = vst.msk [vmem:[%s638 + $0x78] sm:$0x1] %vm639, 0.0
        %646 = vst.msk [vmem:[%s638 + $0x90] sm:$0x1] %vm639, 0.0
        %647 = vst.msk [vmem:[%s638 + $0xa8] sm:$0x1] %vm639, 0.0
        %648 = vst.msk [vmem:[%s638 + $0xc0] sm:$0x1] %vm639, 0.0
        %649 = vst.msk [vmem:[%s638 + $0xd8] sm:$0x1] %vm639, 0.0
        %650 = vst.msk [vmem:[%s638 + $0xf0] sm:$0x1] %vm639, 0.0
        %651 = vst.msk [vmem:[%s638 + $0x108] sm:$0x1] %vm639, 0.0
        %652 = vst.msk [vmem:[%s638 + $0x120] sm:$0x1] %vm639, 0.0
        %653 = vst.msk [vmem:[%s638 + $0x138] sm:$0x1] %vm639, 0.0
        %654 = vst.msk [vmem:[%s638 + $0x150] sm:$0x1] %vm639, 0.0
        %655 = vst.msk [vmem:[%s638 + $0x168] sm:$0x1] %vm639, 0.0
        %656 = vst.msk [vmem:[%s638 + $0x11] sm:$0x1] %vm639, 0.0
        %657 = vst.msk [vmem:[%s638 + $0x29] sm:$0x1] %vm639, 0.0
        %658 = vst.msk [vmem:[%s638 + $0x41] sm:$0x1] %vm639, 0.0
        %659 = vst.msk [vmem:[%s638 + $0x59] sm:$0x1] %vm639, 0.0
        %660 = vst.msk [vmem:[%s638 + $0x71] sm:$0x1] %vm639, 0.0
        %661 = vst.msk [vmem:[%s638 + $0x89] sm:$0x1] %vm639, 0.0
        %662 = vst.msk [vmem:[%s638 + $0xa1] sm:$0x1] %vm639, 0.0
        %663 = vst.msk [vmem:[%s638 + $0xb9] sm:$0x1] %vm639, 0.0
        %664 = vst.msk [vmem:[%s638 + $0xd1] sm:$0x1] %vm639, 0.0
        %665 = vst.msk [vmem:[%s638 + $0xe9] sm:$0x1] %vm639, 0.0
        %666 = vst.msk [vmem:[%s638 + $0x101] sm:$0x1] %vm639, 0.0
        %667 = vst.msk [vmem:[%s638 + $0x119] sm:$0x1] %vm639, 0.0
        %668 = vst.msk [vmem:[%s638 + $0x131] sm:$0x1] %vm639, 0.0
        %669 = vst.msk [vmem:[%s638 + $0x149] sm:$0x1] %vm639, 0.0
        %670 = vst.msk [vmem:[%s638 + $0x161] sm:$0x1] %vm639, 0.0
        %671 = vst.msk [vmem:[%s638 + $0x179] sm:$0x1] %vm639, 0.0
        %v672 = vld [vmem:[%s621] sm:$0xff]
        %v673 = vld [vmem:[%s621 + $0x8] sm:$0xff]
        %v674 = vld [vmem:[%s621 + $0x10] sm:$0xff]
        %v675 = vld [vmem:[%s621 + $0x18] sm:$0xff]
        %v676 = vld [vmem:[%s621 + $0x20] sm:$0xff]
        %v677 = vld [vmem:[%s621 + $0x28] sm:$0xff]
        %v678 = vld [vmem:[%s621 + $0x30] sm:$0xff]
        %v679 = vld [vmem:[%s621 + $0x38] sm:$0xff]
        %v680 = vld [vmem:[%s621 + $0x40] sm:$0xff]
        %v681 = vld [vmem:[%s621 + $0x48] sm:$0xff]
        %v682 = vld [vmem:[%s621 + $0x50] sm:$0xff]
        %v683 = vld [vmem:[%s621 + $0x58] sm:$0xff]
        %v684 = vld [vmem:[%s621 + $0x60] sm:$0xff]
        %v685 = vld [vmem:[%s621 + $0x68] sm:$0xff]
        %v686 = vld [vmem:[%s621 + $0x70] sm:$0xff]
        %v687 = vld [vmem:[%s621 + $0x78] sm:$0xff]
        %v688 = vld [vmem:[%s621 + $0x80] sm:$0xff]
        %v689 = vld [vmem:[%s621 + $0x88] sm:$0xff]
        %v690 = vld [vmem:[%s621 + $0x90] sm:$0xff]
        %v691 = vld [vmem:[%s621 + $0x98] sm:$0xff]
        %v692 = vld [vmem:[%s621 + $0xa0] sm:$0xff]
        %v693 = vld [vmem:[%s621 + $0xa8] sm:$0xff]
        %v694 = vld [vmem:[%s621 + $0xb0] sm:$0xff]
        %v695 = vld [vmem:[%s621 + $0xb8] sm:$0xff]
        %v696 = vld [vmem:[%s621 + $0xc0] sm:$0xff]
        %v697 = vld [vmem:[%s621 + $0xc8] sm:$0xff]
        %v698 = vld [vmem:[%s621 + $0xd0] sm:$0xff]
        %v699 = vld [vmem:[%s621 + $0xd8] sm:$0xff]
        %v700 = vld [vmem:[%s621 + $0xe0] sm:$0xff]
        %v701 = vld [vmem:[%s621 + $0xe8] sm:$0xff]
        %v702 = vld [vmem:[%s621 + $0xf0] sm:$0xff]
        %v703 = vld [vmem:[%s621 + $0xf8] sm:$0xff]
        %v704 = vld [vmem:[%s2] sm:$0x1]
        %v706 = vperm.slane %v704, 0
        %v708 = vmul.f32 %v672, %v706
        %v709 = vmul.f32 %v673, %v706
        %v710 = vmul.f32 %v674, %v706
        %v711 = vmul.f32 %v675, %v706
        %v712 = vmul.f32 %v676, %v706
        %v713 = vmul.f32 %v677, %v706
        %v714 = vmul.f32 %v678, %v706
        %v715 = vmul.f32 %v679, %v706
        %v716 = vmul.f32 %v680, %v706
        %v717 = vmul.f32 %v681, %v706
        %v718 = vmul.f32 %v682, %v706
        %v719 = vmul.f32 %v683, %v706
        %v720 = vmul.f32 %v684, %v706
        %v721 = vmul.f32 %v685, %v706
        %v722 = vmul.f32 %v686, %v706
        %v723 = vmul.f32 %v687, %v706
        %v724 = vmul.f32 %v688, %v706
        %v725 = vmul.f32 %v689, %v706
        %v726 = vmul.f32 %v690, %v706
        %v727 = vmul.f32 %v691, %v706
        %v728 = vmul.f32 %v692, %v706
        %v729 = vmul.f32 %v693, %v706
        %v730 = vmul.f32 %v694, %v706
        %v731 = vmul.f32 %v695, %v706
        %v732 = vmul.f32 %v696, %v706
        %v733 = vmul.f32 %v697, %v706
        %v734 = vmul.f32 %v698, %v706
        %v735 = vmul.f32 %v699, %v706
        %v736 = vmul.f32 %v700, %v706
        %v737 = vmul.f32 %v701, %v706
        %v738 = vmul.f32 %v702, %v706
        %v739 = vmul.f32 %v703, %v706
        %v740 = vld [vmem:[%s3] sm:$0x1]
        %v742 = vperm.slane %v740, 0
        %v744 = vadd.f32 %v708, %v742
        %v745 = vadd.f32 %v709, %v742
        %v746 = vadd.f32 %v710, %v742
        %v747 = vadd.f32 %v711, %v742
        %v748 = vadd.f32 %v712, %v742
        %v749 = vadd.f32 %v713, %v742
        %v750 = vadd.f32 %v714, %v742
        %v751 = vadd.f32 %v715, %v742
        %v752 = vadd.f32 %v716, %v742
        %v753 = vadd.f32 %v717, %v742
        %v754 = vadd.f32 %v718, %v742
        %v755 = vadd.f32 %v719, %v742
        %v756 = vadd.f32 %v720, %v742
        %v757 = vadd.f32 %v721, %v742
        %v758 = vadd.f32 %v722, %v742
        %v759 = vadd.f32 %v723, %v742
        %v760 = vadd.f32 %v724, %v742
        %v761 = vadd.f32 %v725, %v742
        %v762 = vadd.f32 %v726, %v742
        %v763 = vadd.f32 %v727, %v742
        %v764 = vadd.f32 %v728, %v742
        %v765 = vadd.f32 %v729, %v742
        %v766 = vadd.f32 %v730, %v742
        %v767 = vadd.f32 %v731, %v742
        %v768 = vadd.f32 %v732, %v742
        %v769 = vadd.f32 %v733, %v742
        %v770 = vadd.f32 %v734, %v742
        %v771 = vadd.f32 %v735, %v742
        %v772 = vadd.f32 %v736, %v742
        %v773 = vadd.f32 %v737, %v742
        %v774 = vadd.f32 %v738, %v742
        %v775 = vadd.f32 %v739, %v742
        %vm776 = vcmp.gt.f32.partialorder %v744, 0.0
        %vm777 = vcmp.gt.f32.partialorder %v745, 0.0
        %vm778 = vcmp.gt.f32.partialorder %v746, 0.0
        %vm779 = vcmp.gt.f32.partialorder %v747, 0.0
        %vm780 = vcmp.gt.f32.partialorder %v748, 0.0
        %vm781 = vcmp.gt.f32.partialorder %v749, 0.0
        %vm782 = vcmp.gt.f32.partialorder %v750, 0.0
        %vm783 = vcmp.gt.f32.partialorder %v751, 0.0
        %vm784 = vcmp.gt.f32.partialorder %v752, 0.0
        %vm785 = vcmp.gt.f32.partialorder %v753, 0.0
        %vm786 = vcmp.gt.f32.partialorder %v754, 0.0
        %vm787 = vcmp.gt.f32.partialorder %v755, 0.0
        %vm788 = vcmp.gt.f32.partialorder %v756, 0.0
        %vm789 = vcmp.gt.f32.partialorder %v757, 0.0
        %vm790 = vcmp.gt.f32.partialorder %v758, 0.0
        %vm791 = vcmp.gt.f32.partialorder %v759, 0.0
        %vm792 = vcmp.gt.f32.partialorder %v760, 0.0
        %vm793 = vcmp.gt.f32.partialorder %v761, 0.0
        %vm794 = vcmp.gt.f32.partialorder %v762, 0.0
        %vm795 = vcmp.gt.f32.partialorder %v763, 0.0
        %vm796 = vcmp.gt.f32.partialorder %v764, 0.0
        %vm797 = vcmp.gt.f32.partialorder %v765, 0.0
        %vm798 = vcmp.gt.f32.partialorder %v766, 0.0
        %vm799 = vcmp.gt.f32.partialorder %v767, 0.0
        %vm800 = vcmp.gt.f32.partialorder %v768, 0.0
        %vm801 = vcmp.gt.f32.partialorder %v769, 0.0
        %vm802 = vcmp.gt.f32.partialorder %v770, 0.0
        %vm803 = vcmp.gt.f32.partialorder %v771, 0.0
        %vm804 = vcmp.gt.f32.partialorder %v772, 0.0
        %vm805 = vcmp.gt.f32.partialorder %v773, 0.0
        %vm806 = vcmp.gt.f32.partialorder %v774, 0.0
        %vm807 = vcmp.gt.f32.partialorder %v775, 0.0
        %v808 = vstv %s628
        %v809 = vmul.f32 %v808, %v744
        %v810 = vmul.f32 %v808, %v745
        %v811 = vmul.f32 %v808, %v746
        %v812 = vmul.f32 %v808, %v747
        %v813 = vmul.f32 %v808, %v748
        %v814 = vmul.f32 %v808, %v749
        %v815 = vmul.f32 %v808, %v750
        %v816 = vmul.f32 %v808, %v751
        %v817 = vmul.f32 %v808, %v752
        %v818 = vmul.f32 %v808, %v753
        %v819 = vmul.f32 %v808, %v754
        %v820 = vmul.f32 %v808, %v755
        %v821 = vmul.f32 %v808, %v756
        %v822 = vmul.f32 %v808, %v757
        %v823 = vmul.f32 %v808, %v758
        %v824 = vmul.f32 %v808, %v759
        %v825 = vmul.f32 %v808, %v760
        %v826 = vmul.f32 %v808, %v761
        %v827 = vmul.f32 %v808, %v762
        %v828 = vmul.f32 %v808, %v763
        %v829 = vmul.f32 %v808, %v764
        %v830 = vmul.f32 %v808, %v765
        %v831 = vmul.f32 %v808, %v766
        %v832 = vmul.f32 %v808, %v767
        %v833 = vmul.f32 %v808, %v768
        %v834 = vmul.f32 %v808, %v769
        %v835 = vmul.f32 %v808, %v770
        %v836 = vmul.f32 %v808, %v771
        %v837 = vmul.f32 %v808, %v772
        %v838 = vmul.f32 %v808, %v773
        %v839 = vmul.f32 %v808, %v774
        %v840 = vmul.f32 %v808, %v775
        %v841 = vsel %vm776, %v744, %v809
        %v842 = vsel %vm777, %v745, %v810
        %v843 = vsel %vm778, %v746, %v811
        %v844 = vsel %vm779, %v747, %v812
        %v845 = vsel %vm780, %v748, %v813
        %v846 = vsel %vm781, %v749, %v814
        %v847 = vsel %vm782, %v750, %v815
        %v848 = vsel %vm783, %v751, %v816
        %v849 = vsel %vm784, %v752, %v817
        %v850 = vsel %vm785, %v753, %v818
        %v851 = vsel %vm786, %v754, %v819
        %v852 = vsel %vm787, %v755, %v820
        %v853 = vsel %vm788, %v756, %v821
        %v854 = vsel %vm789, %v757, %v822
        %v855 = vsel %vm790, %v758, %v823
        %v856 = vsel %vm791, %v759, %v824
        %v857 = vsel %vm792, %v760, %v825
        %v858 = vsel %vm793, %v761, %v826
        %v859 = vsel %vm794, %v762, %v827
        %v860 = vsel %vm795, %v763, %v828
        %v861 = vsel %vm796, %v764, %v829
        %v862 = vsel %vm797, %v765, %v830
        %v863 = vsel %vm798, %v766, %v831
        %v864 = vsel %vm799, %v767, %v832
        %v865 = vsel %vm800, %v768, %v833
        %v866 = vsel %vm801, %v769, %v834
        %v867 = vsel %vm802, %v770, %v835
        %v868 = vsel %vm803, %v771, %v836
        %v869 = vsel %vm804, %v772, %v837
        %v870 = vsel %vm805, %v773, %v838
        %v871 = vsel %vm806, %v774, %v839
        %v872 = vsel %vm807, %v775, %v840
        %873 = vst.msk [vmem:[%s638 + $0x1] sm:$0xff] %vm629, %v841
        %874 = vst.msk [vmem:[%s638 + $0x9] sm:$0xff] %vm629, %v842
        %875 = vst.msk [vmem:[%s638 + $0x19] sm:$0xff] %vm629, %v843
        %876 = vst.msk [vmem:[%s638 + $0x21] sm:$0xff] %vm629, %v844
        %877 = vst.msk [vmem:[%s638 + $0x31] sm:$0xff] %vm629, %v845
        %878 = vst.msk [vmem:[%s638 + $0x39] sm:$0xff] %vm629, %v846
        %879 = vst.msk [vmem:[%s638 + $0x49] sm:$0xff] %vm629, %v847
        %880 = vst.msk [vmem:[%s638 + $0x51] sm:$0xff] %vm629, %v848
        %881 = vst.msk [vmem:[%s638 + $0x61] sm:$0xff] %vm629, %v849
        %882 = vst.msk [vmem:[%s638 + $0x69] sm:$0xff] %vm629, %v850
        %883 = vst.msk [vmem:[%s638 + $0x79] sm:$0xff] %vm629, %v851
        %884 = vst.msk [vmem:[%s638 + $0x81] sm:$0xff] %vm629, %v852
        %885 = vst.msk [vmem:[%s638 + $0x91] sm:$0xff] %vm629, %v853
        %886 = vst.msk [vmem:[%s638 + $0x99] sm:$0xff] %vm629, %v854
        %887 = vst.msk [vmem:[%s638 + $0xa9] sm:$0xff] %vm629, %v855
        %888 = vst.msk [vmem:[%s638 + $0xb1] sm:$0xff] %vm629, %v856
        %889 = vst.msk [vmem:[%s638 + $0xc1] sm:$0xff] %vm629, %v857
        %890 = vst.msk [vmem:[%s638 + $0xc9] sm:$0xff] %vm629, %v858
        %891 = vst.msk [vmem:[%s638 + $0xd9] sm:$0xff] %vm629, %v859
        %892 = vst.msk [vmem:[%s638 + $0xe1] sm:$0xff] %vm629, %v860
        %893 = vst.msk [vmem:[%s638 + $0xf1] sm:$0xff] %vm629, %v861
        %894 = vst.msk [vmem:[%s638 + $0xf9] sm:$0xff] %vm629, %v862
        %895 = vst.msk [vmem:[%s638 + $0x109] sm:$0xff] %vm629, %v863
        %896 = vst.msk [vmem:[%s638 + $0x111] sm:$0xff] %vm629, %v864
        %897 = vst.msk [vmem:[%s638 + $0x121] sm:$0xff] %vm629, %v865
        %898 = vst.msk [vmem:[%s638 + $0x129] sm:$0xff] %vm629, %v866
        %899 = vst.msk [vmem:[%s638 + $0x139] sm:$0xff] %vm629, %v867
        %900 = vst.msk [vmem:[%s638 + $0x141] sm:$0xff] %vm629, %v868
        %901 = vst.msk [vmem:[%s638 + $0x151] sm:$0xff] %vm629, %v869
        %902 = vst.msk [vmem:[%s638 + $0x159] sm:$0xff] %vm629, %v870
        %903 = vst.msk [vmem:[%s638 + $0x169] sm:$0xff] %vm629, %v871
        %904 = vst.msk [vmem:[%s638 + $0x171] sm:$0xff] %vm629, %v872
        %v905 = vld [vmem:[#allocation2] sm:$0xff]
        %v906 = vld [vmem:[#allocation2 + $0x8] sm:$0xff]
        %v907 = vld [vmem:[#allocation2 + $0x18] sm:$0xff]
        %v908 = vld [vmem:[#allocation2 + $0x20] sm:$0xff]
        %v909 = vld [vmem:[#allocation2 + $0x30] sm:$0xff]
        %v910 = vld [vmem:[#allocation2 + $0x38] sm:$0xff]
        %v911 = vld [vmem:[#allocation2 + $0x48] sm:$0xff]
        %v912 = vld [vmem:[#allocation2 + $0x50] sm:$0xff]
        %v913 = vld [vmem:[#allocation2 + $0x60] sm:$0xff]
        %v914 = vld [vmem:[#allocation2 + $0x68] sm:$0xff]
        %v915 = vld [vmem:[#allocation2 + $0x78] sm:$0xff]
        %v916 = vld [vmem:[#allocation2 + $0x80] sm:$0xff]
        %v917 = vld [vmem:[#allocation2 + $0x90] sm:$0xff]
        %v918 = vld [vmem:[#allocation2 + $0x98] sm:$0xff]
        %v919 = vld [vmem:[#allocation2 + $0xa8] sm:$0xff]
        %v920 = vld [vmem:[#allocation2 + $0xb0] sm:$0xff]
        %v921 = vld [vmem:[#allocation2 + $0xc0] sm:$0xff]
        %v922 = vld [vmem:[#allocation2 + $0xc8] sm:$0xff]
        %v923 = vld [vmem:[#allocation2 + $0xd8] sm:$0xff]
        %v924 = vld [vmem:[#allocation2 + $0xe0] sm:$0xff]
        %v925 = vld [vmem:[#allocation2 + $0xf0] sm:$0xff]
        %v926 = vld [vmem:[#allocation2 + $0xf8] sm:$0xff]
        %v927 = vld [vmem:[#allocation2 + $0x108] sm:$0xff]
        %v928 = vld [vmem:[#allocation2 + $0x110] sm:$0xff]
        %v929 = vld [vmem:[#allocation2 + $0x120] sm:$0xff]
        %v930 = vld [vmem:[#allocation2 + $0x128] sm:$0xff]
        %v931 = vld [vmem:[#allocation2 + $0x138] sm:$0xff]
        %v932 = vld [vmem:[#allocation2 + $0x140] sm:$0xff]
        %v933 = vld [vmem:[#allocation2 + $0x150] sm:$0xff]
        %v934 = vld [vmem:[#allocation2 + $0x158] sm:$0xff]
        %v935 = vld [vmem:[#allocation2 + $0x168] sm:$0xff]
        %v936 = vld [vmem:[#allocation2 + $0x170] sm:$0xff]
        %v937 = vld [vmem:[%s4] sm:$0xff]
        %v938 = vld [vmem:[%s4 + $0x8] sm:$0xff]
        %v939 = vld [vmem:[%s4 + $0x10] sm:$0xff]
        %v940 = vld [vmem:[%s4 + $0x18] sm:$0xff]
        %v941 = vld [vmem:[%s4 + $0x20] sm:$0xff]
        %v942 = vld [vmem:[#allocation2 + $0x1] sm:$0xff]
        %v943 = vld [vmem:[#allocation2 + $0x9] sm:$0xff]
        %v944 = vld [vmem:[#allocation2 + $0x19] sm:$0xff]
        %v945 = vld [vmem:[#allocation2 + $0x21] sm:$0xff]
        %v946 = vld [vmem:[#allocation2 + $0x31] sm:$0xff]
        %v947 = vld [vmem:[#allocation2 + $0x39] sm:$0xff]
        %v948 = vld [vmem:[#allocation2 + $0x49] sm:$0xff]
        %v949 = vld [vmem:[#allocation2 + $0x51] sm:$0xff]
        %v950 = vld [vmem:[#allocation2 + $0x61] sm:$0xff]
        %v951 = vld [vmem:[#allocation2 + $0x69] sm:$0xff]
        %v952 = vld [vmem:[#allocation2 + $0x79] sm:$0xff]
        %v953 = vld [vmem:[#allocation2 + $0x81] sm:$0xff]
        %v954 = vld [vmem:[#allocation2 + $0x91] sm:$0xff]
        %v955 = vld [vmem:[#allocation2 + $0x99] sm:$0xff]
        %v956 = vld [vmem:[#allocation2 + $0xa9] sm:$0xff]
        %v957 = vld [vmem:[#allocation2 + $0xb1] sm:$0xff]
        %v958 = vld [vmem:[#allocation2 + $0xc1] sm:$0xff]
        %v959 = vld [vmem:[#allocation2 + $0xc9] sm:$0xff]
        %v960 = vld [vmem:[#allocation2 + $0xd9] sm:$0xff]
        %v961 = vld [vmem:[#allocation2 + $0xe1] sm:$0xff]
        %v962 = vld [vmem:[#allocation2 + $0xf1] sm:$0xff]
        %v963 = vld [vmem:[#allocation2 + $0xf9] sm:$0xff]
        %v964 = vld [vmem:[#allocation2 + $0x109] sm:$0xff]
        %v965 = vld [vmem:[#allocation2 + $0x111] sm:$0xff]
        %v966 = vld [vmem:[#allocation2 + $0x121] sm:$0xff]
        %v967 = vld [vmem:[#allocation2 + $0x129] sm:$0xff]
        %v968 = vld [vmem:[#allocation2 + $0x139] sm:$0xff]
        %v969 = vld [vmem:[#allocation2 + $0x141] sm:$0xff]
        %v970 = vld [vmem:[#allocation2 + $0x151] sm:$0xff]
        %v971 = vld [vmem:[#allocation2 + $0x159] sm:$0xff]
        %v972 = vld [vmem:[#allocation2 + $0x169] sm:$0xff]
        %v973 = vld [vmem:[#allocation2 + $0x171] sm:$0xff]
        %s974 = scalar_lea.vmem %s4, 40
        %v975 = vld [vmem:[%s974] sm:$0xff]
        %v976 = vld [vmem:[%s974 + $0x8] sm:$0xff]
        %v977 = vld [vmem:[%s974 + $0x10] sm:$0xff]
        %v978 = vld [vmem:[%s974 + $0x18] sm:$0xff]
        %v979 = vld [vmem:[%s974 + $0x20] sm:$0xff]
        %v981 = vsel %vm629, %v942, 0
        %v984 = vsel %vm629, %v943, 0
        %v987 = vsel %vm629, %v944, 0
        %v990 = vsel %vm629, %v945, 0
        %v993 = vsel %vm629, %v946, 0
        %v996 = vsel %vm629, %v947, 0
        %v999 = vsel %vm629, %v948, 0
        %v1002 = vsel %vm629, %v949, 0
        %v1005 = vsel %vm629, %v950, 0
        %v1008 = vsel %vm629, %v951, 0
        %v1011 = vsel %vm629, %v952, 0
        %v1014 = vsel %vm629, %v953, 0
        %v1017 = vsel %vm629, %v954, 0
        %v1020 = vsel %vm629, %v955, 0
        %v1023 = vsel %vm629, %v956, 0
        %v1026 = vsel %vm629, %v957, 0
        %v1029 = vsel %vm629, %v958, 0
        %v1032 = vsel %vm629, %v959, 0
        %v1035 = vsel %vm629, %v960, 0
        %v1038 = vsel %vm629, %v961, 0
        %v1041 = vsel %vm629, %v962, 0
        %v1044 = vsel %vm629, %v963, 0
        %v1047 = vsel %vm629, %v964, 0
        %v1050 = vsel %vm629, %v965, 0
        %v1053 = vsel %vm629, %v966, 0
        %v1056 = vsel %vm629, %v967, 0
        %v1059 = vsel %vm629, %v968, 0
        %v1062 = vsel %vm629, %v969, 0
        %v1065 = vsel %vm629, %v970, 0
        %v1068 = vsel %vm629, %v971, 0
        %v1071 = vsel %vm629, %v972, 0
        %v1074 = vsel %vm629, %v973, 0
        %1076 = vmatpush.msra.mxu0 0.0
        %1077 = vmatpush.msra.mxu0 0.0
        %1078 = vmatpush.msra.mxu0 0.0
        %1079 = vmatpush.msra.mxu0 0.0
        %1080 = vmatpush.msra.mxu0 0.0
        %1081 = vmatpush.msra.mxu0 0.0
        %1082 = vmatpush.msra.mxu0 0.0
        %1083 = vmatpush.msra.mxu0 0.0
        %1084 = vmatpush.msra.mxu0 0.0
        %1085 = vmatpush.msra.mxu0 0.0
        %1086 = vmatpush.msra.mxu0 0.0
        %1087 = vmatpush.msra.mxu0 %v979
        %1088 = vmatpush.msra.mxu0 %v978
        %1089 = vmatpush.msra.mxu0 %v977
        %1090 = vmatpush.msra.mxu0 %v976
        %1091 = vmatpush.msra.mxu0 %v975
        %1092 = vmatmul.f32.gmra.mxu0 %v981
        %v1093 = vpop.f32.mrf.mxu0
        %v1094 = vadd.f32 0.0, %v1093
        %1095 = vmatmul.f32.gmra.mxu0 %v984
        %v1096 = vpop.f32.mrf.mxu0
        %v1097 = vadd.f32 0.0, %v1096
        %1098 = vmatmul.f32.gmra.mxu0 %v987
        %v1099 = vpop.f32.mrf.mxu0
        %v1100 = vadd.f32 0.0, %v1099
        %1101 = vmatmul.f32.gmra.mxu0 %v990
        %v1102 = vpop.f32.mrf.mxu0
        %v1103 = vadd.f32 0.0, %v1102
        %1104 = vmatmul.f32.gmra.mxu0 %v993
        %v1105 = vpop.f32.mrf.mxu0
        %v1106 = vadd.f32 0.0, %v1105
        %1107 = vmatmul.f32.gmra.mxu0 %v996
        %v1108 = vpop.f32.mrf.mxu0
        %v1109 = vadd.f32 0.0, %v1108
        %1110 = vmatmul.f32.gmra.mxu0 %v999
        %v1111 = vpop.f32.mrf.mxu0
        %v1112 = vadd.f32 0.0, %v1111
        %1113 = vmatmul.f32.gmra.mxu0 %v1002
        %v1114 = vpop.f32.mrf.mxu0
        %v1115 = vadd.f32 0.0, %v1114
        %1116 = vmatmul.f32.gmra.mxu0 %v1005
        %v1117 = vpop.f32.mrf.mxu0
        %v1118 = vadd.f32 0.0, %v1117
        %1119 = vmatmul.f32.gmra.mxu0 %v1008
        %v1120 = vpop.f32.mrf.mxu0
        %v1121 = vadd.f32 0.0, %v1120
        %1122 = vmatmul.f32.gmra.mxu0 %v1011
        %v1123 = vpop.f32.mrf.mxu0
        %v1124 = vadd.f32 0.0, %v1123
        %1125 = vmatmul.f32.gmra.mxu0 %v1014
        %v1126 = vpop.f32.mrf.mxu0
        %v1127 = vadd.f32 0.0, %v1126
        %1128 = vmatmul.f32.gmra.mxu0 %v1017
        %v1129 = vpop.f32.mrf.mxu0
        %v1130 = vadd.f32 0.0, %v1129
        %1131 = vmatmul.f32.gmra.mxu0 %v1020
        %v1132 = vpop.f32.mrf.mxu0
        %v1133 = vadd.f32 0.0, %v1132
        %1134 = vmatmul.f32.gmra.mxu0 %v1023
        %v1135 = vpop.f32.mrf.mxu0
        %v1136 = vadd.f32 0.0, %v1135
        %1137 = vmatmul.f32.gmra.mxu0 %v1026
        %v1138 = vpop.f32.mrf.mxu0
        %v1139 = vadd.f32 0.0, %v1138
        %1140 = vmatmul.f32.gmra.mxu0 %v1029
        %v1141 = vpop.f32.mrf.mxu0
        %v1142 = vadd.f32 0.0, %v1141
        %1143 = vmatmul.f32.gmra.mxu0 %v1032
        %v1144 = vpop.f32.mrf.mxu0
        %v1145 = vadd.f32 0.0, %v1144
        %1146 = vmatmul.f32.gmra.mxu0 %v1035
        %v1147 = vpop.f32.mrf.mxu0
        %v1148 = vadd.f32 0.0, %v1147
        %1149 = vmatmul.f32.gmra.mxu0 %v1038
        %v1150 = vpop.f32.mrf.mxu0
        %v1151 = vadd.f32 0.0, %v1150
        %1152 = vmatmul.f32.gmra.mxu0 %v1041
        %v1153 = vpop.f32.mrf.mxu0
        %v1154 = vadd.f32 0.0, %v1153
        %1155 = vmatmul.f32.gmra.mxu0 %v1044
        %v1156 = vpop.f32.mrf.mxu0
        %v1157 = vadd.f32 0.0, %v1156
        %1158 = vmatmul.f32.gmra.mxu0 %v1047
        %v1159 = vpop.f32.mrf.mxu0
        %v1160 = vadd.f32 0.0, %v1159
        %1161 = vmatmul.f32.gmra.mxu0 %v1050
        %v1162 = vpop.f32.mrf.mxu0
        %v1163 = vadd.f32 0.0, %v1162
        %1164 = vmatmul.f32.gmra.mxu0 %v1053
        %v1165 = vpop.f32.mrf.mxu0
        %v1166 = vadd.f32 0.0, %v1165
        %1167 = vmatmul.f32.gmra.mxu0 %v1056
        %v1168 = vpop.f32.mrf.mxu0
        %v1169 = vadd.f32 0.0, %v1168
        %1170 = vmatmul.f32.gmra.mxu0 %v1059
        %v1171 = vpop.f32.mrf.mxu0
        %v1172 = vadd.f32 0.0, %v1171
        %1173 = vmatmul.f32.gmra.mxu0 %v1062
        %v1174 = vpop.f32.mrf.mxu0
        %v1175 = vadd.f32 0.0, %v1174
        %1176 = vmatmul.f32.gmra.mxu0 %v1065
        %v1177 = vpop.f32.mrf.mxu0
        %v1178 = vadd.f32 0.0, %v1177
        %1179 = vmatmul.f32.gmra.mxu0 %v1068
        %v1180 = vpop.f32.mrf.mxu0
        %v1181 = vadd.f32 0.0, %v1180
        %1182 = vmatmul.f32.gmra.mxu0 %v1071
        %v1183 = vpop.f32.mrf.mxu0
        %v1184 = vadd.f32 0.0, %v1183
        %1185 = vmatmul.f32.gmra.mxu0 %v1074
        %v1186 = vpop.f32.mrf.mxu0
        %v1187 = vadd.f32 0.0, %v1186
        %1188 = vdwg.mxu0
        %v1190 = vsel %vm629, %v905, 0
        %v1193 = vsel %vm629, %v906, 0
        %v1196 = vsel %vm629, %v907, 0
        %v1199 = vsel %vm629, %v908, 0
        %v1202 = vsel %vm629, %v909, 0
        %v1205 = vsel %vm629, %v910, 0
        %v1208 = vsel %vm629, %v911, 0
        %v1211 = vsel %vm629, %v912, 0
        %v1214 = vsel %vm629, %v913, 0
        %v1217 = vsel %vm629, %v914, 0
        %v1220 = vsel %vm629, %v915, 0
        %v1223 = vsel %vm629, %v916, 0
        %v1226 = vsel %vm629, %v917, 0
        %v1229 = vsel %vm629, %v918, 0
        %v1232 = vsel %vm629, %v919, 0
        %v1235 = vsel %vm629, %v920, 0
        %v1238 = vsel %vm629, %v921, 0
        %v1241 = vsel %vm629, %v922, 0
        %v1244 = vsel %vm629, %v923, 0
        %v1247 = vsel %vm629, %v924, 0
        %v1250 = vsel %vm629, %v925, 0
        %v1253 = vsel %vm629, %v926, 0
        %v1256 = vsel %vm629, %v927, 0
        %v1259 = vsel %vm629, %v928, 0
        %v1262 = vsel %vm629, %v929, 0
        %v1265 = vsel %vm629, %v930, 0
        %v1268 = vsel %vm629, %v931, 0
        %v1271 = vsel %vm629, %v932, 0
        %v1274 = vsel %vm629, %v933, 0
        %v1277 = vsel %vm629, %v934, 0
        %v1280 = vsel %vm629, %v935, 0
        %v1283 = vsel %vm629, %v936, 0
        %1285 = vmatpush.msra.mxu0 0.0
        %1286 = vmatpush.msra.mxu0 0.0
        %1287 = vmatpush.msra.mxu0 0.0
        %1288 = vmatpush.msra.mxu0 0.0
        %1289 = vmatpush.msra.mxu0 0.0
        %1290 = vmatpush.msra.mxu0 0.0
        %1291 = vmatpush.msra.mxu0 0.0
        %1292 = vmatpush.msra.mxu0 0.0
        %1293 = vmatpush.msra.mxu0 0.0
        %1294 = vmatpush.msra.mxu0 0.0
        %1295 = vmatpush.msra.mxu0 0.0
        %1296 = vmatpush.msra.mxu0 %v941
        %1297 = vmatpush.msra.mxu0 %v940
        %1298 = vmatpush.msra.mxu0 %v939
        %1299 = vmatpush.msra.mxu0 %v938
        %1300 = vmatpush.msra.mxu0 %v937
        %1301 = vmatmul.f32.gmra.mxu0 %v1190
        %v1302 = vpop.f32.mrf.mxu0
        %v1303 = vadd.f32 %v1094, %v1302
        %1304 = vmatmul.f32.gmra.mxu0 %v1193
        %v1305 = vpop.f32.mrf.mxu0
        %v1306 = vadd.f32 %v1097, %v1305
        %1307 = vmatmul.f32.gmra.mxu0 %v1196
        %v1308 = vpop.f32.mrf.mxu0
        %v1309 = vadd.f32 %v1100, %v1308
        %1310 = vmatmul.f32.gmra.mxu0 %v1199
        %v1311 = vpop.f32.mrf.mxu0
        %v1312 = vadd.f32 %v1103, %v1311
        %1313 = vmatmul.f32.gmra.mxu0 %v1202
        %v1314 = vpop.f32.mrf.mxu0
        %v1315 = vadd.f32 %v1106, %v1314
        %1316 = vmatmul.f32.gmra.mxu0 %v1205
        %v1317 = vpop.f32.mrf.mxu0
        %v1318 = vadd.f32 %v1109, %v1317
        %1319 = vmatmul.f32.gmra.mxu0 %v1208
        %v1320 = vpop.f32.mrf.mxu0
        %v1321 = vadd.f32 %v1112, %v1320
        %1322 = vmatmul.f32.gmra.mxu0 %v1211
        %v1323 = vpop.f32.mrf.mxu0
        %v1324 = vadd.f32 %v1115, %v1323
        %1325 = vmatmul.f32.gmra.mxu0 %v1214
        %v1326 = vpop.f32.mrf.mxu0
        %v1327 = vadd.f32 %v1118, %v1326
        %1328 = vmatmul.f32.gmra.mxu0 %v1217
        %v1329 = vpop.f32.mrf.mxu0
        %v1330 = vadd.f32 %v1121, %v1329
        %1331 = vmatmul.f32.gmra.mxu0 %v1220
        %v1332 = vpop.f32.mrf.mxu0
        %v1333 = vadd.f32 %v1124, %v1332
        %1334 = vmatmul.f32.gmra.mxu0 %v1223
        %v1335 = vpop.f32.mrf.mxu0
        %v1336 = vadd.f32 %v1127, %v1335
        %1337 = vmatmul.f32.gmra.mxu0 %v1226
        %v1338 = vpop.f32.mrf.mxu0
        %v1339 = vadd.f32 %v1130, %v1338
        %1340 = vmatmul.f32.gmra.mxu0 %v1229
        %v1341 = vpop.f32.mrf.mxu0
        %v1342 = vadd.f32 %v1133, %v1341
        %1343 = vmatmul.f32.gmra.mxu0 %v1232
        %v1344 = vpop.f32.mrf.mxu0
        %v1345 = vadd.f32 %v1136, %v1344
        %1346 = vmatmul.f32.gmra.mxu0 %v1235
        %v1347 = vpop.f32.mrf.mxu0
        %v1348 = vadd.f32 %v1139, %v1347
        %1349 = vmatmul.f32.gmra.mxu0 %v1238
        %v1350 = vpop.f32.mrf.mxu0
        %v1351 = vadd.f32 %v1142, %v1350
        %1352 = vmatmul.f32.gmra.mxu0 %v1241
        %v1353 = vpop.f32.mrf.mxu0
        %v1354 = vadd.f32 %v1145, %v1353
        %1355 = vmatmul.f32.gmra.mxu0 %v1244
        %v1356 = vpop.f32.mrf.mxu0
        %v1357 = vadd.f32 %v1148, %v1356
        %1358 = vmatmul.f32.gmra.mxu0 %v1247
        %v1359 = vpop.f32.mrf.mxu0
        %v1360 = vadd.f32 %v1151, %v1359
        %1361 = vmatmul.f32.gmra.mxu0 %v1250
        %v1362 = vpop.f32.mrf.mxu0
        %v1363 = vadd.f32 %v1154, %v1362
        %1364 = vmatmul.f32.gmra.mxu0 %v1253
        %v1365 = vpop.f32.mrf.mxu0
        %v1366 = vadd.f32 %v1157, %v1365
        %1367 = vmatmul.f32.gmra.mxu0 %v1256
        %v1368 = vpop.f32.mrf.mxu0
        %v1369 = vadd.f32 %v1160, %v1368
        %1370 = vmatmul.f32.gmra.mxu0 %v1259
        %v1371 = vpop.f32.mrf.mxu0
        %v1372 = vadd.f32 %v1163, %v1371
        %1373 = vmatmul.f32.gmra.mxu0 %v1262
        %v1374 = vpop.f32.mrf.mxu0
        %v1375 = vadd.f32 %v1166, %v1374
        %1376 = vmatmul.f32.gmra.mxu0 %v1265
        %v1377 = vpop.f32.mrf.mxu0
        %v1378 = vadd.f32 %v1169, %v1377
        %1379 = vmatmul.f32.gmra.mxu0 %v1268
        %v1380 = vpop.f32.mrf.mxu0
        %v1381 = vadd.f32 %v1172, %v1380
        %1382 = vmatmul.f32.gmra.mxu0 %v1271
        %v1383 = vpop.f32.mrf.mxu0
        %v1384 = vadd.f32 %v1175, %v1383
        %1385 = vmatmul.f32.gmra.mxu0 %v1274
        %v1386 = vpop.f32.mrf.mxu0
        %v1387 = vadd.f32 %v1178, %v1386
        %1388 = vmatmul.f32.gmra.mxu0 %v1277
        %v1389 = vpop.f32.mrf.mxu0
        %v1390 = vadd.f32 %v1181, %v1389
        %1391 = vmatmul.f32.gmra.mxu0 %v1280
        %v1392 = vpop.f32.mrf.mxu0
        %v1393 = vadd.f32 %v1184, %v1392
        %1394 = vmatmul.f32.gmra.mxu0 %v1283
        %v1395 = vpop.f32.mrf.mxu0
        %v1396 = vadd.f32 %v1187, %v1395
        %1397 = vdwg.mxu0
        %v1398 = vld [vmem:[#allocation2 + $0x2] sm:$0xff]
        %v1399 = vld [vmem:[#allocation2 + $0xa] sm:$0xff]
        %v1400 = vld [vmem:[#allocation2 + $0x1a] sm:$0xff]
        %v1401 = vld [vmem:[#allocation2 + $0x22] sm:$0xff]
        %v1402 = vld [vmem:[#allocation2 + $0x32] sm:$0xff]
        %v1403 = vld [vmem:[#allocation2 + $0x3a] sm:$0xff]
        %v1404 = vld [vmem:[#allocation2 + $0x4a] sm:$0xff]
        %v1405 = vld [vmem:[#allocation2 + $0x52] sm:$0xff]
        %v1406 = vld [vmem:[#allocation2 + $0x62] sm:$0xff]
        %v1407 = vld [vmem:[#allocation2 + $0x6a] sm:$0xff]
        %v1408 = vld [vmem:[#allocation2 + $0x7a] sm:$0xff]
        %v1409 = vld [vmem:[#allocation2 + $0x82] sm:$0xff]
        %v1410 = vld [vmem:[#allocation2 + $0x92] sm:$0xff]
        %v1411 = vld [vmem:[#allocation2 + $0x9a] sm:$0xff]
        %v1412 = vld [vmem:[#allocation2 + $0xaa] sm:$0xff]
        %v1413 = vld [vmem:[#allocation2 + $0xb2] sm:$0xff]
        %v1414 = vld [vmem:[#allocation2 + $0xc2] sm:$0xff]
        %v1415 = vld [vmem:[#allocation2 + $0xca] sm:$0xff]
        %v1416 = vld [vmem:[#allocation2 + $0xda] sm:$0xff]
        %v1417 = vld [vmem:[#allocation2 + $0xe2] sm:$0xff]
        %v1418 = vld [vmem:[#allocation2 + $0xf2] sm:$0xff]
        %v1419 = vld [vmem:[#allocation2 + $0xfa] sm:$0xff]
        %v1420 = vld [vmem:[#allocation2 + $0x10a] sm:$0xff]
        %v1421 = vld [vmem:[#allocation2 + $0x112] sm:$0xff]
        %v1422 = vld [vmem:[#allocation2 + $0x122] sm:$0xff]
        %v1423 = vld [vmem:[#allocation2 + $0x12a] sm:$0xff]
        %v1424 = vld [vmem:[#allocation2 + $0x13a] sm:$0xff]
        %v1425 = vld [vmem:[#allocation2 + $0x142] sm:$0xff]
        %v1426 = vld [vmem:[#allocation2 + $0x152] sm:$0xff]
        %v1427 = vld [vmem:[#allocation2 + $0x15a] sm:$0xff]
        %v1428 = vld [vmem:[#allocation2 + $0x16a] sm:$0xff]
        %v1429 = vld [vmem:[#allocation2 + $0x172] sm:$0xff]
        %s1430 = scalar_lea.vmem %s4, 80
        %v1431 = vld [vmem:[%s1430] sm:$0xff]
        %v1432 = vld [vmem:[%s1430 + $0x8] sm:$0xff]
        %v1433 = vld [vmem:[%s1430 + $0x10] sm:$0xff]
        %v1434 = vld [vmem:[%s1430 + $0x18] sm:$0xff]
        %v1435 = vld [vmem:[%s1430 + $0x20] sm:$0xff]
        %v1437 = vsel %vm629, %v1398, 0
        %v1440 = vsel %vm629, %v1399, 0
        %v1443 = vsel %vm629, %v1400, 0
        %v1446 = vsel %vm629, %v1401, 0
        %v1449 = vsel %vm629, %v1402, 0
        %v1452 = vsel %vm629, %v1403, 0
        %v1455 = vsel %vm629, %v1404, 0
        %v1458 = vsel %vm629, %v1405, 0
        %v1461 = vsel %vm629, %v1406, 0
        %v1464 = vsel %vm629, %v1407, 0
        %v1467 = vsel %vm629, %v1408, 0
        %v1470 = vsel %vm629, %v1409, 0
        %v1473 = vsel %vm629, %v1410, 0
        %v1476 = vsel %vm629, %v1411, 0
        %v1479 = vsel %vm629, %v1412, 0
        %v1482 = vsel %vm629, %v1413, 0
        %v1485 = vsel %vm629, %v1414, 0
        %v1488 = vsel %vm629, %v1415, 0
        %v1491 = vsel %vm629, %v1416, 0
        %v1494 = vsel %vm629, %v1417, 0
        %v1497 = vsel %vm629, %v1418, 0
        %v1500 = vsel %vm629, %v1419, 0
        %v1503 = vsel %vm629, %v1420, 0
        %v1506 = vsel %vm629, %v1421, 0
        %v1509 = vsel %vm629, %v1422, 0
        %v1512 = vsel %vm629, %v1423, 0
        %v1515 = vsel %vm629, %v1424, 0
        %v1518 = vsel %vm629, %v1425, 0
        %v1521 = vsel %vm629, %v1426, 0
        %v1524 = vsel %vm629, %v1427, 0
        %v1527 = vsel %vm629, %v1428, 0
        %v1530 = vsel %vm629, %v1429, 0
        %1532 = vmatpush.msra.mxu0 0.0
        %1533 = vmatpush.msra.mxu0 0.0
        %1534 = vmatpush.msra.mxu0 0.0
        %1535 = vmatpush.msra.mxu0 0.0
        %1536 = vmatpush.msra.mxu0 0.0
        %1537 = vmatpush.msra.mxu0 0.0
        %1538 = vmatpush.msra.mxu0 0.0
        %1539 = vmatpush.msra.mxu0 0.0
        %1540 = vmatpush.msra.mxu0 0.0
        %1541 = vmatpush.msra.mxu0 0.0
        %1542 = vmatpush.msra.mxu0 0.0
        %1543 = vmatpush.msra.mxu0 %v1435
        %1544 = vmatpush.msra.mxu0 %v1434
        %1545 = vmatpush.msra.mxu0 %v1433
        %1546 = vmatpush.msra.mxu0 %v1432
        %1547 = vmatpush.msra.mxu0 %v1431
        %1548 = vmatmul.f32.gmra.mxu0 %v1437
        %v1549 = vpop.f32.mrf.mxu0
        %v1550 = vadd.f32 0.0, %v1549
        %1551 = vmatmul.f32.gmra.mxu0 %v1440
        %v1552 = vpop.f32.mrf.mxu0
        %v1553 = vadd.f32 0.0, %v1552
        %1554 = vmatmul.f32.gmra.mxu0 %v1443
        %v1555 = vpop.f32.mrf.mxu0
        %v1556 = vadd.f32 0.0, %v1555
        %1557 = vmatmul.f32.gmra.mxu0 %v1446
        %v1558 = vpop.f32.mrf.mxu0
        %v1559 = vadd.f32 0.0, %v1558
        %1560 = vmatmul.f32.gmra.mxu0 %v1449
        %v1561 = vpop.f32.mrf.mxu0
        %v1562 = vadd.f32 0.0, %v1561
        %1563 = vmatmul.f32.gmra.mxu0 %v1452
        %v1564 = vpop.f32.mrf.mxu0
        %v1565 = vadd.f32 0.0, %v1564
        %1566 = vmatmul.f32.gmra.mxu0 %v1455
        %v1567 = vpop.f32.mrf.mxu0
        %v1568 = vadd.f32 0.0, %v1567
        %1569 = vmatmul.f32.gmra.mxu0 %v1458
        %v1570 = vpop.f32.mrf.mxu0
        %v1571 = vadd.f32 0.0, %v1570
        %1572 = vmatmul.f32.gmra.mxu0 %v1461
        %v1573 = vpop.f32.mrf.mxu0
        %v1574 = vadd.f32 0.0, %v1573
        %1575 = vmatmul.f32.gmra.mxu0 %v1464
        %v1576 = vpop.f32.mrf.mxu0
        %v1577 = vadd.f32 0.0, %v1576
        %1578 = vmatmul.f32.gmra.mxu0 %v1467
        %v1579 = vpop.f32.mrf.mxu0
        %v1580 = vadd.f32 0.0, %v1579
        %1581 = vmatmul.f32.gmra.mxu0 %v1470
        %v1582 = vpop.f32.mrf.mxu0
        %v1583 = vadd.f32 0.0, %v1582
        %1584 = vmatmul.f32.gmra.mxu0 %v1473
        %v1585 = vpop.f32.mrf.mxu0
        %v1586 = vadd.f32 0.0, %v1585
        %1587 = vmatmul.f32.gmra.mxu0 %v1476
        %v1588 = vpop.f32.mrf.mxu0
        %v1589 = vadd.f32 0.0, %v1588
        %1590 = vmatmul.f32.gmra.mxu0 %v1479
        %v1591 = vpop.f32.mrf.mxu0
        %v1592 = vadd.f32 0.0, %v1591
        %1593 = vmatmul.f32.gmra.mxu0 %v1482
        %v1594 = vpop.f32.mrf.mxu0
        %v1595 = vadd.f32 0.0, %v1594
        %1596 = vmatmul.f32.gmra.mxu0 %v1485
        %v1597 = vpop.f32.mrf.mxu0
        %v1598 = vadd.f32 0.0, %v1597
        %1599 = vmatmul.f32.gmra.mxu0 %v1488
        %v1600 = vpop.f32.mrf.mxu0
        %v1601 = vadd.f32 0.0, %v1600
        %1602 = vmatmul.f32.gmra.mxu0 %v1491
        %v1603 = vpop.f32.mrf.mxu0
        %v1604 = vadd.f32 0.0, %v1603
        %1605 = vmatmul.f32.gmra.mxu0 %v1494
        %v1606 = vpop.f32.mrf.mxu0
        %v1607 = vadd.f32 0.0, %v1606
        %1608 = vmatmul.f32.gmra.mxu0 %v1497
        %v1609 = vpop.f32.mrf.mxu0
        %v1610 = vadd.f32 0.0, %v1609
        %1611 = vmatmul.f32.gmra.mxu0 %v1500
        %v1612 = vpop.f32.mrf.mxu0
        %v1613 = vadd.f32 0.0, %v1612
        %1614 = vmatmul.f32.gmra.mxu0 %v1503
        %v1615 = vpop.f32.mrf.mxu0
        %v1616 = vadd.f32 0.0, %v1615
        %1617 = vmatmul.f32.gmra.mxu0 %v1506
        %v1618 = vpop.f32.mrf.mxu0
        %v1619 = vadd.f32 0.0, %v1618
        %1620 = vmatmul.f32.gmra.mxu0 %v1509
        %v1621 = vpop.f32.mrf.mxu0
        %v1622 = vadd.f32 0.0, %v1621
        %1623 = vmatmul.f32.gmra.mxu0 %v1512
        %v1624 = vpop.f32.mrf.mxu0
        %v1625 = vadd.f32 0.0, %v1624
        %1626 = vmatmul.f32.gmra.mxu0 %v1515
        %v1627 = vpop.f32.mrf.mxu0
        %v1628 = vadd.f32 0.0, %v1627
        %1629 = vmatmul.f32.gmra.mxu0 %v1518
        %v1630 = vpop.f32.mrf.mxu0
        %v1631 = vadd.f32 0.0, %v1630
        %1632 = vmatmul.f32.gmra.mxu0 %v1521
        %v1633 = vpop.f32.mrf.mxu0
        %v1634 = vadd.f32 0.0, %v1633
        %1635 = vmatmul.f32.gmra.mxu0 %v1524
        %v1636 = vpop.f32.mrf.mxu0
        %v1637 = vadd.f32 0.0, %v1636
        %1638 = vmatmul.f32.gmra.mxu0 %v1527
        %v1639 = vpop.f32.mrf.mxu0
        %v1640 = vadd.f32 0.0, %v1639
        %1641 = vmatmul.f32.gmra.mxu0 %v1530
        %v1642 = vpop.f32.mrf.mxu0
        %v1643 = vadd.f32 0.0, %v1642
        %1644 = vdwg.mxu0
        %v1645 = vadd.f32 %v1303, %v1550
        %v1646 = vadd.f32 %v1306, %v1553
        %v1647 = vadd.f32 %v1309, %v1556
        %v1648 = vadd.f32 %v1312, %v1559
        %v1649 = vadd.f32 %v1315, %v1562
        %v1650 = vadd.f32 %v1318, %v1565
        %v1651 = vadd.f32 %v1321, %v1568
        %v1652 = vadd.f32 %v1324, %v1571
        %v1653 = vadd.f32 %v1327, %v1574
        %v1654 = vadd.f32 %v1330, %v1577
        %v1655 = vadd.f32 %v1333, %v1580
        %v1656 = vadd.f32 %v1336, %v1583
        %v1657 = vadd.f32 %v1339, %v1586
        %v1658 = vadd.f32 %v1342, %v1589
        %v1659 = vadd.f32 %v1345, %v1592
        %v1660 = vadd.f32 %v1348, %v1595
        %v1661 = vadd.f32 %v1351, %v1598
        %v1662 = vadd.f32 %v1354, %v1601
        %v1663 = vadd.f32 %v1357, %v1604
        %v1664 = vadd.f32 %v1360, %v1607
        %v1665 = vadd.f32 %v1363, %v1610
        %v1666 = vadd.f32 %v1366, %v1613
        %v1667 = vadd.f32 %v1369, %v1616
        %v1668 = vadd.f32 %v1372, %v1619
        %v1669 = vadd.f32 %v1375, %v1622
        %v1670 = vadd.f32 %v1378, %v1625
        %v1671 = vadd.f32 %v1381, %v1628
        %v1672 = vadd.f32 %v1384, %v1631
        %v1673 = vadd.f32 %v1387, %v1634
        %v1674 = vadd.f32 %v1390, %v1637
        %v1675 = vadd.f32 %v1393, %v1640
        %v1676 = vadd.f32 %v1396, %v1643
        %v1677 = vld [vmem:[%s638] sm:$0xff]
        %v1678 = vld [vmem:[%s638 + $0x8] sm:$0xff]
        %v1679 = vld [vmem:[%s638 + $0x18] sm:$0xff]
        %v1680 = vld [vmem:[%s638 + $0x20] sm:$0xff]
        %v1681 = vld [vmem:[%s638 + $0x30] sm:$0xff]
        %v1682 = vld [vmem:[%s638 + $0x38] sm:$0xff]
        %v1683 = vld [vmem:[%s638 + $0x48] sm:$0xff]
        %v1684 = vld [vmem:[%s638 + $0x50] sm:$0xff]
        %v1685 = vld [vmem:[%s638 + $0x60] sm:$0xff]
        %v1686 = vld [vmem:[%s638 + $0x68] sm:$0xff]
        %v1687 = vld [vmem:[%s638 + $0x78] sm:$0xff]
        %v1688 = vld [vmem:[%s638 + $0x80] sm:$0xff]
        %v1689 = vld [vmem:[%s638 + $0x90] sm:$0xff]
        %v1690 = vld [vmem:[%s638 + $0x98] sm:$0xff]
        %v1691 = vld [vmem:[%s638 + $0xa8] sm:$0xff]
        %v1692 = vld [vmem:[%s638 + $0xb0] sm:$0xff]
        %v1693 = vld [vmem:[%s638 + $0xc0] sm:$0xff]
        %v1694 = vld [vmem:[%s638 + $0xc8] sm:$0xff]
        %v1695 = vld [vmem:[%s638 + $0xd8] sm:$0xff]
        %v1696 = vld [vmem:[%s638 + $0xe0] sm:$0xff]
        %v1697 = vld [vmem:[%s638 + $0xf0] sm:$0xff]
        %v1698 = vld [vmem:[%s638 + $0xf8] sm:$0xff]
        %v1699 = vld [vmem:[%s638 + $0x108] sm:$0xff]
        %v1700 = vld [vmem:[%s638 + $0x110] sm:$0xff]
        %v1701 = vld [vmem:[%s638 + $0x120] sm:$0xff]
        %v1702 = vld [vmem:[%s638 + $0x128] sm:$0xff]
        %v1703 = vld [vmem:[%s638 + $0x138] sm:$0xff]
        %v1704 = vld [vmem:[%s638 + $0x140] sm:$0xff]
        %v1705 = vld [vmem:[%s638 + $0x150] sm:$0xff]
        %v1706 = vld [vmem:[%s638 + $0x158] sm:$0xff]
        %v1707 = vld [vmem:[%s638 + $0x168] sm:$0xff]
        %v1708 = vld [vmem:[%s638 + $0x170] sm:$0xff]
        %s1709 = scalar_lea.vmem %s4, 120
        %v1710 = vld [vmem:[%s1709] sm:$0xff]
        %v1711 = vld [vmem:[%s1709 + $0x8] sm:$0xff]
        %v1712 = vld [vmem:[%s1709 + $0x10] sm:$0xff]
        %v1713 = vld [vmem:[%s1709 + $0x18] sm:$0xff]
        %v1714 = vld [vmem:[%s1709 + $0x20] sm:$0xff]
        %v1716 = vsel %vm629, %v1677, 0
        %v1719 = vsel %vm629, %v1678, 0
        %v1722 = vsel %vm629, %v1679, 0
        %v1725 = vsel %vm629, %v1680, 0
        %v1728 = vsel %vm629, %v1681, 0
        %v1731 = vsel %vm629, %v1682, 0
        %v1734 = vsel %vm629, %v1683, 0
        %v1737 = vsel %vm629, %v1684, 0
        %v1740 = vsel %vm629, %v1685, 0
        %v1743 = vsel %vm629, %v1686, 0
        %v1746 = vsel %vm629, %v1687, 0
        %v1749 = vsel %vm629, %v1688, 0
        %v1752 = vsel %vm629, %v1689, 0
        %v1755 = vsel %vm629, %v1690, 0
        %v1758 = vsel %vm629, %v1691, 0
        %v1761 = vsel %vm629, %v1692, 0
        %v1764 = vsel %vm629, %v1693, 0
        %v1767 = vsel %vm629, %v1694, 0
        %v1770 = vsel %vm629, %v1695, 0
        %v1773 = vsel %vm629, %v1696, 0
        %v1776 = vsel %vm629, %v1697, 0
        %v1779 = vsel %vm629, %v1698, 0
        %v1782 = vsel %vm629, %v1699, 0
        %v1785 = vsel %vm629, %v1700, 0
        %v1788 = vsel %vm629, %v1701, 0
        %v1791 = vsel %vm629, %v1702, 0
        %v1794 = vsel %vm629, %v1703, 0
        %v1797 = vsel %vm629, %v1704, 0
        %v1800 = vsel %vm629, %v1705, 0
        %v1803 = vsel %vm629, %v1706, 0
        %v1806 = vsel %vm629, %v1707, 0
        %v1809 = vsel %vm629, %v1708, 0
        %1811 = vmatpush.msra.mxu0 0.0
        %1812 = vmatpush.msra.mxu0 0.0
        %1813 = vmatpush.msra.mxu0 0.0
        %1814 = vmatpush.msra.mxu0 0.0
        %1815 = vmatpush.msra.mxu0 0.0
        %1816 = vmatpush.msra.mxu0 0.0
        %1817 = vmatpush.msra.mxu0 0.0
        %1818 = vmatpush.msra.mxu0 0.0
        %1819 = vmatpush.msra.mxu0 0.0
        %1820 = vmatpush.msra.mxu0 0.0
        %1821 = vmatpush.msra.mxu0 0.0
        %1822 = vmatpush.msra.mxu0 %v1714
        %1823 = vmatpush.msra.mxu0 %v1713
        %1824 = vmatpush.msra.mxu0 %v1712
        %1825 = vmatpush.msra.mxu0 %v1711
        %1826 = vmatpush.msra.mxu0 %v1710
        %1827 = vmatmul.f32.gmra.mxu0 %v1716
        %v1828 = vpop.f32.mrf.mxu0
        %v1829 = vadd.f32 0.0, %v1828
        %1830 = vmatmul.f32.gmra.mxu0 %v1719
        %v1831 = vpop.f32.mrf.mxu0
        %v1832 = vadd.f32 0.0, %v1831
        %1833 = vmatmul.f32.gmra.mxu0 %v1722
        %v1834 = vpop.f32.mrf.mxu0
        %v1835 = vadd.f32 0.0, %v1834
        %1836 = vmatmul.f32.gmra.mxu0 %v1725
        %v1837 = vpop.f32.mrf.mxu0
        %v1838 = vadd.f32 0.0, %v1837
        %1839 = vmatmul.f32.gmra.mxu0 %v1728
        %v1840 = vpop.f32.mrf.mxu0
        %v1841 = vadd.f32 0.0, %v1840
        %1842 = vmatmul.f32.gmra.mxu0 %v1731
        %v1843 = vpop.f32.mrf.mxu0
        %v1844 = vadd.f32 0.0, %v1843
        %1845 = vmatmul.f32.gmra.mxu0 %v1734
        %v1846 = vpop.f32.mrf.mxu0
        %v1847 = vadd.f32 0.0, %v1846
        %1848 = vmatmul.f32.gmra.mxu0 %v1737
        %v1849 = vpop.f32.mrf.mxu0
        %v1850 = vadd.f32 0.0, %v1849
        %1851 = vmatmul.f32.gmra.mxu0 %v1740
        %v1852 = vpop.f32.mrf.mxu0
        %v1853 = vadd.f32 0.0, %v1852
        %1854 = vmatmul.f32.gmra.mxu0 %v1743
        %v1855 = vpop.f32.mrf.mxu0
        %v1856 = vadd.f32 0.0, %v1855
        %1857 = vmatmul.f32.gmra.mxu0 %v1746
        %v1858 = vpop.f32.mrf.mxu0
        %v1859 = vadd.f32 0.0, %v1858
        %1860 = vmatmul.f32.gmra.mxu0 %v1749
        %v1861 = vpop.f32.mrf.mxu0
        %v1862 = vadd.f32 0.0, %v1861
        %1863 = vmatmul.f32.gmra.mxu0 %v1752
        %v1864 = vpop.f32.mrf.mxu0
        %v1865 = vadd.f32 0.0, %v1864
        %1866 = vmatmul.f32.gmra.mxu0 %v1755
        %v1867 = vpop.f32.mrf.mxu0
        %v1868 = vadd.f32 0.0, %v1867
        %1869 = vmatmul.f32.gmra.mxu0 %v1758
        %v1870 = vpop.f32.mrf.mxu0
        %v1871 = vadd.f32 0.0, %v1870
        %1872 = vmatmul.f32.gmra.mxu0 %v1761
        %v1873 = vpop.f32.mrf.mxu0
        %v1874 = vadd.f32 0.0, %v1873
        %1875 = vmatmul.f32.gmra.mxu0 %v1764
        %v1876 = vpop.f32.mrf.mxu0
        %v1877 = vadd.f32 0.0, %v1876
        %1878 = vmatmul.f32.gmra.mxu0 %v1767
        %v1879 = vpop.f32.mrf.mxu0
        %v1880 = vadd.f32 0.0, %v1879
        %1881 = vmatmul.f32.gmra.mxu0 %v1770
        %v1882 = vpop.f32.mrf.mxu0
        %v1883 = vadd.f32 0.0, %v1882
        %1884 = vmatmul.f32.gmra.mxu0 %v1773
        %v1885 = vpop.f32.mrf.mxu0
        %v1886 = vadd.f32 0.0, %v1885
        %1887 = vmatmul.f32.gmra.mxu0 %v1776
        %v1888 = vpop.f32.mrf.mxu0
        %v1889 = vadd.f32 0.0, %v1888
        %1890 = vmatmul.f32.gmra.mxu0 %v1779
        %v1891 = vpop.f32.mrf.mxu0
        %v1892 = vadd.f32 0.0, %v1891
        %1893 = vmatmul.f32.gmra.mxu0 %v1782
        %v1894 = vpop.f32.mrf.mxu0
        %v1895 = vadd.f32 0.0, %v1894
        %1896 = vmatmul.f32.gmra.mxu0 %v1785
        %v1897 = vpop.f32.mrf.mxu0
        %v1898 = vadd.f32 0.0, %v1897
        %1899 = vmatmul.f32.gmra.mxu0 %v1788
        %v1900 = vpop.f32.mrf.mxu0
        %v1901 = vadd.f32 0.0, %v1900
        %1902 = vmatmul.f32.gmra.mxu0 %v1791
        %v1903 = vpop.f32.mrf.mxu0
        %v1904 = vadd.f32 0.0, %v1903
        %1905 = vmatmul.f32.gmra.mxu0 %v1794
        %v1906 = vpop.f32.mrf.mxu0
        %v1907 = vadd.f32 0.0, %v1906
        %1908 = vmatmul.f32.gmra.mxu0 %v1797
        %v1909 = vpop.f32.mrf.mxu0
        %v1910 = vadd.f32 0.0, %v1909
        %1911 = vmatmul.f32.gmra.mxu0 %v1800
        %v1912 = vpop.f32.mrf.mxu0
        %v1913 = vadd.f32 0.0, %v1912
        %1914 = vmatmul.f32.gmra.mxu0 %v1803
        %v1915 = vpop.f32.mrf.mxu0
        %v1916 = vadd.f32 0.0, %v1915
        %1917 = vmatmul.f32.gmra.mxu0 %v1806
        %v1918 = vpop.f32.mrf.mxu0
        %v1919 = vadd.f32 0.0, %v1918
        %1920 = vmatmul.f32.gmra.mxu0 %v1809
        %v1921 = vpop.f32.mrf.mxu0
        %v1922 = vadd.f32 0.0, %v1921
        %1923 = vdwg.mxu0
        %v1924 = vadd.f32 %v1645, %v1829
        %v1925 = vadd.f32 %v1646, %v1832
        %v1926 = vadd.f32 %v1647, %v1835
        %v1927 = vadd.f32 %v1648, %v1838
        %v1928 = vadd.f32 %v1649, %v1841
        %v1929 = vadd.f32 %v1650, %v1844
        %v1930 = vadd.f32 %v1651, %v1847
        %v1931 = vadd.f32 %v1652, %v1850
        %v1932 = vadd.f32 %v1653, %v1853
        %v1933 = vadd.f32 %v1654, %v1856
        %v1934 = vadd.f32 %v1655, %v1859
        %v1935 = vadd.f32 %v1656, %v1862
        %v1936 = vadd.f32 %v1657, %v1865
        %v1937 = vadd.f32 %v1658, %v1868
        %v1938 = vadd.f32 %v1659, %v1871
        %v1939 = vadd.f32 %v1660, %v1874
        %v1940 = vadd.f32 %v1661, %v1877
        %v1941 = vadd.f32 %v1662, %v1880
        %v1942 = vadd.f32 %v1663, %v1883
        %v1943 = vadd.f32 %v1664, %v1886
        %v1944 = vadd.f32 %v1665, %v1889
        %v1945 = vadd.f32 %v1666, %v1892
        %v1946 = vadd.f32 %v1667, %v1895
        %v1947 = vadd.f32 %v1668, %v1898
        %v1948 = vadd.f32 %v1669, %v1901
        %v1949 = vadd.f32 %v1670, %v1904
        %v1950 = vadd.f32 %v1671, %v1907
        %v1951 = vadd.f32 %v1672, %v1910
        %v1952 = vadd.f32 %v1673, %v1913
        %v1953 = vadd.f32 %v1674, %v1916
        %v1954 = vadd.f32 %v1675, %v1919
        %v1955 = vadd.f32 %v1676, %v1922
        %v1956 = vld [vmem:[%s638 + $0x1] sm:$0xff]
        %v1957 = vld [vmem:[%s638 + $0x9] sm:$0xff]
        %v1958 = vld [vmem:[%s638 + $0x19] sm:$0xff]
        %v1959 = vld [vmem:[%s638 + $0x21] sm:$0xff]
        %v1960 = vld [vmem:[%s638 + $0x31] sm:$0xff]
        %v1961 = vld [vmem:[%s638 + $0x39] sm:$0xff]
        %v1962 = vld [vmem:[%s638 + $0x49] sm:$0xff]
        %v1963 = vld [vmem:[%s638 + $0x51] sm:$0xff]
        %v1964 = vld [vmem:[%s638 + $0x61] sm:$0xff]
        %v1965 = vld [vmem:[%s638 + $0x69] sm:$0xff]
        %v1966 = vld [vmem:[%s638 + $0x79] sm:$0xff]
        %v1967 = vld [vmem:[%s638 + $0x81] sm:$0xff]
        %v1968 = vld [vmem:[%s638 + $0x91] sm:$0xff]
        %v1969 = vld [vmem:[%s638 + $0x99] sm:$0xff]
        %v1970 = vld [vmem:[%s638 + $0xa9] sm:$0xff]
        %v1971 = vld [vmem:[%s638 + $0xb1] sm:$0xff]
        %v1972 = vld [vmem:[%s638 + $0xc1] sm:$0xff]
        %v1973 = vld [vmem:[%s638 + $0xc9] sm:$0xff]
        %v1974 = vld [vmem:[%s638 + $0xd9] sm:$0xff]
        %v1975 = vld [vmem:[%s638 + $0xe1] sm:$0xff]
        %v1976 = vld [vmem:[%s638 + $0xf1] sm:$0xff]
        %v1977 = vld [vmem:[%s638 + $0xf9] sm:$0xff]
        %v1978 = vld [vmem:[%s638 + $0x109] sm:$0xff]
        %v1979 = vld [vmem:[%s638 + $0x111] sm:$0xff]
        %v1980 = vld [vmem:[%s638 + $0x121] sm:$0xff]
        %v1981 = vld [vmem:[%s638 + $0x129] sm:$0xff]
        %v1982 = vld [vmem:[%s638 + $0x139] sm:$0xff]
        %v1983 = vld [vmem:[%s638 + $0x141] sm:$0xff]
        %v1984 = vld [vmem:[%s638 + $0x151] sm:$0xff]
        %v1985 = vld [vmem:[%s638 + $0x159] sm:$0xff]
        %v1986 = vld [vmem:[%s638 + $0x169] sm:$0xff]
        %v1987 = vld [vmem:[%s638 + $0x171] sm:$0xff]
        %s1988 = scalar_lea.vmem %s4, 160
        %v1989 = vld [vmem:[%s1988] sm:$0xff]
        %v1990 = vld [vmem:[%s1988 + $0x8] sm:$0xff]
        %v1991 = vld [vmem:[%s1988 + $0x10] sm:$0xff]
        %v1992 = vld [vmem:[%s1988 + $0x18] sm:$0xff]
        %v1993 = vld [vmem:[%s1988 + $0x20] sm:$0xff]
        %v1995 = vsel %vm629, %v1956, 0
        %v1998 = vsel %vm629, %v1957, 0
        %v2001 = vsel %vm629, %v1958, 0
        %v2004 = vsel %vm629, %v1959, 0
        %v2007 = vsel %vm629, %v1960, 0
        %v2010 = vsel %vm629, %v1961, 0
        %v2013 = vsel %vm629, %v1962, 0
        %v2016 = vsel %vm629, %v1963, 0
        %v2019 = vsel %vm629, %v1964, 0
        %v2022 = vsel %vm629, %v1965, 0
        %v2025 = vsel %vm629, %v1966, 0
        %v2028 = vsel %vm629, %v1967, 0
        %v2031 = vsel %vm629, %v1968, 0
        %v2034 = vsel %vm629, %v1969, 0
        %v2037 = vsel %vm629, %v1970, 0
        %v2040 = vsel %vm629, %v1971, 0
        %v2043 = vsel %vm629, %v1972, 0
        %v2046 = vsel %vm629, %v1973, 0
        %v2049 = vsel %vm629, %v1974, 0
        %v2052 = vsel %vm629, %v1975, 0
        %v2055 = vsel %vm629, %v1976, 0
        %v2058 = vsel %vm629, %v1977, 0
        %v2061 = vsel %vm629, %v1978, 0
        %v2064 = vsel %vm629, %v1979, 0
        %v2067 = vsel %vm629, %v1980, 0
        %v2070 = vsel %vm629, %v1981, 0
        %v2073 = vsel %vm629, %v1982, 0
        %v2076 = vsel %vm629, %v1983, 0
        %v2079 = vsel %vm629, %v1984, 0
        %v2082 = vsel %vm629, %v1985, 0
        %v2085 = vsel %vm629, %v1986, 0
        %v2088 = vsel %vm629, %v1987, 0
        %2090 = vmatpush.msra.mxu0 0.0
        %2091 = vmatpush.msra.mxu0 0.0
        %2092 = vmatpush.msra.mxu0 0.0
        %2093 = vmatpush.msra.mxu0 0.0
        %2094 = vmatpush.msra.mxu0 0.0
        %2095 = vmatpush.msra.mxu0 0.0
        %2096 = vmatpush.msra.mxu0 0.0
        %2097 = vmatpush.msra.mxu0 0.0
        %2098 = vmatpush.msra.mxu0 0.0
        %2099 = vmatpush.msra.mxu0 0.0
        %2100 = vmatpush.msra.mxu0 0.0
        %2101 = vmatpush.msra.mxu0 %v1993
        %2102 = vmatpush.msra.mxu0 %v1992
        %2103 = vmatpush.msra.mxu0 %v1991
        %2104 = vmatpush.msra.mxu0 %v1990
        %2105 = vmatpush.msra.mxu0 %v1989
        %2106 = vmatmul.f32.gmra.mxu0 %v1995
        %v2107 = vpop.f32.mrf.mxu0
        %v2108 = vadd.f32 0.0, %v2107
        %2109 = vmatmul.f32.gmra.mxu0 %v1998
        %v2110 = vpop.f32.mrf.mxu0
        %v2111 = vadd.f32 0.0, %v2110
        %2112 = vmatmul.f32.gmra.mxu0 %v2001
        %v2113 = vpop.f32.mrf.mxu0
        %v2114 = vadd.f32 0.0, %v2113
        %2115 = vmatmul.f32.gmra.mxu0 %v2004
        %v2116 = vpop.f32.mrf.mxu0
        %v2117 = vadd.f32 0.0, %v2116
        %2118 = vmatmul.f32.gmra.mxu0 %v2007
        %v2119 = vpop.f32.mrf.mxu0
        %v2120 = vadd.f32 0.0, %v2119
        %2121 = vmatmul.f32.gmra.mxu0 %v2010
        %v2122 = vpop.f32.mrf.mxu0
        %v2123 = vadd.f32 0.0, %v2122
        %2124 = vmatmul.f32.gmra.mxu0 %v2013
        %v2125 = vpop.f32.mrf.mxu0
        %v2126 = vadd.f32 0.0, %v2125
        %2127 = vmatmul.f32.gmra.mxu0 %v2016
        %v2128 = vpop.f32.mrf.mxu0
        %v2129 = vadd.f32 0.0, %v2128
        %2130 = vmatmul.f32.gmra.mxu0 %v2019
        %v2131 = vpop.f32.mrf.mxu0
        %v2132 = vadd.f32 0.0, %v2131
        %2133 = vmatmul.f32.gmra.mxu0 %v2022
        %v2134 = vpop.f32.mrf.mxu0
        %v2135 = vadd.f32 0.0, %v2134
        %2136 = vmatmul.f32.gmra.mxu0 %v2025
        %v2137 = vpop.f32.mrf.mxu0
        %v2138 = vadd.f32 0.0, %v2137
        %2139 = vmatmul.f32.gmra.mxu0 %v2028
        %v2140 = vpop.f32.mrf.mxu0
        %v2141 = vadd.f32 0.0, %v2140
        %2142 = vmatmul.f32.gmra.mxu0 %v2031
        %v2143 = vpop.f32.mrf.mxu0
        %v2144 = vadd.f32 0.0, %v2143
        %2145 = vmatmul.f32.gmra.mxu0 %v2034
        %v2146 = vpop.f32.mrf.mxu0
        %v2147 = vadd.f32 0.0, %v2146
        %2148 = vmatmul.f32.gmra.mxu0 %v2037
        %v2149 = vpop.f32.mrf.mxu0
        %v2150 = vadd.f32 0.0, %v2149
        %2151 = vmatmul.f32.gmra.mxu0 %v2040
        %v2152 = vpop.f32.mrf.mxu0
        %v2153 = vadd.f32 0.0, %v2152
        %2154 = vmatmul.f32.gmra.mxu0 %v2043
        %v2155 = vpop.f32.mrf.mxu0
        %v2156 = vadd.f32 0.0, %v2155
        %2157 = vmatmul.f32.gmra.mxu0 %v2046
        %v2158 = vpop.f32.mrf.mxu0
        %v2159 = vadd.f32 0.0, %v2158
        %2160 = vmatmul.f32.gmra.mxu0 %v2049
        %v2161 = vpop.f32.mrf.mxu0
        %v2162 = vadd.f32 0.0, %v2161
        %2163 = vmatmul.f32.gmra.mxu0 %v2052
        %v2164 = vpop.f32.mrf.mxu0
        %v2165 = vadd.f32 0.0, %v2164
        %2166 = vmatmul.f32.gmra.mxu0 %v2055
        %v2167 = vpop.f32.mrf.mxu0
        %v2168 = vadd.f32 0.0, %v2167
        %2169 = vmatmul.f32.gmra.mxu0 %v2058
        %v2170 = vpop.f32.mrf.mxu0
        %v2171 = vadd.f32 0.0, %v2170
        %2172 = vmatmul.f32.gmra.mxu0 %v2061
        %v2173 = vpop.f32.mrf.mxu0
        %v2174 = vadd.f32 0.0, %v2173
        %2175 = vmatmul.f32.gmra.mxu0 %v2064
        %v2176 = vpop.f32.mrf.mxu0
        %v2177 = vadd.f32 0.0, %v2176
        %2178 = vmatmul.f32.gmra.mxu0 %v2067
        %v2179 = vpop.f32.mrf.mxu0
        %v2180 = vadd.f32 0.0, %v2179
        %2181 = vmatmul.f32.gmra.mxu0 %v2070
        %v2182 = vpop.f32.mrf.mxu0
        %v2183 = vadd.f32 0.0, %v2182
        %2184 = vmatmul.f32.gmra.mxu0 %v2073
        %v2185 = vpop.f32.mrf.mxu0
        %v2186 = vadd.f32 0.0, %v2185
        %2187 = vmatmul.f32.gmra.mxu0 %v2076
        %v2188 = vpop.f32.mrf.mxu0
        %v2189 = vadd.f32 0.0, %v2188
        %2190 = vmatmul.f32.gmra.mxu0 %v2079
        %v2191 = vpop.f32.mrf.mxu0
        %v2192 = vadd.f32 0.0, %v2191
        %2193 = vmatmul.f32.gmra.mxu0 %v2082
        %v2194 = vpop.f32.mrf.mxu0
        %v2195 = vadd.f32 0.0, %v2194
        %2196 = vmatmul.f32.gmra.mxu0 %v2085
        %v2197 = vpop.f32.mrf.mxu0
        %v2198 = vadd.f32 0.0, %v2197
        %2199 = vmatmul.f32.gmra.mxu0 %v2088
        %v2200 = vpop.f32.mrf.mxu0
        %v2201 = vadd.f32 0.0, %v2200
        %2202 = vdwg.mxu0
        %v2203 = vadd.f32 %v1924, %v2108
        %v2204 = vadd.f32 %v1925, %v2111
        %v2205 = vadd.f32 %v1926, %v2114
        %v2206 = vadd.f32 %v1927, %v2117
        %v2207 = vadd.f32 %v1928, %v2120
        %v2208 = vadd.f32 %v1929, %v2123
        %v2209 = vadd.f32 %v1930, %v2126
        %v2210 = vadd.f32 %v1931, %v2129
        %v2211 = vadd.f32 %v1932, %v2132
        %v2212 = vadd.f32 %v1933, %v2135
        %v2213 = vadd.f32 %v1934, %v2138
        %v2214 = vadd.f32 %v1935, %v2141
        %v2215 = vadd.f32 %v1936, %v2144
        %v2216 = vadd.f32 %v1937, %v2147
        %v2217 = vadd.f32 %v1938, %v2150
        %v2218 = vadd.f32 %v1939, %v2153
        %v2219 = vadd.f32 %v1940, %v2156
        %v2220 = vadd.f32 %v1941, %v2159
        %v2221 = vadd.f32 %v1942, %v2162
        %v2222 = vadd.f32 %v1943, %v2165
        %v2223 = vadd.f32 %v1944, %v2168
        %v2224 = vadd.f32 %v1945, %v2171
        %v2225 = vadd.f32 %v1946, %v2174
        %v2226 = vadd.f32 %v1947, %v2177
        %v2227 = vadd.f32 %v1948, %v2180
        %v2228 = vadd.f32 %v1949, %v2183
        %v2229 = vadd.f32 %v1950, %v2186
        %v2230 = vadd.f32 %v1951, %v2189
        %v2231 = vadd.f32 %v1952, %v2192
        %v2232 = vadd.f32 %v1953, %v2195
        %v2233 = vadd.f32 %v1954, %v2198
        %v2234 = vadd.f32 %v1955, %v2201
        %v2235 = vld [vmem:[%s638 + $0x2] sm:$0xff]
        %v2236 = vld [vmem:[%s638 + $0xa] sm:$0xff]
        %v2237 = vld [vmem:[%s638 + $0x1a] sm:$0xff]
        %v2238 = vld [vmem:[%s638 + $0x22] sm:$0xff]
        %v2239 = vld [vmem:[%s638 + $0x32] sm:$0xff]
        %v2240 = vld [vmem:[%s638 + $0x3a] sm:$0xff]
        %v2241 = vld [vmem:[%s638 + $0x4a] sm:$0xff]
        %v2242 = vld [vmem:[%s638 + $0x52] sm:$0xff]
        %v2243 = vld [vmem:[%s638 + $0x62] sm:$0xff]
        %v2244 = vld [vmem:[%s638 + $0x6a] sm:$0xff]
        %v2245 = vld [vmem:[%s638 + $0x7a] sm:$0xff]
        %v2246 = vld [vmem:[%s638 + $0x82] sm:$0xff]
        %v2247 = vld [vmem:[%s638 + $0x92] sm:$0xff]
        %v2248 = vld [vmem:[%s638 + $0x9a] sm:$0xff]
        %v2249 = vld [vmem:[%s638 + $0xaa] sm:$0xff]
        %v2250 = vld [vmem:[%s638 + $0xb2] sm:$0xff]
        %v2251 = vld [vmem:[%s638 + $0xc2] sm:$0xff]
        %v2252 = vld [vmem:[%s638 + $0xca] sm:$0xff]
        %v2253 = vld [vmem:[%s638 + $0xda] sm:$0xff]
        %v2254 = vld [vmem:[%s638 + $0xe2] sm:$0xff]
        %v2255 = vld [vmem:[%s638 + $0xf2] sm:$0xff]
        %v2256 = vld [vmem:[%s638 + $0xfa] sm:$0xff]
        %v2257 = vld [vmem:[%s638 + $0x10a] sm:$0xff]
        %v2258 = vld [vmem:[%s638 + $0x112] sm:$0xff]
        %v2259 = vld [vmem:[%s638 + $0x122] sm:$0xff]
        %v2260 = vld [vmem:[%s638 + $0x12a] sm:$0xff]
        %v2261 = vld [vmem:[%s638 + $0x13a] sm:$0xff]
        %v2262 = vld [vmem:[%s638 + $0x142] sm:$0xff]
        %v2263 = vld [vmem:[%s638 + $0x152] sm:$0xff]
        %v2264 = vld [vmem:[%s638 + $0x15a] sm:$0xff]
        %v2265 = vld [vmem:[%s638 + $0x16a] sm:$0xff]
        %v2266 = vld [vmem:[%s638 + $0x172] sm:$0xff]
        %s2267 = scalar_lea.vmem %s4, 200
        %v2268 = vld [vmem:[%s2267] sm:$0xff]
        %v2269 = vld [vmem:[%s2267 + $0x8] sm:$0xff]
        %v2270 = vld [vmem:[%s2267 + $0x10] sm:$0xff]
        %v2271 = vld [vmem:[%s2267 + $0x18] sm:$0xff]
        %v2272 = vld [vmem:[%s2267 + $0x20] sm:$0xff]
        %v2274 = vsel %vm629, %v2235, 0
        %v2277 = vsel %vm629, %v2236, 0
        %v2280 = vsel %vm629, %v2237, 0
        %v2283 = vsel %vm629, %v2238, 0
        %v2286 = vsel %vm629, %v2239, 0
        %v2289 = vsel %vm629, %v2240, 0
        %v2292 = vsel %vm629, %v2241, 0
        %v2295 = vsel %vm629, %v2242, 0
        %v2298 = vsel %vm629, %v2243, 0
        %v2301 = vsel %vm629, %v2244, 0
        %v2304 = vsel %vm629, %v2245, 0
        %v2307 = vsel %vm629, %v2246, 0
        %v2310 = vsel %vm629, %v2247, 0
        %v2313 = vsel %vm629, %v2248, 0
        %v2316 = vsel %vm629, %v2249, 0
        %v2319 = vsel %vm629, %v2250, 0
        %v2322 = vsel %vm629, %v2251, 0
        %v2325 = vsel %vm629, %v2252, 0
        %v2328 = vsel %vm629, %v2253, 0
        %v2331 = vsel %vm629, %v2254, 0
        %v2334 = vsel %vm629, %v2255, 0
        %v2337 = vsel %vm629, %v2256, 0
        %v2340 = vsel %vm629, %v2257, 0
        %v2343 = vsel %vm629, %v2258, 0
        %v2346 = vsel %vm629, %v2259, 0
        %v2349 = vsel %vm629, %v2260, 0
        %v2352 = vsel %vm629, %v2261, 0
        %v2355 = vsel %vm629, %v2262, 0
        %v2358 = vsel %vm629, %v2263, 0
        %v2361 = vsel %vm629, %v2264, 0
        %v2364 = vsel %vm629, %v2265, 0
        %v2367 = vsel %vm629, %v2266, 0
        %2369 = vmatpush.msra.mxu0 0.0
        %2370 = vmatpush.msra.mxu0 0.0
        %2371 = vmatpush.msra.mxu0 0.0
        %2372 = vmatpush.msra.mxu0 0.0
        %2373 = vmatpush.msra.mxu0 0.0
        %2374 = vmatpush.msra.mxu0 0.0
        %2375 = vmatpush.msra.mxu0 0.0
        %2376 = vmatpush.msra.mxu0 0.0
        %2377 = vmatpush.msra.mxu0 0.0
        %2378 = vmatpush.msra.mxu0 0.0
        %2379 = vmatpush.msra.mxu0 0.0
        %2380 = vmatpush.msra.mxu0 %v2272
        %2381 = vmatpush.msra.mxu0 %v2271
        %2382 = vmatpush.msra.mxu0 %v2270
        %2383 = vmatpush.msra.mxu0 %v2269
        %2384 = vmatpush.msra.mxu0 %v2268
        %2385 = vmatmul.f32.gmra.mxu0 %v2274
        %v2386 = vpop.f32.mrf.mxu0
        %v2387 = vadd.f32 0.0, %v2386
        %2388 = vmatmul.f32.gmra.mxu0 %v2277
        %v2389 = vpop.f32.mrf.mxu0
        %v2390 = vadd.f32 0.0, %v2389
        %2391 = vmatmul.f32.gmra.mxu0 %v2280
        %v2392 = vpop.f32.mrf.mxu0
        %v2393 = vadd.f32 0.0, %v2392
        %2394 = vmatmul.f32.gmra.mxu0 %v2283
        %v2395 = vpop.f32.mrf.mxu0
        %v2396 = vadd.f32 0.0, %v2395
        %2397 = vmatmul.f32.gmra.mxu0 %v2286
        %v2398 = vpop.f32.mrf.mxu0
        %v2399 = vadd.f32 0.0, %v2398
        %2400 = vmatmul.f32.gmra.mxu0 %v2289
        %v2401 = vpop.f32.mrf.mxu0
        %v2402 = vadd.f32 0.0, %v2401
        %2403 = vmatmul.f32.gmra.mxu0 %v2292
        %v2404 = vpop.f32.mrf.mxu0
        %v2405 = vadd.f32 0.0, %v2404
        %2406 = vmatmul.f32.gmra.mxu0 %v2295
        %v2407 = vpop.f32.mrf.mxu0
        %v2408 = vadd.f32 0.0, %v2407
        %2409 = vmatmul.f32.gmra.mxu0 %v2298
        %v2410 = vpop.f32.mrf.mxu0
        %v2411 = vadd.f32 0.0, %v2410
        %2412 = vmatmul.f32.gmra.mxu0 %v2301
        %v2413 = vpop.f32.mrf.mxu0
        %v2414 = vadd.f32 0.0, %v2413
        %2415 = vmatmul.f32.gmra.mxu0 %v2304
        %v2416 = vpop.f32.mrf.mxu0
        %v2417 = vadd.f32 0.0, %v2416
        %2418 = vmatmul.f32.gmra.mxu0 %v2307
        %v2419 = vpop.f32.mrf.mxu0
        %v2420 = vadd.f32 0.0, %v2419
        %2421 = vmatmul.f32.gmra.mxu0 %v2310
        %v2422 = vpop.f32.mrf.mxu0
        %v2423 = vadd.f32 0.0, %v2422
        %2424 = vmatmul.f32.gmra.mxu0 %v2313
        %v2425 = vpop.f32.mrf.mxu0
        %v2426 = vadd.f32 0.0, %v2425
        %2427 = vmatmul.f32.gmra.mxu0 %v2316
        %v2428 = vpop.f32.mrf.mxu0
        %v2429 = vadd.f32 0.0, %v2428
        %2430 = vmatmul.f32.gmra.mxu0 %v2319
        %v2431 = vpop.f32.mrf.mxu0
        %v2432 = vadd.f32 0.0, %v2431
        %2433 = vmatmul.f32.gmra.mxu0 %v2322
        %v2434 = vpop.f32.mrf.mxu0
        %v2435 = vadd.f32 0.0, %v2434
        %2436 = vmatmul.f32.gmra.mxu0 %v2325
        %v2437 = vpop.f32.mrf.mxu0
        %v2438 = vadd.f32 0.0, %v2437
        %2439 = vmatmul.f32.gmra.mxu0 %v2328
        %v2440 = vpop.f32.mrf.mxu0
        %v2441 = vadd.f32 0.0, %v2440
        %2442 = vmatmul.f32.gmra.mxu0 %v2331
        %v2443 = vpop.f32.mrf.mxu0
        %v2444 = vadd.f32 0.0, %v2443
        %2445 = vmatmul.f32.gmra.mxu0 %v2334
        %v2446 = vpop.f32.mrf.mxu0
        %v2447 = vadd.f32 0.0, %v2446
        %2448 = vmatmul.f32.gmra.mxu0 %v2337
        %v2449 = vpop.f32.mrf.mxu0
        %v2450 = vadd.f32 0.0, %v2449
        %2451 = vmatmul.f32.gmra.mxu0 %v2340
        %v2452 = vpop.f32.mrf.mxu0
        %v2453 = vadd.f32 0.0, %v2452
        %2454 = vmatmul.f32.gmra.mxu0 %v2343
        %v2455 = vpop.f32.mrf.mxu0
        %v2456 = vadd.f32 0.0, %v2455
        %2457 = vmatmul.f32.gmra.mxu0 %v2346
        %v2458 = vpop.f32.mrf.mxu0
        %v2459 = vadd.f32 0.0, %v2458
        %2460 = vmatmul.f32.gmra.mxu0 %v2349
        %v2461 = vpop.f32.mrf.mxu0
        %v2462 = vadd.f32 0.0, %v2461
        %2463 = vmatmul.f32.gmra.mxu0 %v2352
        %v2464 = vpop.f32.mrf.mxu0
        %v2465 = vadd.f32 0.0, %v2464
        %2466 = vmatmul.f32.gmra.mxu0 %v2355
        %v2467 = vpop.f32.mrf.mxu0
        %v2468 = vadd.f32 0.0, %v2467
        %2469 = vmatmul.f32.gmra.mxu0 %v2358
        %v2470 = vpop.f32.mrf.mxu0
        %v2471 = vadd.f32 0.0, %v2470
        %2472 = vmatmul.f32.gmra.mxu0 %v2361
        %v2473 = vpop.f32.mrf.mxu0
        %v2474 = vadd.f32 0.0, %v2473
        %2475 = vmatmul.f32.gmra.mxu0 %v2364
        %v2476 = vpop.f32.mrf.mxu0
        %v2477 = vadd.f32 0.0, %v2476
        %2478 = vmatmul.f32.gmra.mxu0 %v2367
        %v2479 = vpop.f32.mrf.mxu0
        %v2480 = vadd.f32 0.0, %v2479
        %2481 = vdwg.mxu0
        %v2482 = vadd.f32 %v2203, %v2387
        %v2483 = vadd.f32 %v2204, %v2390
        %v2484 = vadd.f32 %v2205, %v2393
        %v2485 = vadd.f32 %v2206, %v2396
        %v2486 = vadd.f32 %v2207, %v2399
        %v2487 = vadd.f32 %v2208, %v2402
        %v2488 = vadd.f32 %v2209, %v2405
        %v2489 = vadd.f32 %v2210, %v2408
        %v2490 = vadd.f32 %v2211, %v2411
        %v2491 = vadd.f32 %v2212, %v2414
        %v2492 = vadd.f32 %v2213, %v2417
        %v2493 = vadd.f32 %v2214, %v2420
        %v2494 = vadd.f32 %v2215, %v2423
        %v2495 = vadd.f32 %v2216, %v2426
        %v2496 = vadd.f32 %v2217, %v2429
        %v2497 = vadd.f32 %v2218, %v2432
        %v2498 = vadd.f32 %v2219, %v2435
        %v2499 = vadd.f32 %v2220, %v2438
        %v2500 = vadd.f32 %v2221, %v2441
        %v2501 = vadd.f32 %v2222, %v2444
        %v2502 = vadd.f32 %v2223, %v2447
        %v2503 = vadd.f32 %v2224, %v2450
        %v2504 = vadd.f32 %v2225, %v2453
        %v2505 = vadd.f32 %v2226, %v2456
        %v2506 = vadd.f32 %v2227, %v2459
        %v2507 = vadd.f32 %v2228, %v2462
        %v2508 = vadd.f32 %v2229, %v2465
        %v2509 = vadd.f32 %v2230, %v2468
        %v2510 = vadd.f32 %v2231, %v2471
        %v2511 = vadd.f32 %v2232, %v2474
        %v2512 = vadd.f32 %v2233, %v2477
        %v2513 = vadd.f32 %v2234, %v2480
        %s2514 = scalar_lea.vmem [#allocation2], 48
        %v2515 = vld [vmem:[%s2514] sm:$0xff]
        %v2516 = vld [vmem:[%s2514 + $0x8] sm:$0xff]
        %v2517 = vld [vmem:[%s2514 + $0x18] sm:$0xff]
        %v2518 = vld [vmem:[%s2514 + $0x20] sm:$0xff]
        %v2519 = vld [vmem:[%s2514 + $0x30] sm:$0xff]
        %v2520 = vld [vmem:[%s2514 + $0x38] sm:$0xff]
        %v2521 = vld [vmem:[%s2514 + $0x48] sm:$0xff]
        %v2522 = vld [vmem:[%s2514 + $0x50] sm:$0xff]
        %v2523 = vld [vmem:[%s2514 + $0x60] sm:$0xff]
        %v2524 = vld [vmem:[%s2514 + $0x68] sm:$0xff]
        %v2525 = vld [vmem:[%s2514 + $0x78] sm:$0xff]
        %v2526 = vld [vmem:[%s2514 + $0x80] sm:$0xff]
        %v2527 = vld [vmem:[%s2514 + $0x90] sm:$0xff]
        %v2528 = vld [vmem:[%s2514 + $0x98] sm:$0xff]
        %v2529 = vld [vmem:[%s2514 + $0xa8] sm:$0xff]
        %v2530 = vld [vmem:[%s2514 + $0xb0] sm:$0xff]
        %v2531 = vld [vmem:[%s2514 + $0xc0] sm:$0xff]
        %v2532 = vld [vmem:[%s2514 + $0xc8] sm:$0xff]
        %v2533 = vld [vmem:[%s2514 + $0xd8] sm:$0xff]
        %v2534 = vld [vmem:[%s2514 + $0xe0] sm:$0xff]
        %v2535 = vld [vmem:[%s2514 + $0xf0] sm:$0xff]
        %v2536 = vld [vmem:[%s2514 + $0xf8] sm:$0xff]
        %v2537 = vld [vmem:[%s2514 + $0x108] sm:$0xff]
        %v2538 = vld [vmem:[%s2514 + $0x110] sm:$0xff]
        %v2539 = vld [vmem:[%s2514 + $0x120] sm:$0xff]
        %v2540 = vld [vmem:[%s2514 + $0x128] sm:$0xff]
        %v2541 = vld [vmem:[%s2514 + $0x138] sm:$0xff]
        %v2542 = vld [vmem:[%s2514 + $0x140] sm:$0xff]
        %v2543 = vld [vmem:[%s2514 + $0x150] sm:$0xff]
        %v2544 = vld [vmem:[%s2514 + $0x158] sm:$0xff]
        %v2545 = vld [vmem:[%s2514 + $0x168] sm:$0xff]
        %v2546 = vld [vmem:[%s2514 + $0x170] sm:$0xff]
        %s2547 = scalar_lea.vmem %s4, 240
        %v2548 = vld [vmem:[%s2547] sm:$0xff]
        %v2549 = vld [vmem:[%s2547 + $0x8] sm:$0xff]
        %v2550 = vld [vmem:[%s2547 + $0x10] sm:$0xff]
        %v2551 = vld [vmem:[%s2547 + $0x18] sm:$0xff]
        %v2552 = vld [vmem:[%s2547 + $0x20] sm:$0xff]
        %v2554 = vsel %vm629, %v2515, 0
        %v2557 = vsel %vm629, %v2516, 0
        %v2560 = vsel %vm629, %v2517, 0
        %v2563 = vsel %vm629, %v2518, 0
        %v2566 = vsel %vm629, %v2519, 0
        %v2569 = vsel %vm629, %v2520, 0
        %v2572 = vsel %vm629, %v2521, 0
        %v2575 = vsel %vm629, %v2522, 0
        %v2578 = vsel %vm629, %v2523, 0
        %v2581 = vsel %vm629, %v2524, 0
        %v2584 = vsel %vm629, %v2525, 0
        %v2587 = vsel %vm629, %v2526, 0
        %v2590 = vsel %vm629, %v2527, 0
        %v2593 = vsel %vm629, %v2528, 0
        %v2596 = vsel %vm629, %v2529, 0
        %v2599 = vsel %vm629, %v2530, 0
        %v2602 = vsel %vm629, %v2531, 0
        %v2605 = vsel %vm629, %v2532, 0
        %v2608 = vsel %vm629, %v2533, 0
        %v2611 = vsel %vm629, %v2534, 0
        %v2614 = vsel %vm629, %v2535, 0
        %v2617 = vsel %vm629, %v2536, 0
        %v2620 = vsel %vm629, %v2537, 0
        %v2623 = vsel %vm629, %v2538, 0
        %v2626 = vsel %vm629, %v2539, 0
        %v2629 = vsel %vm629, %v2540, 0
        %v2632 = vsel %vm629, %v2541, 0
        %v2635 = vsel %vm629, %v2542, 0
        %v2638 = vsel %vm629, %v2543, 0
        %v2641 = vsel %vm629, %v2544, 0
        %v2644 = vsel %vm629, %v2545, 0
        %v2647 = vsel %vm629, %v2546, 0
        %2649 = vmatpush.msra.mxu0 0.0
        %2650 = vmatpush.msra.mxu0 0.0
        %2651 = vmatpush.msra.mxu0 0.0
        %2652 = vmatpush.msra.mxu0 0.0
        %2653 = vmatpush.msra.mxu0 0.0
        %2654 = vmatpush.msra.mxu0 0.0
        %2655 = vmatpush.msra.mxu0 0.0
        %2656 = vmatpush.msra.mxu0 0.0
        %2657 = vmatpush.msra.mxu0 0.0
        %2658 = vmatpush.msra.mxu0 0.0
        %2659 = vmatpush.msra.mxu0 0.0
        %2660 = vmatpush.msra.mxu0 %v2552
        %2661 = vmatpush.msra.mxu0 %v2551
        %2662 = vmatpush.msra.mxu0 %v2550
        %2663 = vmatpush.msra.mxu0 %v2549
        %2664 = vmatpush.msra.mxu0 %v2548
        %2665 = vmatmul.f32.gmra.mxu0 %v2554
        %v2666 = vpop.f32.mrf.mxu0
        %v2667 = vadd.f32 0.0, %v2666
        %2668 = vmatmul.f32.gmra.mxu0 %v2557
        %v2669 = vpop.f32.mrf.mxu0
        %v2670 = vadd.f32 0.0, %v2669
        %2671 = vmatmul.f32.gmra.mxu0 %v2560
        %v2672 = vpop.f32.mrf.mxu0
        %v2673 = vadd.f32 0.0, %v2672
        %2674 = vmatmul.f32.gmra.mxu0 %v2563
        %v2675 = vpop.f32.mrf.mxu0
        %v2676 = vadd.f32 0.0, %v2675
        %2677 = vmatmul.f32.gmra.mxu0 %v2566
        %v2678 = vpop.f32.mrf.mxu0
        %v2679 = vadd.f32 0.0, %v2678
        %2680 = vmatmul.f32.gmra.mxu0 %v2569
        %v2681 = vpop.f32.mrf.mxu0
        %v2682 = vadd.f32 0.0, %v2681
        %2683 = vmatmul.f32.gmra.mxu0 %v2572
        %v2684 = vpop.f32.mrf.mxu0
        %v2685 = vadd.f32 0.0, %v2684
        %2686 = vmatmul.f32.gmra.mxu0 %v2575
        %v2687 = vpop.f32.mrf.mxu0
        %v2688 = vadd.f32 0.0, %v2687
        %2689 = vmatmul.f32.gmra.mxu0 %v2578
        %v2690 = vpop.f32.mrf.mxu0
        %v2691 = vadd.f32 0.0, %v2690
        %2692 = vmatmul.f32.gmra.mxu0 %v2581
        %v2693 = vpop.f32.mrf.mxu0
        %v2694 = vadd.f32 0.0, %v2693
        %2695 = vmatmul.f32.gmra.mxu0 %v2584
        %v2696 = vpop.f32.mrf.mxu0
        %v2697 = vadd.f32 0.0, %v2696
        %2698 = vmatmul.f32.gmra.mxu0 %v2587
        %v2699 = vpop.f32.mrf.mxu0
        %v2700 = vadd.f32 0.0, %v2699
        %2701 = vmatmul.f32.gmra.mxu0 %v2590
        %v2702 = vpop.f32.mrf.mxu0
        %v2703 = vadd.f32 0.0, %v2702
        %2704 = vmatmul.f32.gmra.mxu0 %v2593
        %v2705 = vpop.f32.mrf.mxu0
        %v2706 = vadd.f32 0.0, %v2705
        %2707 = vmatmul.f32.gmra.mxu0 %v2596
        %v2708 = vpop.f32.mrf.mxu0
        %v2709 = vadd.f32 0.0, %v2708
        %2710 = vmatmul.f32.gmra.mxu0 %v2599
        %v2711 = vpop.f32.mrf.mxu0
        %v2712 = vadd.f32 0.0, %v2711
        %2713 = vmatmul.f32.gmra.mxu0 %v2602
        %v2714 = vpop.f32.mrf.mxu0
        %v2715 = vadd.f32 0.0, %v2714
        %2716 = vmatmul.f32.gmra.mxu0 %v2605
        %v2717 = vpop.f32.mrf.mxu0
        %v2718 = vadd.f32 0.0, %v2717
        %2719 = vmatmul.f32.gmra.mxu0 %v2608
        %v2720 = vpop.f32.mrf.mxu0
        %v2721 = vadd.f32 0.0, %v2720
        %2722 = vmatmul.f32.gmra.mxu0 %v2611
        %v2723 = vpop.f32.mrf.mxu0
        %v2724 = vadd.f32 0.0, %v2723
        %2725 = vmatmul.f32.gmra.mxu0 %v2614
        %v2726 = vpop.f32.mrf.mxu0
        %v2727 = vadd.f32 0.0, %v2726
        %2728 = vmatmul.f32.gmra.mxu0 %v2617
        %v2729 = vpop.f32.mrf.mxu0
        %v2730 = vadd.f32 0.0, %v2729
        %2731 = vmatmul.f32.gmra.mxu0 %v2620
        %v2732 = vpop.f32.mrf.mxu0
        %v2733 = vadd.f32 0.0, %v2732
        %2734 = vmatmul.f32.gmra.mxu0 %v2623
        %v2735 = vpop.f32.mrf.mxu0
        %v2736 = vadd.f32 0.0, %v2735
        %2737 = vmatmul.f32.gmra.mxu0 %v2626
        %v2738 = vpop.f32.mrf.mxu0
        %v2739 = vadd.f32 0.0, %v2738
        %2740 = vmatmul.f32.gmra.mxu0 %v2629
        %v2741 = vpop.f32.mrf.mxu0
        %v2742 = vadd.f32 0.0, %v2741
        %2743 = vmatmul.f32.gmra.mxu0 %v2632
        %v2744 = vpop.f32.mrf.mxu0
        %v2745 = vadd.f32 0.0, %v2744
        %2746 = vmatmul.f32.gmra.mxu0 %v2635
        %v2747 = vpop.f32.mrf.mxu0
        %v2748 = vadd.f32 0.0, %v2747
        %2749 = vmatmul.f32.gmra.mxu0 %v2638
        %v2750 = vpop.f32.mrf.mxu0
        %v2751 = vadd.f32 0.0, %v2750
        %2752 = vmatmul.f32.gmra.mxu0 %v2641
        %v2753 = vpop.f32.mrf.mxu0
        %v2754 = vadd.f32 0.0, %v2753
        %2755 = vmatmul.f32.gmra.mxu0 %v2644
        %v2756 = vpop.f32.mrf.mxu0
        %v2757 = vadd.f32 0.0, %v2756
        %2758 = vmatmul.f32.gmra.mxu0 %v2647
        %v2759 = vpop.f32.mrf.mxu0
        %v2760 = vadd.f32 0.0, %v2759
        %2761 = vdwg.mxu0
        %v2762 = vadd.f32 %v2482, %v2667
        %v2763 = vadd.f32 %v2483, %v2670
        %v2764 = vadd.f32 %v2484, %v2673
        %v2765 = vadd.f32 %v2485, %v2676
        %v2766 = vadd.f32 %v2486, %v2679
        %v2767 = vadd.f32 %v2487, %v2682
        %v2768 = vadd.f32 %v2488, %v2685
        %v2769 = vadd.f32 %v2489, %v2688
        %v2770 = vadd.f32 %v2490, %v2691
        %v2771 = vadd.f32 %v2491, %v2694
        %v2772 = vadd.f32 %v2492, %v2697
        %v2773 = vadd.f32 %v2493, %v2700
        %v2774 = vadd.f32 %v2494, %v2703
        %v2775 = vadd.f32 %v2495, %v2706
        %v2776 = vadd.f32 %v2496, %v2709
        %v2777 = vadd.f32 %v2497, %v2712
        %v2778 = vadd.f32 %v2498, %v2715
        %v2779 = vadd.f32 %v2499, %v2718
        %v2780 = vadd.f32 %v2500, %v2721
        %v2781 = vadd.f32 %v2501, %v2724
        %v2782 = vadd.f32 %v2502, %v2727
        %v2783 = vadd.f32 %v2503, %v2730
        %v2784 = vadd.f32 %v2504, %v2733
        %v2785 = vadd.f32 %v2505, %v2736
        %v2786 = vadd.f32 %v2506, %v2739
        %v2787 = vadd.f32 %v2507, %v2742
        %v2788 = vadd.f32 %v2508, %v2745
        %v2789 = vadd.f32 %v2509, %v2748
        %v2790 = vadd.f32 %v2510, %v2751
        %v2791 = vadd.f32 %v2511, %v2754
        %v2792 = vadd.f32 %v2512, %v2757
        %v2793 = vadd.f32 %v2513, %v2760
        %v2794 = vld [vmem:[%s2514 + $0x1] sm:$0xff]
        %v2795 = vld [vmem:[%s2514 + $0x9] sm:$0xff]
        %v2796 = vld [vmem:[%s2514 + $0x19] sm:$0xff]
        %v2797 = vld [vmem:[%s2514 + $0x21] sm:$0xff]
        %v2798 = vld [vmem:[%s2514 + $0x31] sm:$0xff]
        %v2799 = vld [vmem:[%s2514 + $0x39] sm:$0xff]
        %v2800 = vld [vmem:[%s2514 + $0x49] sm:$0xff]
        %v2801 = vld [vmem:[%s2514 + $0x51] sm:$0xff]
        %v2802 = vld [vmem:[%s2514 + $0x61] sm:$0xff]
        %v2803 = vld [vmem:[%s2514 + $0x69] sm:$0xff]
        %v2804 = vld [vmem:[%s2514 + $0x79] sm:$0xff]
        %v2805 = vld [vmem:[%s2514 + $0x81] sm:$0xff]
        %v2806 = vld [vmem:[%s2514 + $0x91] sm:$0xff]
        %v2807 = vld [vmem:[%s2514 + $0x99] sm:$0xff]
        %v2808 = vld [vmem:[%s2514 + $0xa9] sm:$0xff]
        %v2809 = vld [vmem:[%s2514 + $0xb1] sm:$0xff]
        %v2810 = vld [vmem:[%s2514 + $0xc1] sm:$0xff]
        %v2811 = vld [vmem:[%s2514 + $0xc9] sm:$0xff]
        %v2812 = vld [vmem:[%s2514 + $0xd9] sm:$0xff]
        %v2813 = vld [vmem:[%s2514 + $0xe1] sm:$0xff]
        %v2814 = vld [vmem:[%s2514 + $0xf1] sm:$0xff]
        %v2815 = vld [vmem:[%s2514 + $0xf9] sm:$0xff]
        %v2816 = vld [vmem:[%s2514 + $0x109] sm:$0xff]
        %v2817 = vld [vmem:[%s2514 + $0x111] sm:$0xff]
        %v2818 = vld [vmem:[%s2514 + $0x121] sm:$0xff]
        %v2819 = vld [vmem:[%s2514 + $0x129] sm:$0xff]
        %v2820 = vld [vmem:[%s2514 + $0x139] sm:$0xff]
        %v2821 = vld [vmem:[%s2514 + $0x141] sm:$0xff]
        %v2822 = vld [vmem:[%s2514 + $0x151] sm:$0xff]
        %v2823 = vld [vmem:[%s2514 + $0x159] sm:$0xff]
        %v2824 = vld [vmem:[%s2514 + $0x169] sm:$0xff]
        %v2825 = vld [vmem:[%s2514 + $0x171] sm:$0xff]
        %s2826 = scalar_lea.vmem %s4, 280
        %v2827 = vld [vmem:[%s2826] sm:$0xff]
        %v2828 = vld [vmem:[%s2826 + $0x8] sm:$0xff]
        %v2829 = vld [vmem:[%s2826 + $0x10] sm:$0xff]
        %v2830 = vld [vmem:[%s2826 + $0x18] sm:$0xff]
        %v2831 = vld [vmem:[%s2826 + $0x20] sm:$0xff]
        %v2833 = vsel %vm629, %v2794, 0
        %v2836 = vsel %vm629, %v2795, 0
        %v2839 = vsel %vm629, %v2796, 0
        %v2842 = vsel %vm629, %v2797, 0
        %v2845 = vsel %vm629, %v2798, 0
        %v2848 = vsel %vm629, %v2799, 0
        %v2851 = vsel %vm629, %v2800, 0
        %v2854 = vsel %vm629, %v2801, 0
        %v2857 = vsel %vm629, %v2802, 0
        %v2860 = vsel %vm629, %v2803, 0
        %v2863 = vsel %vm629, %v2804, 0
        %v2866 = vsel %vm629, %v2805, 0
        %v2869 = vsel %vm629, %v2806, 0
        %v2872 = vsel %vm629, %v2807, 0
        %v2875 = vsel %vm629, %v2808, 0
        %v2878 = vsel %vm629, %v2809, 0
        %v2881 = vsel %vm629, %v2810, 0
        %v2884 = vsel %vm629, %v2811, 0
        %v2887 = vsel %vm629, %v2812, 0
        %v2890 = vsel %vm629, %v2813, 0
        %v2893 = vsel %vm629, %v2814, 0
        %v2896 = vsel %vm629, %v2815, 0
        %v2899 = vsel %vm629, %v2816, 0
        %v2902 = vsel %vm629, %v2817, 0
        %v2905 = vsel %vm629, %v2818, 0
        %v2908 = vsel %vm629, %v2819, 0
        %v2911 = vsel %vm629, %v2820, 0
        %v2914 = vsel %vm629, %v2821, 0
        %v2917 = vsel %vm629, %v2822, 0
        %v2920 = vsel %vm629, %v2823, 0
        %v2923 = vsel %vm629, %v2824, 0
        %v2926 = vsel %vm629, %v2825, 0
        %2928 = vmatpush.msra.mxu0 0.0
        %2929 = vmatpush.msra.mxu0 0.0
        %2930 = vmatpush.msra.mxu0 0.0
        %2931 = vmatpush.msra.mxu0 0.0
        %2932 = vmatpush.msra.mxu0 0.0
        %2933 = vmatpush.msra.mxu0 0.0
        %2934 = vmatpush.msra.mxu0 0.0
        %2935 = vmatpush.msra.mxu0 0.0
        %2936 = vmatpush.msra.mxu0 0.0
        %2937 = vmatpush.msra.mxu0 0.0
        %2938 = vmatpush.msra.mxu0 0.0
        %2939 = vmatpush.msra.mxu0 %v2831
        %2940 = vmatpush.msra.mxu0 %v2830
        %2941 = vmatpush.msra.mxu0 %v2829
        %2942 = vmatpush.msra.mxu0 %v2828
        %2943 = vmatpush.msra.mxu0 %v2827
        %2944 = vmatmul.f32.gmra.mxu0 %v2833
        %v2945 = vpop.f32.mrf.mxu0
        %v2946 = vadd.f32 0.0, %v2945
        %2947 = vmatmul.f32.gmra.mxu0 %v2836
        %v2948 = vpop.f32.mrf.mxu0
        %v2949 = vadd.f32 0.0, %v2948
        %2950 = vmatmul.f32.gmra.mxu0 %v2839
        %v2951 = vpop.f32.mrf.mxu0
        %v2952 = vadd.f32 0.0, %v2951
        %2953 = vmatmul.f32.gmra.mxu0 %v2842
        %v2954 = vpop.f32.mrf.mxu0
        %v2955 = vadd.f32 0.0, %v2954
        %2956 = vmatmul.f32.gmra.mxu0 %v2845
        %v2957 = vpop.f32.mrf.mxu0
        %v2958 = vadd.f32 0.0, %v2957
        %2959 = vmatmul.f32.gmra.mxu0 %v2848
        %v2960 = vpop.f32.mrf.mxu0
        %v2961 = vadd.f32 0.0, %v2960
        %2962 = vmatmul.f32.gmra.mxu0 %v2851
        %v2963 = vpop.f32.mrf.mxu0
        %v2964 = vadd.f32 0.0, %v2963
        %2965 = vmatmul.f32.gmra.mxu0 %v2854
        %v2966 = vpop.f32.mrf.mxu0
        %v2967 = vadd.f32 0.0, %v2966
        %2968 = vmatmul.f32.gmra.mxu0 %v2857
        %v2969 = vpop.f32.mrf.mxu0
        %v2970 = vadd.f32 0.0, %v2969
        %2971 = vmatmul.f32.gmra.mxu0 %v2860
        %v2972 = vpop.f32.mrf.mxu0
        %v2973 = vadd.f32 0.0, %v2972
        %2974 = vmatmul.f32.gmra.mxu0 %v2863
        %v2975 = vpop.f32.mrf.mxu0
        %v2976 = vadd.f32 0.0, %v2975
        %2977 = vmatmul.f32.gmra.mxu0 %v2866
        %v2978 = vpop.f32.mrf.mxu0
        %v2979 = vadd.f32 0.0, %v2978
        %2980 = vmatmul.f32.gmra.mxu0 %v2869
        %v2981 = vpop.f32.mrf.mxu0
        %v2982 = vadd.f32 0.0, %v2981
        %2983 = vmatmul.f32.gmra.mxu0 %v2872
        %v2984 = vpop.f32.mrf.mxu0
        %v2985 = vadd.f32 0.0, %v2984
        %2986 = vmatmul.f32.gmra.mxu0 %v2875
        %v2987 = vpop.f32.mrf.mxu0
        %v2988 = vadd.f32 0.0, %v2987
        %2989 = vmatmul.f32.gmra.mxu0 %v2878
        %v2990 = vpop.f32.mrf.mxu0
        %v2991 = vadd.f32 0.0, %v2990
        %2992 = vmatmul.f32.gmra.mxu0 %v2881
        %v2993 = vpop.f32.mrf.mxu0
        %v2994 = vadd.f32 0.0, %v2993
        %2995 = vmatmul.f32.gmra.mxu0 %v2884
        %v2996 = vpop.f32.mrf.mxu0
        %v2997 = vadd.f32 0.0, %v2996
        %2998 = vmatmul.f32.gmra.mxu0 %v2887
        %v2999 = vpop.f32.mrf.mxu0
        %v3000 = vadd.f32 0.0, %v2999
        %3001 = vmatmul.f32.gmra.mxu0 %v2890
        %v3002 = vpop.f32.mrf.mxu0
        %v3003 = vadd.f32 0.0, %v3002
        %3004 = vmatmul.f32.gmra.mxu0 %v2893
        %v3005 = vpop.f32.mrf.mxu0
        %v3006 = vadd.f32 0.0, %v3005
        %3007 = vmatmul.f32.gmra.mxu0 %v2896
        %v3008 = vpop.f32.mrf.mxu0
        %v3009 = vadd.f32 0.0, %v3008
        %3010 = vmatmul.f32.gmra.mxu0 %v2899
        %v3011 = vpop.f32.mrf.mxu0
        %v3012 = vadd.f32 0.0, %v3011
        %3013 = vmatmul.f32.gmra.mxu0 %v2902
        %v3014 = vpop.f32.mrf.mxu0
        %v3015 = vadd.f32 0.0, %v3014
        %3016 = vmatmul.f32.gmra.mxu0 %v2905
        %v3017 = vpop.f32.mrf.mxu0
        %v3018 = vadd.f32 0.0, %v3017
        %3019 = vmatmul.f32.gmra.mxu0 %v2908
        %v3020 = vpop.f32.mrf.mxu0
        %v3021 = vadd.f32 0.0, %v3020
        %3022 = vmatmul.f32.gmra.mxu0 %v2911
        %v3023 = vpop.f32.mrf.mxu0
        %v3024 = vadd.f32 0.0, %v3023
        %3025 = vmatmul.f32.gmra.mxu0 %v2914
        %v3026 = vpop.f32.mrf.mxu0
        %v3027 = vadd.f32 0.0, %v3026
        %3028 = vmatmul.f32.gmra.mxu0 %v2917
        %v3029 = vpop.f32.mrf.mxu0
        %v3030 = vadd.f32 0.0, %v3029
        %3031 = vmatmul.f32.gmra.mxu0 %v2920
        %v3032 = vpop.f32.mrf.mxu0
        %v3033 = vadd.f32 0.0, %v3032
        %3034 = vmatmul.f32.gmra.mxu0 %v2923
        %v3035 = vpop.f32.mrf.mxu0
        %v3036 = vadd.f32 0.0, %v3035
        %3037 = vmatmul.f32.gmra.mxu0 %v2926
        %v3038 = vpop.f32.mrf.mxu0
        %v3039 = vadd.f32 0.0, %v3038
        %3040 = vdwg.mxu0
        %v3041 = vadd.f32 %v2762, %v2946
        %v3042 = vadd.f32 %v2763, %v2949
        %v3043 = vadd.f32 %v2764, %v2952
        %v3044 = vadd.f32 %v2765, %v2955
        %v3045 = vadd.f32 %v2766, %v2958
        %v3046 = vadd.f32 %v2767, %v2961
        %v3047 = vadd.f32 %v2768, %v2964
        %v3048 = vadd.f32 %v2769, %v2967
        %v3049 = vadd.f32 %v2770, %v2970
        %v3050 = vadd.f32 %v2771, %v2973
        %v3051 = vadd.f32 %v2772, %v2976
        %v3052 = vadd.f32 %v2773, %v2979
        %v3053 = vadd.f32 %v2774, %v2982
        %v3054 = vadd.f32 %v2775, %v2985
        %v3055 = vadd.f32 %v2776, %v2988
        %v3056 = vadd.f32 %v2777, %v2991
        %v3057 = vadd.f32 %v2778, %v2994
        %v3058 = vadd.f32 %v2779, %v2997
        %v3059 = vadd.f32 %v2780, %v3000
        %v3060 = vadd.f32 %v2781, %v3003
        %v3061 = vadd.f32 %v2782, %v3006
        %v3062 = vadd.f32 %v2783, %v3009
        %v3063 = vadd.f32 %v2784, %v3012
        %v3064 = vadd.f32 %v2785, %v3015
        %v3065 = vadd.f32 %v2786, %v3018
        %v3066 = vadd.f32 %v2787, %v3021
        %v3067 = vadd.f32 %v2788, %v3024
        %v3068 = vadd.f32 %v2789, %v3027
        %v3069 = vadd.f32 %v2790, %v3030
        %v3070 = vadd.f32 %v2791, %v3033
        %v3071 = vadd.f32 %v2792, %v3036
        %v3072 = vadd.f32 %v2793, %v3039
        %v3073 = vld [vmem:[%s2514 + $0x2] sm:$0xff]
        %v3074 = vld [vmem:[%s2514 + $0xa] sm:$0xff]
        %v3075 = vld [vmem:[%s2514 + $0x1a] sm:$0xff]
        %v3076 = vld [vmem:[%s2514 + $0x22] sm:$0xff]
        %v3077 = vld [vmem:[%s2514 + $0x32] sm:$0xff]
        %v3078 = vld [vmem:[%s2514 + $0x3a] sm:$0xff]
        %v3079 = vld [vmem:[%s2514 + $0x4a] sm:$0xff]
        %v3080 = vld [vmem:[%s2514 + $0x52] sm:$0xff]
        %v3081 = vld [vmem:[%s2514 + $0x62] sm:$0xff]
        %v3082 = vld [vmem:[%s2514 + $0x6a] sm:$0xff]
        %v3083 = vld [vmem:[%s2514 + $0x7a] sm:$0xff]
        %v3084 = vld [vmem:[%s2514 + $0x82] sm:$0xff]
        %v3085 = vld [vmem:[%s2514 + $0x92] sm:$0xff]
        %v3086 = vld [vmem:[%s2514 + $0x9a] sm:$0xff]
        %v3087 = vld [vmem:[%s2514 + $0xaa] sm:$0xff]
        %v3088 = vld [vmem:[%s2514 + $0xb2] sm:$0xff]
        %v3089 = vld [vmem:[%s2514 + $0xc2] sm:$0xff]
        %v3090 = vld [vmem:[%s2514 + $0xca] sm:$0xff]
        %v3091 = vld [vmem:[%s2514 + $0xda] sm:$0xff]
        %v3092 = vld [vmem:[%s2514 + $0xe2] sm:$0xff]
        %v3093 = vld [vmem:[%s2514 + $0xf2] sm:$0xff]
        %v3094 = vld [vmem:[%s2514 + $0xfa] sm:$0xff]
        %v3095 = vld [vmem:[%s2514 + $0x10a] sm:$0xff]
        %v3096 = vld [vmem:[%s2514 + $0x112] sm:$0xff]
        %v3097 = vld [vmem:[%s2514 + $0x122] sm:$0xff]
        %v3098 = vld [vmem:[%s2514 + $0x12a] sm:$0xff]
        %v3099 = vld [vmem:[%s2514 + $0x13a] sm:$0xff]
        %v3100 = vld [vmem:[%s2514 + $0x142] sm:$0xff]
        %v3101 = vld [vmem:[%s2514 + $0x152] sm:$0xff]
        %v3102 = vld [vmem:[%s2514 + $0x15a] sm:$0xff]
        %v3103 = vld [vmem:[%s2514 + $0x16a] sm:$0xff]
        %v3104 = vld [vmem:[%s2514 + $0x172] sm:$0xff]
        %s3105 = scalar_lea.vmem %s4, 320
        %v3106 = vld [vmem:[%s3105] sm:$0xff]
        %v3107 = vld [vmem:[%s3105 + $0x8] sm:$0xff]
        %v3108 = vld [vmem:[%s3105 + $0x10] sm:$0xff]
        %v3109 = vld [vmem:[%s3105 + $0x18] sm:$0xff]
        %v3110 = vld [vmem:[%s3105 + $0x20] sm:$0xff]
        %v3112 = vsel %vm629, %v3073, 0
        %v3115 = vsel %vm629, %v3074, 0
        %v3118 = vsel %vm629, %v3075, 0
        %v3121 = vsel %vm629, %v3076, 0
        %v3124 = vsel %vm629, %v3077, 0
        %v3127 = vsel %vm629, %v3078, 0
        %v3130 = vsel %vm629, %v3079, 0
        %v3133 = vsel %vm629, %v3080, 0
        %v3136 = vsel %vm629, %v3081, 0
        %v3139 = vsel %vm629, %v3082, 0
        %v3142 = vsel %vm629, %v3083, 0
        %v3145 = vsel %vm629, %v3084, 0
        %v3148 = vsel %vm629, %v3085, 0
        %v3151 = vsel %vm629, %v3086, 0
        %v3154 = vsel %vm629, %v3087, 0
        %v3157 = vsel %vm629, %v3088, 0
        %v3160 = vsel %vm629, %v3089, 0
        %v3163 = vsel %vm629, %v3090, 0
        %v3166 = vsel %vm629, %v3091, 0
        %v3169 = vsel %vm629, %v3092, 0
        %v3172 = vsel %vm629, %v3093, 0
        %v3175 = vsel %vm629, %v3094, 0
        %v3178 = vsel %vm629, %v3095, 0
        %v3181 = vsel %vm629, %v3096, 0
        %v3184 = vsel %vm629, %v3097, 0
        %v3187 = vsel %vm629, %v3098, 0
        %v3190 = vsel %vm629, %v3099, 0
        %v3193 = vsel %vm629, %v3100, 0
        %v3196 = vsel %vm629, %v3101, 0
        %v3199 = vsel %vm629, %v3102, 0
        %v3202 = vsel %vm629, %v3103, 0
        %v3205 = vsel %vm629, %v3104, 0
        %3207 = vmatpush.msra.mxu0 0.0
        %3208 = vmatpush.msra.mxu0 0.0
        %3209 = vmatpush.msra.mxu0 0.0
        %3210 = vmatpush.msra.mxu0 0.0
        %3211 = vmatpush.msra.mxu0 0.0
        %3212 = vmatpush.msra.mxu0 0.0
        %3213 = vmatpush.msra.mxu0 0.0
        %3214 = vmatpush.msra.mxu0 0.0
        %3215 = vmatpush.msra.mxu0 0.0
        %3216 = vmatpush.msra.mxu0 0.0
        %3217 = vmatpush.msra.mxu0 0.0
        %3218 = vmatpush.msra.mxu0 %v3110
        %3219 = vmatpush.msra.mxu0 %v3109
        %3220 = vmatpush.msra.mxu0 %v3108
        %3221 = vmatpush.msra.mxu0 %v3107
        %3222 = vmatpush.msra.mxu0 %v3106
        %3223 = vmatmul.f32.gmra.mxu0 %v3112
        %v3224 = vpop.f32.mrf.mxu0
        %v3225 = vadd.f32 0.0, %v3224
        %3226 = vmatmul.f32.gmra.mxu0 %v3115
        %v3227 = vpop.f32.mrf.mxu0
        %v3228 = vadd.f32 0.0, %v3227
        %3229 = vmatmul.f32.gmra.mxu0 %v3118
        %v3230 = vpop.f32.mrf.mxu0
        %v3231 = vadd.f32 0.0, %v3230
        %3232 = vmatmul.f32.gmra.mxu0 %v3121
        %v3233 = vpop.f32.mrf.mxu0
        %v3234 = vadd.f32 0.0, %v3233
        %3235 = vmatmul.f32.gmra.mxu0 %v3124
        %v3236 = vpop.f32.mrf.mxu0
        %v3237 = vadd.f32 0.0, %v3236
        %3238 = vmatmul.f32.gmra.mxu0 %v3127
        %v3239 = vpop.f32.mrf.mxu0
        %v3240 = vadd.f32 0.0, %v3239
        %3241 = vmatmul.f32.gmra.mxu0 %v3130
        %v3242 = vpop.f32.mrf.mxu0
        %v3243 = vadd.f32 0.0, %v3242
        %3244 = vmatmul.f32.gmra.mxu0 %v3133
        %v3245 = vpop.f32.mrf.mxu0
        %v3246 = vadd.f32 0.0, %v3245
        %3247 = vmatmul.f32.gmra.mxu0 %v3136
        %v3248 = vpop.f32.mrf.mxu0
        %v3249 = vadd.f32 0.0, %v3248
        %3250 = vmatmul.f32.gmra.mxu0 %v3139
        %v3251 = vpop.f32.mrf.mxu0
        %v3252 = vadd.f32 0.0, %v3251
        %3253 = vmatmul.f32.gmra.mxu0 %v3142
        %v3254 = vpop.f32.mrf.mxu0
        %v3255 = vadd.f32 0.0, %v3254
        %3256 = vmatmul.f32.gmra.mxu0 %v3145
        %v3257 = vpop.f32.mrf.mxu0
        %v3258 = vadd.f32 0.0, %v3257
        %3259 = vmatmul.f32.gmra.mxu0 %v3148
        %v3260 = vpop.f32.mrf.mxu0
        %v3261 = vadd.f32 0.0, %v3260
        %3262 = vmatmul.f32.gmra.mxu0 %v3151
        %v3263 = vpop.f32.mrf.mxu0
        %v3264 = vadd.f32 0.0, %v3263
        %3265 = vmatmul.f32.gmra.mxu0 %v3154
        %v3266 = vpop.f32.mrf.mxu0
        %v3267 = vadd.f32 0.0, %v3266
        %3268 = vmatmul.f32.gmra.mxu0 %v3157
        %v3269 = vpop.f32.mrf.mxu0
        %v3270 = vadd.f32 0.0, %v3269
        %3271 = vmatmul.f32.gmra.mxu0 %v3160
        %v3272 = vpop.f32.mrf.mxu0
        %v3273 = vadd.f32 0.0, %v3272
        %3274 = vmatmul.f32.gmra.mxu0 %v3163
        %v3275 = vpop.f32.mrf.mxu0
        %v3276 = vadd.f32 0.0, %v3275
        %3277 = vmatmul.f32.gmra.mxu0 %v3166
        %v3278 = vpop.f32.mrf.mxu0
        %v3279 = vadd.f32 0.0, %v3278
        %3280 = vmatmul.f32.gmra.mxu0 %v3169
        %v3281 = vpop.f32.mrf.mxu0
        %v3282 = vadd.f32 0.0, %v3281
        %3283 = vmatmul.f32.gmra.mxu0 %v3172
        %v3284 = vpop.f32.mrf.mxu0
        %v3285 = vadd.f32 0.0, %v3284
        %3286 = vmatmul.f32.gmra.mxu0 %v3175
        %v3287 = vpop.f32.mrf.mxu0
        %v3288 = vadd.f32 0.0, %v3287
        %3289 = vmatmul.f32.gmra.mxu0 %v3178
        %v3290 = vpop.f32.mrf.mxu0
        %v3291 = vadd.f32 0.0, %v3290
        %3292 = vmatmul.f32.gmra.mxu0 %v3181
        %v3293 = vpop.f32.mrf.mxu0
        %v3294 = vadd.f32 0.0, %v3293
        %3295 = vmatmul.f32.gmra.mxu0 %v3184
        %v3296 = vpop.f32.mrf.mxu0
        %v3297 = vadd.f32 0.0, %v3296
        %3298 = vmatmul.f32.gmra.mxu0 %v3187
        %v3299 = vpop.f32.mrf.mxu0
        %v3300 = vadd.f32 0.0, %v3299
        %3301 = vmatmul.f32.gmra.mxu0 %v3190
        %v3302 = vpop.f32.mrf.mxu0
        %v3303 = vadd.f32 0.0, %v3302
        %3304 = vmatmul.f32.gmra.mxu0 %v3193
        %v3305 = vpop.f32.mrf.mxu0
        %v3306 = vadd.f32 0.0, %v3305
        %3307 = vmatmul.f32.gmra.mxu0 %v3196
        %v3308 = vpop.f32.mrf.mxu0
        %v3309 = vadd.f32 0.0, %v3308
        %3310 = vmatmul.f32.gmra.mxu0 %v3199
        %v3311 = vpop.f32.mrf.mxu0
        %v3312 = vadd.f32 0.0, %v3311
        %3313 = vmatmul.f32.gmra.mxu0 %v3202
        %v3314 = vpop.f32.mrf.mxu0
        %v3315 = vadd.f32 0.0, %v3314
        %3316 = vmatmul.f32.gmra.mxu0 %v3205
        %v3317 = vpop.f32.mrf.mxu0
        %v3318 = vadd.f32 0.0, %v3317
        %3319 = vdwg.mxu0
        %v3320 = vadd.f32 %v3041, %v3225
        %v3321 = vadd.f32 %v3042, %v3228
        %v3322 = vadd.f32 %v3043, %v3231
        %v3323 = vadd.f32 %v3044, %v3234
        %v3324 = vadd.f32 %v3045, %v3237
        %v3325 = vadd.f32 %v3046, %v3240
        %v3326 = vadd.f32 %v3047, %v3243
        %v3327 = vadd.f32 %v3048, %v3246
        %v3328 = vadd.f32 %v3049, %v3249
        %v3329 = vadd.f32 %v3050, %v3252
        %v3330 = vadd.f32 %v3051, %v3255
        %v3331 = vadd.f32 %v3052, %v3258
        %v3332 = vadd.f32 %v3053, %v3261
        %v3333 = vadd.f32 %v3054, %v3264
        %v3334 = vadd.f32 %v3055, %v3267
        %v3335 = vadd.f32 %v3056, %v3270
        %v3336 = vadd.f32 %v3057, %v3273
        %v3337 = vadd.f32 %v3058, %v3276
        %v3338 = vadd.f32 %v3059, %v3279
        %v3339 = vadd.f32 %v3060, %v3282
        %v3340 = vadd.f32 %v3061, %v3285
        %v3341 = vadd.f32 %v3062, %v3288
        %v3342 = vadd.f32 %v3063, %v3291
        %v3343 = vadd.f32 %v3064, %v3294
        %v3344 = vadd.f32 %v3065, %v3297
        %v3345 = vadd.f32 %v3066, %v3300
        %v3346 = vadd.f32 %v3067, %v3303
        %v3347 = vadd.f32 %v3068, %v3306
        %v3348 = vadd.f32 %v3069, %v3309
        %v3349 = vadd.f32 %v3070, %v3312
        %v3350 = vadd.f32 %v3071, %v3315
        %v3351 = vadd.f32 %v3072, %v3318
        %v3352 = vld [vmem:[%s5] sm:$0x1]
        %v3354 = vperm.slane %v3352, 0
        %v3356 = vadd.f32 %v3320, %v3354
        %v3357 = vadd.f32 %v3321, %v3354
        %v3358 = vadd.f32 %v3322, %v3354
        %v3359 = vadd.f32 %v3323, %v3354
        %v3360 = vadd.f32 %v3324, %v3354
        %v3361 = vadd.f32 %v3325, %v3354
        %v3362 = vadd.f32 %v3326, %v3354
        %v3363 = vadd.f32 %v3327, %v3354
        %v3364 = vadd.f32 %v3328, %v3354
        %v3365 = vadd.f32 %v3329, %v3354
        %v3366 = vadd.f32 %v3330, %v3354
        %v3367 = vadd.f32 %v3331, %v3354
        %v3368 = vadd.f32 %v3332, %v3354
        %v3369 = vadd.f32 %v3333, %v3354
        %v3370 = vadd.f32 %v3334, %v3354
        %v3371 = vadd.f32 %v3335, %v3354
        %v3372 = vadd.f32 %v3336, %v3354
        %v3373 = vadd.f32 %v3337, %v3354
        %v3374 = vadd.f32 %v3338, %v3354
        %v3375 = vadd.f32 %v3339, %v3354
        %v3376 = vadd.f32 %v3340, %v3354
        %v3377 = vadd.f32 %v3341, %v3354
        %v3378 = vadd.f32 %v3342, %v3354
        %v3379 = vadd.f32 %v3343, %v3354
        %v3380 = vadd.f32 %v3344, %v3354
        %v3381 = vadd.f32 %v3345, %v3354
        %v3382 = vadd.f32 %v3346, %v3354
        %v3383 = vadd.f32 %v3347, %v3354
        %v3384 = vadd.f32 %v3348, %v3354
        %v3385 = vadd.f32 %v3349, %v3354
        %v3386 = vadd.f32 %v3350, %v3354
        %v3387 = vadd.f32 %v3351, %v3354
        %v3388 = vld [vmem:[%s6] sm:$0x1]
        %v3390 = vperm.slane %v3388, 0
        %v3392 = vmul.f32 %v3356, %v3390
        %v3393 = vmul.f32 %v3357, %v3390
        %v3394 = vmul.f32 %v3358, %v3390
        %v3395 = vmul.f32 %v3359, %v3390
        %v3396 = vmul.f32 %v3360, %v3390
        %v3397 = vmul.f32 %v3361, %v3390
        %v3398 = vmul.f32 %v3362, %v3390
        %v3399 = vmul.f32 %v3363, %v3390
        %v3400 = vmul.f32 %v3364, %v3390
        %v3401 = vmul.f32 %v3365, %v3390
        %v3402 = vmul.f32 %v3366, %v3390
        %v3403 = vmul.f32 %v3367, %v3390
        %v3404 = vmul.f32 %v3368, %v3390
        %v3405 = vmul.f32 %v3369, %v3390
        %v3406 = vmul.f32 %v3370, %v3390
        %v3407 = vmul.f32 %v3371, %v3390
        %v3408 = vmul.f32 %v3372, %v3390
        %v3409 = vmul.f32 %v3373, %v3390
        %v3410 = vmul.f32 %v3374, %v3390
        %v3411 = vmul.f32 %v3375, %v3390
        %v3412 = vmul.f32 %v3376, %v3390
        %v3413 = vmul.f32 %v3377, %v3390
        %v3414 = vmul.f32 %v3378, %v3390
        %v3415 = vmul.f32 %v3379, %v3390
        %v3416 = vmul.f32 %v3380, %v3390
        %v3417 = vmul.f32 %v3381, %v3390
        %v3418 = vmul.f32 %v3382, %v3390
        %v3419 = vmul.f32 %v3383, %v3390
        %v3420 = vmul.f32 %v3384, %v3390
        %v3421 = vmul.f32 %v3385, %v3390
        %v3422 = vmul.f32 %v3386, %v3390
        %v3423 = vmul.f32 %v3387, %v3390
        %v3424 = vld [vmem:[%s7] sm:$0x1]
        %v3426 = vperm.slane %v3424, 0
        %v3428 = vadd.f32 %v3392, %v3426
        %v3429 = vadd.f32 %v3393, %v3426
        %v3430 = vadd.f32 %v3394, %v3426
        %v3431 = vadd.f32 %v3395, %v3426
        %v3432 = vadd.f32 %v3396, %v3426
        %v3433 = vadd.f32 %v3397, %v3426
        %v3434 = vadd.f32 %v3398, %v3426
        %v3435 = vadd.f32 %v3399, %v3426
        %v3436 = vadd.f32 %v3400, %v3426
        %v3437 = vadd.f32 %v3401, %v3426
        %v3438 = vadd.f32 %v3402, %v3426
        %v3439 = vadd.f32 %v3403, %v3426
        %v3440 = vadd.f32 %v3404, %v3426
        %v3441 = vadd.f32 %v3405, %v3426
        %v3442 = vadd.f32 %v3406, %v3426
        %v3443 = vadd.f32 %v3407, %v3426
        %v3444 = vadd.f32 %v3408, %v3426
        %v3445 = vadd.f32 %v3409, %v3426
        %v3446 = vadd.f32 %v3410, %v3426
        %v3447 = vadd.f32 %v3411, %v3426
        %v3448 = vadd.f32 %v3412, %v3426
        %v3449 = vadd.f32 %v3413, %v3426
        %v3450 = vadd.f32 %v3414, %v3426
        %v3451 = vadd.f32 %v3415, %v3426
        %v3452 = vadd.f32 %v3416, %v3426
        %v3453 = vadd.f32 %v3417, %v3426
        %v3454 = vadd.f32 %v3418, %v3426
        %v3455 = vadd.f32 %v3419, %v3426
        %v3456 = vadd.f32 %v3420, %v3426
        %v3457 = vadd.f32 %v3421, %v3426
        %v3458 = vadd.f32 %v3422, %v3426
        %v3459 = vadd.f32 %v3423, %v3426
        %vm3460 = vcmp.gt.f32.partialorder %v3428, 0.0
        %vm3461 = vcmp.gt.f32.partialorder %v3429, 0.0
        %vm3462 = vcmp.gt.f32.partialorder %v3430, 0.0
        %vm3463 = vcmp.gt.f32.partialorder %v3431, 0.0
        %vm3464 = vcmp.gt.f32.partialorder %v3432, 0.0
        %vm3465 = vcmp.gt.f32.partialorder %v3433, 0.0
        %vm3466 = vcmp.gt.f32.partialorder %v3434, 0.0
        %vm3467 = vcmp.gt.f32.partialorder %v3435, 0.0
        %vm3468 = vcmp.gt.f32.partialorder %v3436, 0.0
        %vm3469 = vcmp.gt.f32.partialorder %v3437, 0.0
        %vm3470 = vcmp.gt.f32.partialorder %v3438, 0.0
        %vm3471 = vcmp.gt.f32.partialorder %v3439, 0.0
        %vm3472 = vcmp.gt.f32.partialorder %v3440, 0.0
        %vm3473 = vcmp.gt.f32.partialorder %v3441, 0.0
        %vm3474 = vcmp.gt.f32.partialorder %v3442, 0.0
        %vm3475 = vcmp.gt.f32.partialorder %v3443, 0.0
        %vm3476 = vcmp.gt.f32.partialorder %v3444, 0.0
        %vm3477 = vcmp.gt.f32.partialorder %v3445, 0.0
        %vm3478 = vcmp.gt.f32.partialorder %v3446, 0.0
        %vm3479 = vcmp.gt.f32.partialorder %v3447, 0.0
        %vm3480 = vcmp.gt.f32.partialorder %v3448, 0.0
        %vm3481 = vcmp.gt.f32.partialorder %v3449, 0.0
        %vm3482 = vcmp.gt.f32.partialorder %v3450, 0.0
        %vm3483 = vcmp.gt.f32.partialorder %v3451, 0.0
        %vm3484 = vcmp.gt.f32.partialorder %v3452, 0.0
        %vm3485 = vcmp.gt.f32.partialorder %v3453, 0.0
        %vm3486 = vcmp.gt.f32.partialorder %v3454, 0.0
        %vm3487 = vcmp.gt.f32.partialorder %v3455, 0.0
        %vm3488 = vcmp.gt.f32.partialorder %v3456, 0.0
        %vm3489 = vcmp.gt.f32.partialorder %v3457, 0.0
        %vm3490 = vcmp.gt.f32.partialorder %v3458, 0.0
        %vm3491 = vcmp.gt.f32.partialorder %v3459, 0.0
        %v3492 = vmul.f32 %v808, %v3428
        %v3493 = vmul.f32 %v808, %v3429
        %v3494 = vmul.f32 %v808, %v3430
        %v3495 = vmul.f32 %v808, %v3431
        %v3496 = vmul.f32 %v808, %v3432
        %v3497 = vmul.f32 %v808, %v3433
        %v3498 = vmul.f32 %v808, %v3434
        %v3499 = vmul.f32 %v808, %v3435
        %v3500 = vmul.f32 %v808, %v3436
        %v3501 = vmul.f32 %v808, %v3437
        %v3502 = vmul.f32 %v808, %v3438
        %v3503 = vmul.f32 %v808, %v3439
        %v3504 = vmul.f32 %v808, %v3440
        %v3505 = vmul.f32 %v808, %v3441
        %v3506 = vmul.f32 %v808, %v3442
        %v3507 = vmul.f32 %v808, %v3443
        %v3508 = vmul.f32 %v808, %v3444
        %v3509 = vmul.f32 %v808, %v3445
        %v3510 = vmul.f32 %v808, %v3446
        %v3511 = vmul.f32 %v808, %v3447
        %v3512 = vmul.f32 %v808, %v3448
        %v3513 = vmul.f32 %v808, %v3449
        %v3514 = vmul.f32 %v808, %v3450
        %v3515 = vmul.f32 %v808, %v3451
        %v3516 = vmul.f32 %v808, %v3452
        %v3517 = vmul.f32 %v808, %v3453
        %v3518 = vmul.f32 %v808, %v3454
        %v3519 = vmul.f32 %v808, %v3455
        %v3520 = vmul.f32 %v808, %v3456
        %v3521 = vmul.f32 %v808, %v3457
        %v3522 = vmul.f32 %v808, %v3458
        %v3523 = vmul.f32 %v808, %v3459
        %v3524 = vsel %vm3460, %v3428, %v3492
        %v3525 = vsel %vm3461, %v3429, %v3493
        %v3526 = vsel %vm3462, %v3430, %v3494
        %v3527 = vsel %vm3463, %v3431, %v3495
        %v3528 = vsel %vm3464, %v3432, %v3496
        %v3529 = vsel %vm3465, %v3433, %v3497
        %v3530 = vsel %vm3466, %v3434, %v3498
        %v3531 = vsel %vm3467, %v3435, %v3499
        %v3532 = vsel %vm3468, %v3436, %v3500
        %v3533 = vsel %vm3469, %v3437, %v3501
        %v3534 = vsel %vm3470, %v3438, %v3502
        %v3535 = vsel %vm3471, %v3439, %v3503
        %v3536 = vsel %vm3472, %v3440, %v3504
        %v3537 = vsel %vm3473, %v3441, %v3505
        %v3538 = vsel %vm3474, %v3442, %v3506
        %v3539 = vsel %vm3475, %v3443, %v3507
        %v3540 = vsel %vm3476, %v3444, %v3508
        %v3541 = vsel %vm3477, %v3445, %v3509
        %v3542 = vsel %vm3478, %v3446, %v3510
        %v3543 = vsel %vm3479, %v3447, %v3511
        %v3544 = vsel %vm3480, %v3448, %v3512
        %v3545 = vsel %vm3481, %v3449, %v3513
        %v3546 = vsel %vm3482, %v3450, %v3514
        %v3547 = vsel %vm3483, %v3451, %v3515
        %v3548 = vsel %vm3484, %v3452, %v3516
        %v3549 = vsel %vm3485, %v3453, %v3517
        %v3550 = vsel %vm3486, %v3454, %v3518
        %v3551 = vsel %vm3487, %v3455, %v3519
        %v3552 = vsel %vm3488, %v3456, %v3520
        %v3553 = vsel %vm3489, %v3457, %v3521
        %v3554 = vsel %vm3490, %v3458, %v3522
        %v3555 = vsel %vm3491, %v3459, %v3523
        %vm3556 = vcmask 261120
        %3557 = vst.msk [vmem:[%s638 + $0x1] sm:$0xff] %vm3556, %v3524
        %3558 = vst.msk [vmem:[%s638 + $0x9] sm:$0xff] %vm3556, %v3525
        %3559 = vst.msk [vmem:[%s638 + $0x19] sm:$0xff] %vm3556, %v3526
        %3560 = vst.msk [vmem:[%s638 + $0x21] sm:$0xff] %vm3556, %v3527
        %3561 = vst.msk [vmem:[%s638 + $0x31] sm:$0xff] %vm3556, %v3528
        %3562 = vst.msk [vmem:[%s638 + $0x39] sm:$0xff] %vm3556, %v3529
        %3563 = vst.msk [vmem:[%s638 + $0x49] sm:$0xff] %vm3556, %v3530
        %3564 = vst.msk [vmem:[%s638 + $0x51] sm:$0xff] %vm3556, %v3531
        %3565 = vst.msk [vmem:[%s638 + $0x61] sm:$0xff] %vm3556, %v3532
        %3566 = vst.msk [vmem:[%s638 + $0x69] sm:$0xff] %vm3556, %v3533
        %3567 = vst.msk [vmem:[%s638 + $0x79] sm:$0xff] %vm3556, %v3534
        %3568 = vst.msk [vmem:[%s638 + $0x81] sm:$0xff] %vm3556, %v3535
        %3569 = vst.msk [vmem:[%s638 + $0x91] sm:$0xff] %vm3556, %v3536
        %3570 = vst.msk [vmem:[%s638 + $0x99] sm:$0xff] %vm3556, %v3537
        %3571 = vst.msk [vmem:[%s638 + $0xa9] sm:$0xff] %vm3556, %v3538
        %3572 = vst.msk [vmem:[%s638 + $0xb1] sm:$0xff] %vm3556, %v3539
        %3573 = vst.msk [vmem:[%s638 + $0xc1] sm:$0xff] %vm3556, %v3540
        %3574 = vst.msk [vmem:[%s638 + $0xc9] sm:$0xff] %vm3556, %v3541
        %3575 = vst.msk [vmem:[%s638 + $0xd9] sm:$0xff] %vm3556, %v3542
        %3576 = vst.msk [vmem:[%s638 + $0xe1] sm:$0xff] %vm3556, %v3543
        %3577 = vst.msk [vmem:[%s638 + $0xf1] sm:$0xff] %vm3556, %v3544
        %3578 = vst.msk [vmem:[%s638 + $0xf9] sm:$0xff] %vm3556, %v3545
        %3579 = vst.msk [vmem:[%s638 + $0x109] sm:$0xff] %vm3556, %v3546
        %3580 = vst.msk [vmem:[%s638 + $0x111] sm:$0xff] %vm3556, %v3547
        %3581 = vst.msk [vmem:[%s638 + $0x121] sm:$0xff] %vm3556, %v3548
        %3582 = vst.msk [vmem:[%s638 + $0x129] sm:$0xff] %vm3556, %v3549
        %3583 = vst.msk [vmem:[%s638 + $0x139] sm:$0xff] %vm3556, %v3550
        %3584 = vst.msk [vmem:[%s638 + $0x141] sm:$0xff] %vm3556, %v3551
        %3585 = vst.msk [vmem:[%s638 + $0x151] sm:$0xff] %vm3556, %v3552
        %3586 = vst.msk [vmem:[%s638 + $0x159] sm:$0xff] %vm3556, %v3553
        %3587 = vst.msk [vmem:[%s638 + $0x169] sm:$0xff] %vm3556, %v3554
        %3588 = vst.msk [vmem:[%s638 + $0x171] sm:$0xff] %vm3556, %v3555
        %v3589 = vld [vmem:[#allocation2] sm:$0xff]
        %v3590 = vld [vmem:[#allocation2 + $0x8] sm:$0xff]
        %v3591 = vld [vmem:[#allocation2 + $0x18] sm:$0xff]
        %v3592 = vld [vmem:[#allocation2 + $0x20] sm:$0xff]
        %v3593 = vld [vmem:[#allocation2 + $0x30] sm:$0xff]
        %v3594 = vld [vmem:[#allocation2 + $0x38] sm:$0xff]
        %v3595 = vld [vmem:[#allocation2 + $0x48] sm:$0xff]
        %v3596 = vld [vmem:[#allocation2 + $0x50] sm:$0xff]
        %v3597 = vld [vmem:[#allocation2 + $0x60] sm:$0xff]
        %v3598 = vld [vmem:[#allocation2 + $0x68] sm:$0xff]
        %v3599 = vld [vmem:[#allocation2 + $0x78] sm:$0xff]
        %v3600 = vld [vmem:[#allocation2 + $0x80] sm:$0xff]
        %v3601 = vld [vmem:[#allocation2 + $0x90] sm:$0xff]
        %v3602 = vld [vmem:[#allocation2 + $0x98] sm:$0xff]
        %v3603 = vld [vmem:[#allocation2 + $0xa8] sm:$0xff]
        %v3604 = vld [vmem:[#allocation2 + $0xb0] sm:$0xff]
        %v3605 = vld [vmem:[#allocation2 + $0xc0] sm:$0xff]
        %v3606 = vld [vmem:[#allocation2 + $0xc8] sm:$0xff]
        %v3607 = vld [vmem:[#allocation2 + $0xd8] sm:$0xff]
        %v3608 = vld [vmem:[#allocation2 + $0xe0] sm:$0xff]
        %v3609 = vld [vmem:[#allocation2 + $0xf0] sm:$0xff]
        %v3610 = vld [vmem:[#allocation2 + $0xf8] sm:$0xff]
        %v3611 = vld [vmem:[#allocation2 + $0x108] sm:$0xff]
        %v3612 = vld [vmem:[#allocation2 + $0x110] sm:$0xff]
        %v3613 = vld [vmem:[#allocation2 + $0x120] sm:$0xff]
        %v3614 = vld [vmem:[#allocation2 + $0x128] sm:$0xff]
        %v3615 = vld [vmem:[#allocation2 + $0x138] sm:$0xff]
        %v3616 = vld [vmem:[#allocation2 + $0x140] sm:$0xff]
        %v3617 = vld [vmem:[#allocation2 + $0x150] sm:$0xff]
        %v3618 = vld [vmem:[#allocation2 + $0x158] sm:$0xff]
        %v3619 = vld [vmem:[#allocation2 + $0x168] sm:$0xff]
        %v3620 = vld [vmem:[#allocation2 + $0x170] sm:$0xff]
        %v3621 = vld [vmem:[#allocation4] sm:$0xff]
        %v3622 = vld [vmem:[#allocation4 + $0x8] sm:$0xff]
        %v3623 = vld [vmem:[#allocation4 + $0x10] sm:$0xff]
        %v3624 = vld [vmem:[#allocation4 + $0x18] sm:$0xff]
        %v3625 = vld [vmem:[#allocation2 + $0x1] sm:$0xff]
        %v3626 = vld [vmem:[#allocation2 + $0x9] sm:$0xff]
        %v3627 = vld [vmem:[#allocation2 + $0x19] sm:$0xff]
        %v3628 = vld [vmem:[#allocation2 + $0x21] sm:$0xff]
        %v3629 = vld [vmem:[#allocation2 + $0x31] sm:$0xff]
        %v3630 = vld [vmem:[#allocation2 + $0x39] sm:$0xff]
        %v3631 = vld [vmem:[#allocation2 + $0x49] sm:$0xff]
        %v3632 = vld [vmem:[#allocation2 + $0x51] sm:$0xff]
        %v3633 = vld [vmem:[#allocation2 + $0x61] sm:$0xff]
        %v3634 = vld [vmem:[#allocation2 + $0x69] sm:$0xff]
        %v3635 = vld [vmem:[#allocation2 + $0x79] sm:$0xff]
        %v3636 = vld [vmem:[#allocation2 + $0x81] sm:$0xff]
        %v3637 = vld [vmem:[#allocation2 + $0x91] sm:$0xff]
        %v3638 = vld [vmem:[#allocation2 + $0x99] sm:$0xff]
        %v3639 = vld [vmem:[#allocation2 + $0xa9] sm:$0xff]
        %v3640 = vld [vmem:[#allocation2 + $0xb1] sm:$0xff]
        %v3641 = vld [vmem:[#allocation2 + $0xc1] sm:$0xff]
        %v3642 = vld [vmem:[#allocation2 + $0xc9] sm:$0xff]
        %v3643 = vld [vmem:[#allocation2 + $0xd9] sm:$0xff]
        %v3644 = vld [vmem:[#allocation2 + $0xe1] sm:$0xff]
        %v3645 = vld [vmem:[#allocation2 + $0xf1] sm:$0xff]
        %v3646 = vld [vmem:[#allocation2 + $0xf9] sm:$0xff]
        %v3647 = vld [vmem:[#allocation2 + $0x109] sm:$0xff]
        %v3648 = vld [vmem:[#allocation2 + $0x111] sm:$0xff]
        %v3649 = vld [vmem:[#allocation2 + $0x121] sm:$0xff]
        %v3650 = vld [vmem:[#allocation2 + $0x129] sm:$0xff]
        %v3651 = vld [vmem:[#allocation2 + $0x139] sm:$0xff]
        %v3652 = vld [vmem:[#allocation2 + $0x141] sm:$0xff]
        %v3653 = vld [vmem:[#allocation2 + $0x151] sm:$0xff]
        %v3654 = vld [vmem:[#allocation2 + $0x159] sm:$0xff]
        %v3655 = vld [vmem:[#allocation2 + $0x169] sm:$0xff]
        %v3656 = vld [vmem:[#allocation2 + $0x171] sm:$0xff]
        %s3657 = scalar_lea.vmem [#allocation4], 32
        %v3658 = vld [vmem:[%s3657] sm:$0xff]
        %v3659 = vld [vmem:[%s3657 + $0x8] sm:$0xff]
        %v3660 = vld [vmem:[%s3657 + $0x10] sm:$0xff]
        %v3661 = vld [vmem:[%s3657 + $0x18] sm:$0xff]
        %v3663 = vsel %vm3556, %v3625, 0
        %v3666 = vsel %vm3556, %v3626, 0
        %v3669 = vsel %vm3556, %v3627, 0
        %v3672 = vsel %vm3556, %v3628, 0
        %v3675 = vsel %vm3556, %v3629, 0
        %v3678 = vsel %vm3556, %v3630, 0
        %v3681 = vsel %vm3556, %v3631, 0
        %v3684 = vsel %vm3556, %v3632, 0
        %v3687 = vsel %vm3556, %v3633, 0
        %v3690 = vsel %vm3556, %v3634, 0
        %v3693 = vsel %vm3556, %v3635, 0
        %v3696 = vsel %vm3556, %v3636, 0
        %v3699 = vsel %vm3556, %v3637, 0
        %v3702 = vsel %vm3556, %v3638, 0
        %v3705 = vsel %vm3556, %v3639, 0
        %v3708 = vsel %vm3556, %v3640, 0
        %v3711 = vsel %vm3556, %v3641, 0
        %v3714 = vsel %vm3556, %v3642, 0
        %v3717 = vsel %vm3556, %v3643, 0
        %v3720 = vsel %vm3556, %v3644, 0
        %v3723 = vsel %vm3556, %v3645, 0
        %v3726 = vsel %vm3556, %v3646, 0
        %v3729 = vsel %vm3556, %v3647, 0
        %v3732 = vsel %vm3556, %v3648, 0
        %v3735 = vsel %vm3556, %v3649, 0
        %v3738 = vsel %vm3556, %v3650, 0
        %v3741 = vsel %vm3556, %v3651, 0
        %v3744 = vsel %vm3556, %v3652, 0
        %v3747 = vsel %vm3556, %v3653, 0
        %v3750 = vsel %vm3556, %v3654, 0
        %v3753 = vsel %vm3556, %v3655, 0
        %v3756 = vsel %vm3556, %v3656, 0
        %3758 = vmatpush.msra.mxu0 0.0
        %3759 = vmatpush.msra.mxu0 0.0
        %3760 = vmatpush.msra.mxu0 0.0
        %3761 = vmatpush.msra.mxu0 0.0
        %3762 = vmatpush.msra.mxu0 0.0
        %3763 = vmatpush.msra.mxu0 0.0
        %3764 = vmatpush.msra.mxu0 0.0
        %3765 = vmatpush.msra.mxu0 0.0
        %3766 = vmatpush.msra.mxu0 0.0
        %3767 = vmatpush.msra.mxu0 0.0
        %3768 = vmatpush.msra.mxu0 0.0
        %3769 = vmatpush.msra.mxu0 0.0
        %3770 = vmatpush.msra.mxu0 %v3661
        %3771 = vmatpush.msra.mxu0 %v3660
        %3772 = vmatpush.msra.mxu0 %v3659
        %3773 = vmatpush.msra.mxu0 %v3658
        %3774 = vmatmul.f32.gmra.mxu0 %v3663
        %v3775 = vpop.f32.mrf.mxu0
        %v3776 = vadd.f32 0.0, %v3775
        %3777 = vmatmul.f32.gmra.mxu0 %v3666
        %v3778 = vpop.f32.mrf.mxu0
        %v3779 = vadd.f32 0.0, %v3778
        %3780 = vmatmul.f32.gmra.mxu0 %v3669
        %v3781 = vpop.f32.mrf.mxu0
        %v3782 = vadd.f32 0.0, %v3781
        %3783 = vmatmul.f32.gmra.mxu0 %v3672
        %v3784 = vpop.f32.mrf.mxu0
        %v3785 = vadd.f32 0.0, %v3784
        %3786 = vmatmul.f32.gmra.mxu0 %v3675
        %v3787 = vpop.f32.mrf.mxu0
        %v3788 = vadd.f32 0.0, %v3787
        %3789 = vmatmul.f32.gmra.mxu0 %v3678
        %v3790 = vpop.f32.mrf.mxu0
        %v3791 = vadd.f32 0.0, %v3790
        %3792 = vmatmul.f32.gmra.mxu0 %v3681
        %v3793 = vpop.f32.mrf.mxu0
        %v3794 = vadd.f32 0.0, %v3793
        %3795 = vmatmul.f32.gmra.mxu0 %v3684
        %v3796 = vpop.f32.mrf.mxu0
        %v3797 = vadd.f32 0.0, %v3796
        %3798 = vmatmul.f32.gmra.mxu0 %v3687
        %v3799 = vpop.f32.mrf.mxu0
        %v3800 = vadd.f32 0.0, %v3799
        %3801 = vmatmul.f32.gmra.mxu0 %v3690
        %v3802 = vpop.f32.mrf.mxu0
        %v3803 = vadd.f32 0.0, %v3802
        %3804 = vmatmul.f32.gmra.mxu0 %v3693
        %v3805 = vpop.f32.mrf.mxu0
        %v3806 = vadd.f32 0.0, %v3805
        %3807 = vmatmul.f32.gmra.mxu0 %v3696
        %v3808 = vpop.f32.mrf.mxu0
        %v3809 = vadd.f32 0.0, %v3808
        %3810 = vmatmul.f32.gmra.mxu0 %v3699
        %v3811 = vpop.f32.mrf.mxu0
        %v3812 = vadd.f32 0.0, %v3811
        %3813 = vmatmul.f32.gmra.mxu0 %v3702
        %v3814 = vpop.f32.mrf.mxu0
        %v3815 = vadd.f32 0.0, %v3814
        %3816 = vmatmul.f32.gmra.mxu0 %v3705
        %v3817 = vpop.f32.mrf.mxu0
        %v3818 = vadd.f32 0.0, %v3817
        %3819 = vmatmul.f32.gmra.mxu0 %v3708
        %v3820 = vpop.f32.mrf.mxu0
        %v3821 = vadd.f32 0.0, %v3820
        %3822 = vmatmul.f32.gmra.mxu0 %v3711
        %v3823 = vpop.f32.mrf.mxu0
        %v3824 = vadd.f32 0.0, %v3823
        %3825 = vmatmul.f32.gmra.mxu0 %v3714
        %v3826 = vpop.f32.mrf.mxu0
        %v3827 = vadd.f32 0.0, %v3826
        %3828 = vmatmul.f32.gmra.mxu0 %v3717
        %v3829 = vpop.f32.mrf.mxu0
        %v3830 = vadd.f32 0.0, %v3829
        %3831 = vmatmul.f32.gmra.mxu0 %v3720
        %v3832 = vpop.f32.mrf.mxu0
        %v3833 = vadd.f32 0.0, %v3832
        %3834 = vmatmul.f32.gmra.mxu0 %v3723
        %v3835 = vpop.f32.mrf.mxu0
        %v3836 = vadd.f32 0.0, %v3835
        %3837 = vmatmul.f32.gmra.mxu0 %v3726
        %v3838 = vpop.f32.mrf.mxu0
        %v3839 = vadd.f32 0.0, %v3838
        %3840 = vmatmul.f32.gmra.mxu0 %v3729
        %v3841 = vpop.f32.mrf.mxu0
        %v3842 = vadd.f32 0.0, %v3841
        %3843 = vmatmul.f32.gmra.mxu0 %v3732
        %v3844 = vpop.f32.mrf.mxu0
        %v3845 = vadd.f32 0.0, %v3844
        %3846 = vmatmul.f32.gmra.mxu0 %v3735
        %v3847 = vpop.f32.mrf.mxu0
        %v3848 = vadd.f32 0.0, %v3847
        %3849 = vmatmul.f32.gmra.mxu0 %v3738
        %v3850 = vpop.f32.mrf.mxu0
        %v3851 = vadd.f32 0.0, %v3850
        %3852 = vmatmul.f32.gmra.mxu0 %v3741
        %v3853 = vpop.f32.mrf.mxu0
        %v3854 = vadd.f32 0.0, %v3853
        %3855 = vmatmul.f32.gmra.mxu0 %v3744
        %v3856 = vpop.f32.mrf.mxu0
        %v3857 = vadd.f32 0.0, %v3856
        %3858 = vmatmul.f32.gmra.mxu0 %v3747
        %v3859 = vpop.f32.mrf.mxu0
        %v3860 = vadd.f32 0.0, %v3859
        %3861 = vmatmul.f32.gmra.mxu0 %v3750
        %v3862 = vpop.f32.mrf.mxu0
        %v3863 = vadd.f32 0.0, %v3862
        %3864 = vmatmul.f32.gmra.mxu0 %v3753
        %v3865 = vpop.f32.mrf.mxu0
        %v3866 = vadd.f32 0.0, %v3865
        %3867 = vmatmul.f32.gmra.mxu0 %v3756
        %v3868 = vpop.f32.mrf.mxu0
        %v3869 = vadd.f32 0.0, %v3868
        %3870 = vdwg.mxu0
        %v3872 = vsel %vm3556, %v3589, 0
        %v3875 = vsel %vm3556, %v3590, 0
        %v3878 = vsel %vm3556, %v3591, 0
        %v3881 = vsel %vm3556, %v3592, 0
        %v3884 = vsel %vm3556, %v3593, 0
        %v3887 = vsel %vm3556, %v3594, 0
        %v3890 = vsel %vm3556, %v3595, 0
        %v3893 = vsel %vm3556, %v3596, 0
        %v3896 = vsel %vm3556, %v3597, 0
        %v3899 = vsel %vm3556, %v3598, 0
        %v3902 = vsel %vm3556, %v3599, 0
        %v3905 = vsel %vm3556, %v3600, 0
        %v3908 = vsel %vm3556, %v3601, 0
        %v3911 = vsel %vm3556, %v3602, 0
        %v3914 = vsel %vm3556, %v3603, 0
        %v3917 = vsel %vm3556, %v3604, 0
        %v3920 = vsel %vm3556, %v3605, 0
        %v3923 = vsel %vm3556, %v3606, 0
        %v3926 = vsel %vm3556, %v3607, 0
        %v3929 = vsel %vm3556, %v3608, 0
        %v3932 = vsel %vm3556, %v3609, 0
        %v3935 = vsel %vm3556, %v3610, 0
        %v3938 = vsel %vm3556, %v3611, 0
        %v3941 = vsel %vm3556, %v3612, 0
        %v3944 = vsel %vm3556, %v3613, 0
        %v3947 = vsel %vm3556, %v3614, 0
        %v3950 = vsel %vm3556, %v3615, 0
        %v3953 = vsel %vm3556, %v3616, 0
        %v3956 = vsel %vm3556, %v3617, 0
        %v3959 = vsel %vm3556, %v3618, 0
        %v3962 = vsel %vm3556, %v3619, 0
        %v3965 = vsel %vm3556, %v3620, 0
        %3967 = vmatpush.msra.mxu0 0.0
        %3968 = vmatpush.msra.mxu0 0.0
        %3969 = vmatpush.msra.mxu0 0.0
        %3970 = vmatpush.msra.mxu0 0.0
        %3971 = vmatpush.msra.mxu0 0.0
        %3972 = vmatpush.msra.mxu0 0.0
        %3973 = vmatpush.msra.mxu0 0.0
        %3974 = vmatpush.msra.mxu0 0.0
        %3975 = vmatpush.msra.mxu0 0.0
        %3976 = vmatpush.msra.mxu0 0.0
        %3977 = vmatpush.msra.mxu0 0.0
        %3978 = vmatpush.msra.mxu0 0.0
        %3979 = vmatpush.msra.mxu0 %v3624
        %3980 = vmatpush.msra.mxu0 %v3623
        %3981 = vmatpush.msra.mxu0 %v3622
        %3982 = vmatpush.msra.mxu0 %v3621
        %3983 = vmatmul.f32.gmra.mxu0 %v3872
        %v3984 = vpop.f32.mrf.mxu0
        %v3985 = vadd.f32 %v3776, %v3984
        %3986 = vmatmul.f32.gmra.mxu0 %v3875
        %v3987 = vpop.f32.mrf.mxu0
        %v3988 = vadd.f32 %v3779, %v3987
        %3989 = vmatmul.f32.gmra.mxu0 %v3878
        %v3990 = vpop.f32.mrf.mxu0
        %v3991 = vadd.f32 %v3782, %v3990
        %3992 = vmatmul.f32.gmra.mxu0 %v3881
        %v3993 = vpop.f32.mrf.mxu0
        %v3994 = vadd.f32 %v3785, %v3993
        %3995 = vmatmul.f32.gmra.mxu0 %v3884
        %v3996 = vpop.f32.mrf.mxu0
        %v3997 = vadd.f32 %v3788, %v3996
        %3998 = vmatmul.f32.gmra.mxu0 %v3887
        %v3999 = vpop.f32.mrf.mxu0
        %v4000 = vadd.f32 %v3791, %v3999
        %4001 = vmatmul.f32.gmra.mxu0 %v3890
        %v4002 = vpop.f32.mrf.mxu0
        %v4003 = vadd.f32 %v3794, %v4002
        %4004 = vmatmul.f32.gmra.mxu0 %v3893
        %v4005 = vpop.f32.mrf.mxu0
        %v4006 = vadd.f32 %v3797, %v4005
        %4007 = vmatmul.f32.gmra.mxu0 %v3896
        %v4008 = vpop.f32.mrf.mxu0
        %v4009 = vadd.f32 %v3800, %v4008
        %4010 = vmatmul.f32.gmra.mxu0 %v3899
        %v4011 = vpop.f32.mrf.mxu0
        %v4012 = vadd.f32 %v3803, %v4011
        %4013 = vmatmul.f32.gmra.mxu0 %v3902
        %v4014 = vpop.f32.mrf.mxu0
        %v4015 = vadd.f32 %v3806, %v4014
        %4016 = vmatmul.f32.gmra.mxu0 %v3905
        %v4017 = vpop.f32.mrf.mxu0
        %v4018 = vadd.f32 %v3809, %v4017
        %4019 = vmatmul.f32.gmra.mxu0 %v3908
        %v4020 = vpop.f32.mrf.mxu0
        %v4021 = vadd.f32 %v3812, %v4020
        %4022 = vmatmul.f32.gmra.mxu0 %v3911
        %v4023 = vpop.f32.mrf.mxu0
        %v4024 = vadd.f32 %v3815, %v4023
        %4025 = vmatmul.f32.gmra.mxu0 %v3914
        %v4026 = vpop.f32.mrf.mxu0
        %v4027 = vadd.f32 %v3818, %v4026
        %4028 = vmatmul.f32.gmra.mxu0 %v3917
        %v4029 = vpop.f32.mrf.mxu0
        %v4030 = vadd.f32 %v3821, %v4029
        %4031 = vmatmul.f32.gmra.mxu0 %v3920
        %v4032 = vpop.f32.mrf.mxu0
        %v4033 = vadd.f32 %v3824, %v4032
        %4034 = vmatmul.f32.gmra.mxu0 %v3923
        %v4035 = vpop.f32.mrf.mxu0
        %v4036 = vadd.f32 %v3827, %v4035
        %4037 = vmatmul.f32.gmra.mxu0 %v3926
        %v4038 = vpop.f32.mrf.mxu0
        %v4039 = vadd.f32 %v3830, %v4038
        %4040 = vmatmul.f32.gmra.mxu0 %v3929
        %v4041 = vpop.f32.mrf.mxu0
        %v4042 = vadd.f32 %v3833, %v4041
        %4043 = vmatmul.f32.gmra.mxu0 %v3932
        %v4044 = vpop.f32.mrf.mxu0
        %v4045 = vadd.f32 %v3836, %v4044
        %4046 = vmatmul.f32.gmra.mxu0 %v3935
        %v4047 = vpop.f32.mrf.mxu0
        %v4048 = vadd.f32 %v3839, %v4047
        %4049 = vmatmul.f32.gmra.mxu0 %v3938
        %v4050 = vpop.f32.mrf.mxu0
        %v4051 = vadd.f32 %v3842, %v4050
        %4052 = vmatmul.f32.gmra.mxu0 %v3941
        %v4053 = vpop.f32.mrf.mxu0
        %v4054 = vadd.f32 %v3845, %v4053
        %4055 = vmatmul.f32.gmra.mxu0 %v3944
        %v4056 = vpop.f32.mrf.mxu0
        %v4057 = vadd.f32 %v3848, %v4056
        %4058 = vmatmul.f32.gmra.mxu0 %v3947
        %v4059 = vpop.f32.mrf.mxu0
        %v4060 = vadd.f32 %v3851, %v4059
        %4061 = vmatmul.f32.gmra.mxu0 %v3950
        %v4062 = vpop.f32.mrf.mxu0
        %v4063 = vadd.f32 %v3854, %v4062
        %4064 = vmatmul.f32.gmra.mxu0 %v3953
        %v4065 = vpop.f32.mrf.mxu0
        %v4066 = vadd.f32 %v3857, %v4065
        %4067 = vmatmul.f32.gmra.mxu0 %v3956
        %v4068 = vpop.f32.mrf.mxu0
        %v4069 = vadd.f32 %v3860, %v4068
        %4070 = vmatmul.f32.gmra.mxu0 %v3959
        %v4071 = vpop.f32.mrf.mxu0
        %v4072 = vadd.f32 %v3863, %v4071
        %4073 = vmatmul.f32.gmra.mxu0 %v3962
        %v4074 = vpop.f32.mrf.mxu0
        %v4075 = vadd.f32 %v3866, %v4074
        %4076 = vmatmul.f32.gmra.mxu0 %v3965
        %v4077 = vpop.f32.mrf.mxu0
        %v4078 = vadd.f32 %v3869, %v4077
        %4079 = vdwg.mxu0
        %v4080 = vld [vmem:[#allocation2 + $0x2] sm:$0xff]
        %v4081 = vld [vmem:[#allocation2 + $0xa] sm:$0xff]
        %v4082 = vld [vmem:[#allocation2 + $0x1a] sm:$0xff]
        %v4083 = vld [vmem:[#allocation2 + $0x22] sm:$0xff]
        %v4084 = vld [vmem:[#allocation2 + $0x32] sm:$0xff]
        %v4085 = vld [vmem:[#allocation2 + $0x3a] sm:$0xff]
        %v4086 = vld [vmem:[#allocation2 + $0x4a] sm:$0xff]
        %v4087 = vld [vmem:[#allocation2 + $0x52] sm:$0xff]
        %v4088 = vld [vmem:[#allocation2 + $0x62] sm:$0xff]
        %v4089 = vld [vmem:[#allocation2 + $0x6a] sm:$0xff]
        %v4090 = vld [vmem:[#allocation2 + $0x7a] sm:$0xff]
        %v4091 = vld [vmem:[#allocation2 + $0x82] sm:$0xff]
        %v4092 = vld [vmem:[#allocation2 + $0x92] sm:$0xff]
        %v4093 = vld [vmem:[#allocation2 + $0x9a] sm:$0xff]
        %v4094 = vld [vmem:[#allocation2 + $0xaa] sm:$0xff]
        %v4095 = vld [vmem:[#allocation2 + $0xb2] sm:$0xff]
        %v4096 = vld [vmem:[#allocation2 + $0xc2] sm:$0xff]
        %v4097 = vld [vmem:[#allocation2 + $0xca] sm:$0xff]
        %v4098 = vld [vmem:[#allocation2 + $0xda] sm:$0xff]
        %v4099 = vld [vmem:[#allocation2 + $0xe2] sm:$0xff]
        %v4100 = vld [vmem:[#allocation2 + $0xf2] sm:$0xff]
        %v4101 = vld [vmem:[#allocation2 + $0xfa] sm:$0xff]
        %v4102 = vld [vmem:[#allocation2 + $0x10a] sm:$0xff]
        %v4103 = vld [vmem:[#allocation2 + $0x112] sm:$0xff]
        %v4104 = vld [vmem:[#allocation2 + $0x122] sm:$0xff]
        %v4105 = vld [vmem:[#allocation2 + $0x12a] sm:$0xff]
        %v4106 = vld [vmem:[#allocation2 + $0x13a] sm:$0xff]
        %v4107 = vld [vmem:[#allocation2 + $0x142] sm:$0xff]
        %v4108 = vld [vmem:[#allocation2 + $0x152] sm:$0xff]
        %v4109 = vld [vmem:[#allocation2 + $0x15a] sm:$0xff]
        %v4110 = vld [vmem:[#allocation2 + $0x16a] sm:$0xff]
        %v4111 = vld [vmem:[#allocation2 + $0x172] sm:$0xff]
        %s4112 = scalar_lea.vmem [#allocation4], 64
        %v4113 = vld [vmem:[%s4112] sm:$0xff]
        %v4114 = vld [vmem:[%s4112 + $0x8] sm:$0xff]
        %v4115 = vld [vmem:[%s4112 + $0x10] sm:$0xff]
        %v4116 = vld [vmem:[%s4112 + $0x18] sm:$0xff]
        %v4118 = vsel %vm3556, %v4080, 0
        %v4121 = vsel %vm3556, %v4081, 0
        %v4124 = vsel %vm3556, %v4082, 0
        %v4127 = vsel %vm3556, %v4083, 0
        %v4130 = vsel %vm3556, %v4084, 0
        %v4133 = vsel %vm3556, %v4085, 0
        %v4136 = vsel %vm3556, %v4086, 0
        %v4139 = vsel %vm3556, %v4087, 0
        %v4142 = vsel %vm3556, %v4088, 0
        %v4145 = vsel %vm3556, %v4089, 0
        %v4148 = vsel %vm3556, %v4090, 0
        %v4151 = vsel %vm3556, %v4091, 0
        %v4154 = vsel %vm3556, %v4092, 0
        %v4157 = vsel %vm3556, %v4093, 0
        %v4160 = vsel %vm3556, %v4094, 0
        %v4163 = vsel %vm3556, %v4095, 0
        %v4166 = vsel %vm3556, %v4096, 0
        %v4169 = vsel %vm3556, %v4097, 0
        %v4172 = vsel %vm3556, %v4098, 0
        %v4175 = vsel %vm3556, %v4099, 0
        %v4178 = vsel %vm3556, %v4100, 0
        %v4181 = vsel %vm3556, %v4101, 0
        %v4184 = vsel %vm3556, %v4102, 0
        %v4187 = vsel %vm3556, %v4103, 0
        %v4190 = vsel %vm3556, %v4104, 0
        %v4193 = vsel %vm3556, %v4105, 0
        %v4196 = vsel %vm3556, %v4106, 0
        %v4199 = vsel %vm3556, %v4107, 0
        %v4202 = vsel %vm3556, %v4108, 0
        %v4205 = vsel %vm3556, %v4109, 0
        %v4208 = vsel %vm3556, %v4110, 0
        %v4211 = vsel %vm3556, %v4111, 0
        %4213 = vmatpush.msra.mxu0 0.0
        %4214 = vmatpush.msra.mxu0 0.0
        %4215 = vmatpush.msra.mxu0 0.0
        %4216 = vmatpush.msra.mxu0 0.0
        %4217 = vmatpush.msra.mxu0 0.0
        %4218 = vmatpush.msra.mxu0 0.0
        %4219 = vmatpush.msra.mxu0 0.0
        %4220 = vmatpush.msra.mxu0 0.0
        %4221 = vmatpush.msra.mxu0 0.0
        %4222 = vmatpush.msra.mxu0 0.0
        %4223 = vmatpush.msra.mxu0 0.0
        %4224 = vmatpush.msra.mxu0 0.0
        %4225 = vmatpush.msra.mxu0 %v4116
        %4226 = vmatpush.msra.mxu0 %v4115
        %4227 = vmatpush.msra.mxu0 %v4114
        %4228 = vmatpush.msra.mxu0 %v4113
        %4229 = vmatmul.f32.gmra.mxu0 %v4118
        %v4230 = vpop.f32.mrf.mxu0
        %v4231 = vadd.f32 0.0, %v4230
        %4232 = vmatmul.f32.gmra.mxu0 %v4121
        %v4233 = vpop.f32.mrf.mxu0
        %v4234 = vadd.f32 0.0, %v4233
        %4235 = vmatmul.f32.gmra.mxu0 %v4124
        %v4236 = vpop.f32.mrf.mxu0
        %v4237 = vadd.f32 0.0, %v4236
        %4238 = vmatmul.f32.gmra.mxu0 %v4127
        %v4239 = vpop.f32.mrf.mxu0
        %v4240 = vadd.f32 0.0, %v4239
        %4241 = vmatmul.f32.gmra.mxu0 %v4130
        %v4242 = vpop.f32.mrf.mxu0
        %v4243 = vadd.f32 0.0, %v4242
        %4244 = vmatmul.f32.gmra.mxu0 %v4133
        %v4245 = vpop.f32.mrf.mxu0
        %v4246 = vadd.f32 0.0, %v4245
        %4247 = vmatmul.f32.gmra.mxu0 %v4136
        %v4248 = vpop.f32.mrf.mxu0
        %v4249 = vadd.f32 0.0, %v4248
        %4250 = vmatmul.f32.gmra.mxu0 %v4139
        %v4251 = vpop.f32.mrf.mxu0
        %v4252 = vadd.f32 0.0, %v4251
        %4253 = vmatmul.f32.gmra.mxu0 %v4142
        %v4254 = vpop.f32.mrf.mxu0
        %v4255 = vadd.f32 0.0, %v4254
        %4256 = vmatmul.f32.gmra.mxu0 %v4145
        %v4257 = vpop.f32.mrf.mxu0
        %v4258 = vadd.f32 0.0, %v4257
        %4259 = vmatmul.f32.gmra.mxu0 %v4148
        %v4260 = vpop.f32.mrf.mxu0
        %v4261 = vadd.f32 0.0, %v4260
        %4262 = vmatmul.f32.gmra.mxu0 %v4151
        %v4263 = vpop.f32.mrf.mxu0
        %v4264 = vadd.f32 0.0, %v4263
        %4265 = vmatmul.f32.gmra.mxu0 %v4154
        %v4266 = vpop.f32.mrf.mxu0
        %v4267 = vadd.f32 0.0, %v4266
        %4268 = vmatmul.f32.gmra.mxu0 %v4157
        %v4269 = vpop.f32.mrf.mxu0
        %v4270 = vadd.f32 0.0, %v4269
        %4271 = vmatmul.f32.gmra.mxu0 %v4160
        %v4272 = vpop.f32.mrf.mxu0
        %v4273 = vadd.f32 0.0, %v4272
        %4274 = vmatmul.f32.gmra.mxu0 %v4163
        %v4275 = vpop.f32.mrf.mxu0
        %v4276 = vadd.f32 0.0, %v4275
        %4277 = vmatmul.f32.gmra.mxu0 %v4166
        %v4278 = vpop.f32.mrf.mxu0
        %v4279 = vadd.f32 0.0, %v4278
        %4280 = vmatmul.f32.gmra.mxu0 %v4169
        %v4281 = vpop.f32.mrf.mxu0
        %v4282 = vadd.f32 0.0, %v4281
        %4283 = vmatmul.f32.gmra.mxu0 %v4172
        %v4284 = vpop.f32.mrf.mxu0
        %v4285 = vadd.f32 0.0, %v4284
        %4286 = vmatmul.f32.gmra.mxu0 %v4175
        %v4287 = vpop.f32.mrf.mxu0
        %v4288 = vadd.f32 0.0, %v4287
        %4289 = vmatmul.f32.gmra.mxu0 %v4178
        %v4290 = vpop.f32.mrf.mxu0
        %v4291 = vadd.f32 0.0, %v4290
        %4292 = vmatmul.f32.gmra.mxu0 %v4181
        %v4293 = vpop.f32.mrf.mxu0
        %v4294 = vadd.f32 0.0, %v4293
        %4295 = vmatmul.f32.gmra.mxu0 %v4184
        %v4296 = vpop.f32.mrf.mxu0
        %v4297 = vadd.f32 0.0, %v4296
        %4298 = vmatmul.f32.gmra.mxu0 %v4187
        %v4299 = vpop.f32.mrf.mxu0
        %v4300 = vadd.f32 0.0, %v4299
        %4301 = vmatmul.f32.gmra.mxu0 %v4190
        %v4302 = vpop.f32.mrf.mxu0
        %v4303 = vadd.f32 0.0, %v4302
        %4304 = vmatmul.f32.gmra.mxu0 %v4193
        %v4305 = vpop.f32.mrf.mxu0
        %v4306 = vadd.f32 0.0, %v4305
        %4307 = vmatmul.f32.gmra.mxu0 %v4196
        %v4308 = vpop.f32.mrf.mxu0
        %v4309 = vadd.f32 0.0, %v4308
        %4310 = vmatmul.f32.gmra.mxu0 %v4199
        %v4311 = vpop.f32.mrf.mxu0
        %v4312 = vadd.f32 0.0, %v4311
        %4313 = vmatmul.f32.gmra.mxu0 %v4202
        %v4314 = vpop.f32.mrf.mxu0
        %v4315 = vadd.f32 0.0, %v4314
        %4316 = vmatmul.f32.gmra.mxu0 %v4205
        %v4317 = vpop.f32.mrf.mxu0
        %v4318 = vadd.f32 0.0, %v4317
        %4319 = vmatmul.f32.gmra.mxu0 %v4208
        %v4320 = vpop.f32.mrf.mxu0
        %v4321 = vadd.f32 0.0, %v4320
        %4322 = vmatmul.f32.gmra.mxu0 %v4211
        %v4323 = vpop.f32.mrf.mxu0
        %v4324 = vadd.f32 0.0, %v4323
        %4325 = vdwg.mxu0
        %v4326 = vadd.f32 %v3985, %v4231
        %v4327 = vadd.f32 %v3988, %v4234
        %v4328 = vadd.f32 %v3991, %v4237
        %v4329 = vadd.f32 %v3994, %v4240
        %v4330 = vadd.f32 %v3997, %v4243
        %v4331 = vadd.f32 %v4000, %v4246
        %v4332 = vadd.f32 %v4003, %v4249
        %v4333 = vadd.f32 %v4006, %v4252
        %v4334 = vadd.f32 %v4009, %v4255
        %v4335 = vadd.f32 %v4012, %v4258
        %v4336 = vadd.f32 %v4015, %v4261
        %v4337 = vadd.f32 %v4018, %v4264
        %v4338 = vadd.f32 %v4021, %v4267
        %v4339 = vadd.f32 %v4024, %v4270
        %v4340 = vadd.f32 %v4027, %v4273
        %v4341 = vadd.f32 %v4030, %v4276
        %v4342 = vadd.f32 %v4033, %v4279
        %v4343 = vadd.f32 %v4036, %v4282
        %v4344 = vadd.f32 %v4039, %v4285
        %v4345 = vadd.f32 %v4042, %v4288
        %v4346 = vadd.f32 %v4045, %v4291
        %v4347 = vadd.f32 %v4048, %v4294
        %v4348 = vadd.f32 %v4051, %v4297
        %v4349 = vadd.f32 %v4054, %v4300
        %v4350 = vadd.f32 %v4057, %v4303
        %v4351 = vadd.f32 %v4060, %v4306
        %v4352 = vadd.f32 %v4063, %v4309
        %v4353 = vadd.f32 %v4066, %v4312
        %v4354 = vadd.f32 %v4069, %v4315
        %v4355 = vadd.f32 %v4072, %v4318
        %v4356 = vadd.f32 %v4075, %v4321
        %v4357 = vadd.f32 %v4078, %v4324
        %v4358 = vld [vmem:[%s638] sm:$0xff]
        %v4359 = vld [vmem:[%s638 + $0x8] sm:$0xff]
        %v4360 = vld [vmem:[%s638 + $0x18] sm:$0xff]
        %v4361 = vld [vmem:[%s638 + $0x20] sm:$0xff]
        %v4362 = vld [vmem:[%s638 + $0x30] sm:$0xff]
        %v4363 = vld [vmem:[%s638 + $0x38] sm:$0xff]
        %v4364 = vld [vmem:[%s638 + $0x48] sm:$0xff]
        %v4365 = vld [vmem:[%s638 + $0x50] sm:$0xff]
        %v4366 = vld [vmem:[%s638 + $0x60] sm:$0xff]
        %v4367 = vld [vmem:[%s638 + $0x68] sm:$0xff]
        %v4368 = vld [vmem:[%s638 + $0x78] sm:$0xff]
        %v4369 = vld [vmem:[%s638 + $0x80] sm:$0xff]
        %v4370 = vld [vmem:[%s638 + $0x90] sm:$0xff]
        %v4371 = vld [vmem:[%s638 + $0x98] sm:$0xff]
        %v4372 = vld [vmem:[%s638 + $0xa8] sm:$0xff]
        %v4373 = vld [vmem:[%s638 + $0xb0] sm:$0xff]
        %v4374 = vld [vmem:[%s638 + $0xc0] sm:$0xff]
        %v4375 = vld [vmem:[%s638 + $0xc8] sm:$0xff]
        %v4376 = vld [vmem:[%s638 + $0xd8] sm:$0xff]
        %v4377 = vld [vmem:[%s638 + $0xe0] sm:$0xff]
        %v4378 = vld [vmem:[%s638 + $0xf0] sm:$0xff]
        %v4379 = vld [vmem:[%s638 + $0xf8] sm:$0xff]
        %v4380 = vld [vmem:[%s638 + $0x108] sm:$0xff]
        %v4381 = vld [vmem:[%s638 + $0x110] sm:$0xff]
        %v4382 = vld [vmem:[%s638 + $0x120] sm:$0xff]
        %v4383 = vld [vmem:[%s638 + $0x128] sm:$0xff]
        %v4384 = vld [vmem:[%s638 + $0x138] sm:$0xff]
        %v4385 = vld [vmem:[%s638 + $0x140] sm:$0xff]
        %v4386 = vld [vmem:[%s638 + $0x150] sm:$0xff]
        %v4387 = vld [vmem:[%s638 + $0x158] sm:$0xff]
        %v4388 = vld [vmem:[%s638 + $0x168] sm:$0xff]
        %v4389 = vld [vmem:[%s638 + $0x170] sm:$0xff]
        %s4390 = scalar_lea.vmem [#allocation4], 96
        %v4391 = vld [vmem:[%s4390] sm:$0xff]
        %v4392 = vld [vmem:[%s4390 + $0x8] sm:$0xff]
        %v4393 = vld [vmem:[%s4390 + $0x10] sm:$0xff]
        %v4394 = vld [vmem:[%s4390 + $0x18] sm:$0xff]
        %v4396 = vsel %vm3556, %v4358, 0
        %v4399 = vsel %vm3556, %v4359, 0
        %v4402 = vsel %vm3556, %v4360, 0
        %v4405 = vsel %vm3556, %v4361, 0
        %v4408 = vsel %vm3556, %v4362, 0
        %v4411 = vsel %vm3556, %v4363, 0
        %v4414 = vsel %vm3556, %v4364, 0
        %v4417 = vsel %vm3556, %v4365, 0
        %v4420 = vsel %vm3556, %v4366, 0
        %v4423 = vsel %vm3556, %v4367, 0
        %v4426 = vsel %vm3556, %v4368, 0
        %v4429 = vsel %vm3556, %v4369, 0
        %v4432 = vsel %vm3556, %v4370, 0
        %v4435 = vsel %vm3556, %v4371, 0
        %v4438 = vsel %vm3556, %v4372, 0
        %v4441 = vsel %vm3556, %v4373, 0
        %v4444 = vsel %vm3556, %v4374, 0
        %v4447 = vsel %vm3556, %v4375, 0
        %v4450 = vsel %vm3556, %v4376, 0
        %v4453 = vsel %vm3556, %v4377, 0
        %v4456 = vsel %vm3556, %v4378, 0
        %v4459 = vsel %vm3556, %v4379, 0
        %v4462 = vsel %vm3556, %v4380, 0
        %v4465 = vsel %vm3556, %v4381, 0
        %v4468 = vsel %vm3556, %v4382, 0
        %v4471 = vsel %vm3556, %v4383, 0
        %v4474 = vsel %vm3556, %v4384, 0
        %v4477 = vsel %vm3556, %v4385, 0
        %v4480 = vsel %vm3556, %v4386, 0
        %v4483 = vsel %vm3556, %v4387, 0
        %v4486 = vsel %vm3556, %v4388, 0
        %v4489 = vsel %vm3556, %v4389, 0
        %4491 = vmatpush.msra.mxu0 0.0
        %4492 = vmatpush.msra.mxu0 0.0
        %4493 = vmatpush.msra.mxu0 0.0
        %4494 = vmatpush.msra.mxu0 0.0
        %4495 = vmatpush.msra.mxu0 0.0
        %4496 = vmatpush.msra.mxu0 0.0
        %4497 = vmatpush.msra.mxu0 0.0
        %4498 = vmatpush.msra.mxu0 0.0
        %4499 = vmatpush.msra.mxu0 0.0
        %4500 = vmatpush.msra.mxu0 0.0
        %4501 = vmatpush.msra.mxu0 0.0
        %4502 = vmatpush.msra.mxu0 0.0
        %4503 = vmatpush.msra.mxu0 %v4394
        %4504 = vmatpush.msra.mxu0 %v4393
        %4505 = vmatpush.msra.mxu0 %v4392
        %4506 = vmatpush.msra.mxu0 %v4391
        %4507 = vmatmul.f32.gmra.mxu0 %v4396
        %v4508 = vpop.f32.mrf.mxu0
        %v4509 = vadd.f32 0.0, %v4508
        %4510 = vmatmul.f32.gmra.mxu0 %v4399
        %v4511 = vpop.f32.mrf.mxu0
        %v4512 = vadd.f32 0.0, %v4511
        %4513 = vmatmul.f32.gmra.mxu0 %v4402
        %v4514 = vpop.f32.mrf.mxu0
        %v4515 = vadd.f32 0.0, %v4514
        %4516 = vmatmul.f32.gmra.mxu0 %v4405
        %v4517 = vpop.f32.mrf.mxu0
        %v4518 = vadd.f32 0.0, %v4517
        %4519 = vmatmul.f32.gmra.mxu0 %v4408
        %v4520 = vpop.f32.mrf.mxu0
        %v4521 = vadd.f32 0.0, %v4520
        %4522 = vmatmul.f32.gmra.mxu0 %v4411
        %v4523 = vpop.f32.mrf.mxu0
        %v4524 = vadd.f32 0.0, %v4523
        %4525 = vmatmul.f32.gmra.mxu0 %v4414
        %v4526 = vpop.f32.mrf.mxu0
        %v4527 = vadd.f32 0.0, %v4526
        %4528 = vmatmul.f32.gmra.mxu0 %v4417
        %v4529 = vpop.f32.mrf.mxu0
        %v4530 = vadd.f32 0.0, %v4529
        %4531 = vmatmul.f32.gmra.mxu0 %v4420
        %v4532 = vpop.f32.mrf.mxu0
        %v4533 = vadd.f32 0.0, %v4532
        %4534 = vmatmul.f32.gmra.mxu0 %v4423
        %v4535 = vpop.f32.mrf.mxu0
        %v4536 = vadd.f32 0.0, %v4535
        %4537 = vmatmul.f32.gmra.mxu0 %v4426
        %v4538 = vpop.f32.mrf.mxu0
        %v4539 = vadd.f32 0.0, %v4538
        %4540 = vmatmul.f32.gmra.mxu0 %v4429
        %v4541 = vpop.f32.mrf.mxu0
        %v4542 = vadd.f32 0.0, %v4541
        %4543 = vmatmul.f32.gmra.mxu0 %v4432
        %v4544 = vpop.f32.mrf.mxu0
        %v4545 = vadd.f32 0.0, %v4544
        %4546 = vmatmul.f32.gmra.mxu0 %v4435
        %v4547 = vpop.f32.mrf.mxu0
        %v4548 = vadd.f32 0.0, %v4547
        %4549 = vmatmul.f32.gmra.mxu0 %v4438
        %v4550 = vpop.f32.mrf.mxu0
        %v4551 = vadd.f32 0.0, %v4550
        %4552 = vmatmul.f32.gmra.mxu0 %v4441
        %v4553 = vpop.f32.mrf.mxu0
        %v4554 = vadd.f32 0.0, %v4553
        %4555 = vmatmul.f32.gmra.mxu0 %v4444
        %v4556 = vpop.f32.mrf.mxu0
        %v4557 = vadd.f32 0.0, %v4556
        %4558 = vmatmul.f32.gmra.mxu0 %v4447
        %v4559 = vpop.f32.mrf.mxu0
        %v4560 = vadd.f32 0.0, %v4559
        %4561 = vmatmul.f32.gmra.mxu0 %v4450
        %v4562 = vpop.f32.mrf.mxu0
        %v4563 = vadd.f32 0.0, %v4562
        %4564 = vmatmul.f32.gmra.mxu0 %v4453
        %v4565 = vpop.f32.mrf.mxu0
        %v4566 = vadd.f32 0.0, %v4565
        %4567 = vmatmul.f32.gmra.mxu0 %v4456
        %v4568 = vpop.f32.mrf.mxu0
        %v4569 = vadd.f32 0.0, %v4568
        %4570 = vmatmul.f32.gmra.mxu0 %v4459
        %v4571 = vpop.f32.mrf.mxu0
        %v4572 = vadd.f32 0.0, %v4571
        %4573 = vmatmul.f32.gmra.mxu0 %v4462
        %v4574 = vpop.f32.mrf.mxu0
        %v4575 = vadd.f32 0.0, %v4574
        %4576 = vmatmul.f32.gmra.mxu0 %v4465
        %v4577 = vpop.f32.mrf.mxu0
        %v4578 = vadd.f32 0.0, %v4577
        %4579 = vmatmul.f32.gmra.mxu0 %v4468
        %v4580 = vpop.f32.mrf.mxu0
        %v4581 = vadd.f32 0.0, %v4580
        %4582 = vmatmul.f32.gmra.mxu0 %v4471
        %v4583 = vpop.f32.mrf.mxu0
        %v4584 = vadd.f32 0.0, %v4583
        %4585 = vmatmul.f32.gmra.mxu0 %v4474
        %v4586 = vpop.f32.mrf.mxu0
        %v4587 = vadd.f32 0.0, %v4586
        %4588 = vmatmul.f32.gmra.mxu0 %v4477
        %v4589 = vpop.f32.mrf.mxu0
        %v4590 = vadd.f32 0.0, %v4589
        %4591 = vmatmul.f32.gmra.mxu0 %v4480
        %v4592 = vpop.f32.mrf.mxu0
        %v4593 = vadd.f32 0.0, %v4592
        %4594 = vmatmul.f32.gmra.mxu0 %v4483
        %v4595 = vpop.f32.mrf.mxu0
        %v4596 = vadd.f32 0.0, %v4595
        %4597 = vmatmul.f32.gmra.mxu0 %v4486
        %v4598 = vpop.f32.mrf.mxu0
        %v4599 = vadd.f32 0.0, %v4598
        %4600 = vmatmul.f32.gmra.mxu0 %v4489
        %v4601 = vpop.f32.mrf.mxu0
        %v4602 = vadd.f32 0.0, %v4601
        %4603 = vdwg.mxu0
        %v4604 = vadd.f32 %v4326, %v4509
        %v4605 = vadd.f32 %v4327, %v4512
        %v4606 = vadd.f32 %v4328, %v4515
        %v4607 = vadd.f32 %v4329, %v4518
        %v4608 = vadd.f32 %v4330, %v4521
        %v4609 = vadd.f32 %v4331, %v4524
        %v4610 = vadd.f32 %v4332, %v4527
        %v4611 = vadd.f32 %v4333, %v4530
        %v4612 = vadd.f32 %v4334, %v4533
        %v4613 = vadd.f32 %v4335, %v4536
        %v4614 = vadd.f32 %v4336, %v4539
        %v4615 = vadd.f32 %v4337, %v4542
        %v4616 = vadd.f32 %v4338, %v4545
        %v4617 = vadd.f32 %v4339, %v4548
        %v4618 = vadd.f32 %v4340, %v4551
        %v4619 = vadd.f32 %v4341, %v4554
        %v4620 = vadd.f32 %v4342, %v4557
        %v4621 = vadd.f32 %v4343, %v4560
        %v4622 = vadd.f32 %v4344, %v4563
        %v4623 = vadd.f32 %v4345, %v4566
        %v4624 = vadd.f32 %v4346, %v4569
        %v4625 = vadd.f32 %v4347, %v4572
        %v4626 = vadd.f32 %v4348, %v4575
        %v4627 = vadd.f32 %v4349, %v4578
        %v4628 = vadd.f32 %v4350, %v4581
        %v4629 = vadd.f32 %v4351, %v4584
        %v4630 = vadd.f32 %v4352, %v4587
        %v4631 = vadd.f32 %v4353, %v4590
        %v4632 = vadd.f32 %v4354, %v4593
        %v4633 = vadd.f32 %v4355, %v4596
        %v4634 = vadd.f32 %v4356, %v4599
        %v4635 = vadd.f32 %v4357, %v4602
        %v4636 = vld [vmem:[%s638 + $0x1] sm:$0xff]
        %v4637 = vld [vmem:[%s638 + $0x9] sm:$0xff]
        %v4638 = vld [vmem:[%s638 + $0x19] sm:$0xff]
        %v4639 = vld [vmem:[%s638 + $0x21] sm:$0xff]
        %v4640 = vld [vmem:[%s638 + $0x31] sm:$0xff]
        %v4641 = vld [vmem:[%s638 + $0x39] sm:$0xff]
        %v4642 = vld [vmem:[%s638 + $0x49] sm:$0xff]
        %v4643 = vld [vmem:[%s638 + $0x51] sm:$0xff]
        %v4644 = vld [vmem:[%s638 + $0x61] sm:$0xff]
        %v4645 = vld [vmem:[%s638 + $0x69] sm:$0xff]
        %v4646 = vld [vmem:[%s638 + $0x79] sm:$0xff]
        %v4647 = vld [vmem:[%s638 + $0x81] sm:$0xff]
        %v4648 = vld [vmem:[%s638 + $0x91] sm:$0xff]
        %v4649 = vld [vmem:[%s638 + $0x99] sm:$0xff]
        %v4650 = vld [vmem:[%s638 + $0xa9] sm:$0xff]
        %v4651 = vld [vmem:[%s638 + $0xb1] sm:$0xff]
        %v4652 = vld [vmem:[%s638 + $0xc1] sm:$0xff]
        %v4653 = vld [vmem:[%s638 + $0xc9] sm:$0xff]
        %v4654 = vld [vmem:[%s638 + $0xd9] sm:$0xff]
        %v4655 = vld [vmem:[%s638 + $0xe1] sm:$0xff]
        %v4656 = vld [vmem:[%s638 + $0xf1] sm:$0xff]
        %v4657 = vld [vmem:[%s638 + $0xf9] sm:$0xff]
        %v4658 = vld [vmem:[%s638 + $0x109] sm:$0xff]
        %v4659 = vld [vmem:[%s638 + $0x111] sm:$0xff]
        %v4660 = vld [vmem:[%s638 + $0x121] sm:$0xff]
        %v4661 = vld [vmem:[%s638 + $0x129] sm:$0xff]
        %v4662 = vld [vmem:[%s638 + $0x139] sm:$0xff]
        %v4663 = vld [vmem:[%s638 + $0x141] sm:$0xff]
        %v4664 = vld [vmem:[%s638 + $0x151] sm:$0xff]
        %v4665 = vld [vmem:[%s638 + $0x159] sm:$0xff]
        %v4666 = vld [vmem:[%s638 + $0x169] sm:$0xff]
        %v4667 = vld [vmem:[%s638 + $0x171] sm:$0xff]
        %s4668 = scalar_lea.vmem [#allocation4], 128
        %v4669 = vld [vmem:[%s4668] sm:$0xff]
        %v4670 = vld [vmem:[%s4668 + $0x8] sm:$0xff]
        %v4671 = vld [vmem:[%s4668 + $0x10] sm:$0xff]
        %v4672 = vld [vmem:[%s4668 + $0x18] sm:$0xff]
        %v4674 = vsel %vm3556, %v4636, 0
        %v4677 = vsel %vm3556, %v4637, 0
        %v4680 = vsel %vm3556, %v4638, 0
        %v4683 = vsel %vm3556, %v4639, 0
        %v4686 = vsel %vm3556, %v4640, 0
        %v4689 = vsel %vm3556, %v4641, 0
        %v4692 = vsel %vm3556, %v4642, 0
        %v4695 = vsel %vm3556, %v4643, 0
        %v4698 = vsel %vm3556, %v4644, 0
        %v4701 = vsel %vm3556, %v4645, 0
        %v4704 = vsel %vm3556, %v4646, 0
        %v4707 = vsel %vm3556, %v4647, 0
        %v4710 = vsel %vm3556, %v4648, 0
        %v4713 = vsel %vm3556, %v4649, 0
        %v4716 = vsel %vm3556, %v4650, 0
        %v4719 = vsel %vm3556, %v4651, 0
        %v4722 = vsel %vm3556, %v4652, 0
        %v4725 = vsel %vm3556, %v4653, 0
        %v4728 = vsel %vm3556, %v4654, 0
        %v4731 = vsel %vm3556, %v4655, 0
        %v4734 = vsel %vm3556, %v4656, 0
        %v4737 = vsel %vm3556, %v4657, 0
        %v4740 = vsel %vm3556, %v4658, 0
        %v4743 = vsel %vm3556, %v4659, 0
        %v4746 = vsel %vm3556, %v4660, 0
        %v4749 = vsel %vm3556, %v4661, 0
        %v4752 = vsel %vm3556, %v4662, 0
        %v4755 = vsel %vm3556, %v4663, 0
        %v4758 = vsel %vm3556, %v4664, 0
        %v4761 = vsel %vm3556, %v4665, 0
        %v4764 = vsel %vm3556, %v4666, 0
        %v4767 = vsel %vm3556, %v4667, 0
        %4769 = vmatpush.msra.mxu0 0.0
        %4770 = vmatpush.msra.mxu0 0.0
        %4771 = vmatpush.msra.mxu0 0.0
        %4772 = vmatpush.msra.mxu0 0.0
        %4773 = vmatpush.msra.mxu0 0.0
        %4774 = vmatpush.msra.mxu0 0.0
        %4775 = vmatpush.msra.mxu0 0.0
        %4776 = vmatpush.msra.mxu0 0.0
        %4777 = vmatpush.msra.mxu0 0.0
        %4778 = vmatpush.msra.mxu0 0.0
        %4779 = vmatpush.msra.mxu0 0.0
        %4780 = vmatpush.msra.mxu0 0.0
        %4781 = vmatpush.msra.mxu0 %v4672
        %4782 = vmatpush.msra.mxu0 %v4671
        %4783 = vmatpush.msra.mxu0 %v4670
        %4784 = vmatpush.msra.mxu0 %v4669
        %4785 = vmatmul.f32.gmra.mxu0 %v4674
        %v4786 = vpop.f32.mrf.mxu0
        %v4787 = vadd.f32 0.0, %v4786
        %4788 = vmatmul.f32.gmra.mxu0 %v4677
        %v4789 = vpop.f32.mrf.mxu0
        %v4790 = vadd.f32 0.0, %v4789
        %4791 = vmatmul.f32.gmra.mxu0 %v4680
        %v4792 = vpop.f32.mrf.mxu0
        %v4793 = vadd.f32 0.0, %v4792
        %4794 = vmatmul.f32.gmra.mxu0 %v4683
        %v4795 = vpop.f32.mrf.mxu0
        %v4796 = vadd.f32 0.0, %v4795
        %4797 = vmatmul.f32.gmra.mxu0 %v4686
        %v4798 = vpop.f32.mrf.mxu0
        %v4799 = vadd.f32 0.0, %v4798
        %4800 = vmatmul.f32.gmra.mxu0 %v4689
        %v4801 = vpop.f32.mrf.mxu0
        %v4802 = vadd.f32 0.0, %v4801
        %4803 = vmatmul.f32.gmra.mxu0 %v4692
        %v4804 = vpop.f32.mrf.mxu0
        %v4805 = vadd.f32 0.0, %v4804
        %4806 = vmatmul.f32.gmra.mxu0 %v4695
        %v4807 = vpop.f32.mrf.mxu0
        %v4808 = vadd.f32 0.0, %v4807
        %4809 = vmatmul.f32.gmra.mxu0 %v4698
        %v4810 = vpop.f32.mrf.mxu0
        %v4811 = vadd.f32 0.0, %v4810
        %4812 = vmatmul.f32.gmra.mxu0 %v4701
        %v4813 = vpop.f32.mrf.mxu0
        %v4814 = vadd.f32 0.0, %v4813
        %4815 = vmatmul.f32.gmra.mxu0 %v4704
        %v4816 = vpop.f32.mrf.mxu0
        %v4817 = vadd.f32 0.0, %v4816
        %4818 = vmatmul.f32.gmra.mxu0 %v4707
        %v4819 = vpop.f32.mrf.mxu0
        %v4820 = vadd.f32 0.0, %v4819
        %4821 = vmatmul.f32.gmra.mxu0 %v4710
        %v4822 = vpop.f32.mrf.mxu0
        %v4823 = vadd.f32 0.0, %v4822
        %4824 = vmatmul.f32.gmra.mxu0 %v4713
        %v4825 = vpop.f32.mrf.mxu0
        %v4826 = vadd.f32 0.0, %v4825
        %4827 = vmatmul.f32.gmra.mxu0 %v4716
        %v4828 = vpop.f32.mrf.mxu0
        %v4829 = vadd.f32 0.0, %v4828
        %4830 = vmatmul.f32.gmra.mxu0 %v4719
        %v4831 = vpop.f32.mrf.mxu0
        %v4832 = vadd.f32 0.0, %v4831
        %4833 = vmatmul.f32.gmra.mxu0 %v4722
        %v4834 = vpop.f32.mrf.mxu0
        %v4835 = vadd.f32 0.0, %v4834
        %4836 = vmatmul.f32.gmra.mxu0 %v4725
        %v4837 = vpop.f32.mrf.mxu0
        %v4838 = vadd.f32 0.0, %v4837
        %4839 = vmatmul.f32.gmra.mxu0 %v4728
        %v4840 = vpop.f32.mrf.mxu0
        %v4841 = vadd.f32 0.0, %v4840
        %4842 = vmatmul.f32.gmra.mxu0 %v4731
        %v4843 = vpop.f32.mrf.mxu0
        %v4844 = vadd.f32 0.0, %v4843
        %4845 = vmatmul.f32.gmra.mxu0 %v4734
        %v4846 = vpop.f32.mrf.mxu0
        %v4847 = vadd.f32 0.0, %v4846
        %4848 = vmatmul.f32.gmra.mxu0 %v4737
        %v4849 = vpop.f32.mrf.mxu0
        %v4850 = vadd.f32 0.0, %v4849
        %4851 = vmatmul.f32.gmra.mxu0 %v4740
        %v4852 = vpop.f32.mrf.mxu0
        %v4853 = vadd.f32 0.0, %v4852
        %4854 = vmatmul.f32.gmra.mxu0 %v4743
        %v4855 = vpop.f32.mrf.mxu0
        %v4856 = vadd.f32 0.0, %v4855
        %4857 = vmatmul.f32.gmra.mxu0 %v4746
        %v4858 = vpop.f32.mrf.mxu0
        %v4859 = vadd.f32 0.0, %v4858
        %4860 = vmatmul.f32.gmra.mxu0 %v4749
        %v4861 = vpop.f32.mrf.mxu0
        %v4862 = vadd.f32 0.0, %v4861
        %4863 = vmatmul.f32.gmra.mxu0 %v4752
        %v4864 = vpop.f32.mrf.mxu0
        %v4865 = vadd.f32 0.0, %v4864
        %4866 = vmatmul.f32.gmra.mxu0 %v4755
        %v4867 = vpop.f32.mrf.mxu0
        %v4868 = vadd.f32 0.0, %v4867
        %4869 = vmatmul.f32.gmra.mxu0 %v4758
        %v4870 = vpop.f32.mrf.mxu0
        %v4871 = vadd.f32 0.0, %v4870
        %4872 = vmatmul.f32.gmra.mxu0 %v4761
        %v4873 = vpop.f32.mrf.mxu0
        %v4874 = vadd.f32 0.0, %v4873
        %4875 = vmatmul.f32.gmra.mxu0 %v4764
        %v4876 = vpop.f32.mrf.mxu0
        %v4877 = vadd.f32 0.0, %v4876
        %4878 = vmatmul.f32.gmra.mxu0 %v4767
        %v4879 = vpop.f32.mrf.mxu0
        %v4880 = vadd.f32 0.0, %v4879
        %4881 = vdwg.mxu0
        %v4882 = vadd.f32 %v4604, %v4787
        %v4883 = vadd.f32 %v4605, %v4790
        %v4884 = vadd.f32 %v4606, %v4793
        %v4885 = vadd.f32 %v4607, %v4796
        %v4886 = vadd.f32 %v4608, %v4799
        %v4887 = vadd.f32 %v4609, %v4802
        %v4888 = vadd.f32 %v4610, %v4805
        %v4889 = vadd.f32 %v4611, %v4808
        %v4890 = vadd.f32 %v4612, %v4811
        %v4891 = vadd.f32 %v4613, %v4814
        %v4892 = vadd.f32 %v4614, %v4817
        %v4893 = vadd.f32 %v4615, %v4820
        %v4894 = vadd.f32 %v4616, %v4823
        %v4895 = vadd.f32 %v4617, %v4826
        %v4896 = vadd.f32 %v4618, %v4829
        %v4897 = vadd.f32 %v4619, %v4832
        %v4898 = vadd.f32 %v4620, %v4835
        %v4899 = vadd.f32 %v4621, %v4838
        %v4900 = vadd.f32 %v4622, %v4841
        %v4901 = vadd.f32 %v4623, %v4844
        %v4902 = vadd.f32 %v4624, %v4847
        %v4903 = vadd.f32 %v4625, %v4850
        %v4904 = vadd.f32 %v4626, %v4853
        %v4905 = vadd.f32 %v4627, %v4856
        %v4906 = vadd.f32 %v4628, %v4859
        %v4907 = vadd.f32 %v4629, %v4862
        %v4908 = vadd.f32 %v4630, %v4865
        %v4909 = vadd.f32 %v4631, %v4868
        %v4910 = vadd.f32 %v4632, %v4871
        %v4911 = vadd.f32 %v4633, %v4874
        %v4912 = vadd.f32 %v4634, %v4877
        %v4913 = vadd.f32 %v4635, %v4880
        %v4914 = vld [vmem:[%s638 + $0x2] sm:$0xff]
        %v4915 = vld [vmem:[%s638 + $0xa] sm:$0xff]
        %v4916 = vld [vmem:[%s638 + $0x1a] sm:$0xff]
        %v4917 = vld [vmem:[%s638 + $0x22] sm:$0xff]
        %v4918 = vld [vmem:[%s638 + $0x32] sm:$0xff]
        %v4919 = vld [vmem:[%s638 + $0x3a] sm:$0xff]
        %v4920 = vld [vmem:[%s638 + $0x4a] sm:$0xff]
        %v4921 = vld [vmem:[%s638 + $0x52] sm:$0xff]
        %v4922 = vld [vmem:[%s638 + $0x62] sm:$0xff]
        %v4923 = vld [vmem:[%s638 + $0x6a] sm:$0xff]
        %v4924 = vld [vmem:[%s638 + $0x7a] sm:$0xff]
        %v4925 = vld [vmem:[%s638 + $0x82] sm:$0xff]
        %v4926 = vld [vmem:[%s638 + $0x92] sm:$0xff]
        %v4927 = vld [vmem:[%s638 + $0x9a] sm:$0xff]
        %v4928 = vld [vmem:[%s638 + $0xaa] sm:$0xff]
        %v4929 = vld [vmem:[%s638 + $0xb2] sm:$0xff]
        %v4930 = vld [vmem:[%s638 + $0xc2] sm:$0xff]
        %v4931 = vld [vmem:[%s638 + $0xca] sm:$0xff]
        %v4932 = vld [vmem:[%s638 + $0xda] sm:$0xff]
        %v4933 = vld [vmem:[%s638 + $0xe2] sm:$0xff]
        %v4934 = vld [vmem:[%s638 + $0xf2] sm:$0xff]
        %v4935 = vld [vmem:[%s638 + $0xfa] sm:$0xff]
        %v4936 = vld [vmem:[%s638 + $0x10a] sm:$0xff]
        %v4937 = vld [vmem:[%s638 + $0x112] sm:$0xff]
        %v4938 = vld [vmem:[%s638 + $0x122] sm:$0xff]
        %v4939 = vld [vmem:[%s638 + $0x12a] sm:$0xff]
        %v4940 = vld [vmem:[%s638 + $0x13a] sm:$0xff]
        %v4941 = vld [vmem:[%s638 + $0x142] sm:$0xff]
        %v4942 = vld [vmem:[%s638 + $0x152] sm:$0xff]
        %v4943 = vld [vmem:[%s638 + $0x15a] sm:$0xff]
        %v4944 = vld [vmem:[%s638 + $0x16a] sm:$0xff]
        %v4945 = vld [vmem:[%s638 + $0x172] sm:$0xff]
        %s4946 = scalar_lea.vmem [#allocation4], 160
        %v4947 = vld [vmem:[%s4946] sm:$0xff]
        %v4948 = vld [vmem:[%s4946 + $0x8] sm:$0xff]
        %v4949 = vld [vmem:[%s4946 + $0x10] sm:$0xff]
        %v4950 = vld [vmem:[%s4946 + $0x18] sm:$0xff]
        %v4952 = vsel %vm3556, %v4914, 0
        %v4955 = vsel %vm3556, %v4915, 0
        %v4958 = vsel %vm3556, %v4916, 0
        %v4961 = vsel %vm3556, %v4917, 0
        %v4964 = vsel %vm3556, %v4918, 0
        %v4967 = vsel %vm3556, %v4919, 0
        %v4970 = vsel %vm3556, %v4920, 0
        %v4973 = vsel %vm3556, %v4921, 0
        %v4976 = vsel %vm3556, %v4922, 0
        %v4979 = vsel %vm3556, %v4923, 0
        %v4982 = vsel %vm3556, %v4924, 0
        %v4985 = vsel %vm3556, %v4925, 0
        %v4988 = vsel %vm3556, %v4926, 0
        %v4991 = vsel %vm3556, %v4927, 0
        %v4994 = vsel %vm3556, %v4928, 0
        %v4997 = vsel %vm3556, %v4929, 0
        %v5000 = vsel %vm3556, %v4930, 0
        %v5003 = vsel %vm3556, %v4931, 0
        %v5006 = vsel %vm3556, %v4932, 0
        %v5009 = vsel %vm3556, %v4933, 0
        %v5012 = vsel %vm3556, %v4934, 0
        %v5015 = vsel %vm3556, %v4935, 0
        %v5018 = vsel %vm3556, %v4936, 0
        %v5021 = vsel %vm3556, %v4937, 0
        %v5024 = vsel %vm3556, %v4938, 0
        %v5027 = vsel %vm3556, %v4939, 0
        %v5030 = vsel %vm3556, %v4940, 0
        %v5033 = vsel %vm3556, %v4941, 0
        %v5036 = vsel %vm3556, %v4942, 0
        %v5039 = vsel %vm3556, %v4943, 0
        %v5042 = vsel %vm3556, %v4944, 0
        %v5045 = vsel %vm3556, %v4945, 0
        %5047 = vmatpush.msra.mxu0 0.0
        %5048 = vmatpush.msra.mxu0 0.0
        %5049 = vmatpush.msra.mxu0 0.0
        %5050 = vmatpush.msra.mxu0 0.0
        %5051 = vmatpush.msra.mxu0 0.0
        %5052 = vmatpush.msra.mxu0 0.0
        %5053 = vmatpush.msra.mxu0 0.0
        %5054 = vmatpush.msra.mxu0 0.0
        %5055 = vmatpush.msra.mxu0 0.0
        %5056 = vmatpush.msra.mxu0 0.0
        %5057 = vmatpush.msra.mxu0 0.0
        %5058 = vmatpush.msra.mxu0 0.0
        %5059 = vmatpush.msra.mxu0 %v4950
        %5060 = vmatpush.msra.mxu0 %v4949
        %5061 = vmatpush.msra.mxu0 %v4948
        %5062 = vmatpush.msra.mxu0 %v4947
        %5063 = vmatmul.f32.gmra.mxu0 %v4952
        %v5064 = vpop.f32.mrf.mxu0
        %v5065 = vadd.f32 0.0, %v5064
        %5066 = vmatmul.f32.gmra.mxu0 %v4955
        %v5067 = vpop.f32.mrf.mxu0
        %v5068 = vadd.f32 0.0, %v5067
        %5069 = vmatmul.f32.gmra.mxu0 %v4958
        %v5070 = vpop.f32.mrf.mxu0
        %v5071 = vadd.f32 0.0, %v5070
        %5072 = vmatmul.f32.gmra.mxu0 %v4961
        %v5073 = vpop.f32.mrf.mxu0
        %v5074 = vadd.f32 0.0, %v5073
        %5075 = vmatmul.f32.gmra.mxu0 %v4964
        %v5076 = vpop.f32.mrf.mxu0
        %v5077 = vadd.f32 0.0, %v5076
        %5078 = vmatmul.f32.gmra.mxu0 %v4967
        %v5079 = vpop.f32.mrf.mxu0
        %v5080 = vadd.f32 0.0, %v5079
        %5081 = vmatmul.f32.gmra.mxu0 %v4970
        %v5082 = vpop.f32.mrf.mxu0
        %v5083 = vadd.f32 0.0, %v5082
        %5084 = vmatmul.f32.gmra.mxu0 %v4973
        %v5085 = vpop.f32.mrf.mxu0
        %v5086 = vadd.f32 0.0, %v5085
        %5087 = vmatmul.f32.gmra.mxu0 %v4976
        %v5088 = vpop.f32.mrf.mxu0
        %v5089 = vadd.f32 0.0, %v5088
        %5090 = vmatmul.f32.gmra.mxu0 %v4979
        %v5091 = vpop.f32.mrf.mxu0
        %v5092 = vadd.f32 0.0, %v5091
        %5093 = vmatmul.f32.gmra.mxu0 %v4982
        %v5094 = vpop.f32.mrf.mxu0
        %v5095 = vadd.f32 0.0, %v5094
        %5096 = vmatmul.f32.gmra.mxu0 %v4985
        %v5097 = vpop.f32.mrf.mxu0
        %v5098 = vadd.f32 0.0, %v5097
        %5099 = vmatmul.f32.gmra.mxu0 %v4988
        %v5100 = vpop.f32.mrf.mxu0
        %v5101 = vadd.f32 0.0, %v5100
        %5102 = vmatmul.f32.gmra.mxu0 %v4991
        %v5103 = vpop.f32.mrf.mxu0
        %v5104 = vadd.f32 0.0, %v5103
        %5105 = vmatmul.f32.gmra.mxu0 %v4994
        %v5106 = vpop.f32.mrf.mxu0
        %v5107 = vadd.f32 0.0, %v5106
        %5108 = vmatmul.f32.gmra.mxu0 %v4997
        %v5109 = vpop.f32.mrf.mxu0
        %v5110 = vadd.f32 0.0, %v5109
        %5111 = vmatmul.f32.gmra.mxu0 %v5000
        %v5112 = vpop.f32.mrf.mxu0
        %v5113 = vadd.f32 0.0, %v5112
        %5114 = vmatmul.f32.gmra.mxu0 %v5003
        %v5115 = vpop.f32.mrf.mxu0
        %v5116 = vadd.f32 0.0, %v5115
        %5117 = vmatmul.f32.gmra.mxu0 %v5006
        %v5118 = vpop.f32.mrf.mxu0
        %v5119 = vadd.f32 0.0, %v5118
        %5120 = vmatmul.f32.gmra.mxu0 %v5009
        %v5121 = vpop.f32.mrf.mxu0
        %v5122 = vadd.f32 0.0, %v5121
        %5123 = vmatmul.f32.gmra.mxu0 %v5012
        %v5124 = vpop.f32.mrf.mxu0
        %v5125 = vadd.f32 0.0, %v5124
        %5126 = vmatmul.f32.gmra.mxu0 %v5015
        %v5127 = vpop.f32.mrf.mxu0
        %v5128 = vadd.f32 0.0, %v5127
        %5129 = vmatmul.f32.gmra.mxu0 %v5018
        %v5130 = vpop.f32.mrf.mxu0
        %v5131 = vadd.f32 0.0, %v5130
        %5132 = vmatmul.f32.gmra.mxu0 %v5021
        %v5133 = vpop.f32.mrf.mxu0
        %v5134 = vadd.f32 0.0, %v5133
        %5135 = vmatmul.f32.gmra.mxu0 %v5024
        %v5136 = vpop.f32.mrf.mxu0
        %v5137 = vadd.f32 0.0, %v5136
        %5138 = vmatmul.f32.gmra.mxu0 %v5027
        %v5139 = vpop.f32.mrf.mxu0
        %v5140 = vadd.f32 0.0, %v5139
        %5141 = vmatmul.f32.gmra.mxu0 %v5030
        %v5142 = vpop.f32.mrf.mxu0
        %v5143 = vadd.f32 0.0, %v5142
        %5144 = vmatmul.f32.gmra.mxu0 %v5033
        %v5145 = vpop.f32.mrf.mxu0
        %v5146 = vadd.f32 0.0, %v5145
        %5147 = vmatmul.f32.gmra.mxu0 %v5036
        %v5148 = vpop.f32.mrf.mxu0
        %v5149 = vadd.f32 0.0, %v5148
        %5150 = vmatmul.f32.gmra.mxu0 %v5039
        %v5151 = vpop.f32.mrf.mxu0
        %v5152 = vadd.f32 0.0, %v5151
        %5153 = vmatmul.f32.gmra.mxu0 %v5042
        %v5154 = vpop.f32.mrf.mxu0
        %v5155 = vadd.f32 0.0, %v5154
        %5156 = vmatmul.f32.gmra.mxu0 %v5045
        %v5157 = vpop.f32.mrf.mxu0
        %v5158 = vadd.f32 0.0, %v5157
        %5159 = vdwg.mxu0
        %v5160 = vadd.f32 %v4882, %v5065
        %v5161 = vadd.f32 %v4883, %v5068
        %v5162 = vadd.f32 %v4884, %v5071
        %v5163 = vadd.f32 %v4885, %v5074
        %v5164 = vadd.f32 %v4886, %v5077
        %v5165 = vadd.f32 %v4887, %v5080
        %v5166 = vadd.f32 %v4888, %v5083
        %v5167 = vadd.f32 %v4889, %v5086
        %v5168 = vadd.f32 %v4890, %v5089
        %v5169 = vadd.f32 %v4891, %v5092
        %v5170 = vadd.f32 %v4892, %v5095
        %v5171 = vadd.f32 %v4893, %v5098
        %v5172 = vadd.f32 %v4894, %v5101
        %v5173 = vadd.f32 %v4895, %v5104
        %v5174 = vadd.f32 %v4896, %v5107
        %v5175 = vadd.f32 %v4897, %v5110
        %v5176 = vadd.f32 %v4898, %v5113
        %v5177 = vadd.f32 %v4899, %v5116
        %v5178 = vadd.f32 %v4900, %v5119
        %v5179 = vadd.f32 %v4901, %v5122
        %v5180 = vadd.f32 %v4902, %v5125
        %v5181 = vadd.f32 %v4903, %v5128
        %v5182 = vadd.f32 %v4904, %v5131
        %v5183 = vadd.f32 %v4905, %v5134
        %v5184 = vadd.f32 %v4906, %v5137
        %v5185 = vadd.f32 %v4907, %v5140
        %v5186 = vadd.f32 %v4908, %v5143
        %v5187 = vadd.f32 %v4909, %v5146
        %v5188 = vadd.f32 %v4910, %v5149
        %v5189 = vadd.f32 %v4911, %v5152
        %v5190 = vadd.f32 %v4912, %v5155
        %v5191 = vadd.f32 %v4913, %v5158
        %v5192 = vld [vmem:[%s2514] sm:$0xff]
        %v5193 = vld [vmem:[%s2514 + $0x8] sm:$0xff]
        %v5194 = vld [vmem:[%s2514 + $0x18] sm:$0xff]
        %v5195 = vld [vmem:[%s2514 + $0x20] sm:$0xff]
        %v5196 = vld [vmem:[%s2514 + $0x30] sm:$0xff]
        %v5197 = vld [vmem:[%s2514 + $0x38] sm:$0xff]
        %v5198 = vld [vmem:[%s2514 + $0x48] sm:$0xff]
        %v5199 = vld [vmem:[%s2514 + $0x50] sm:$0xff]
        %v5200 = vld [vmem:[%s2514 + $0x60] sm:$0xff]
        %v5201 = vld [vmem:[%s2514 + $0x68] sm:$0xff]
        %v5202 = vld [vmem:[%s2514 + $0x78] sm:$0xff]
        %v5203 = vld [vmem:[%s2514 + $0x80] sm:$0xff]
        %v5204 = vld [vmem:[%s2514 + $0x90] sm:$0xff]
        %v5205 = vld [vmem:[%s2514 + $0x98] sm:$0xff]
        %v5206 = vld [vmem:[%s2514 + $0xa8] sm:$0xff]
        %v5207 = vld [vmem:[%s2514 + $0xb0] sm:$0xff]
        %v5208 = vld [vmem:[%s2514 + $0xc0] sm:$0xff]
        %v5209 = vld [vmem:[%s2514 + $0xc8] sm:$0xff]
        %v5210 = vld [vmem:[%s2514 + $0xd8] sm:$0xff]
        %v5211 = vld [vmem:[%s2514 + $0xe0] sm:$0xff]
        %v5212 = vld [vmem:[%s2514 + $0xf0] sm:$0xff]
        %v5213 = vld [vmem:[%s2514 + $0xf8] sm:$0xff]
        %v5214 = vld [vmem:[%s2514 + $0x108] sm:$0xff]
        %v5215 = vld [vmem:[%s2514 + $0x110] sm:$0xff]
        %v5216 = vld [vmem:[%s2514 + $0x120] sm:$0xff]
        %v5217 = vld [vmem:[%s2514 + $0x128] sm:$0xff]
        %v5218 = vld [vmem:[%s2514 + $0x138] sm:$0xff]
        %v5219 = vld [vmem:[%s2514 + $0x140] sm:$0xff]
        %v5220 = vld [vmem:[%s2514 + $0x150] sm:$0xff]
        %v5221 = vld [vmem:[%s2514 + $0x158] sm:$0xff]
        %v5222 = vld [vmem:[%s2514 + $0x168] sm:$0xff]
        %v5223 = vld [vmem:[%s2514 + $0x170] sm:$0xff]
        %s5224 = scalar_lea.vmem [#allocation4], 192
        %v5225 = vld [vmem:[%s5224] sm:$0xff]
        %v5226 = vld [vmem:[%s5224 + $0x8] sm:$0xff]
        %v5227 = vld [vmem:[%s5224 + $0x10] sm:$0xff]
        %v5228 = vld [vmem:[%s5224 + $0x18] sm:$0xff]
        %v5230 = vsel %vm3556, %v5192, 0
        %v5233 = vsel %vm3556, %v5193, 0
        %v5236 = vsel %vm3556, %v5194, 0
        %v5239 = vsel %vm3556, %v5195, 0
        %v5242 = vsel %vm3556, %v5196, 0
        %v5245 = vsel %vm3556, %v5197, 0
        %v5248 = vsel %vm3556, %v5198, 0
        %v5251 = vsel %vm3556, %v5199, 0
        %v5254 = vsel %vm3556, %v5200, 0
        %v5257 = vsel %vm3556, %v5201, 0
        %v5260 = vsel %vm3556, %v5202, 0
        %v5263 = vsel %vm3556, %v5203, 0
        %v5266 = vsel %vm3556, %v5204, 0
        %v5269 = vsel %vm3556, %v5205, 0
        %v5272 = vsel %vm3556, %v5206, 0
        %v5275 = vsel %vm3556, %v5207, 0
        %v5278 = vsel %vm3556, %v5208, 0
        %v5281 = vsel %vm3556, %v5209, 0
        %v5284 = vsel %vm3556, %v5210, 0
        %v5287 = vsel %vm3556, %v5211, 0
        %v5290 = vsel %vm3556, %v5212, 0
        %v5293 = vsel %vm3556, %v5213, 0
        %v5296 = vsel %vm3556, %v5214, 0
        %v5299 = vsel %vm3556, %v5215, 0
        %v5302 = vsel %vm3556, %v5216, 0
        %v5305 = vsel %vm3556, %v5217, 0
        %v5308 = vsel %vm3556, %v5218, 0
        %v5311 = vsel %vm3556, %v5219, 0
        %v5314 = vsel %vm3556, %v5220, 0
        %v5317 = vsel %vm3556, %v5221, 0
        %v5320 = vsel %vm3556, %v5222, 0
        %v5323 = vsel %vm3556, %v5223, 0
        %5325 = vmatpush.msra.mxu0 0.0
        %5326 = vmatpush.msra.mxu0 0.0
        %5327 = vmatpush.msra.mxu0 0.0
        %5328 = vmatpush.msra.mxu0 0.0
        %5329 = vmatpush.msra.mxu0 0.0
        %5330 = vmatpush.msra.mxu0 0.0
        %5331 = vmatpush.msra.mxu0 0.0
        %5332 = vmatpush.msra.mxu0 0.0
        %5333 = vmatpush.msra.mxu0 0.0
        %5334 = vmatpush.msra.mxu0 0.0
        %5335 = vmatpush.msra.mxu0 0.0
        %5336 = vmatpush.msra.mxu0 0.0
        %5337 = vmatpush.msra.mxu0 %v5228
        %5338 = vmatpush.msra.mxu0 %v5227
        %5339 = vmatpush.msra.mxu0 %v5226
        %5340 = vmatpush.msra.mxu0 %v5225
        %5341 = vmatmul.f32.gmra.mxu0 %v5230
        %v5342 = vpop.f32.mrf.mxu0
        %v5343 = vadd.f32 0.0, %v5342
        %5344 = vmatmul.f32.gmra.mxu0 %v5233
        %v5345 = vpop.f32.mrf.mxu0
        %v5346 = vadd.f32 0.0, %v5345
        %5347 = vmatmul.f32.gmra.mxu0 %v5236
        %v5348 = vpop.f32.mrf.mxu0
        %v5349 = vadd.f32 0.0, %v5348
        %5350 = vmatmul.f32.gmra.mxu0 %v5239
        %v5351 = vpop.f32.mrf.mxu0
        %v5352 = vadd.f32 0.0, %v5351
        %5353 = vmatmul.f32.gmra.mxu0 %v5242
        %v5354 = vpop.f32.mrf.mxu0
        %v5355 = vadd.f32 0.0, %v5354
        %5356 = vmatmul.f32.gmra.mxu0 %v5245
        %v5357 = vpop.f32.mrf.mxu0
        %v5358 = vadd.f32 0.0, %v5357
        %5359 = vmatmul.f32.gmra.mxu0 %v5248
        %v5360 = vpop.f32.mrf.mxu0
        %v5361 = vadd.f32 0.0, %v5360
        %5362 = vmatmul.f32.gmra.mxu0 %v5251
        %v5363 = vpop.f32.mrf.mxu0
        %v5364 = vadd.f32 0.0, %v5363
        %5365 = vmatmul.f32.gmra.mxu0 %v5254
        %v5366 = vpop.f32.mrf.mxu0
        %v5367 = vadd.f32 0.0, %v5366
        %5368 = vmatmul.f32.gmra.mxu0 %v5257
        %v5369 = vpop.f32.mrf.mxu0
        %v5370 = vadd.f32 0.0, %v5369
        %5371 = vmatmul.f32.gmra.mxu0 %v5260
        %v5372 = vpop.f32.mrf.mxu0
        %v5373 = vadd.f32 0.0, %v5372
        %5374 = vmatmul.f32.gmra.mxu0 %v5263
        %v5375 = vpop.f32.mrf.mxu0
        %v5376 = vadd.f32 0.0, %v5375
        %5377 = vmatmul.f32.gmra.mxu0 %v5266
        %v5378 = vpop.f32.mrf.mxu0
        %v5379 = vadd.f32 0.0, %v5378
        %5380 = vmatmul.f32.gmra.mxu0 %v5269
        %v5381 = vpop.f32.mrf.mxu0
        %v5382 = vadd.f32 0.0, %v5381
        %5383 = vmatmul.f32.gmra.mxu0 %v5272
        %v5384 = vpop.f32.mrf.mxu0
        %v5385 = vadd.f32 0.0, %v5384
        %5386 = vmatmul.f32.gmra.mxu0 %v5275
        %v5387 = vpop.f32.mrf.mxu0
        %v5388 = vadd.f32 0.0, %v5387
        %5389 = vmatmul.f32.gmra.mxu0 %v5278
        %v5390 = vpop.f32.mrf.mxu0
        %v5391 = vadd.f32 0.0, %v5390
        %5392 = vmatmul.f32.gmra.mxu0 %v5281
        %v5393 = vpop.f32.mrf.mxu0
        %v5394 = vadd.f32 0.0, %v5393
        %5395 = vmatmul.f32.gmra.mxu0 %v5284
        %v5396 = vpop.f32.mrf.mxu0
        %v5397 = vadd.f32 0.0, %v5396
        %5398 = vmatmul.f32.gmra.mxu0 %v5287
        %v5399 = vpop.f32.mrf.mxu0
        %v5400 = vadd.f32 0.0, %v5399
        %5401 = vmatmul.f32.gmra.mxu0 %v5290
        %v5402 = vpop.f32.mrf.mxu0
        %v5403 = vadd.f32 0.0, %v5402
        %5404 = vmatmul.f32.gmra.mxu0 %v5293
        %v5405 = vpop.f32.mrf.mxu0
        %v5406 = vadd.f32 0.0, %v5405
        %5407 = vmatmul.f32.gmra.mxu0 %v5296
        %v5408 = vpop.f32.mrf.mxu0
        %v5409 = vadd.f32 0.0, %v5408
        %5410 = vmatmul.f32.gmra.mxu0 %v5299
        %v5411 = vpop.f32.mrf.mxu0
        %v5412 = vadd.f32 0.0, %v5411
        %5413 = vmatmul.f32.gmra.mxu0 %v5302
        %v5414 = vpop.f32.mrf.mxu0
        %v5415 = vadd.f32 0.0, %v5414
        %5416 = vmatmul.f32.gmra.mxu0 %v5305
        %v5417 = vpop.f32.mrf.mxu0
        %v5418 = vadd.f32 0.0, %v5417
        %5419 = vmatmul.f32.gmra.mxu0 %v5308
        %v5420 = vpop.f32.mrf.mxu0
        %v5421 = vadd.f32 0.0, %v5420
        %5422 = vmatmul.f32.gmra.mxu0 %v5311
        %v5423 = vpop.f32.mrf.mxu0
        %v5424 = vadd.f32 0.0, %v5423
        %5425 = vmatmul.f32.gmra.mxu0 %v5314
        %v5426 = vpop.f32.mrf.mxu0
        %v5427 = vadd.f32 0.0, %v5426
        %5428 = vmatmul.f32.gmra.mxu0 %v5317
        %v5429 = vpop.f32.mrf.mxu0
        %v5430 = vadd.f32 0.0, %v5429
        %5431 = vmatmul.f32.gmra.mxu0 %v5320
        %v5432 = vpop.f32.mrf.mxu0
        %v5433 = vadd.f32 0.0, %v5432
        %5434 = vmatmul.f32.gmra.mxu0 %v5323
        %v5435 = vpop.f32.mrf.mxu0
        %v5436 = vadd.f32 0.0, %v5435
        %5437 = vdwg.mxu0
        %v5438 = vadd.f32 %v5160, %v5343
        %v5439 = vadd.f32 %v5161, %v5346
        %v5440 = vadd.f32 %v5162, %v5349
        %v5441 = vadd.f32 %v5163, %v5352
        %v5442 = vadd.f32 %v5164, %v5355
        %v5443 = vadd.f32 %v5165, %v5358
        %v5444 = vadd.f32 %v5166, %v5361
        %v5445 = vadd.f32 %v5167, %v5364
        %v5446 = vadd.f32 %v5168, %v5367
        %v5447 = vadd.f32 %v5169, %v5370
        %v5448 = vadd.f32 %v5170, %v5373
        %v5449 = vadd.f32 %v5171, %v5376
        %v5450 = vadd.f32 %v5172, %v5379
        %v5451 = vadd.f32 %v5173, %v5382
        %v5452 = vadd.f32 %v5174, %v5385
        %v5453 = vadd.f32 %v5175, %v5388
        %v5454 = vadd.f32 %v5176, %v5391
        %v5455 = vadd.f32 %v5177, %v5394
        %v5456 = vadd.f32 %v5178, %v5397
        %v5457 = vadd.f32 %v5179, %v5400
        %v5458 = vadd.f32 %v5180, %v5403
        %v5459 = vadd.f32 %v5181, %v5406
        %v5460 = vadd.f32 %v5182, %v5409
        %v5461 = vadd.f32 %v5183, %v5412
        %v5462 = vadd.f32 %v5184, %v5415
        %v5463 = vadd.f32 %v5185, %v5418
        %v5464 = vadd.f32 %v5186, %v5421
        %v5465 = vadd.f32 %v5187, %v5424
        %v5466 = vadd.f32 %v5188, %v5427
        %v5467 = vadd.f32 %v5189, %v5430
        %v5468 = vadd.f32 %v5190, %v5433
        %v5469 = vadd.f32 %v5191, %v5436
        %v5470 = vld [vmem:[%s2514 + $0x1] sm:$0xff]
        %v5471 = vld [vmem:[%s2514 + $0x9] sm:$0xff]
        %v5472 = vld [vmem:[%s2514 + $0x19] sm:$0xff]
        %v5473 = vld [vmem:[%s2514 + $0x21] sm:$0xff]
        %v5474 = vld [vmem:[%s2514 + $0x31] sm:$0xff]
        %v5475 = vld [vmem:[%s2514 + $0x39] sm:$0xff]
        %v5476 = vld [vmem:[%s2514 + $0x49] sm:$0xff]
        %v5477 = vld [vmem:[%s2514 + $0x51] sm:$0xff]
        %v5478 = vld [vmem:[%s2514 + $0x61] sm:$0xff]
        %v5479 = vld [vmem:[%s2514 + $0x69] sm:$0xff]
        %v5480 = vld [vmem:[%s2514 + $0x79] sm:$0xff]
        %v5481 = vld [vmem:[%s2514 + $0x81] sm:$0xff]
        %v5482 = vld [vmem:[%s2514 + $0x91] sm:$0xff]
        %v5483 = vld [vmem:[%s2514 + $0x99] sm:$0xff]
        %v5484 = vld [vmem:[%s2514 + $0xa9] sm:$0xff]
        %v5485 = vld [vmem:[%s2514 + $0xb1] sm:$0xff]
        %v5486 = vld [vmem:[%s2514 + $0xc1] sm:$0xff]
        %v5487 = vld [vmem:[%s2514 + $0xc9] sm:$0xff]
        %v5488 = vld [vmem:[%s2514 + $0xd9] sm:$0xff]
        %v5489 = vld [vmem:[%s2514 + $0xe1] sm:$0xff]
        %v5490 = vld [vmem:[%s2514 + $0xf1] sm:$0xff]
        %v5491 = vld [vmem:[%s2514 + $0xf9] sm:$0xff]
        %v5492 = vld [vmem:[%s2514 + $0x109] sm:$0xff]
        %v5493 = vld [vmem:[%s2514 + $0x111] sm:$0xff]
        %v5494 = vld [vmem:[%s2514 + $0x121] sm:$0xff]
        %v5495 = vld [vmem:[%s2514 + $0x129] sm:$0xff]
        %v5496 = vld [vmem:[%s2514 + $0x139] sm:$0xff]
        %v5497 = vld [vmem:[%s2514 + $0x141] sm:$0xff]
        %v5498 = vld [vmem:[%s2514 + $0x151] sm:$0xff]
        %v5499 = vld [vmem:[%s2514 + $0x159] sm:$0xff]
        %v5500 = vld [vmem:[%s2514 + $0x169] sm:$0xff]
        %v5501 = vld [vmem:[%s2514 + $0x171] sm:$0xff]
        %s5502 = scalar_lea.vmem [#allocation4], 224
        %v5503 = vld [vmem:[%s5502] sm:$0xff]
        %v5504 = vld [vmem:[%s5502 + $0x8] sm:$0xff]
        %v5505 = vld [vmem:[%s5502 + $0x10] sm:$0xff]
        %v5506 = vld [vmem:[%s5502 + $0x18] sm:$0xff]
        %v5508 = vsel %vm3556, %v5470, 0
        %v5511 = vsel %vm3556, %v5471, 0
        %v5514 = vsel %vm3556, %v5472, 0
        %v5517 = vsel %vm3556, %v5473, 0
        %v5520 = vsel %vm3556, %v5474, 0
        %v5523 = vsel %vm3556, %v5475, 0
        %v5526 = vsel %vm3556, %v5476, 0
        %v5529 = vsel %vm3556, %v5477, 0
        %v5532 = vsel %vm3556, %v5478, 0
        %v5535 = vsel %vm3556, %v5479, 0
        %v5538 = vsel %vm3556, %v5480, 0
        %v5541 = vsel %vm3556, %v5481, 0
        %v5544 = vsel %vm3556, %v5482, 0
        %v5547 = vsel %vm3556, %v5483, 0
        %v5550 = vsel %vm3556, %v5484, 0
        %v5553 = vsel %vm3556, %v5485, 0
        %v5556 = vsel %vm3556, %v5486, 0
        %v5559 = vsel %vm3556, %v5487, 0
        %v5562 = vsel %vm3556, %v5488, 0
        %v5565 = vsel %vm3556, %v5489, 0
        %v5568 = vsel %vm3556, %v5490, 0
        %v5571 = vsel %vm3556, %v5491, 0
        %v5574 = vsel %vm3556, %v5492, 0
        %v5577 = vsel %vm3556, %v5493, 0
        %v5580 = vsel %vm3556, %v5494, 0
        %v5583 = vsel %vm3556, %v5495, 0
        %v5586 = vsel %vm3556, %v5496, 0
        %v5589 = vsel %vm3556, %v5497, 0
        %v5592 = vsel %vm3556, %v5498, 0
        %v5595 = vsel %vm3556, %v5499, 0
        %v5598 = vsel %vm3556, %v5500, 0
        %v5601 = vsel %vm3556, %v5501, 0
        %5603 = vmatpush.msra.mxu0 0.0
        %5604 = vmatpush.msra.mxu0 0.0
        %5605 = vmatpush.msra.mxu0 0.0
        %5606 = vmatpush.msra.mxu0 0.0
        %5607 = vmatpush.msra.mxu0 0.0
        %5608 = vmatpush.msra.mxu0 0.0
        %5609 = vmatpush.msra.mxu0 0.0
        %5610 = vmatpush.msra.mxu0 0.0
        %5611 = vmatpush.msra.mxu0 0.0
        %5612 = vmatpush.msra.mxu0 0.0
        %5613 = vmatpush.msra.mxu0 0.0
        %5614 = vmatpush.msra.mxu0 0.0
        %5615 = vmatpush.msra.mxu0 %v5506
        %5616 = vmatpush.msra.mxu0 %v5505
        %5617 = vmatpush.msra.mxu0 %v5504
        %5618 = vmatpush.msra.mxu0 %v5503
        %5619 = vmatmul.f32.gmra.mxu0 %v5508
        %v5620 = vpop.f32.mrf.mxu0
        %v5621 = vadd.f32 0.0, %v5620
        %5622 = vmatmul.f32.gmra.mxu0 %v5511
        %v5623 = vpop.f32.mrf.mxu0
        %v5624 = vadd.f32 0.0, %v5623
        %5625 = vmatmul.f32.gmra.mxu0 %v5514
        %v5626 = vpop.f32.mrf.mxu0
        %v5627 = vadd.f32 0.0, %v5626
        %5628 = vmatmul.f32.gmra.mxu0 %v5517
        %v5629 = vpop.f32.mrf.mxu0
        %v5630 = vadd.f32 0.0, %v5629
        %5631 = vmatmul.f32.gmra.mxu0 %v5520
        %v5632 = vpop.f32.mrf.mxu0
        %v5633 = vadd.f32 0.0, %v5632
        %5634 = vmatmul.f32.gmra.mxu0 %v5523
        %v5635 = vpop.f32.mrf.mxu0
        %v5636 = vadd.f32 0.0, %v5635
        %5637 = vmatmul.f32.gmra.mxu0 %v5526
        %v5638 = vpop.f32.mrf.mxu0
        %v5639 = vadd.f32 0.0, %v5638
        %5640 = vmatmul.f32.gmra.mxu0 %v5529
        %v5641 = vpop.f32.mrf.mxu0
        %v5642 = vadd.f32 0.0, %v5641
        %5643 = vmatmul.f32.gmra.mxu0 %v5532
        %v5644 = vpop.f32.mrf.mxu0
        %v5645 = vadd.f32 0.0, %v5644
        %5646 = vmatmul.f32.gmra.mxu0 %v5535
        %v5647 = vpop.f32.mrf.mxu0
        %v5648 = vadd.f32 0.0, %v5647
        %5649 = vmatmul.f32.gmra.mxu0 %v5538
        %v5650 = vpop.f32.mrf.mxu0
        %v5651 = vadd.f32 0.0, %v5650
        %5652 = vmatmul.f32.gmra.mxu0 %v5541
        %v5653 = vpop.f32.mrf.mxu0
        %v5654 = vadd.f32 0.0, %v5653
        %5655 = vmatmul.f32.gmra.mxu0 %v5544
        %v5656 = vpop.f32.mrf.mxu0
        %v5657 = vadd.f32 0.0, %v5656
        %5658 = vmatmul.f32.gmra.mxu0 %v5547
        %v5659 = vpop.f32.mrf.mxu0
        %v5660 = vadd.f32 0.0, %v5659
        %5661 = vmatmul.f32.gmra.mxu0 %v5550
        %v5662 = vpop.f32.mrf.mxu0
        %v5663 = vadd.f32 0.0, %v5662
        %5664 = vmatmul.f32.gmra.mxu0 %v5553
        %v5665 = vpop.f32.mrf.mxu0
        %v5666 = vadd.f32 0.0, %v5665
        %5667 = vmatmul.f32.gmra.mxu0 %v5556
        %v5668 = vpop.f32.mrf.mxu0
        %v5669 = vadd.f32 0.0, %v5668
        %5670 = vmatmul.f32.gmra.mxu0 %v5559
        %v5671 = vpop.f32.mrf.mxu0
        %v5672 = vadd.f32 0.0, %v5671
        %5673 = vmatmul.f32.gmra.mxu0 %v5562
        %v5674 = vpop.f32.mrf.mxu0
        %v5675 = vadd.f32 0.0, %v5674
        %5676 = vmatmul.f32.gmra.mxu0 %v5565
        %v5677 = vpop.f32.mrf.mxu0
        %v5678 = vadd.f32 0.0, %v5677
        %5679 = vmatmul.f32.gmra.mxu0 %v5568
        %v5680 = vpop.f32.mrf.mxu0
        %v5681 = vadd.f32 0.0, %v5680
        %5682 = vmatmul.f32.gmra.mxu0 %v5571
        %v5683 = vpop.f32.mrf.mxu0
        %v5684 = vadd.f32 0.0, %v5683
        %5685 = vmatmul.f32.gmra.mxu0 %v5574
        %v5686 = vpop.f32.mrf.mxu0
        %v5687 = vadd.f32 0.0, %v5686
        %5688 = vmatmul.f32.gmra.mxu0 %v5577
        %v5689 = vpop.f32.mrf.mxu0
        %v5690 = vadd.f32 0.0, %v5689
        %5691 = vmatmul.f32.gmra.mxu0 %v5580
        %v5692 = vpop.f32.mrf.mxu0
        %v5693 = vadd.f32 0.0, %v5692
        %5694 = vmatmul.f32.gmra.mxu0 %v5583
        %v5695 = vpop.f32.mrf.mxu0
        %v5696 = vadd.f32 0.0, %v5695
        %5697 = vmatmul.f32.gmra.mxu0 %v5586
        %v5698 = vpop.f32.mrf.mxu0
        %v5699 = vadd.f32 0.0, %v5698
        %5700 = vmatmul.f32.gmra.mxu0 %v5589
        %v5701 = vpop.f32.mrf.mxu0
        %v5702 = vadd.f32 0.0, %v5701
        %5703 = vmatmul.f32.gmra.mxu0 %v5592
        %v5704 = vpop.f32.mrf.mxu0
        %v5705 = vadd.f32 0.0, %v5704
        %5706 = vmatmul.f32.gmra.mxu0 %v5595
        %v5707 = vpop.f32.mrf.mxu0
        %v5708 = vadd.f32 0.0, %v5707
        %5709 = vmatmul.f32.gmra.mxu0 %v5598
        %v5710 = vpop.f32.mrf.mxu0
        %v5711 = vadd.f32 0.0, %v5710
        %5712 = vmatmul.f32.gmra.mxu0 %v5601
        %v5713 = vpop.f32.mrf.mxu0
        %v5714 = vadd.f32 0.0, %v5713
        %5715 = vdwg.mxu0
        %v5716 = vadd.f32 %v5438, %v5621
        %v5717 = vadd.f32 %v5439, %v5624
        %v5718 = vadd.f32 %v5440, %v5627
        %v5719 = vadd.f32 %v5441, %v5630
        %v5720 = vadd.f32 %v5442, %v5633
        %v5721 = vadd.f32 %v5443, %v5636
        %v5722 = vadd.f32 %v5444, %v5639
        %v5723 = vadd.f32 %v5445, %v5642
        %v5724 = vadd.f32 %v5446, %v5645
        %v5725 = vadd.f32 %v5447, %v5648
        %v5726 = vadd.f32 %v5448, %v5651
        %v5727 = vadd.f32 %v5449, %v5654
        %v5728 = vadd.f32 %v5450, %v5657
        %v5729 = vadd.f32 %v5451, %v5660
        %v5730 = vadd.f32 %v5452, %v5663
        %v5731 = vadd.f32 %v5453, %v5666
        %v5732 = vadd.f32 %v5454, %v5669
        %v5733 = vadd.f32 %v5455, %v5672
        %v5734 = vadd.f32 %v5456, %v5675
        %v5735 = vadd.f32 %v5457, %v5678
        %v5736 = vadd.f32 %v5458, %v5681
        %v5737 = vadd.f32 %v5459, %v5684
        %v5738 = vadd.f32 %v5460, %v5687
        %v5739 = vadd.f32 %v5461, %v5690
        %v5740 = vadd.f32 %v5462, %v5693
        %v5741 = vadd.f32 %v5463, %v5696
        %v5742 = vadd.f32 %v5464, %v5699
        %v5743 = vadd.f32 %v5465, %v5702
        %v5744 = vadd.f32 %v5466, %v5705
        %v5745 = vadd.f32 %v5467, %v5708
        %v5746 = vadd.f32 %v5468, %v5711
        %v5747 = vadd.f32 %v5469, %v5714
        %v5748 = vld [vmem:[%s2514 + $0x2] sm:$0xff]
        %v5749 = vld [vmem:[%s2514 + $0xa] sm:$0xff]
        %v5750 = vld [vmem:[%s2514 + $0x1a] sm:$0xff]
        %v5751 = vld [vmem:[%s2514 + $0x22] sm:$0xff]
        %v5752 = vld [vmem:[%s2514 + $0x32] sm:$0xff]
        %v5753 = vld [vmem:[%s2514 + $0x3a] sm:$0xff]
        %v5754 = vld [vmem:[%s2514 + $0x4a] sm:$0xff]
        %v5755 = vld [vmem:[%s2514 + $0x52] sm:$0xff]
        %v5756 = vld [vmem:[%s2514 + $0x62] sm:$0xff]
        %v5757 = vld [vmem:[%s2514 + $0x6a] sm:$0xff]
        %v5758 = vld [vmem:[%s2514 + $0x7a] sm:$0xff]
        %v5759 = vld [vmem:[%s2514 + $0x82] sm:$0xff]
        %v5760 = vld [vmem:[%s2514 + $0x92] sm:$0xff]
        %v5761 = vld [vmem:[%s2514 + $0x9a] sm:$0xff]
        %v5762 = vld [vmem:[%s2514 + $0xaa] sm:$0xff]
        %v5763 = vld [vmem:[%s2514 + $0xb2] sm:$0xff]
        %v5764 = vld [vmem:[%s2514 + $0xc2] sm:$0xff]
        %v5765 = vld [vmem:[%s2514 + $0xca] sm:$0xff]
        %v5766 = vld [vmem:[%s2514 + $0xda] sm:$0xff]
        %v5767 = vld [vmem:[%s2514 + $0xe2] sm:$0xff]
        %v5768 = vld [vmem:[%s2514 + $0xf2] sm:$0xff]
        %v5769 = vld [vmem:[%s2514 + $0xfa] sm:$0xff]
        %v5770 = vld [vmem:[%s2514 + $0x10a] sm:$0xff]
        %v5771 = vld [vmem:[%s2514 + $0x112] sm:$0xff]
        %v5772 = vld [vmem:[%s2514 + $0x122] sm:$0xff]
        %v5773 = vld [vmem:[%s2514 + $0x12a] sm:$0xff]
        %v5774 = vld [vmem:[%s2514 + $0x13a] sm:$0xff]
        %v5775 = vld [vmem:[%s2514 + $0x142] sm:$0xff]
        %v5776 = vld [vmem:[%s2514 + $0x152] sm:$0xff]
        %v5777 = vld [vmem:[%s2514 + $0x15a] sm:$0xff]
        %v5778 = vld [vmem:[%s2514 + $0x16a] sm:$0xff]
        %v5779 = vld [vmem:[%s2514 + $0x172] sm:$0xff]
        %s5780 = scalar_lea.vmem [#allocation4], 256
        %v5781 = vld [vmem:[%s5780] sm:$0xff]
        %v5782 = vld [vmem:[%s5780 + $0x8] sm:$0xff]
        %v5783 = vld [vmem:[%s5780 + $0x10] sm:$0xff]
        %v5784 = vld [vmem:[%s5780 + $0x18] sm:$0xff]
        %v5786 = vsel %vm3556, %v5748, 0
        %v5789 = vsel %vm3556, %v5749, 0
        %v5792 = vsel %vm3556, %v5750, 0
        %v5795 = vsel %vm3556, %v5751, 0
        %v5798 = vsel %vm3556, %v5752, 0
        %v5801 = vsel %vm3556, %v5753, 0
        %v5804 = vsel %vm3556, %v5754, 0
        %v5807 = vsel %vm3556, %v5755, 0
        %v5810 = vsel %vm3556, %v5756, 0
        %v5813 = vsel %vm3556, %v5757, 0
        %v5816 = vsel %vm3556, %v5758, 0
        %v5819 = vsel %vm3556, %v5759, 0
        %v5822 = vsel %vm3556, %v5760, 0
        %v5825 = vsel %vm3556, %v5761, 0
        %v5828 = vsel %vm3556, %v5762, 0
        %v5831 = vsel %vm3556, %v5763, 0
        %v5834 = vsel %vm3556, %v5764, 0
        %v5837 = vsel %vm3556, %v5765, 0
        %v5840 = vsel %vm3556, %v5766, 0
        %v5843 = vsel %vm3556, %v5767, 0
        %v5846 = vsel %vm3556, %v5768, 0
        %v5849 = vsel %vm3556, %v5769, 0
        %v5852 = vsel %vm3556, %v5770, 0
        %v5855 = vsel %vm3556, %v5771, 0
        %v5858 = vsel %vm3556, %v5772, 0
        %v5861 = vsel %vm3556, %v5773, 0
        %v5864 = vsel %vm3556, %v5774, 0
        %v5867 = vsel %vm3556, %v5775, 0
        %v5870 = vsel %vm3556, %v5776, 0
        %v5873 = vsel %vm3556, %v5777, 0
        %v5876 = vsel %vm3556, %v5778, 0
        %v5879 = vsel %vm3556, %v5779, 0
        %5881 = vmatpush.msra.mxu0 0.0
        %5882 = vmatpush.msra.mxu0 0.0
        %5883 = vmatpush.msra.mxu0 0.0
        %5884 = vmatpush.msra.mxu0 0.0
        %5885 = vmatpush.msra.mxu0 0.0
        %5886 = vmatpush.msra.mxu0 0.0
        %5887 = vmatpush.msra.mxu0 0.0
        %5888 = vmatpush.msra.mxu0 0.0
        %5889 = vmatpush.msra.mxu0 0.0
        %5890 = vmatpush.msra.mxu0 0.0
        %5891 = vmatpush.msra.mxu0 0.0
        %5892 = vmatpush.msra.mxu0 0.0
        %5893 = vmatpush.msra.mxu0 %v5784
        %5894 = vmatpush.msra.mxu0 %v5783
        %5895 = vmatpush.msra.mxu0 %v5782
        %5896 = vmatpush.msra.mxu0 %v5781
        %5897 = vmatmul.f32.gmra.mxu0 %v5786
        %v5898 = vpop.f32.mrf.mxu0
        %v5899 = vadd.f32 0.0, %v5898
        %5900 = vmatmul.f32.gmra.mxu0 %v5789
        %v5901 = vpop.f32.mrf.mxu0
        %v5902 = vadd.f32 0.0, %v5901
        %5903 = vmatmul.f32.gmra.mxu0 %v5792
        %v5904 = vpop.f32.mrf.mxu0
        %v5905 = vadd.f32 0.0, %v5904
        %5906 = vmatmul.f32.gmra.mxu0 %v5795
        %v5907 = vpop.f32.mrf.mxu0
        %v5908 = vadd.f32 0.0, %v5907
        %5909 = vmatmul.f32.gmra.mxu0 %v5798
        %v5910 = vpop.f32.mrf.mxu0
        %v5911 = vadd.f32 0.0, %v5910
        %5912 = vmatmul.f32.gmra.mxu0 %v5801
        %v5913 = vpop.f32.mrf.mxu0
        %v5914 = vadd.f32 0.0, %v5913
        %5915 = vmatmul.f32.gmra.mxu0 %v5804
        %v5916 = vpop.f32.mrf.mxu0
        %v5917 = vadd.f32 0.0, %v5916
        %5918 = vmatmul.f32.gmra.mxu0 %v5807
        %v5919 = vpop.f32.mrf.mxu0
        %v5920 = vadd.f32 0.0, %v5919
        %5921 = vmatmul.f32.gmra.mxu0 %v5810
        %v5922 = vpop.f32.mrf.mxu0
        %v5923 = vadd.f32 0.0, %v5922
        %5924 = vmatmul.f32.gmra.mxu0 %v5813
        %v5925 = vpop.f32.mrf.mxu0
        %v5926 = vadd.f32 0.0, %v5925
        %5927 = vmatmul.f32.gmra.mxu0 %v5816
        %v5928 = vpop.f32.mrf.mxu0
        %v5929 = vadd.f32 0.0, %v5928
        %5930 = vmatmul.f32.gmra.mxu0 %v5819
        %v5931 = vpop.f32.mrf.mxu0
        %v5932 = vadd.f32 0.0, %v5931
        %5933 = vmatmul.f32.gmra.mxu0 %v5822
        %v5934 = vpop.f32.mrf.mxu0
        %v5935 = vadd.f32 0.0, %v5934
        %5936 = vmatmul.f32.gmra.mxu0 %v5825
        %v5937 = vpop.f32.mrf.mxu0
        %v5938 = vadd.f32 0.0, %v5937
        %5939 = vmatmul.f32.gmra.mxu0 %v5828
        %v5940 = vpop.f32.mrf.mxu0
        %v5941 = vadd.f32 0.0, %v5940
        %5942 = vmatmul.f32.gmra.mxu0 %v5831
        %v5943 = vpop.f32.mrf.mxu0
        %v5944 = vadd.f32 0.0, %v5943
        %5945 = vmatmul.f32.gmra.mxu0 %v5834
        %v5946 = vpop.f32.mrf.mxu0
        %v5947 = vadd.f32 0.0, %v5946
        %5948 = vmatmul.f32.gmra.mxu0 %v5837
        %v5949 = vpop.f32.mrf.mxu0
        %v5950 = vadd.f32 0.0, %v5949
        %5951 = vmatmul.f32.gmra.mxu0 %v5840
        %v5952 = vpop.f32.mrf.mxu0
        %v5953 = vadd.f32 0.0, %v5952
        %5954 = vmatmul.f32.gmra.mxu0 %v5843
        %v5955 = vpop.f32.mrf.mxu0
        %v5956 = vadd.f32 0.0, %v5955
        %5957 = vmatmul.f32.gmra.mxu0 %v5846
        %v5958 = vpop.f32.mrf.mxu0
        %v5959 = vadd.f32 0.0, %v5958
        %5960 = vmatmul.f32.gmra.mxu0 %v5849
        %v5961 = vpop.f32.mrf.mxu0
        %v5962 = vadd.f32 0.0, %v5961
        %5963 = vmatmul.f32.gmra.mxu0 %v5852
        %v5964 = vpop.f32.mrf.mxu0
        %v5965 = vadd.f32 0.0, %v5964
        %5966 = vmatmul.f32.gmra.mxu0 %v5855
        %v5967 = vpop.f32.mrf.mxu0
        %v5968 = vadd.f32 0.0, %v5967
        %5969 = vmatmul.f32.gmra.mxu0 %v5858
        %v5970 = vpop.f32.mrf.mxu0
        %v5971 = vadd.f32 0.0, %v5970
        %5972 = vmatmul.f32.gmra.mxu0 %v5861
        %v5973 = vpop.f32.mrf.mxu0
        %v5974 = vadd.f32 0.0, %v5973
        %5975 = vmatmul.f32.gmra.mxu0 %v5864
        %v5976 = vpop.f32.mrf.mxu0
        %v5977 = vadd.f32 0.0, %v5976
        %5978 = vmatmul.f32.gmra.mxu0 %v5867
        %v5979 = vpop.f32.mrf.mxu0
        %v5980 = vadd.f32 0.0, %v5979
        %5981 = vmatmul.f32.gmra.mxu0 %v5870
        %v5982 = vpop.f32.mrf.mxu0
        %v5983 = vadd.f32 0.0, %v5982
        %5984 = vmatmul.f32.gmra.mxu0 %v5873
        %v5985 = vpop.f32.mrf.mxu0
        %v5986 = vadd.f32 0.0, %v5985
        %5987 = vmatmul.f32.gmra.mxu0 %v5876
        %v5988 = vpop.f32.mrf.mxu0
        %v5989 = vadd.f32 0.0, %v5988
        %5990 = vmatmul.f32.gmra.mxu0 %v5879
        %v5991 = vpop.f32.mrf.mxu0
        %v5992 = vadd.f32 0.0, %v5991
        %5993 = vdwg.mxu0
        %v5994 = vadd.f32 %v5716, %v5899
        %v5995 = vadd.f32 %v5717, %v5902
        %v5996 = vadd.f32 %v5718, %v5905
        %v5997 = vadd.f32 %v5719, %v5908
        %v5998 = vadd.f32 %v5720, %v5911
        %v5999 = vadd.f32 %v5721, %v5914
        %v6000 = vadd.f32 %v5722, %v5917
        %v6001 = vadd.f32 %v5723, %v5920
        %v6002 = vadd.f32 %v5724, %v5923
        %v6003 = vadd.f32 %v5725, %v5926
        %v6004 = vadd.f32 %v5726, %v5929
        %v6005 = vadd.f32 %v5727, %v5932
        %v6006 = vadd.f32 %v5728, %v5935
        %v6007 = vadd.f32 %v5729, %v5938
        %v6008 = vadd.f32 %v5730, %v5941
        %v6009 = vadd.f32 %v5731, %v5944
        %v6010 = vadd.f32 %v5732, %v5947
        %v6011 = vadd.f32 %v5733, %v5950
        %v6012 = vadd.f32 %v5734, %v5953
        %v6013 = vadd.f32 %v5735, %v5956
        %v6014 = vadd.f32 %v5736, %v5959
        %v6015 = vadd.f32 %v5737, %v5962
        %v6016 = vadd.f32 %v5738, %v5965
        %v6017 = vadd.f32 %v5739, %v5968
        %v6018 = vadd.f32 %v5740, %v5971
        %v6019 = vadd.f32 %v5741, %v5974
        %v6020 = vadd.f32 %v5742, %v5977
        %v6021 = vadd.f32 %v5743, %v5980
        %v6022 = vadd.f32 %v5744, %v5983
        %v6023 = vadd.f32 %v5745, %v5986
        %v6024 = vadd.f32 %v5746, %v5989
        %v6025 = vadd.f32 %v5747, %v5992
        %v6026 = vld [vmem:[%s9] sm:$0x1]
        %v6028 = vperm.slane %v6026, 0
        %v6030 = vadd.f32 %v5994, %v6028
        %v6031 = vadd.f32 %v5995, %v6028
        %v6032 = vadd.f32 %v5996, %v6028
        %v6033 = vadd.f32 %v5997, %v6028
        %v6034 = vadd.f32 %v5998, %v6028
        %v6035 = vadd.f32 %v5999, %v6028
        %v6036 = vadd.f32 %v6000, %v6028
        %v6037 = vadd.f32 %v6001, %v6028
        %v6038 = vadd.f32 %v6002, %v6028
        %v6039 = vadd.f32 %v6003, %v6028
        %v6040 = vadd.f32 %v6004, %v6028
        %v6041 = vadd.f32 %v6005, %v6028
        %v6042 = vadd.f32 %v6006, %v6028
        %v6043 = vadd.f32 %v6007, %v6028
        %v6044 = vadd.f32 %v6008, %v6028
        %v6045 = vadd.f32 %v6009, %v6028
        %v6046 = vadd.f32 %v6010, %v6028
        %v6047 = vadd.f32 %v6011, %v6028
        %v6048 = vadd.f32 %v6012, %v6028
        %v6049 = vadd.f32 %v6013, %v6028
        %v6050 = vadd.f32 %v6014, %v6028
        %v6051 = vadd.f32 %v6015, %v6028
        %v6052 = vadd.f32 %v6016, %v6028
        %v6053 = vadd.f32 %v6017, %v6028
        %v6054 = vadd.f32 %v6018, %v6028
        %v6055 = vadd.f32 %v6019, %v6028
        %v6056 = vadd.f32 %v6020, %v6028
        %v6057 = vadd.f32 %v6021, %v6028
        %v6058 = vadd.f32 %v6022, %v6028
        %v6059 = vadd.f32 %v6023, %v6028
        %v6060 = vadd.f32 %v6024, %v6028
        %v6061 = vadd.f32 %v6025, %v6028
        %v6062 = vadd.f32 %v3356, %v6030
        %v6063 = vadd.f32 %v3357, %v6031
        %v6064 = vadd.f32 %v3358, %v6032
        %v6065 = vadd.f32 %v3359, %v6033
        %v6066 = vadd.f32 %v3360, %v6034
        %v6067 = vadd.f32 %v3361, %v6035
        %v6068 = vadd.f32 %v3362, %v6036
        %v6069 = vadd.f32 %v3363, %v6037
        %v6070 = vadd.f32 %v3364, %v6038
        %v6071 = vadd.f32 %v3365, %v6039
        %v6072 = vadd.f32 %v3366, %v6040
        %v6073 = vadd.f32 %v3367, %v6041
        %v6074 = vadd.f32 %v3368, %v6042
        %v6075 = vadd.f32 %v3369, %v6043
        %v6076 = vadd.f32 %v3370, %v6044
        %v6077 = vadd.f32 %v3371, %v6045
        %v6078 = vadd.f32 %v3372, %v6046
        %v6079 = vadd.f32 %v3373, %v6047
        %v6080 = vadd.f32 %v3374, %v6048
        %v6081 = vadd.f32 %v3375, %v6049
        %v6082 = vadd.f32 %v3376, %v6050
        %v6083 = vadd.f32 %v3377, %v6051
        %v6084 = vadd.f32 %v3378, %v6052
        %v6085 = vadd.f32 %v3379, %v6053
        %v6086 = vadd.f32 %v3380, %v6054
        %v6087 = vadd.f32 %v3381, %v6055
        %v6088 = vadd.f32 %v3382, %v6056
        %v6089 = vadd.f32 %v3383, %v6057
        %v6090 = vadd.f32 %v3384, %v6058
        %v6091 = vadd.f32 %v3385, %v6059
        %v6092 = vadd.f32 %v3386, %v6060
        %v6093 = vadd.f32 %v3387, %v6061
        %v6094 = vld [vmem:[%s10] sm:$0x1]
        %v6096 = vperm.slane %v6094, 0
        %v6098 = vmul.f32 %v6062, %v6096
        %v6099 = vmul.f32 %v6063, %v6096
        %v6100 = vmul.f32 %v6064, %v6096
        %v6101 = vmul.f32 %v6065, %v6096
        %v6102 = vmul.f32 %v6066, %v6096
        %v6103 = vmul.f32 %v6067, %v6096
        %v6104 = vmul.f32 %v6068, %v6096
        %v6105 = vmul.f32 %v6069, %v6096
        %v6106 = vmul.f32 %v6070, %v6096
        %v6107 = vmul.f32 %v6071, %v6096
        %v6108 = vmul.f32 %v6072, %v6096
        %v6109 = vmul.f32 %v6073, %v6096
        %v6110 = vmul.f32 %v6074, %v6096
        %v6111 = vmul.f32 %v6075, %v6096
        %v6112 = vmul.f32 %v6076, %v6096
        %v6113 = vmul.f32 %v6077, %v6096
        %v6114 = vmul.f32 %v6078, %v6096
        %v6115 = vmul.f32 %v6079, %v6096
        %v6116 = vmul.f32 %v6080, %v6096
        %v6117 = vmul.f32 %v6081, %v6096
        %v6118 = vmul.f32 %v6082, %v6096
        %v6119 = vmul.f32 %v6083, %v6096
        %v6120 = vmul.f32 %v6084, %v6096
        %v6121 = vmul.f32 %v6085, %v6096
        %v6122 = vmul.f32 %v6086, %v6096
        %v6123 = vmul.f32 %v6087, %v6096
        %v6124 = vmul.f32 %v6088, %v6096
        %v6125 = vmul.f32 %v6089, %v6096
        %v6126 = vmul.f32 %v6090, %v6096
        %v6127 = vmul.f32 %v6091, %v6096
        %v6128 = vmul.f32 %v6092, %v6096
        %v6129 = vmul.f32 %v6093, %v6096
        %v6130 = vld [vmem:[%s11] sm:$0x1]
        %v6132 = vperm.slane %v6130, 0
        %v6134 = vadd.f32 %v6098, %v6132
        %v6135 = vadd.f32 %v6099, %v6132
        %v6136 = vadd.f32 %v6100, %v6132
        %v6137 = vadd.f32 %v6101, %v6132
        %v6138 = vadd.f32 %v6102, %v6132
        %v6139 = vadd.f32 %v6103, %v6132
        %v6140 = vadd.f32 %v6104, %v6132
        %v6141 = vadd.f32 %v6105, %v6132
        %v6142 = vadd.f32 %v6106, %v6132
        %v6143 = vadd.f32 %v6107, %v6132
        %v6144 = vadd.f32 %v6108, %v6132
        %v6145 = vadd.f32 %v6109, %v6132
        %v6146 = vadd.f32 %v6110, %v6132
        %v6147 = vadd.f32 %v6111, %v6132
        %v6148 = vadd.f32 %v6112, %v6132
        %v6149 = vadd.f32 %v6113, %v6132
        %v6150 = vadd.f32 %v6114, %v6132
        %v6151 = vadd.f32 %v6115, %v6132
        %v6152 = vadd.f32 %v6116, %v6132
        %v6153 = vadd.f32 %v6117, %v6132
        %v6154 = vadd.f32 %v6118, %v6132
        %v6155 = vadd.f32 %v6119, %v6132
        %v6156 = vadd.f32 %v6120, %v6132
        %v6157 = vadd.f32 %v6121, %v6132
        %v6158 = vadd.f32 %v6122, %v6132
        %v6159 = vadd.f32 %v6123, %v6132
        %v6160 = vadd.f32 %v6124, %v6132
        %v6161 = vadd.f32 %v6125, %v6132
        %v6162 = vadd.f32 %v6126, %v6132
        %v6163 = vadd.f32 %v6127, %v6132
        %v6164 = vadd.f32 %v6128, %v6132
        %v6165 = vadd.f32 %v6129, %v6132
        %vm6166 = vcmp.gt.f32.partialorder %v6134, 0.0
        %vm6167 = vcmp.gt.f32.partialorder %v6135, 0.0
        %vm6168 = vcmp.gt.f32.partialorder %v6136, 0.0
        %vm6169 = vcmp.gt.f32.partialorder %v6137, 0.0
        %vm6170 = vcmp.gt.f32.partialorder %v6138, 0.0
        %vm6171 = vcmp.gt.f32.partialorder %v6139, 0.0
        %vm6172 = vcmp.gt.f32.partialorder %v6140, 0.0
        %vm6173 = vcmp.gt.f32.partialorder %v6141, 0.0
        %vm6174 = vcmp.gt.f32.partialorder %v6142, 0.0
        %vm6175 = vcmp.gt.f32.partialorder %v6143, 0.0
        %vm6176 = vcmp.gt.f32.partialorder %v6144, 0.0
        %vm6177 = vcmp.gt.f32.partialorder %v6145, 0.0
        %vm6178 = vcmp.gt.f32.partialorder %v6146, 0.0
        %vm6179 = vcmp.gt.f32.partialorder %v6147, 0.0
        %vm6180 = vcmp.gt.f32.partialorder %v6148, 0.0
        %vm6181 = vcmp.gt.f32.partialorder %v6149, 0.0
        %vm6182 = vcmp.gt.f32.partialorder %v6150, 0.0
        %vm6183 = vcmp.gt.f32.partialorder %v6151, 0.0
        %vm6184 = vcmp.gt.f32.partialorder %v6152, 0.0
        %vm6185 = vcmp.gt.f32.partialorder %v6153, 0.0
        %vm6186 = vcmp.gt.f32.partialorder %v6154, 0.0
        %vm6187 = vcmp.gt.f32.partialorder %v6155, 0.0
        %vm6188 = vcmp.gt.f32.partialorder %v6156, 0.0
        %vm6189 = vcmp.gt.f32.partialorder %v6157, 0.0
        %vm6190 = vcmp.gt.f32.partialorder %v6158, 0.0
        %vm6191 = vcmp.gt.f32.partialorder %v6159, 0.0
        %vm6192 = vcmp.gt.f32.partialorder %v6160, 0.0
        %vm6193 = vcmp.gt.f32.partialorder %v6161, 0.0
        %vm6194 = vcmp.gt.f32.partialorder %v6162, 0.0
        %vm6195 = vcmp.gt.f32.partialorder %v6163, 0.0
        %vm6196 = vcmp.gt.f32.partialorder %v6164, 0.0
        %vm6197 = vcmp.gt.f32.partialorder %v6165, 0.0
        %v6198 = vmul.f32 %v808, %v6134
        %v6199 = vmul.f32 %v808, %v6135
        %v6200 = vmul.f32 %v808, %v6136
        %v6201 = vmul.f32 %v808, %v6137
        %v6202 = vmul.f32 %v808, %v6138
        %v6203 = vmul.f32 %v808, %v6139
        %v6204 = vmul.f32 %v808, %v6140
        %v6205 = vmul.f32 %v808, %v6141
        %v6206 = vmul.f32 %v808, %v6142
        %v6207 = vmul.f32 %v808, %v6143
        %v6208 = vmul.f32 %v808, %v6144
        %v6209 = vmul.f32 %v808, %v6145
        %v6210 = vmul.f32 %v808, %v6146
        %v6211 = vmul.f32 %v808, %v6147
        %v6212 = vmul.f32 %v808, %v6148
        %v6213 = vmul.f32 %v808, %v6149
        %v6214 = vmul.f32 %v808, %v6150
        %v6215 = vmul.f32 %v808, %v6151
        %v6216 = vmul.f32 %v808, %v6152
        %v6217 = vmul.f32 %v808, %v6153
        %v6218 = vmul.f32 %v808, %v6154
        %v6219 = vmul.f32 %v808, %v6155
        %v6220 = vmul.f32 %v808, %v6156
        %v6221 = vmul.f32 %v808, %v6157
        %v6222 = vmul.f32 %v808, %v6158
        %v6223 = vmul.f32 %v808, %v6159
        %v6224 = vmul.f32 %v808, %v6160
        %v6225 = vmul.f32 %v808, %v6161
        %v6226 = vmul.f32 %v808, %v6162
        %v6227 = vmul.f32 %v808, %v6163
        %v6228 = vmul.f32 %v808, %v6164
        %v6229 = vmul.f32 %v808, %v6165
        %v6230 = vsel %vm6166, %v6134, %v6198
        %v6231 = vsel %vm6167, %v6135, %v6199
        %v6232 = vsel %vm6168, %v6136, %v6200
        %v6233 = vsel %vm6169, %v6137, %v6201
        %v6234 = vsel %vm6170, %v6138, %v6202
        %v6235 = vsel %vm6171, %v6139, %v6203
        %v6236 = vsel %vm6172, %v6140, %v6204
        %v6237 = vsel %vm6173, %v6141, %v6205
        %v6238 = vsel %vm6174, %v6142, %v6206
        %v6239 = vsel %vm6175, %v6143, %v6207
        %v6240 = vsel %vm6176, %v6144, %v6208
        %v6241 = vsel %vm6177, %v6145, %v6209
        %v6242 = vsel %vm6178, %v6146, %v6210
        %v6243 = vsel %vm6179, %v6147, %v6211
        %v6244 = vsel %vm6180, %v6148, %v6212
        %v6245 = vsel %vm6181, %v6149, %v6213
        %v6246 = vsel %vm6182, %v6150, %v6214
        %v6247 = vsel %vm6183, %v6151, %v6215
        %v6248 = vsel %vm6184, %v6152, %v6216
        %v6249 = vsel %vm6185, %v6153, %v6217
        %v6250 = vsel %vm6186, %v6154, %v6218
        %v6251 = vsel %vm6187, %v6155, %v6219
        %v6252 = vsel %vm6188, %v6156, %v6220
        %v6253 = vsel %vm6189, %v6157, %v6221
        %v6254 = vsel %vm6190, %v6158, %v6222
        %v6255 = vsel %vm6191, %v6159, %v6223
        %v6256 = vsel %vm6192, %v6160, %v6224
        %v6257 = vsel %vm6193, %v6161, %v6225
        %v6258 = vsel %vm6194, %v6162, %v6226
        %v6259 = vsel %vm6195, %v6163, %v6227
        %v6260 = vsel %vm6196, %v6164, %v6228
        %v6261 = vsel %vm6197, %v6165, %v6229
        %6262 = vst.msk [vmem:[%s638 + $0x1] sm:$0xff] %vm3556, %v6230
        %6263 = vst.msk [vmem:[%s638 + $0x9] sm:$0xff] %vm3556, %v6231
        %6264 = vst.msk [vmem:[%s638 + $0x19] sm:$0xff] %vm3556, %v6232
        %6265 = vst.msk [vmem:[%s638 + $0x21] sm:$0xff] %vm3556, %v6233
        %6266 = vst.msk [vmem:[%s638 + $0x31] sm:$0xff] %vm3556, %v6234
        %6267 = vst.msk [vmem:[%s638 + $0x39] sm:$0xff] %vm3556, %v6235
        %6268 = vst.msk [vmem:[%s638 + $0x49] sm:$0xff] %vm3556, %v6236
        %6269 = vst.msk [vmem:[%s638 + $0x51] sm:$0xff] %vm3556, %v6237
        %6270 = vst.msk [vmem:[%s638 + $0x61] sm:$0xff] %vm3556, %v6238
        %6271 = vst.msk [vmem:[%s638 + $0x69] sm:$0xff] %vm3556, %v6239
        %6272 = vst.msk [vmem:[%s638 + $0x79] sm:$0xff] %vm3556, %v6240
        %6273 = vst.msk [vmem:[%s638 + $0x81] sm:$0xff] %vm3556, %v6241
        %6274 = vst.msk [vmem:[%s638 + $0x91] sm:$0xff] %vm3556, %v6242
        %6275 = vst.msk [vmem:[%s638 + $0x99] sm:$0xff] %vm3556, %v6243
        %6276 = vst.msk [vmem:[%s638 + $0xa9] sm:$0xff] %vm3556, %v6244
        %6277 = vst.msk [vmem:[%s638 + $0xb1] sm:$0xff] %vm3556, %v6245
        %6278 = vst.msk [vmem:[%s638 + $0xc1] sm:$0xff] %vm3556, %v6246
        %6279 = vst.msk [vmem:[%s638 + $0xc9] sm:$0xff] %vm3556, %v6247
        %6280 = vst.msk [vmem:[%s638 + $0xd9] sm:$0xff] %vm3556, %v6248
        %6281 = vst.msk [vmem:[%s638 + $0xe1] sm:$0xff] %vm3556, %v6249
        %6282 = vst.msk [vmem:[%s638 + $0xf1] sm:$0xff] %vm3556, %v6250
        %6283 = vst.msk [vmem:[%s638 + $0xf9] sm:$0xff] %vm3556, %v6251
        %6284 = vst.msk [vmem:[%s638 + $0x109] sm:$0xff] %vm3556, %v6252
        %6285 = vst.msk [vmem:[%s638 + $0x111] sm:$0xff] %vm3556, %v6253
        %6286 = vst.msk [vmem:[%s638 + $0x121] sm:$0xff] %vm3556, %v6254
        %6287 = vst.msk [vmem:[%s638 + $0x129] sm:$0xff] %vm3556, %v6255
        %6288 = vst.msk [vmem:[%s638 + $0x139] sm:$0xff] %vm3556, %v6256
        %6289 = vst.msk [vmem:[%s638 + $0x141] sm:$0xff] %vm3556, %v6257
        %6290 = vst.msk [vmem:[%s638 + $0x151] sm:$0xff] %vm3556, %v6258
        %6291 = vst.msk [vmem:[%s638 + $0x159] sm:$0xff] %vm3556, %v6259
        %6292 = vst.msk [vmem:[%s638 + $0x169] sm:$0xff] %vm3556, %v6260
        %6293 = vst.msk [vmem:[%s638 + $0x171] sm:$0xff] %vm3556, %v6261
        %v6294 = vld [vmem:[#allocation2] sm:$0xff]
        %v6295 = vld [vmem:[#allocation2 + $0x8] sm:$0xff]
        %v6296 = vld [vmem:[#allocation2 + $0x18] sm:$0xff]
        %v6297 = vld [vmem:[#allocation2 + $0x20] sm:$0xff]
        %v6298 = vld [vmem:[#allocation2 + $0x30] sm:$0xff]
        %v6299 = vld [vmem:[#allocation2 + $0x38] sm:$0xff]
        %v6300 = vld [vmem:[#allocation2 + $0x48] sm:$0xff]
        %v6301 = vld [vmem:[#allocation2 + $0x50] sm:$0xff]
        %v6302 = vld [vmem:[#allocation2 + $0x60] sm:$0xff]
        %v6303 = vld [vmem:[#allocation2 + $0x68] sm:$0xff]
        %v6304 = vld [vmem:[#allocation2 + $0x78] sm:$0xff]
        %v6305 = vld [vmem:[#allocation2 + $0x80] sm:$0xff]
        %v6306 = vld [vmem:[#allocation2 + $0x90] sm:$0xff]
        %v6307 = vld [vmem:[#allocation2 + $0x98] sm:$0xff]
        %v6308 = vld [vmem:[#allocation2 + $0xa8] sm:$0xff]
        %v6309 = vld [vmem:[#allocation2 + $0xb0] sm:$0xff]
        %v6310 = vld [vmem:[#allocation2 + $0xc0] sm:$0xff]
        %v6311 = vld [vmem:[#allocation2 + $0xc8] sm:$0xff]
        %v6312 = vld [vmem:[#allocation2 + $0xd8] sm:$0xff]
        %v6313 = vld [vmem:[#allocation2 + $0xe0] sm:$0xff]
        %v6314 = vld [vmem:[#allocation2 + $0xf0] sm:$0xff]
        %v6315 = vld [vmem:[#allocation2 + $0xf8] sm:$0xff]
        %v6316 = vld [vmem:[#allocation2 + $0x108] sm:$0xff]
        %v6317 = vld [vmem:[#allocation2 + $0x110] sm:$0xff]
        %v6318 = vld [vmem:[#allocation2 + $0x120] sm:$0xff]
        %v6319 = vld [vmem:[#allocation2 + $0x128] sm:$0xff]
        %v6320 = vld [vmem:[#allocation2 + $0x138] sm:$0xff]
        %v6321 = vld [vmem:[#allocation2 + $0x140] sm:$0xff]
        %v6322 = vld [vmem:[#allocation2 + $0x150] sm:$0xff]
        %v6323 = vld [vmem:[#allocation2 + $0x158] sm:$0xff]
        %v6324 = vld [vmem:[#allocation2 + $0x168] sm:$0xff]
        %v6325 = vld [vmem:[#allocation2 + $0x170] sm:$0xff]
        %v6326 = vld [vmem:[#allocation6] sm:$0xff]
        %v6327 = vld [vmem:[#allocation6 + $0x8] sm:$0xff]
        %v6328 = vld [vmem:[#allocation6 + $0x10] sm:$0xff]
        %v6329 = vld [vmem:[#allocation6 + $0x18] sm:$0xff]
        %v6330 = vld [vmem:[#allocation2 + $0x1] sm:$0xff]
        %v6331 = vld [vmem:[#allocation2 + $0x9] sm:$0xff]
        %v6332 = vld [vmem:[#allocation2 + $0x19] sm:$0xff]
        %v6333 = vld [vmem:[#allocation2 + $0x21] sm:$0xff]
        %v6334 = vld [vmem:[#allocation2 + $0x31] sm:$0xff]
        %v6335 = vld [vmem:[#allocation2 + $0x39] sm:$0xff]
        %v6336 = vld [vmem:[#allocation2 + $0x49] sm:$0xff]
        %v6337 = vld [vmem:[#allocation2 + $0x51] sm:$0xff]
        %v6338 = vld [vmem:[#allocation2 + $0x61] sm:$0xff]
        %v6339 = vld [vmem:[#allocation2 + $0x69] sm:$0xff]
        %v6340 = vld [vmem:[#allocation2 + $0x79] sm:$0xff]
        %v6341 = vld [vmem:[#allocation2 + $0x81] sm:$0xff]
        %v6342 = vld [vmem:[#allocation2 + $0x91] sm:$0xff]
        %v6343 = vld [vmem:[#allocation2 + $0x99] sm:$0xff]
        %v6344 = vld [vmem:[#allocation2 + $0xa9] sm:$0xff]
        %v6345 = vld [vmem:[#allocation2 + $0xb1] sm:$0xff]
        %v6346 = vld [vmem:[#allocation2 + $0xc1] sm:$0xff]
        %v6347 = vld [vmem:[#allocation2 + $0xc9] sm:$0xff]
        %v6348 = vld [vmem:[#allocation2 + $0xd9] sm:$0xff]
        %v6349 = vld [vmem:[#allocation2 + $0xe1] sm:$0xff]
        %v6350 = vld [vmem:[#allocation2 + $0xf1] sm:$0xff]
        %v6351 = vld [vmem:[#allocation2 + $0xf9] sm:$0xff]
        %v6352 = vld [vmem:[#allocation2 + $0x109] sm:$0xff]
        %v6353 = vld [vmem:[#allocation2 + $0x111] sm:$0xff]
        %v6354 = vld [vmem:[#allocation2 + $0x121] sm:$0xff]
        %v6355 = vld [vmem:[#allocation2 + $0x129] sm:$0xff]
        %v6356 = vld [vmem:[#allocation2 + $0x139] sm:$0xff]
        %v6357 = vld [vmem:[#allocation2 + $0x141] sm:$0xff]
        %v6358 = vld [vmem:[#allocation2 + $0x151] sm:$0xff]
        %v6359 = vld [vmem:[#allocation2 + $0x159] sm:$0xff]
        %v6360 = vld [vmem:[#allocation2 + $0x169] sm:$0xff]
        %v6361 = vld [vmem:[#allocation2 + $0x171] sm:$0xff]
        %s6362 = scalar_lea.vmem [#allocation6], 32
        %v6363 = vld [vmem:[%s6362] sm:$0xff]
        %v6364 = vld [vmem:[%s6362 + $0x8] sm:$0xff]
        %v6365 = vld [vmem:[%s6362 + $0x10] sm:$0xff]
        %v6366 = vld [vmem:[%s6362 + $0x18] sm:$0xff]
        %v6368 = vsel %vm3556, %v6330, 0
        %v6371 = vsel %vm3556, %v6331, 0
        %v6374 = vsel %vm3556, %v6332, 0
        %v6377 = vsel %vm3556, %v6333, 0
        %v6380 = vsel %vm3556, %v6334, 0
        %v6383 = vsel %vm3556, %v6335, 0
        %v6386 = vsel %vm3556, %v6336, 0
        %v6389 = vsel %vm3556, %v6337, 0
        %v6392 = vsel %vm3556, %v6338, 0
        %v6395 = vsel %vm3556, %v6339, 0
        %v6398 = vsel %vm3556, %v6340, 0
        %v6401 = vsel %vm3556, %v6341, 0
        %v6404 = vsel %vm3556, %v6342, 0
        %v6407 = vsel %vm3556, %v6343, 0
        %v6410 = vsel %vm3556, %v6344, 0
        %v6413 = vsel %vm3556, %v6345, 0
        %v6416 = vsel %vm3556, %v6346, 0
        %v6419 = vsel %vm3556, %v6347, 0
        %v6422 = vsel %vm3556, %v6348, 0
        %v6425 = vsel %vm3556, %v6349, 0
        %v6428 = vsel %vm3556, %v6350, 0
        %v6431 = vsel %vm3556, %v6351, 0
        %v6434 = vsel %vm3556, %v6352, 0
        %v6437 = vsel %vm3556, %v6353, 0
        %v6440 = vsel %vm3556, %v6354, 0
        %v6443 = vsel %vm3556, %v6355, 0
        %v6446 = vsel %vm3556, %v6356, 0
        %v6449 = vsel %vm3556, %v6357, 0
        %v6452 = vsel %vm3556, %v6358, 0
        %v6455 = vsel %vm3556, %v6359, 0
        %v6458 = vsel %vm3556, %v6360, 0
        %v6461 = vsel %vm3556, %v6361, 0
        %6463 = vmatpush.msra.mxu0 0.0
        %6464 = vmatpush.msra.mxu0 0.0
        %6465 = vmatpush.msra.mxu0 0.0
        %6466 = vmatpush.msra.mxu0 0.0
        %6467 = vmatpush.msra.mxu0 0.0
        %6468 = vmatpush.msra.mxu0 0.0
        %6469 = vmatpush.msra.mxu0 0.0
        %6470 = vmatpush.msra.mxu0 0.0
        %6471 = vmatpush.msra.mxu0 0.0
        %6472 = vmatpush.msra.mxu0 0.0
        %6473 = vmatpush.msra.mxu0 0.0
        %6474 = vmatpush.msra.mxu0 0.0
        %6475 = vmatpush.msra.mxu0 %v6366
        %6476 = vmatpush.msra.mxu0 %v6365
        %6477 = vmatpush.msra.mxu0 %v6364
        %6478 = vmatpush.msra.mxu0 %v6363
        %6479 = vmatmul.f32.gmra.mxu0 %v6368
        %v6480 = vpop.f32.mrf.mxu0
        %v6481 = vadd.f32 0.0, %v6480
        %6482 = vmatmul.f32.gmra.mxu0 %v6371
        %v6483 = vpop.f32.mrf.mxu0
        %v6484 = vadd.f32 0.0, %v6483
        %6485 = vmatmul.f32.gmra.mxu0 %v6374
        %v6486 = vpop.f32.mrf.mxu0
        %v6487 = vadd.f32 0.0, %v6486
        %6488 = vmatmul.f32.gmra.mxu0 %v6377
        %v6489 = vpop.f32.mrf.mxu0
        %v6490 = vadd.f32 0.0, %v6489
        %6491 = vmatmul.f32.gmra.mxu0 %v6380
        %v6492 = vpop.f32.mrf.mxu0
        %v6493 = vadd.f32 0.0, %v6492
        %6494 = vmatmul.f32.gmra.mxu0 %v6383
        %v6495 = vpop.f32.mrf.mxu0
        %v6496 = vadd.f32 0.0, %v6495
        %6497 = vmatmul.f32.gmra.mxu0 %v6386
        %v6498 = vpop.f32.mrf.mxu0
        %v6499 = vadd.f32 0.0, %v6498
        %6500 = vmatmul.f32.gmra.mxu0 %v6389
        %v6501 = vpop.f32.mrf.mxu0
        %v6502 = vadd.f32 0.0, %v6501
        %6503 = vmatmul.f32.gmra.mxu0 %v6392
        %v6504 = vpop.f32.mrf.mxu0
        %v6505 = vadd.f32 0.0, %v6504
        %6506 = vmatmul.f32.gmra.mxu0 %v6395
        %v6507 = vpop.f32.mrf.mxu0
        %v6508 = vadd.f32 0.0, %v6507
        %6509 = vmatmul.f32.gmra.mxu0 %v6398
        %v6510 = vpop.f32.mrf.mxu0
        %v6511 = vadd.f32 0.0, %v6510
        %6512 = vmatmul.f32.gmra.mxu0 %v6401
        %v6513 = vpop.f32.mrf.mxu0
        %v6514 = vadd.f32 0.0, %v6513
        %6515 = vmatmul.f32.gmra.mxu0 %v6404
        %v6516 = vpop.f32.mrf.mxu0
        %v6517 = vadd.f32 0.0, %v6516
        %6518 = vmatmul.f32.gmra.mxu0 %v6407
        %v6519 = vpop.f32.mrf.mxu0
        %v6520 = vadd.f32 0.0, %v6519
        %6521 = vmatmul.f32.gmra.mxu0 %v6410
        %v6522 = vpop.f32.mrf.mxu0
        %v6523 = vadd.f32 0.0, %v6522
        %6524 = vmatmul.f32.gmra.mxu0 %v6413
        %v6525 = vpop.f32.mrf.mxu0
        %v6526 = vadd.f32 0.0, %v6525
        %6527 = vmatmul.f32.gmra.mxu0 %v6416
        %v6528 = vpop.f32.mrf.mxu0
        %v6529 = vadd.f32 0.0, %v6528
        %6530 = vmatmul.f32.gmra.mxu0 %v6419
        %v6531 = vpop.f32.mrf.mxu0
        %v6532 = vadd.f32 0.0, %v6531
        %6533 = vmatmul.f32.gmra.mxu0 %v6422
        %v6534 = vpop.f32.mrf.mxu0
        %v6535 = vadd.f32 0.0, %v6534
        %6536 = vmatmul.f32.gmra.mxu0 %v6425
        %v6537 = vpop.f32.mrf.mxu0
        %v6538 = vadd.f32 0.0, %v6537
        %6539 = vmatmul.f32.gmra.mxu0 %v6428
        %v6540 = vpop.f32.mrf.mxu0
        %v6541 = vadd.f32 0.0, %v6540
        %6542 = vmatmul.f32.gmra.mxu0 %v6431
        %v6543 = vpop.f32.mrf.mxu0
        %v6544 = vadd.f32 0.0, %v6543
        %6545 = vmatmul.f32.gmra.mxu0 %v6434
        %v6546 = vpop.f32.mrf.mxu0
        %v6547 = vadd.f32 0.0, %v6546
        %6548 = vmatmul.f32.gmra.mxu0 %v6437
        %v6549 = vpop.f32.mrf.mxu0
        %v6550 = vadd.f32 0.0, %v6549
        %6551 = vmatmul.f32.gmra.mxu0 %v6440
        %v6552 = vpop.f32.mrf.mxu0
        %v6553 = vadd.f32 0.0, %v6552
        %6554 = vmatmul.f32.gmra.mxu0 %v6443
        %v6555 = vpop.f32.mrf.mxu0
        %v6556 = vadd.f32 0.0, %v6555
        %6557 = vmatmul.f32.gmra.mxu0 %v6446
        %v6558 = vpop.f32.mrf.mxu0
        %v6559 = vadd.f32 0.0, %v6558
        %6560 = vmatmul.f32.gmra.mxu0 %v6449
        %v6561 = vpop.f32.mrf.mxu0
        %v6562 = vadd.f32 0.0, %v6561
        %6563 = vmatmul.f32.gmra.mxu0 %v6452
        %v6564 = vpop.f32.mrf.mxu0
        %v6565 = vadd.f32 0.0, %v6564
        %6566 = vmatmul.f32.gmra.mxu0 %v6455
        %v6567 = vpop.f32.mrf.mxu0
        %v6568 = vadd.f32 0.0, %v6567
        %6569 = vmatmul.f32.gmra.mxu0 %v6458
        %v6570 = vpop.f32.mrf.mxu0
        %v6571 = vadd.f32 0.0, %v6570
        %6572 = vmatmul.f32.gmra.mxu0 %v6461
        %v6573 = vpop.f32.mrf.mxu0
        %v6574 = vadd.f32 0.0, %v6573
        %6575 = vdwg.mxu0
        %v6577 = vsel %vm3556, %v6294, 0
        %v6580 = vsel %vm3556, %v6295, 0
        %v6583 = vsel %vm3556, %v6296, 0
        %v6586 = vsel %vm3556, %v6297, 0
        %v6589 = vsel %vm3556, %v6298, 0
        %v6592 = vsel %vm3556, %v6299, 0
        %v6595 = vsel %vm3556, %v6300, 0
        %v6598 = vsel %vm3556, %v6301, 0
        %v6601 = vsel %vm3556, %v6302, 0
        %v6604 = vsel %vm3556, %v6303, 0
        %v6607 = vsel %vm3556, %v6304, 0
        %v6610 = vsel %vm3556, %v6305, 0
        %v6613 = vsel %vm3556, %v6306, 0
        %v6616 = vsel %vm3556, %v6307, 0
        %v6619 = vsel %vm3556, %v6308, 0
        %v6622 = vsel %vm3556, %v6309, 0
        %v6625 = vsel %vm3556, %v6310, 0
        %v6628 = vsel %vm3556, %v6311, 0
        %v6631 = vsel %vm3556, %v6312, 0
        %v6634 = vsel %vm3556, %v6313, 0
        %v6637 = vsel %vm3556, %v6314, 0
        %v6640 = vsel %vm3556, %v6315, 0
        %v6643 = vsel %vm3556, %v6316, 0
        %v6646 = vsel %vm3556, %v6317, 0
        %v6649 = vsel %vm3556, %v6318, 0
        %v6652 = vsel %vm3556, %v6319, 0
        %v6655 = vsel %vm3556, %v6320, 0
        %v6658 = vsel %vm3556, %v6321, 0
        %v6661 = vsel %vm3556, %v6322, 0
        %v6664 = vsel %vm3556, %v6323, 0
        %v6667 = vsel %vm3556, %v6324, 0
        %v6670 = vsel %vm3556, %v6325, 0
        %6672 = vmatpush.msra.mxu0 0.0
        %6673 = vmatpush.msra.mxu0 0.0
        %6674 = vmatpush.msra.mxu0 0.0
        %6675 = vmatpush.msra.mxu0 0.0
        %6676 = vmatpush.msra.mxu0 0.0
        %6677 = vmatpush.msra.mxu0 0.0
        %6678 = vmatpush.msra.mxu0 0.0
        %6679 = vmatpush.msra.mxu0 0.0
        %6680 = vmatpush.msra.mxu0 0.0
        %6681 = vmatpush.msra.mxu0 0.0
        %6682 = vmatpush.msra.mxu0 0.0
        %6683 = vmatpush.msra.mxu0 0.0
        %6684 = vmatpush.msra.mxu0 %v6329
        %6685 = vmatpush.msra.mxu0 %v6328
        %6686 = vmatpush.msra.mxu0 %v6327
        %6687 = vmatpush.msra.mxu0 %v6326
        %6688 = vmatmul.f32.gmra.mxu0 %v6577
        %v6689 = vpop.f32.mrf.mxu0
        %v6690 = vadd.f32 %v6481, %v6689
        %6691 = vmatmul.f32.gmra.mxu0 %v6580
        %v6692 = vpop.f32.mrf.mxu0
        %v6693 = vadd.f32 %v6484, %v6692
        %6694 = vmatmul.f32.gmra.mxu0 %v6583
        %v6695 = vpop.f32.mrf.mxu0
        %v6696 = vadd.f32 %v6487, %v6695
        %6697 = vmatmul.f32.gmra.mxu0 %v6586
        %v6698 = vpop.f32.mrf.mxu0
        %v6699 = vadd.f32 %v6490, %v6698
        %6700 = vmatmul.f32.gmra.mxu0 %v6589
        %v6701 = vpop.f32.mrf.mxu0
        %v6702 = vadd.f32 %v6493, %v6701
        %6703 = vmatmul.f32.gmra.mxu0 %v6592
        %v6704 = vpop.f32.mrf.mxu0
        %v6705 = vadd.f32 %v6496, %v6704
        %6706 = vmatmul.f32.gmra.mxu0 %v6595
        %v6707 = vpop.f32.mrf.mxu0
        %v6708 = vadd.f32 %v6499, %v6707
        %6709 = vmatmul.f32.gmra.mxu0 %v6598
        %v6710 = vpop.f32.mrf.mxu0
        %v6711 = vadd.f32 %v6502, %v6710
        %6712 = vmatmul.f32.gmra.mxu0 %v6601
        %v6713 = vpop.f32.mrf.mxu0
        %v6714 = vadd.f32 %v6505, %v6713
        %6715 = vmatmul.f32.gmra.mxu0 %v6604
        %v6716 = vpop.f32.mrf.mxu0
        %v6717 = vadd.f32 %v6508, %v6716
        %6718 = vmatmul.f32.gmra.mxu0 %v6607
        %v6719 = vpop.f32.mrf.mxu0
        %v6720 = vadd.f32 %v6511, %v6719
        %6721 = vmatmul.f32.gmra.mxu0 %v6610
        %v6722 = vpop.f32.mrf.mxu0
        %v6723 = vadd.f32 %v6514, %v6722
        %6724 = vmatmul.f32.gmra.mxu0 %v6613
        %v6725 = vpop.f32.mrf.mxu0
        %v6726 = vadd.f32 %v6517, %v6725
        %6727 = vmatmul.f32.gmra.mxu0 %v6616
        %v6728 = vpop.f32.mrf.mxu0
        %v6729 = vadd.f32 %v6520, %v6728
        %6730 = vmatmul.f32.gmra.mxu0 %v6619
        %v6731 = vpop.f32.mrf.mxu0
        %v6732 = vadd.f32 %v6523, %v6731
        %6733 = vmatmul.f32.gmra.mxu0 %v6622
        %v6734 = vpop.f32.mrf.mxu0
        %v6735 = vadd.f32 %v6526, %v6734
        %6736 = vmatmul.f32.gmra.mxu0 %v6625
        %v6737 = vpop.f32.mrf.mxu0
        %v6738 = vadd.f32 %v6529, %v6737
        %6739 = vmatmul.f32.gmra.mxu0 %v6628
        %v6740 = vpop.f32.mrf.mxu0
        %v6741 = vadd.f32 %v6532, %v6740
        %6742 = vmatmul.f32.gmra.mxu0 %v6631
        %v6743 = vpop.f32.mrf.mxu0
        %v6744 = vadd.f32 %v6535, %v6743
        %6745 = vmatmul.f32.gmra.mxu0 %v6634
        %v6746 = vpop.f32.mrf.mxu0
        %v6747 = vadd.f32 %v6538, %v6746
        %6748 = vmatmul.f32.gmra.mxu0 %v6637
        %v6749 = vpop.f32.mrf.mxu0
        %v6750 = vadd.f32 %v6541, %v6749
        %6751 = vmatmul.f32.gmra.mxu0 %v6640
        %v6752 = vpop.f32.mrf.mxu0
        %v6753 = vadd.f32 %v6544, %v6752
        %6754 = vmatmul.f32.gmra.mxu0 %v6643
        %v6755 = vpop.f32.mrf.mxu0
        %v6756 = vadd.f32 %v6547, %v6755
        %6757 = vmatmul.f32.gmra.mxu0 %v6646
        %v6758 = vpop.f32.mrf.mxu0
        %v6759 = vadd.f32 %v6550, %v6758
        %6760 = vmatmul.f32.gmra.mxu0 %v6649
        %v6761 = vpop.f32.mrf.mxu0
        %v6762 = vadd.f32 %v6553, %v6761
        %6763 = vmatmul.f32.gmra.mxu0 %v6652
        %v6764 = vpop.f32.mrf.mxu0
        %v6765 = vadd.f32 %v6556, %v6764
        %6766 = vmatmul.f32.gmra.mxu0 %v6655
        %v6767 = vpop.f32.mrf.mxu0
        %v6768 = vadd.f32 %v6559, %v6767
        %6769 = vmatmul.f32.gmra.mxu0 %v6658
        %v6770 = vpop.f32.mrf.mxu0
        %v6771 = vadd.f32 %v6562, %v6770
        %6772 = vmatmul.f32.gmra.mxu0 %v6661
        %v6773 = vpop.f32.mrf.mxu0
        %v6774 = vadd.f32 %v6565, %v6773
        %6775 = vmatmul.f32.gmra.mxu0 %v6664
        %v6776 = vpop.f32.mrf.mxu0
        %v6777 = vadd.f32 %v6568, %v6776
        %6778 = vmatmul.f32.gmra.mxu0 %v6667
        %v6779 = vpop.f32.mrf.mxu0
        %v6780 = vadd.f32 %v6571, %v6779
        %6781 = vmatmul.f32.gmra.mxu0 %v6670
        %v6782 = vpop.f32.mrf.mxu0
        %v6783 = vadd.f32 %v6574, %v6782
        %6784 = vdwg.mxu0
        %v6785 = vld [vmem:[#allocation2 + $0x2] sm:$0xff]
        %v6786 = vld [vmem:[#allocation2 + $0xa] sm:$0xff]
        %v6787 = vld [vmem:[#allocation2 + $0x1a] sm:$0xff]
        %v6788 = vld [vmem:[#allocation2 + $0x22] sm:$0xff]
        %v6789 = vld [vmem:[#allocation2 + $0x32] sm:$0xff]
        %v6790 = vld [vmem:[#allocation2 + $0x3a] sm:$0xff]
        %v6791 = vld [vmem:[#allocation2 + $0x4a] sm:$0xff]
        %v6792 = vld [vmem:[#allocation2 + $0x52] sm:$0xff]
        %v6793 = vld [vmem:[#allocation2 + $0x62] sm:$0xff]
        %v6794 = vld [vmem:[#allocation2 + $0x6a] sm:$0xff]
        %v6795 = vld [vmem:[#allocation2 + $0x7a] sm:$0xff]
        %v6796 = vld [vmem:[#allocation2 + $0x82] sm:$0xff]
        %v6797 = vld [vmem:[#allocation2 + $0x92] sm:$0xff]
        %v6798 = vld [vmem:[#allocation2 + $0x9a] sm:$0xff]
        %v6799 = vld [vmem:[#allocation2 + $0xaa] sm:$0xff]
        %v6800 = vld [vmem:[#allocation2 + $0xb2] sm:$0xff]
        %v6801 = vld [vmem:[#allocation2 + $0xc2] sm:$0xff]
        %v6802 = vld [vmem:[#allocation2 + $0xca] sm:$0xff]
        %v6803 = vld [vmem:[#allocation2 + $0xda] sm:$0xff]
        %v6804 = vld [vmem:[#allocation2 + $0xe2] sm:$0xff]
        %v6805 = vld [vmem:[#allocation2 + $0xf2] sm:$0xff]
        %v6806 = vld [vmem:[#allocation2 + $0xfa] sm:$0xff]
        %v6807 = vld [vmem:[#allocation2 + $0x10a] sm:$0xff]
        %v6808 = vld [vmem:[#allocation2 + $0x112] sm:$0xff]
        %v6809 = vld [vmem:[#allocation2 + $0x122] sm:$0xff]
        %v6810 = vld [vmem:[#allocation2 + $0x12a] sm:$0xff]
        %v6811 = vld [vmem:[#allocation2 + $0x13a] sm:$0xff]
        %v6812 = vld [vmem:[#allocation2 + $0x142] sm:$0xff]
        %v6813 = vld [vmem:[#allocation2 + $0x152] sm:$0xff]
        %v6814 = vld [vmem:[#allocation2 + $0x15a] sm:$0xff]
        %v6815 = vld [vmem:[#allocation2 + $0x16a] sm:$0xff]
        %v6816 = vld [vmem:[#allocation2 + $0x172] sm:$0xff]
        %s6817 = scalar_lea.vmem [#allocation6], 64
        %v6818 = vld [vmem:[%s6817] sm:$0xff]
        %v6819 = vld [vmem:[%s6817 + $0x8] sm:$0xff]
        %v6820 = vld [vmem:[%s6817 + $0x10] sm:$0xff]
        %v6821 = vld [vmem:[%s6817 + $0x18] sm:$0xff]
        %v6823 = vsel %vm3556, %v6785, 0
        %v6826 = vsel %vm3556, %v6786, 0
        %v6829 = vsel %vm3556, %v6787, 0
        %v6832 = vsel %vm3556, %v6788, 0
        %v6835 = vsel %vm3556, %v6789, 0
        %v6838 = vsel %vm3556, %v6790, 0
        %v6841 = vsel %vm3556, %v6791, 0
        %v6844 = vsel %vm3556, %v6792, 0
        %v6847 = vsel %vm3556, %v6793, 0
        %v6850 = vsel %vm3556, %v6794, 0
        %v6853 = vsel %vm3556, %v6795, 0
        %v6856 = vsel %vm3556, %v6796, 0
        %v6859 = vsel %vm3556, %v6797, 0
        %v6862 = vsel %vm3556, %v6798, 0
        %v6865 = vsel %vm3556, %v6799, 0
        %v6868 = vsel %vm3556, %v6800, 0
        %v6871 = vsel %vm3556, %v6801, 0
        %v6874 = vsel %vm3556, %v6802, 0
        %v6877 = vsel %vm3556, %v6803, 0
        %v6880 = vsel %vm3556, %v6804, 0
        %v6883 = vsel %vm3556, %v6805, 0
        %v6886 = vsel %vm3556, %v6806, 0
        %v6889 = vsel %vm3556, %v6807, 0
        %v6892 = vsel %vm3556, %v6808, 0
        %v6895 = vsel %vm3556, %v6809, 0
        %v6898 = vsel %vm3556, %v6810, 0
        %v6901 = vsel %vm3556, %v6811, 0
        %v6904 = vsel %vm3556, %v6812, 0
        %v6907 = vsel %vm3556, %v6813, 0
        %v6910 = vsel %vm3556, %v6814, 0
        %v6913 = vsel %vm3556, %v6815, 0
        %v6916 = vsel %vm3556, %v6816, 0
        %6918 = vmatpush.msra.mxu0 0.0
        %6919 = vmatpush.msra.mxu0 0.0
        %6920 = vmatpush.msra.mxu0 0.0
        %6921 = vmatpush.msra.mxu0 0.0
        %6922 = vmatpush.msra.mxu0 0.0
        %6923 = vmatpush.msra.mxu0 0.0
        %6924 = vmatpush.msra.mxu0 0.0
        %6925 = vmatpush.msra.mxu0 0.0
        %6926 = vmatpush.msra.mxu0 0.0
        %6927 = vmatpush.msra.mxu0 0.0
        %6928 = vmatpush.msra.mxu0 0.0
        %6929 = vmatpush.msra.mxu0 0.0
        %6930 = vmatpush.msra.mxu0 %v6821
        %6931 = vmatpush.msra.mxu0 %v6820
        %6932 = vmatpush.msra.mxu0 %v6819
        %6933 = vmatpush.msra.mxu0 %v6818
        %6934 = vmatmul.f32.gmra.mxu0 %v6823
        %v6935 = vpop.f32.mrf.mxu0
        %v6936 = vadd.f32 0.0, %v6935
        %6937 = vmatmul.f32.gmra.mxu0 %v6826
        %v6938 = vpop.f32.mrf.mxu0
        %v6939 = vadd.f32 0.0, %v6938
        %6940 = vmatmul.f32.gmra.mxu0 %v6829
        %v6941 = vpop.f32.mrf.mxu0
        %v6942 = vadd.f32 0.0, %v6941
        %6943 = vmatmul.f32.gmra.mxu0 %v6832
        %v6944 = vpop.f32.mrf.mxu0
        %v6945 = vadd.f32 0.0, %v6944
        %6946 = vmatmul.f32.gmra.mxu0 %v6835
        %v6947 = vpop.f32.mrf.mxu0
        %v6948 = vadd.f32 0.0, %v6947
        %6949 = vmatmul.f32.gmra.mxu0 %v6838
        %v6950 = vpop.f32.mrf.mxu0
        %v6951 = vadd.f32 0.0, %v6950
        %6952 = vmatmul.f32.gmra.mxu0 %v6841
        %v6953 = vpop.f32.mrf.mxu0
        %v6954 = vadd.f32 0.0, %v6953
        %6955 = vmatmul.f32.gmra.mxu0 %v6844
        %v6956 = vpop.f32.mrf.mxu0
        %v6957 = vadd.f32 0.0, %v6956
        %6958 = vmatmul.f32.gmra.mxu0 %v6847
        %v6959 = vpop.f32.mrf.mxu0
        %v6960 = vadd.f32 0.0, %v6959
        %6961 = vmatmul.f32.gmra.mxu0 %v6850
        %v6962 = vpop.f32.mrf.mxu0
        %v6963 = vadd.f32 0.0, %v6962
        %6964 = vmatmul.f32.gmra.mxu0 %v6853
        %v6965 = vpop.f32.mrf.mxu0
        %v6966 = vadd.f32 0.0, %v6965
        %6967 = vmatmul.f32.gmra.mxu0 %v6856
        %v6968 = vpop.f32.mrf.mxu0
        %v6969 = vadd.f32 0.0, %v6968
        %6970 = vmatmul.f32.gmra.mxu0 %v6859
        %v6971 = vpop.f32.mrf.mxu0
        %v6972 = vadd.f32 0.0, %v6971
        %6973 = vmatmul.f32.gmra.mxu0 %v6862
        %v6974 = vpop.f32.mrf.mxu0
        %v6975 = vadd.f32 0.0, %v6974
        %6976 = vmatmul.f32.gmra.mxu0 %v6865
        %v6977 = vpop.f32.mrf.mxu0
        %v6978 = vadd.f32 0.0, %v6977
        %6979 = vmatmul.f32.gmra.mxu0 %v6868
        %v6980 = vpop.f32.mrf.mxu0
        %v6981 = vadd.f32 0.0, %v6980
        %6982 = vmatmul.f32.gmra.mxu0 %v6871
        %v6983 = vpop.f32.mrf.mxu0
        %v6984 = vadd.f32 0.0, %v6983
        %6985 = vmatmul.f32.gmra.mxu0 %v6874
        %v6986 = vpop.f32.mrf.mxu0
        %v6987 = vadd.f32 0.0, %v6986
        %6988 = vmatmul.f32.gmra.mxu0 %v6877
        %v6989 = vpop.f32.mrf.mxu0
        %v6990 = vadd.f32 0.0, %v6989
        %6991 = vmatmul.f32.gmra.mxu0 %v6880
        %v6992 = vpop.f32.mrf.mxu0
        %v6993 = vadd.f32 0.0, %v6992
        %6994 = vmatmul.f32.gmra.mxu0 %v6883
        %v6995 = vpop.f32.mrf.mxu0
        %v6996 = vadd.f32 0.0, %v6995
        %6997 = vmatmul.f32.gmra.mxu0 %v6886
        %v6998 = vpop.f32.mrf.mxu0
        %v6999 = vadd.f32 0.0, %v6998
        %7000 = vmatmul.f32.gmra.mxu0 %v6889
        %v7001 = vpop.f32.mrf.mxu0
        %v7002 = vadd.f32 0.0, %v7001
        %7003 = vmatmul.f32.gmra.mxu0 %v6892
        %v7004 = vpop.f32.mrf.mxu0
        %v7005 = vadd.f32 0.0, %v7004
        %7006 = vmatmul.f32.gmra.mxu0 %v6895
        %v7007 = vpop.f32.mrf.mxu0
        %v7008 = vadd.f32 0.0, %v7007
        %7009 = vmatmul.f32.gmra.mxu0 %v6898
        %v7010 = vpop.f32.mrf.mxu0
        %v7011 = vadd.f32 0.0, %v7010
        %7012 = vmatmul.f32.gmra.mxu0 %v6901
        %v7013 = vpop.f32.mrf.mxu0
        %v7014 = vadd.f32 0.0, %v7013
        %7015 = vmatmul.f32.gmra.mxu0 %v6904
        %v7016 = vpop.f32.mrf.mxu0
        %v7017 = vadd.f32 0.0, %v7016
        %7018 = vmatmul.f32.gmra.mxu0 %v6907
        %v7019 = vpop.f32.mrf.mxu0
        %v7020 = vadd.f32 0.0, %v7019
        %7021 = vmatmul.f32.gmra.mxu0 %v6910
        %v7022 = vpop.f32.mrf.mxu0
        %v7023 = vadd.f32 0.0, %v7022
        %7024 = vmatmul.f32.gmra.mxu0 %v6913
        %v7025 = vpop.f32.mrf.mxu0
        %v7026 = vadd.f32 0.0, %v7025
        %7027 = vmatmul.f32.gmra.mxu0 %v6916
        %v7028 = vpop.f32.mrf.mxu0
        %v7029 = vadd.f32 0.0, %v7028
        %7030 = vdwg.mxu0
        %v7031 = vadd.f32 %v6690, %v6936
        %v7032 = vadd.f32 %v6693, %v6939
        %v7033 = vadd.f32 %v6696, %v6942
        %v7034 = vadd.f32 %v6699, %v6945
        %v7035 = vadd.f32 %v6702, %v6948
        %v7036 = vadd.f32 %v6705, %v6951
        %v7037 = vadd.f32 %v6708, %v6954
        %v7038 = vadd.f32 %v6711, %v6957
        %v7039 = vadd.f32 %v6714, %v6960
        %v7040 = vadd.f32 %v6717, %v6963
        %v7041 = vadd.f32 %v6720, %v6966
        %v7042 = vadd.f32 %v6723, %v6969
        %v7043 = vadd.f32 %v6726, %v6972
        %v7044 = vadd.f32 %v6729, %v6975
        %v7045 = vadd.f32 %v6732, %v6978
        %v7046 = vadd.f32 %v6735, %v6981
        %v7047 = vadd.f32 %v6738, %v6984
        %v7048 = vadd.f32 %v6741, %v6987
        %v7049 = vadd.f32 %v6744, %v6990
        %v7050 = vadd.f32 %v6747, %v6993
        %v7051 = vadd.f32 %v6750, %v6996
        %v7052 = vadd.f32 %v6753, %v6999
        %v7053 = vadd.f32 %v6756, %v7002
        %v7054 = vadd.f32 %v6759, %v7005
        %v7055 = vadd.f32 %v6762, %v7008
        %v7056 = vadd.f32 %v6765, %v7011
        %v7057 = vadd.f32 %v6768, %v7014
        %v7058 = vadd.f32 %v6771, %v7017
        %v7059 = vadd.f32 %v6774, %v7020
        %v7060 = vadd.f32 %v6777, %v7023
        %v7061 = vadd.f32 %v6780, %v7026
        %v7062 = vadd.f32 %v6783, %v7029
        %v7063 = vld [vmem:[%s638] sm:$0xff]
        %v7064 = vld [vmem:[%s638 + $0x8] sm:$0xff]
        %v7065 = vld [vmem:[%s638 + $0x18] sm:$0xff]
        %v7066 = vld [vmem:[%s638 + $0x20] sm:$0xff]
        %v7067 = vld [vmem:[%s638 + $0x30] sm:$0xff]
        %v7068 = vld [vmem:[%s638 + $0x38] sm:$0xff]
        %v7069 = vld [vmem:[%s638 + $0x48] sm:$0xff]
        %v7070 = vld [vmem:[%s638 + $0x50] sm:$0xff]
        %v7071 = vld [vmem:[%s638 + $0x60] sm:$0xff]
        %v7072 = vld [vmem:[%s638 + $0x68] sm:$0xff]
        %v7073 = vld [vmem:[%s638 + $0x78] sm:$0xff]
        %v7074 = vld [vmem:[%s638 + $0x80] sm:$0xff]
        %v7075 = vld [vmem:[%s638 + $0x90] sm:$0xff]
        %v7076 = vld [vmem:[%s638 + $0x98] sm:$0xff]
        %v7077 = vld [vmem:[%s638 + $0xa8] sm:$0xff]
        %v7078 = vld [vmem:[%s638 + $0xb0] sm:$0xff]
        %v7079 = vld [vmem:[%s638 + $0xc0] sm:$0xff]
        %v7080 = vld [vmem:[%s638 + $0xc8] sm:$0xff]
        %v7081 = vld [vmem:[%s638 + $0xd8] sm:$0xff]
        %v7082 = vld [vmem:[%s638 + $0xe0] sm:$0xff]
        %v7083 = vld [vmem:[%s638 + $0xf0] sm:$0xff]
        %v7084 = vld [vmem:[%s638 + $0xf8] sm:$0xff]
        %v7085 = vld [vmem:[%s638 + $0x108] sm:$0xff]
        %v7086 = vld [vmem:[%s638 + $0x110] sm:$0xff]
        %v7087 = vld [vmem:[%s638 + $0x120] sm:$0xff]
        %v7088 = vld [vmem:[%s638 + $0x128] sm:$0xff]
        %v7089 = vld [vmem:[%s638 + $0x138] sm:$0xff]
        %v7090 = vld [vmem:[%s638 + $0x140] sm:$0xff]
        %v7091 = vld [vmem:[%s638 + $0x150] sm:$0xff]
        %v7092 = vld [vmem:[%s638 + $0x158] sm:$0xff]
        %v7093 = vld [vmem:[%s638 + $0x168] sm:$0xff]
        %v7094 = vld [vmem:[%s638 + $0x170] sm:$0xff]
        %s7095 = scalar_lea.vmem [#allocation6], 96
        %v7096 = vld [vmem:[%s7095] sm:$0xff]
        %v7097 = vld [vmem:[%s7095 + $0x8] sm:$0xff]
        %v7098 = vld [vmem:[%s7095 + $0x10] sm:$0xff]
        %v7099 = vld [vmem:[%s7095 + $0x18] sm:$0xff]
        %v7101 = vsel %vm3556, %v7063, 0
        %v7104 = vsel %vm3556, %v7064, 0
        %v7107 = vsel %vm3556, %v7065, 0
        %v7110 = vsel %vm3556, %v7066, 0
        %v7113 = vsel %vm3556, %v7067, 0
        %v7116 = vsel %vm3556, %v7068, 0
        %v7119 = vsel %vm3556, %v7069, 0
        %v7122 = vsel %vm3556, %v7070, 0
        %v7125 = vsel %vm3556, %v7071, 0
        %v7128 = vsel %vm3556, %v7072, 0
        %v7131 = vsel %vm3556, %v7073, 0
        %v7134 = vsel %vm3556, %v7074, 0
        %v7137 = vsel %vm3556, %v7075, 0
        %v7140 = vsel %vm3556, %v7076, 0
        %v7143 = vsel %vm3556, %v7077, 0
        %v7146 = vsel %vm3556, %v7078, 0
        %v7149 = vsel %vm3556, %v7079, 0
        %v7152 = vsel %vm3556, %v7080, 0
        %v7155 = vsel %vm3556, %v7081, 0
        %v7158 = vsel %vm3556, %v7082, 0
        %v7161 = vsel %vm3556, %v7083, 0
        %v7164 = vsel %vm3556, %v7084, 0
        %v7167 = vsel %vm3556, %v7085, 0
        %v7170 = vsel %vm3556, %v7086, 0
        %v7173 = vsel %vm3556, %v7087, 0
        %v7176 = vsel %vm3556, %v7088, 0
        %v7179 = vsel %vm3556, %v7089, 0
        %v7182 = vsel %vm3556, %v7090, 0
        %v7185 = vsel %vm3556, %v7091, 0
        %v7188 = vsel %vm3556, %v7092, 0
        %v7191 = vsel %vm3556, %v7093, 0
        %v7194 = vsel %vm3556, %v7094, 0
        %7196 = vmatpush.msra.mxu0 0.0
        %7197 = vmatpush.msra.mxu0 0.0
        %7198 = vmatpush.msra.mxu0 0.0
        %7199 = vmatpush.msra.mxu0 0.0
        %7200 = vmatpush.msra.mxu0 0.0
        %7201 = vmatpush.msra.mxu0 0.0
        %7202 = vmatpush.msra.mxu0 0.0
        %7203 = vmatpush.msra.mxu0 0.0
        %7204 = vmatpush.msra.mxu0 0.0
        %7205 = vmatpush.msra.mxu0 0.0
        %7206 = vmatpush.msra.mxu0 0.0
        %7207 = vmatpush.msra.mxu0 0.0
        %7208 = vmatpush.msra.mxu0 %v7099
        %7209 = vmatpush.msra.mxu0 %v7098
        %7210 = vmatpush.msra.mxu0 %v7097
        %7211 = vmatpush.msra.mxu0 %v7096
        %7212 = vmatmul.f32.gmra.mxu0 %v7101
        %v7213 = vpop.f32.mrf.mxu0
        %v7214 = vadd.f32 0.0, %v7213
        %7215 = vmatmul.f32.gmra.mxu0 %v7104
        %v7216 = vpop.f32.mrf.mxu0
        %v7217 = vadd.f32 0.0, %v7216
        %7218 = vmatmul.f32.gmra.mxu0 %v7107
        %v7219 = vpop.f32.mrf.mxu0
        %v7220 = vadd.f32 0.0, %v7219
        %7221 = vmatmul.f32.gmra.mxu0 %v7110
        %v7222 = vpop.f32.mrf.mxu0
        %v7223 = vadd.f32 0.0, %v7222
        %7224 = vmatmul.f32.gmra.mxu0 %v7113
        %v7225 = vpop.f32.mrf.mxu0
        %v7226 = vadd.f32 0.0, %v7225
        %7227 = vmatmul.f32.gmra.mxu0 %v7116
        %v7228 = vpop.f32.mrf.mxu0
        %v7229 = vadd.f32 0.0, %v7228
        %7230 = vmatmul.f32.gmra.mxu0 %v7119
        %v7231 = vpop.f32.mrf.mxu0
        %v7232 = vadd.f32 0.0, %v7231
        %7233 = vmatmul.f32.gmra.mxu0 %v7122
        %v7234 = vpop.f32.mrf.mxu0
        %v7235 = vadd.f32 0.0, %v7234
        %7236 = vmatmul.f32.gmra.mxu0 %v7125
        %v7237 = vpop.f32.mrf.mxu0
        %v7238 = vadd.f32 0.0, %v7237
        %7239 = vmatmul.f32.gmra.mxu0 %v7128
        %v7240 = vpop.f32.mrf.mxu0
        %v7241 = vadd.f32 0.0, %v7240
        %7242 = vmatmul.f32.gmra.mxu0 %v7131
        %v7243 = vpop.f32.mrf.mxu0
        %v7244 = vadd.f32 0.0, %v7243
        %7245 = vmatmul.f32.gmra.mxu0 %v7134
        %v7246 = vpop.f32.mrf.mxu0
        %v7247 = vadd.f32 0.0, %v7246
        %7248 = vmatmul.f32.gmra.mxu0 %v7137
        %v7249 = vpop.f32.mrf.mxu0
        %v7250 = vadd.f32 0.0, %v7249
        %7251 = vmatmul.f32.gmra.mxu0 %v7140
        %v7252 = vpop.f32.mrf.mxu0
        %v7253 = vadd.f32 0.0, %v7252
        %7254 = vmatmul.f32.gmra.mxu0 %v7143
        %v7255 = vpop.f32.mrf.mxu0
        %v7256 = vadd.f32 0.0, %v7255
        %7257 = vmatmul.f32.gmra.mxu0 %v7146
        %v7258 = vpop.f32.mrf.mxu0
        %v7259 = vadd.f32 0.0, %v7258
        %7260 = vmatmul.f32.gmra.mxu0 %v7149
        %v7261 = vpop.f32.mrf.mxu0
        %v7262 = vadd.f32 0.0, %v7261
        %7263 = vmatmul.f32.gmra.mxu0 %v7152
        %v7264 = vpop.f32.mrf.mxu0
        %v7265 = vadd.f32 0.0, %v7264
        %7266 = vmatmul.f32.gmra.mxu0 %v7155
        %v7267 = vpop.f32.mrf.mxu0
        %v7268 = vadd.f32 0.0, %v7267
        %7269 = vmatmul.f32.gmra.mxu0 %v7158
        %v7270 = vpop.f32.mrf.mxu0
        %v7271 = vadd.f32 0.0, %v7270
        %7272 = vmatmul.f32.gmra.mxu0 %v7161
        %v7273 = vpop.f32.mrf.mxu0
        %v7274 = vadd.f32 0.0, %v7273
        %7275 = vmatmul.f32.gmra.mxu0 %v7164
        %v7276 = vpop.f32.mrf.mxu0
        %v7277 = vadd.f32 0.0, %v7276
        %7278 = vmatmul.f32.gmra.mxu0 %v7167
        %v7279 = vpop.f32.mrf.mxu0
        %v7280 = vadd.f32 0.0, %v7279
        %7281 = vmatmul.f32.gmra.mxu0 %v7170
        %v7282 = vpop.f32.mrf.mxu0
        %v7283 = vadd.f32 0.0, %v7282
        %7284 = vmatmul.f32.gmra.mxu0 %v7173
        %v7285 = vpop.f32.mrf.mxu0
        %v7286 = vadd.f32 0.0, %v7285
        %7287 = vmatmul.f32.gmra.mxu0 %v7176
        %v7288 = vpop.f32.mrf.mxu0
        %v7289 = vadd.f32 0.0, %v7288
        %7290 = vmatmul.f32.gmra.mxu0 %v7179
        %v7291 = vpop.f32.mrf.mxu0
        %v7292 = vadd.f32 0.0, %v7291
        %7293 = vmatmul.f32.gmra.mxu0 %v7182
        %v7294 = vpop.f32.mrf.mxu0
        %v7295 = vadd.f32 0.0, %v7294
        %7296 = vmatmul.f32.gmra.mxu0 %v7185
        %v7297 = vpop.f32.mrf.mxu0
        %v7298 = vadd.f32 0.0, %v7297
        %7299 = vmatmul.f32.gmra.mxu0 %v7188
        %v7300 = vpop.f32.mrf.mxu0
        %v7301 = vadd.f32 0.0, %v7300
        %7302 = vmatmul.f32.gmra.mxu0 %v7191
        %v7303 = vpop.f32.mrf.mxu0
        %v7304 = vadd.f32 0.0, %v7303
        %7305 = vmatmul.f32.gmra.mxu0 %v7194
        %v7306 = vpop.f32.mrf.mxu0
        %v7307 = vadd.f32 0.0, %v7306
        %7308 = vdwg.mxu0
        %v7309 = vadd.f32 %v7031, %v7214
        %v7310 = vadd.f32 %v7032, %v7217
        %v7311 = vadd.f32 %v7033, %v7220
        %v7312 = vadd.f32 %v7034, %v7223
        %v7313 = vadd.f32 %v7035, %v7226
        %v7314 = vadd.f32 %v7036, %v7229
        %v7315 = vadd.f32 %v7037, %v7232
        %v7316 = vadd.f32 %v7038, %v7235
        %v7317 = vadd.f32 %v7039, %v7238
        %v7318 = vadd.f32 %v7040, %v7241
        %v7319 = vadd.f32 %v7041, %v7244
        %v7320 = vadd.f32 %v7042, %v7247
        %v7321 = vadd.f32 %v7043, %v7250
        %v7322 = vadd.f32 %v7044, %v7253
        %v7323 = vadd.f32 %v7045, %v7256
        %v7324 = vadd.f32 %v7046, %v7259
        %v7325 = vadd.f32 %v7047, %v7262
        %v7326 = vadd.f32 %v7048, %v7265
        %v7327 = vadd.f32 %v7049, %v7268
        %v7328 = vadd.f32 %v7050, %v7271
        %v7329 = vadd.f32 %v7051, %v7274
        %v7330 = vadd.f32 %v7052, %v7277
        %v7331 = vadd.f32 %v7053, %v7280
        %v7332 = vadd.f32 %v7054, %v7283
        %v7333 = vadd.f32 %v7055, %v7286
        %v7334 = vadd.f32 %v7056, %v7289
        %v7335 = vadd.f32 %v7057, %v7292
        %v7336 = vadd.f32 %v7058, %v7295
        %v7337 = vadd.f32 %v7059, %v7298
        %v7338 = vadd.f32 %v7060, %v7301
        %v7339 = vadd.f32 %v7061, %v7304
        %v7340 = vadd.f32 %v7062, %v7307
        %v7341 = vld [vmem:[%s638 + $0x1] sm:$0xff]
        %v7342 = vld [vmem:[%s638 + $0x9] sm:$0xff]
        %v7343 = vld [vmem:[%s638 + $0x19] sm:$0xff]
        %v7344 = vld [vmem:[%s638 + $0x21] sm:$0xff]
        %v7345 = vld [vmem:[%s638 + $0x31] sm:$0xff]
        %v7346 = vld [vmem:[%s638 + $0x39] sm:$0xff]
        %v7347 = vld [vmem:[%s638 + $0x49] sm:$0xff]
        %v7348 = vld [vmem:[%s638 + $0x51] sm:$0xff]
        %v7349 = vld [vmem:[%s638 + $0x61] sm:$0xff]
        %v7350 = vld [vmem:[%s638 + $0x69] sm:$0xff]
        %v7351 = vld [vmem:[%s638 + $0x79] sm:$0xff]
        %v7352 = vld [vmem:[%s638 + $0x81] sm:$0xff]
        %v7353 = vld [vmem:[%s638 + $0x91] sm:$0xff]
        %v7354 = vld [vmem:[%s638 + $0x99] sm:$0xff]
        %v7355 = vld [vmem:[%s638 + $0xa9] sm:$0xff]
        %v7356 = vld [vmem:[%s638 + $0xb1] sm:$0xff]
        %v7357 = vld [vmem:[%s638 + $0xc1] sm:$0xff]
        %v7358 = vld [vmem:[%s638 + $0xc9] sm:$0xff]
        %v7359 = vld [vmem:[%s638 + $0xd9] sm:$0xff]
        %v7360 = vld [vmem:[%s638 + $0xe1] sm:$0xff]
        %v7361 = vld [vmem:[%s638 + $0xf1] sm:$0xff]
        %v7362 = vld [vmem:[%s638 + $0xf9] sm:$0xff]
        %v7363 = vld [vmem:[%s638 + $0x109] sm:$0xff]
        %v7364 = vld [vmem:[%s638 + $0x111] sm:$0xff]
        %v7365 = vld [vmem:[%s638 + $0x121] sm:$0xff]
        %v7366 = vld [vmem:[%s638 + $0x129] sm:$0xff]
        %v7367 = vld [vmem:[%s638 + $0x139] sm:$0xff]
        %v7368 = vld [vmem:[%s638 + $0x141] sm:$0xff]
        %v7369 = vld [vmem:[%s638 + $0x151] sm:$0xff]
        %v7370 = vld [vmem:[%s638 + $0x159] sm:$0xff]
        %v7371 = vld [vmem:[%s638 + $0x169] sm:$0xff]
        %v7372 = vld [vmem:[%s638 + $0x171] sm:$0xff]
        %s7373 = scalar_lea.vmem [#allocation6], 128
        %v7374 = vld [vmem:[%s7373] sm:$0xff]
        %v7375 = vld [vmem:[%s7373 + $0x8] sm:$0xff]
        %v7376 = vld [vmem:[%s7373 + $0x10] sm:$0xff]
        %v7377 = vld [vmem:[%s7373 + $0x18] sm:$0xff]
        %v7379 = vsel %vm3556, %v7341, 0
        %v7382 = vsel %vm3556, %v7342, 0
        %v7385 = vsel %vm3556, %v7343, 0
        %v7388 = vsel %vm3556, %v7344, 0
        %v7391 = vsel %vm3556, %v7345, 0
        %v7394 = vsel %vm3556, %v7346, 0
        %v7397 = vsel %vm3556, %v7347, 0
        %v7400 = vsel %vm3556, %v7348, 0
        %v7403 = vsel %vm3556, %v7349, 0
        %v7406 = vsel %vm3556, %v7350, 0
        %v7409 = vsel %vm3556, %v7351, 0
        %v7412 = vsel %vm3556, %v7352, 0
        %v7415 = vsel %vm3556, %v7353, 0
        %v7418 = vsel %vm3556, %v7354, 0
        %v7421 = vsel %vm3556, %v7355, 0
        %v7424 = vsel %vm3556, %v7356, 0
        %v7427 = vsel %vm3556, %v7357, 0
        %v7430 = vsel %vm3556, %v7358, 0
        %v7433 = vsel %vm3556, %v7359, 0
        %v7436 = vsel %vm3556, %v7360, 0
        %v7439 = vsel %vm3556, %v7361, 0
        %v7442 = vsel %vm3556, %v7362, 0
        %v7445 = vsel %vm3556, %v7363, 0
        %v7448 = vsel %vm3556, %v7364, 0
        %v7451 = vsel %vm3556, %v7365, 0
        %v7454 = vsel %vm3556, %v7366, 0
        %v7457 = vsel %vm3556, %v7367, 0
        %v7460 = vsel %vm3556, %v7368, 0
        %v7463 = vsel %vm3556, %v7369, 0
        %v7466 = vsel %vm3556, %v7370, 0
        %v7469 = vsel %vm3556, %v7371, 0
        %v7472 = vsel %vm3556, %v7372, 0
        %7474 = vmatpush.msra.mxu0 0.0
        %7475 = vmatpush.msra.mxu0 0.0
        %7476 = vmatpush.msra.mxu0 0.0
        %7477 = vmatpush.msra.mxu0 0.0
        %7478 = vmatpush.msra.mxu0 0.0
        %7479 = vmatpush.msra.mxu0 0.0
        %7480 = vmatpush.msra.mxu0 0.0
        %7481 = vmatpush.msra.mxu0 0.0
        %7482 = vmatpush.msra.mxu0 0.0
        %7483 = vmatpush.msra.mxu0 0.0
        %7484 = vmatpush.msra.mxu0 0.0
        %7485 = vmatpush.msra.mxu0 0.0
        %7486 = vmatpush.msra.mxu0 %v7377
        %7487 = vmatpush.msra.mxu0 %v7376
        %7488 = vmatpush.msra.mxu0 %v7375
        %7489 = vmatpush.msra.mxu0 %v7374
        %7490 = vmatmul.f32.gmra.mxu0 %v7379
        %v7491 = vpop.f32.mrf.mxu0
        %v7492 = vadd.f32 0.0, %v7491
        %7493 = vmatmul.f32.gmra.mxu0 %v7382
        %v7494 = vpop.f32.mrf.mxu0
        %v7495 = vadd.f32 0.0, %v7494
        %7496 = vmatmul.f32.gmra.mxu0 %v7385
        %v7497 = vpop.f32.mrf.mxu0
        %v7498 = vadd.f32 0.0, %v7497
        %7499 = vmatmul.f32.gmra.mxu0 %v7388
        %v7500 = vpop.f32.mrf.mxu0
        %v7501 = vadd.f32 0.0, %v7500
        %7502 = vmatmul.f32.gmra.mxu0 %v7391
        %v7503 = vpop.f32.mrf.mxu0
        %v7504 = vadd.f32 0.0, %v7503
        %7505 = vmatmul.f32.gmra.mxu0 %v7394
        %v7506 = vpop.f32.mrf.mxu0
        %v7507 = vadd.f32 0.0, %v7506
        %7508 = vmatmul.f32.gmra.mxu0 %v7397
        %v7509 = vpop.f32.mrf.mxu0
        %v7510 = vadd.f32 0.0, %v7509
        %7511 = vmatmul.f32.gmra.mxu0 %v7400
        %v7512 = vpop.f32.mrf.mxu0
        %v7513 = vadd.f32 0.0, %v7512
        %7514 = vmatmul.f32.gmra.mxu0 %v7403
        %v7515 = vpop.f32.mrf.mxu0
        %v7516 = vadd.f32 0.0, %v7515
        %7517 = vmatmul.f32.gmra.mxu0 %v7406
        %v7518 = vpop.f32.mrf.mxu0
        %v7519 = vadd.f32 0.0, %v7518
        %7520 = vmatmul.f32.gmra.mxu0 %v7409
        %v7521 = vpop.f32.mrf.mxu0
        %v7522 = vadd.f32 0.0, %v7521
        %7523 = vmatmul.f32.gmra.mxu0 %v7412
        %v7524 = vpop.f32.mrf.mxu0
        %v7525 = vadd.f32 0.0, %v7524
        %7526 = vmatmul.f32.gmra.mxu0 %v7415
        %v7527 = vpop.f32.mrf.mxu0
        %v7528 = vadd.f32 0.0, %v7527
        %7529 = vmatmul.f32.gmra.mxu0 %v7418
        %v7530 = vpop.f32.mrf.mxu0
        %v7531 = vadd.f32 0.0, %v7530
        %7532 = vmatmul.f32.gmra.mxu0 %v7421
        %v7533 = vpop.f32.mrf.mxu0
        %v7534 = vadd.f32 0.0, %v7533
        %7535 = vmatmul.f32.gmra.mxu0 %v7424
        %v7536 = vpop.f32.mrf.mxu0
        %v7537 = vadd.f32 0.0, %v7536
        %7538 = vmatmul.f32.gmra.mxu0 %v7427
        %v7539 = vpop.f32.mrf.mxu0
        %v7540 = vadd.f32 0.0, %v7539
        %7541 = vmatmul.f32.gmra.mxu0 %v7430
        %v7542 = vpop.f32.mrf.mxu0
        %v7543 = vadd.f32 0.0, %v7542
        %7544 = vmatmul.f32.gmra.mxu0 %v7433
        %v7545 = vpop.f32.mrf.mxu0
        %v7546 = vadd.f32 0.0, %v7545
        %7547 = vmatmul.f32.gmra.mxu0 %v7436
        %v7548 = vpop.f32.mrf.mxu0
        %v7549 = vadd.f32 0.0, %v7548
        %7550 = vmatmul.f32.gmra.mxu0 %v7439
        %v7551 = vpop.f32.mrf.mxu0
        %v7552 = vadd.f32 0.0, %v7551
        %7553 = vmatmul.f32.gmra.mxu0 %v7442
        %v7554 = vpop.f32.mrf.mxu0
        %v7555 = vadd.f32 0.0, %v7554
        %7556 = vmatmul.f32.gmra.mxu0 %v7445
        %v7557 = vpop.f32.mrf.mxu0
        %v7558 = vadd.f32 0.0, %v7557
        %7559 = vmatmul.f32.gmra.mxu0 %v7448
        %v7560 = vpop.f32.mrf.mxu0
        %v7561 = vadd.f32 0.0, %v7560
        %7562 = vmatmul.f32.gmra.mxu0 %v7451
        %v7563 = vpop.f32.mrf.mxu0
        %v7564 = vadd.f32 0.0, %v7563
        %7565 = vmatmul.f32.gmra.mxu0 %v7454
        %v7566 = vpop.f32.mrf.mxu0
        %v7567 = vadd.f32 0.0, %v7566
        %7568 = vmatmul.f32.gmra.mxu0 %v7457
        %v7569 = vpop.f32.mrf.mxu0
        %v7570 = vadd.f32 0.0, %v7569
        %7571 = vmatmul.f32.gmra.mxu0 %v7460
        %v7572 = vpop.f32.mrf.mxu0
        %v7573 = vadd.f32 0.0, %v7572
        %7574 = vmatmul.f32.gmra.mxu0 %v7463
        %v7575 = vpop.f32.mrf.mxu0
        %v7576 = vadd.f32 0.0, %v7575
        %7577 = vmatmul.f32.gmra.mxu0 %v7466
        %v7578 = vpop.f32.mrf.mxu0
        %v7579 = vadd.f32 0.0, %v7578
        %7580 = vmatmul.f32.gmra.mxu0 %v7469
        %v7581 = vpop.f32.mrf.mxu0
        %v7582 = vadd.f32 0.0, %v7581
        %7583 = vmatmul.f32.gmra.mxu0 %v7472
        %v7584 = vpop.f32.mrf.mxu0
        %v7585 = vadd.f32 0.0, %v7584
        %7586 = vdwg.mxu0
        %v7587 = vadd.f32 %v7309, %v7492
        %v7588 = vadd.f32 %v7310, %v7495
        %v7589 = vadd.f32 %v7311, %v7498
        %v7590 = vadd.f32 %v7312, %v7501
        %v7591 = vadd.f32 %v7313, %v7504
        %v7592 = vadd.f32 %v7314, %v7507
        %v7593 = vadd.f32 %v7315, %v7510
        %v7594 = vadd.f32 %v7316, %v7513
        %v7595 = vadd.f32 %v7317, %v7516
        %v7596 = vadd.f32 %v7318, %v7519
        %v7597 = vadd.f32 %v7319, %v7522
        %v7598 = vadd.f32 %v7320, %v7525
        %v7599 = vadd.f32 %v7321, %v7528
        %v7600 = vadd.f32 %v7322, %v7531
        %v7601 = vadd.f32 %v7323, %v7534
        %v7602 = vadd.f32 %v7324, %v7537
        %v7603 = vadd.f32 %v7325, %v7540
        %v7604 = vadd.f32 %v7326, %v7543
        %v7605 = vadd.f32 %v7327, %v7546
        %v7606 = vadd.f32 %v7328, %v7549
        %v7607 = vadd.f32 %v7329, %v7552
        %v7608 = vadd.f32 %v7330, %v7555
        %v7609 = vadd.f32 %v7331, %v7558
        %v7610 = vadd.f32 %v7332, %v7561
        %v7611 = vadd.f32 %v7333, %v7564
        %v7612 = vadd.f32 %v7334, %v7567
        %v7613 = vadd.f32 %v7335, %v7570
        %v7614 = vadd.f32 %v7336, %v7573
        %v7615 = vadd.f32 %v7337, %v7576
        %v7616 = vadd.f32 %v7338, %v7579
        %v7617 = vadd.f32 %v7339, %v7582
        %v7618 = vadd.f32 %v7340, %v7585
        %v7619 = vld [vmem:[%s638 + $0x2] sm:$0xff]
        %v7620 = vld [vmem:[%s638 + $0xa] sm:$0xff]
        %v7621 = vld [vmem:[%s638 + $0x1a] sm:$0xff]
        %v7622 = vld [vmem:[%s638 + $0x22] sm:$0xff]
        %v7623 = vld [vmem:[%s638 + $0x32] sm:$0xff]
        %v7624 = vld [vmem:[%s638 + $0x3a] sm:$0xff]
        %v7625 = vld [vmem:[%s638 + $0x4a] sm:$0xff]
        %v7626 = vld [vmem:[%s638 + $0x52] sm:$0xff]
        %v7627 = vld [vmem:[%s638 + $0x62] sm:$0xff]
        %v7628 = vld [vmem:[%s638 + $0x6a] sm:$0xff]
        %v7629 = vld [vmem:[%s638 + $0x7a] sm:$0xff]
        %v7630 = vld [vmem:[%s638 + $0x82] sm:$0xff]
        %v7631 = vld [vmem:[%s638 + $0x92] sm:$0xff]
        %v7632 = vld [vmem:[%s638 + $0x9a] sm:$0xff]
        %v7633 = vld [vmem:[%s638 + $0xaa] sm:$0xff]
        %v7634 = vld [vmem:[%s638 + $0xb2] sm:$0xff]
        %v7635 = vld [vmem:[%s638 + $0xc2] sm:$0xff]
        %v7636 = vld [vmem:[%s638 + $0xca] sm:$0xff]
        %v7637 = vld [vmem:[%s638 + $0xda] sm:$0xff]
        %v7638 = vld [vmem:[%s638 + $0xe2] sm:$0xff]
        %v7639 = vld [vmem:[%s638 + $0xf2] sm:$0xff]
        %v7640 = vld [vmem:[%s638 + $0xfa] sm:$0xff]
        %v7641 = vld [vmem:[%s638 + $0x10a] sm:$0xff]
        %v7642 = vld [vmem:[%s638 + $0x112] sm:$0xff]
        %v7643 = vld [vmem:[%s638 + $0x122] sm:$0xff]
        %v7644 = vld [vmem:[%s638 + $0x12a] sm:$0xff]
        %v7645 = vld [vmem:[%s638 + $0x13a] sm:$0xff]
        %v7646 = vld [vmem:[%s638 + $0x142] sm:$0xff]
        %v7647 = vld [vmem:[%s638 + $0x152] sm:$0xff]
        %v7648 = vld [vmem:[%s638 + $0x15a] sm:$0xff]
        %v7649 = vld [vmem:[%s638 + $0x16a] sm:$0xff]
        %v7650 = vld [vmem:[%s638 + $0x172] sm:$0xff]
        %s7651 = scalar_lea.vmem [#allocation6], 160
        %v7652 = vld [vmem:[%s7651] sm:$0xff]
        %v7653 = vld [vmem:[%s7651 + $0x8] sm:$0xff]
        %v7654 = vld [vmem:[%s7651 + $0x10] sm:$0xff]
        %v7655 = vld [vmem:[%s7651 + $0x18] sm:$0xff]
        %v7657 = vsel %vm3556, %v7619, 0
        %v7660 = vsel %vm3556, %v7620, 0
        %v7663 = vsel %vm3556, %v7621, 0
        %v7666 = vsel %vm3556, %v7622, 0
        %v7669 = vsel %vm3556, %v7623, 0
        %v7672 = vsel %vm3556, %v7624, 0
        %v7675 = vsel %vm3556, %v7625, 0
        %v7678 = vsel %vm3556, %v7626, 0
        %v7681 = vsel %vm3556, %v7627, 0
        %v7684 = vsel %vm3556, %v7628, 0
        %v7687 = vsel %vm3556, %v7629, 0
        %v7690 = vsel %vm3556, %v7630, 0
        %v7693 = vsel %vm3556, %v7631, 0
        %v7696 = vsel %vm3556, %v7632, 0
        %v7699 = vsel %vm3556, %v7633, 0
        %v7702 = vsel %vm3556, %v7634, 0
        %v7705 = vsel %vm3556, %v7635, 0
        %v7708 = vsel %vm3556, %v7636, 0
        %v7711 = vsel %vm3556, %v7637, 0
        %v7714 = vsel %vm3556, %v7638, 0
        %v7717 = vsel %vm3556, %v7639, 0
        %v7720 = vsel %vm3556, %v7640, 0
        %v7723 = vsel %vm3556, %v7641, 0
        %v7726 = vsel %vm3556, %v7642, 0
        %v7729 = vsel %vm3556, %v7643, 0
        %v7732 = vsel %vm3556, %v7644, 0
        %v7735 = vsel %vm3556, %v7645, 0
        %v7738 = vsel %vm3556, %v7646, 0
        %v7741 = vsel %vm3556, %v7647, 0
        %v7744 = vsel %vm3556, %v7648, 0
        %v7747 = vsel %vm3556, %v7649, 0
        %v7750 = vsel %vm3556, %v7650, 0
        %7752 = vmatpush.msra.mxu0 0.0
        %7753 = vmatpush.msra.mxu0 0.0
        %7754 = vmatpush.msra.mxu0 0.0
        %7755 = vmatpush.msra.mxu0 0.0
        %7756 = vmatpush.msra.mxu0 0.0
        %7757 = vmatpush.msra.mxu0 0.0
        %7758 = vmatpush.msra.mxu0 0.0
        %7759 = vmatpush.msra.mxu0 0.0
        %7760 = vmatpush.msra.mxu0 0.0
        %7761 = vmatpush.msra.mxu0 0.0
        %7762 = vmatpush.msra.mxu0 0.0
        %7763 = vmatpush.msra.mxu0 0.0
        %7764 = vmatpush.msra.mxu0 %v7655
        %7765 = vmatpush.msra.mxu0 %v7654
        %7766 = vmatpush.msra.mxu0 %v7653
        %7767 = vmatpush.msra.mxu0 %v7652
        %7768 = vmatmul.f32.gmra.mxu0 %v7657
        %v7769 = vpop.f32.mrf.mxu0
        %v7770 = vadd.f32 0.0, %v7769
        %7771 = vmatmul.f32.gmra.mxu0 %v7660
        %v7772 = vpop.f32.mrf.mxu0
        %v7773 = vadd.f32 0.0, %v7772
        %7774 = vmatmul.f32.gmra.mxu0 %v7663
        %v7775 = vpop.f32.mrf.mxu0
        %v7776 = vadd.f32 0.0, %v7775
        %7777 = vmatmul.f32.gmra.mxu0 %v7666
        %v7778 = vpop.f32.mrf.mxu0
        %v7779 = vadd.f32 0.0, %v7778
        %7780 = vmatmul.f32.gmra.mxu0 %v7669
        %v7781 = vpop.f32.mrf.mxu0
        %v7782 = vadd.f32 0.0, %v7781
        %7783 = vmatmul.f32.gmra.mxu0 %v7672
        %v7784 = vpop.f32.mrf.mxu0
        %v7785 = vadd.f32 0.0, %v7784
        %7786 = vmatmul.f32.gmra.mxu0 %v7675
        %v7787 = vpop.f32.mrf.mxu0
        %v7788 = vadd.f32 0.0, %v7787
        %7789 = vmatmul.f32.gmra.mxu0 %v7678
        %v7790 = vpop.f32.mrf.mxu0
        %v7791 = vadd.f32 0.0, %v7790
        %7792 = vmatmul.f32.gmra.mxu0 %v7681
        %v7793 = vpop.f32.mrf.mxu0
        %v7794 = vadd.f32 0.0, %v7793
        %7795 = vmatmul.f32.gmra.mxu0 %v7684
        %v7796 = vpop.f32.mrf.mxu0
        %v7797 = vadd.f32 0.0, %v7796
        %7798 = vmatmul.f32.gmra.mxu0 %v7687
        %v7799 = vpop.f32.mrf.mxu0
        %v7800 = vadd.f32 0.0, %v7799
        %7801 = vmatmul.f32.gmra.mxu0 %v7690
        %v7802 = vpop.f32.mrf.mxu0
        %v7803 = vadd.f32 0.0, %v7802
        %7804 = vmatmul.f32.gmra.mxu0 %v7693
        %v7805 = vpop.f32.mrf.mxu0
        %v7806 = vadd.f32 0.0, %v7805
        %7807 = vmatmul.f32.gmra.mxu0 %v7696
        %v7808 = vpop.f32.mrf.mxu0
        %v7809 = vadd.f32 0.0, %v7808
        %7810 = vmatmul.f32.gmra.mxu0 %v7699
        %v7811 = vpop.f32.mrf.mxu0
        %v7812 = vadd.f32 0.0, %v7811
        %7813 = vmatmul.f32.gmra.mxu0 %v7702
        %v7814 = vpop.f32.mrf.mxu0
        %v7815 = vadd.f32 0.0, %v7814
        %7816 = vmatmul.f32.gmra.mxu0 %v7705
        %v7817 = vpop.f32.mrf.mxu0
        %v7818 = vadd.f32 0.0, %v7817
        %7819 = vmatmul.f32.gmra.mxu0 %v7708
        %v7820 = vpop.f32.mrf.mxu0
        %v7821 = vadd.f32 0.0, %v7820
        %7822 = vmatmul.f32.gmra.mxu0 %v7711
        %v7823 = vpop.f32.mrf.mxu0
        %v7824 = vadd.f32 0.0, %v7823
        %7825 = vmatmul.f32.gmra.mxu0 %v7714
        %v7826 = vpop.f32.mrf.mxu0
        %v7827 = vadd.f32 0.0, %v7826
        %7828 = vmatmul.f32.gmra.mxu0 %v7717
        %v7829 = vpop.f32.mrf.mxu0
        %v7830 = vadd.f32 0.0, %v7829
        %7831 = vmatmul.f32.gmra.mxu0 %v7720
        %v7832 = vpop.f32.mrf.mxu0
        %v7833 = vadd.f32 0.0, %v7832
        %7834 = vmatmul.f32.gmra.mxu0 %v7723
        %v7835 = vpop.f32.mrf.mxu0
        %v7836 = vadd.f32 0.0, %v7835
        %7837 = vmatmul.f32.gmra.mxu0 %v7726
        %v7838 = vpop.f32.mrf.mxu0
        %v7839 = vadd.f32 0.0, %v7838
        %7840 = vmatmul.f32.gmra.mxu0 %v7729
        %v7841 = vpop.f32.mrf.mxu0
        %v7842 = vadd.f32 0.0, %v7841
        %7843 = vmatmul.f32.gmra.mxu0 %v7732
        %v7844 = vpop.f32.mrf.mxu0
        %v7845 = vadd.f32 0.0, %v7844
        %7846 = vmatmul.f32.gmra.mxu0 %v7735
        %v7847 = vpop.f32.mrf.mxu0
        %v7848 = vadd.f32 0.0, %v7847
        %7849 = vmatmul.f32.gmra.mxu0 %v7738
        %v7850 = vpop.f32.mrf.mxu0
        %v7851 = vadd.f32 0.0, %v7850
        %7852 = vmatmul.f32.gmra.mxu0 %v7741
        %v7853 = vpop.f32.mrf.mxu0
        %v7854 = vadd.f32 0.0, %v7853
        %7855 = vmatmul.f32.gmra.mxu0 %v7744
        %v7856 = vpop.f32.mrf.mxu0
        %v7857 = vadd.f32 0.0, %v7856
        %7858 = vmatmul.f32.gmra.mxu0 %v7747
        %v7859 = vpop.f32.mrf.mxu0
        %v7860 = vadd.f32 0.0, %v7859
        %7861 = vmatmul.f32.gmra.mxu0 %v7750
        %v7862 = vpop.f32.mrf.mxu0
        %v7863 = vadd.f32 0.0, %v7862
        %7864 = vdwg.mxu0
        %v7865 = vadd.f32 %v7587, %v7770
        %v7866 = vadd.f32 %v7588, %v7773
        %v7867 = vadd.f32 %v7589, %v7776
        %v7868 = vadd.f32 %v7590, %v7779
        %v7869 = vadd.f32 %v7591, %v7782
        %v7870 = vadd.f32 %v7592, %v7785
        %v7871 = vadd.f32 %v7593, %v7788
        %v7872 = vadd.f32 %v7594, %v7791
        %v7873 = vadd.f32 %v7595, %v7794
        %v7874 = vadd.f32 %v7596, %v7797
        %v7875 = vadd.f32 %v7597, %v7800
        %v7876 = vadd.f32 %v7598, %v7803
        %v7877 = vadd.f32 %v7599, %v7806
        %v7878 = vadd.f32 %v7600, %v7809
        %v7879 = vadd.f32 %v7601, %v7812
        %v7880 = vadd.f32 %v7602, %v7815
        %v7881 = vadd.f32 %v7603, %v7818
        %v7882 = vadd.f32 %v7604, %v7821
        %v7883 = vadd.f32 %v7605, %v7824
        %v7884 = vadd.f32 %v7606, %v7827
        %v7885 = vadd.f32 %v7607, %v7830
        %v7886 = vadd.f32 %v7608, %v7833
        %v7887 = vadd.f32 %v7609, %v7836
        %v7888 = vadd.f32 %v7610, %v7839
        %v7889 = vadd.f32 %v7611, %v7842
        %v7890 = vadd.f32 %v7612, %v7845
        %v7891 = vadd.f32 %v7613, %v7848
        %v7892 = vadd.f32 %v7614, %v7851
        %v7893 = vadd.f32 %v7615, %v7854
        %v7894 = vadd.f32 %v7616, %v7857
        %v7895 = vadd.f32 %v7617, %v7860
        %v7896 = vadd.f32 %v7618, %v7863
        %v7897 = vld [vmem:[%s2514] sm:$0xff]
        %v7898 = vld [vmem:[%s2514 + $0x8] sm:$0xff]
        %v7899 = vld [vmem:[%s2514 + $0x18] sm:$0xff]
        %v7900 = vld [vmem:[%s2514 + $0x20] sm:$0xff]
        %v7901 = vld [vmem:[%s2514 + $0x30] sm:$0xff]
        %v7902 = vld [vmem:[%s2514 + $0x38] sm:$0xff]
        %v7903 = vld [vmem:[%s2514 + $0x48] sm:$0xff]
        %v7904 = vld [vmem:[%s2514 + $0x50] sm:$0xff]
        %v7905 = vld [vmem:[%s2514 + $0x60] sm:$0xff]
        %v7906 = vld [vmem:[%s2514 + $0x68] sm:$0xff]
        %v7907 = vld [vmem:[%s2514 + $0x78] sm:$0xff]
        %v7908 = vld [vmem:[%s2514 + $0x80] sm:$0xff]
        %v7909 = vld [vmem:[%s2514 + $0x90] sm:$0xff]
        %v7910 = vld [vmem:[%s2514 + $0x98] sm:$0xff]
        %v7911 = vld [vmem:[%s2514 + $0xa8] sm:$0xff]
        %v7912 = vld [vmem:[%s2514 + $0xb0] sm:$0xff]
        %v7913 = vld [vmem:[%s2514 + $0xc0] sm:$0xff]
        %v7914 = vld [vmem:[%s2514 + $0xc8] sm:$0xff]
        %v7915 = vld [vmem:[%s2514 + $0xd8] sm:$0xff]
        %v7916 = vld [vmem:[%s2514 + $0xe0] sm:$0xff]
        %v7917 = vld [vmem:[%s2514 + $0xf0] sm:$0xff]
        %v7918 = vld [vmem:[%s2514 + $0xf8] sm:$0xff]
        %v7919 = vld [vmem:[%s2514 + $0x108] sm:$0xff]
        %v7920 = vld [vmem:[%s2514 + $0x110] sm:$0xff]
        %v7921 = vld [vmem:[%s2514 + $0x120] sm:$0xff]
        %v7922 = vld [vmem:[%s2514 + $0x128] sm:$0xff]
        %v7923 = vld [vmem:[%s2514 + $0x138] sm:$0xff]
        %v7924 = vld [vmem:[%s2514 + $0x140] sm:$0xff]
        %v7925 = vld [vmem:[%s2514 + $0x150] sm:$0xff]
        %v7926 = vld [vmem:[%s2514 + $0x158] sm:$0xff]
        %v7927 = vld [vmem:[%s2514 + $0x168] sm:$0xff]
        %v7928 = vld [vmem:[%s2514 + $0x170] sm:$0xff]
        %s7929 = scalar_lea.vmem [#allocation6], 192
        %v7930 = vld [vmem:[%s7929] sm:$0xff]
        %v7931 = vld [vmem:[%s7929 + $0x8] sm:$0xff]
        %v7932 = vld [vmem:[%s7929 + $0x10] sm:$0xff]
        %v7933 = vld [vmem:[%s7929 + $0x18] sm:$0xff]
        %v7935 = vsel %vm3556, %v7897, 0
        %v7938 = vsel %vm3556, %v7898, 0
        %v7941 = vsel %vm3556, %v7899, 0
        %v7944 = vsel %vm3556, %v7900, 0
        %v7947 = vsel %vm3556, %v7901, 0
        %v7950 = vsel %vm3556, %v7902, 0
        %v7953 = vsel %vm3556, %v7903, 0
        %v7956 = vsel %vm3556, %v7904, 0
        %v7959 = vsel %vm3556, %v7905, 0
        %v7962 = vsel %vm3556, %v7906, 0
        %v7965 = vsel %vm3556, %v7907, 0
        %v7968 = vsel %vm3556, %v7908, 0
        %v7971 = vsel %vm3556, %v7909, 0
        %v7974 = vsel %vm3556, %v7910, 0
        %v7977 = vsel %vm3556, %v7911, 0
        %v7980 = vsel %vm3556, %v7912, 0
        %v7983 = vsel %vm3556, %v7913, 0
        %v7986 = vsel %vm3556, %v7914, 0
        %v7989 = vsel %vm3556, %v7915, 0
        %v7992 = vsel %vm3556, %v7916, 0
        %v7995 = vsel %vm3556, %v7917, 0
        %v7998 = vsel %vm3556, %v7918, 0
        %v8001 = vsel %vm3556, %v7919, 0
        %v8004 = vsel %vm3556, %v7920, 0
        %v8007 = vsel %vm3556, %v7921, 0
        %v8010 = vsel %vm3556, %v7922, 0
        %v8013 = vsel %vm3556, %v7923, 0
        %v8016 = vsel %vm3556, %v7924, 0
        %v8019 = vsel %vm3556, %v7925, 0
        %v8022 = vsel %vm3556, %v7926, 0
        %v8025 = vsel %vm3556, %v7927, 0
        %v8028 = vsel %vm3556, %v7928, 0
        %8030 = vmatpush.msra.mxu0 0.0
        %8031 = vmatpush.msra.mxu0 0.0
        %8032 = vmatpush.msra.mxu0 0.0
        %8033 = vmatpush.msra.mxu0 0.0
        %8034 = vmatpush.msra.mxu0 0.0
        %8035 = vmatpush.msra.mxu0 0.0
        %8036 = vmatpush.msra.mxu0 0.0
        %8037 = vmatpush.msra.mxu0 0.0
        %8038 = vmatpush.msra.mxu0 0.0
        %8039 = vmatpush.msra.mxu0 0.0
        %8040 = vmatpush.msra.mxu0 0.0
        %8041 = vmatpush.msra.mxu0 0.0
        %8042 = vmatpush.msra.mxu0 %v7933
        %8043 = vmatpush.msra.mxu0 %v7932
        %8044 = vmatpush.msra.mxu0 %v7931
        %8045 = vmatpush.msra.mxu0 %v7930
        %8046 = vmatmul.f32.gmra.mxu0 %v7935
        %v8047 = vpop.f32.mrf.mxu0
        %v8048 = vadd.f32 0.0, %v8047
        %8049 = vmatmul.f32.gmra.mxu0 %v7938
        %v8050 = vpop.f32.mrf.mxu0
        %v8051 = vadd.f32 0.0, %v8050
        %8052 = vmatmul.f32.gmra.mxu0 %v7941
        %v8053 = vpop.f32.mrf.mxu0
        %v8054 = vadd.f32 0.0, %v8053
        %8055 = vmatmul.f32.gmra.mxu0 %v7944
        %v8056 = vpop.f32.mrf.mxu0
        %v8057 = vadd.f32 0.0, %v8056
        %8058 = vmatmul.f32.gmra.mxu0 %v7947
        %v8059 = vpop.f32.mrf.mxu0
        %v8060 = vadd.f32 0.0, %v8059
        %8061 = vmatmul.f32.gmra.mxu0 %v7950
        %v8062 = vpop.f32.mrf.mxu0
        %v8063 = vadd.f32 0.0, %v8062
        %8064 = vmatmul.f32.gmra.mxu0 %v7953
        %v8065 = vpop.f32.mrf.mxu0
        %v8066 = vadd.f32 0.0, %v8065
        %8067 = vmatmul.f32.gmra.mxu0 %v7956
        %v8068 = vpop.f32.mrf.mxu0
        %v8069 = vadd.f32 0.0, %v8068
        %8070 = vmatmul.f32.gmra.mxu0 %v7959
        %v8071 = vpop.f32.mrf.mxu0
        %v8072 = vadd.f32 0.0, %v8071
        %8073 = vmatmul.f32.gmra.mxu0 %v7962
        %v8074 = vpop.f32.mrf.mxu0
        %v8075 = vadd.f32 0.0, %v8074
        %8076 = vmatmul.f32.gmra.mxu0 %v7965
        %v8077 = vpop.f32.mrf.mxu0
        %v8078 = vadd.f32 0.0, %v8077
        %8079 = vmatmul.f32.gmra.mxu0 %v7968
        %v8080 = vpop.f32.mrf.mxu0
        %v8081 = vadd.f32 0.0, %v8080
        %8082 = vmatmul.f32.gmra.mxu0 %v7971
        %v8083 = vpop.f32.mrf.mxu0
        %v8084 = vadd.f32 0.0, %v8083
        %8085 = vmatmul.f32.gmra.mxu0 %v7974
        %v8086 = vpop.f32.mrf.mxu0
        %v8087 = vadd.f32 0.0, %v8086
        %8088 = vmatmul.f32.gmra.mxu0 %v7977
        %v8089 = vpop.f32.mrf.mxu0
        %v8090 = vadd.f32 0.0, %v8089
        %8091 = vmatmul.f32.gmra.mxu0 %v7980
        %v8092 = vpop.f32.mrf.mxu0
        %v8093 = vadd.f32 0.0, %v8092
        %8094 = vmatmul.f32.gmra.mxu0 %v7983
        %v8095 = vpop.f32.mrf.mxu0
        %v8096 = vadd.f32 0.0, %v8095
        %8097 = vmatmul.f32.gmra.mxu0 %v7986
        %v8098 = vpop.f32.mrf.mxu0
        %v8099 = vadd.f32 0.0, %v8098
        %8100 = vmatmul.f32.gmra.mxu0 %v7989
        %v8101 = vpop.f32.mrf.mxu0
        %v8102 = vadd.f32 0.0, %v8101
        %8103 = vmatmul.f32.gmra.mxu0 %v7992
        %v8104 = vpop.f32.mrf.mxu0
        %v8105 = vadd.f32 0.0, %v8104
        %8106 = vmatmul.f32.gmra.mxu0 %v7995
        %v8107 = vpop.f32.mrf.mxu0
        %v8108 = vadd.f32 0.0, %v8107
        %8109 = vmatmul.f32.gmra.mxu0 %v7998
        %v8110 = vpop.f32.mrf.mxu0
        %v8111 = vadd.f32 0.0, %v8110
        %8112 = vmatmul.f32.gmra.mxu0 %v8001
        %v8113 = vpop.f32.mrf.mxu0
        %v8114 = vadd.f32 0.0, %v8113
        %8115 = vmatmul.f32.gmra.mxu0 %v8004
        %v8116 = vpop.f32.mrf.mxu0
        %v8117 = vadd.f32 0.0, %v8116
        %8118 = vmatmul.f32.gmra.mxu0 %v8007
        %v8119 = vpop.f32.mrf.mxu0
        %v8120 = vadd.f32 0.0, %v8119
        %8121 = vmatmul.f32.gmra.mxu0 %v8010
        %v8122 = vpop.f32.mrf.mxu0
        %v8123 = vadd.f32 0.0, %v8122
        %8124 = vmatmul.f32.gmra.mxu0 %v8013
        %v8125 = vpop.f32.mrf.mxu0
        %v8126 = vadd.f32 0.0, %v8125
        %8127 = vmatmul.f32.gmra.mxu0 %v8016
        %v8128 = vpop.f32.mrf.mxu0
        %v8129 = vadd.f32 0.0, %v8128
        %8130 = vmatmul.f32.gmra.mxu0 %v8019
        %v8131 = vpop.f32.mrf.mxu0
        %v8132 = vadd.f32 0.0, %v8131
        %8133 = vmatmul.f32.gmra.mxu0 %v8022
        %v8134 = vpop.f32.mrf.mxu0
        %v8135 = vadd.f32 0.0, %v8134
        %8136 = vmatmul.f32.gmra.mxu0 %v8025
        %v8137 = vpop.f32.mrf.mxu0
        %v8138 = vadd.f32 0.0, %v8137
        %8139 = vmatmul.f32.gmra.mxu0 %v8028
        %v8140 = vpop.f32.mrf.mxu0
        %v8141 = vadd.f32 0.0, %v8140
        %8142 = vdwg.mxu0
        %v8143 = vadd.f32 %v7865, %v8048
        %v8144 = vadd.f32 %v7866, %v8051
        %v8145 = vadd.f32 %v7867, %v8054
        %v8146 = vadd.f32 %v7868, %v8057
        %v8147 = vadd.f32 %v7869, %v8060
        %v8148 = vadd.f32 %v7870, %v8063
        %v8149 = vadd.f32 %v7871, %v8066
        %v8150 = vadd.f32 %v7872, %v8069
        %v8151 = vadd.f32 %v7873, %v8072
        %v8152 = vadd.f32 %v7874, %v8075
        %v8153 = vadd.f32 %v7875, %v8078
        %v8154 = vadd.f32 %v7876, %v8081
        %v8155 = vadd.f32 %v7877, %v8084
        %v8156 = vadd.f32 %v7878, %v8087
        %v8157 = vadd.f32 %v7879, %v8090
        %v8158 = vadd.f32 %v7880, %v8093
        %v8159 = vadd.f32 %v7881, %v8096
        %v8160 = vadd.f32 %v7882, %v8099
        %v8161 = vadd.f32 %v7883, %v8102
        %v8162 = vadd.f32 %v7884, %v8105
        %v8163 = vadd.f32 %v7885, %v8108
        %v8164 = vadd.f32 %v7886, %v8111
        %v8165 = vadd.f32 %v7887, %v8114
        %v8166 = vadd.f32 %v7888, %v8117
        %v8167 = vadd.f32 %v7889, %v8120
        %v8168 = vadd.f32 %v7890, %v8123
        %v8169 = vadd.f32 %v7891, %v8126
        %v8170 = vadd.f32 %v7892, %v8129
        %v8171 = vadd.f32 %v7893, %v8132
        %v8172 = vadd.f32 %v7894, %v8135
        %v8173 = vadd.f32 %v7895, %v8138
        %v8174 = vadd.f32 %v7896, %v8141
        %v8175 = vld [vmem:[%s2514 + $0x1] sm:$0xff]
        %v8176 = vld [vmem:[%s2514 + $0x9] sm:$0xff]
        %v8177 = vld [vmem:[%s2514 + $0x19] sm:$0xff]
        %v8178 = vld [vmem:[%s2514 + $0x21] sm:$0xff]
        %v8179 = vld [vmem:[%s2514 + $0x31] sm:$0xff]
        %v8180 = vld [vmem:[%s2514 + $0x39] sm:$0xff]
        %v8181 = vld [vmem:[%s2514 + $0x49] sm:$0xff]
        %v8182 = vld [vmem:[%s2514 + $0x51] sm:$0xff]
        %v8183 = vld [vmem:[%s2514 + $0x61] sm:$0xff]
        %v8184 = vld [vmem:[%s2514 + $0x69] sm:$0xff]
        %v8185 = vld [vmem:[%s2514 + $0x79] sm:$0xff]
        %v8186 = vld [vmem:[%s2514 + $0x81] sm:$0xff]
        %v8187 = vld [vmem:[%s2514 + $0x91] sm:$0xff]
        %v8188 = vld [vmem:[%s2514 + $0x99] sm:$0xff]
        %v8189 = vld [vmem:[%s2514 + $0xa9] sm:$0xff]
        %v8190 = vld [vmem:[%s2514 + $0xb1] sm:$0xff]
        %v8191 = vld [vmem:[%s2514 + $0xc1] sm:$0xff]
        %v8192 = vld [vmem:[%s2514 + $0xc9] sm:$0xff]
        %v8193 = vld [vmem:[%s2514 + $0xd9] sm:$0xff]
        %v8194 = vld [vmem:[%s2514 + $0xe1] sm:$0xff]
        %v8195 = vld [vmem:[%s2514 + $0xf1] sm:$0xff]
        %v8196 = vld [vmem:[%s2514 + $0xf9] sm:$0xff]
        %v8197 = vld [vmem:[%s2514 + $0x109] sm:$0xff]
        %v8198 = vld [vmem:[%s2514 + $0x111] sm:$0xff]
        %v8199 = vld [vmem:[%s2514 + $0x121] sm:$0xff]
        %v8200 = vld [vmem:[%s2514 + $0x129] sm:$0xff]
        %v8201 = vld [vmem:[%s2514 + $0x139] sm:$0xff]
        %v8202 = vld [vmem:[%s2514 + $0x141] sm:$0xff]
        %v8203 = vld [vmem:[%s2514 + $0x151] sm:$0xff]
        %v8204 = vld [vmem:[%s2514 + $0x159] sm:$0xff]
        %v8205 = vld [vmem:[%s2514 + $0x169] sm:$0xff]
        %v8206 = vld [vmem:[%s2514 + $0x171] sm:$0xff]
        %s8207 = scalar_lea.vmem [#allocation6], 224
        %v8208 = vld [vmem:[%s8207] sm:$0xff]
        %v8209 = vld [vmem:[%s8207 + $0x8] sm:$0xff]
        %v8210 = vld [vmem:[%s8207 + $0x10] sm:$0xff]
        %v8211 = vld [vmem:[%s8207 + $0x18] sm:$0xff]
        %v8213 = vsel %vm3556, %v8175, 0
        %v8216 = vsel %vm3556, %v8176, 0
        %v8219 = vsel %vm3556, %v8177, 0
        %v8222 = vsel %vm3556, %v8178, 0
        %v8225 = vsel %vm3556, %v8179, 0
        %v8228 = vsel %vm3556, %v8180, 0
        %v8231 = vsel %vm3556, %v8181, 0
        %v8234 = vsel %vm3556, %v8182, 0
        %v8237 = vsel %vm3556, %v8183, 0
        %v8240 = vsel %vm3556, %v8184, 0
        %v8243 = vsel %vm3556, %v8185, 0
        %v8246 = vsel %vm3556, %v8186, 0
        %v8249 = vsel %vm3556, %v8187, 0
        %v8252 = vsel %vm3556, %v8188, 0
        %v8255 = vsel %vm3556, %v8189, 0
        %v8258 = vsel %vm3556, %v8190, 0
        %v8261 = vsel %vm3556, %v8191, 0
        %v8264 = vsel %vm3556, %v8192, 0
        %v8267 = vsel %vm3556, %v8193, 0
        %v8270 = vsel %vm3556, %v8194, 0
        %v8273 = vsel %vm3556, %v8195, 0
        %v8276 = vsel %vm3556, %v8196, 0
        %v8279 = vsel %vm3556, %v8197, 0
        %v8282 = vsel %vm3556, %v8198, 0
        %v8285 = vsel %vm3556, %v8199, 0
        %v8288 = vsel %vm3556, %v8200, 0
        %v8291 = vsel %vm3556, %v8201, 0
        %v8294 = vsel %vm3556, %v8202, 0
        %v8297 = vsel %vm3556, %v8203, 0
        %v8300 = vsel %vm3556, %v8204, 0
        %v8303 = vsel %vm3556, %v8205, 0
        %v8306 = vsel %vm3556, %v8206, 0
        %8308 = vmatpush.msra.mxu0 0.0
        %8309 = vmatpush.msra.mxu0 0.0
        %8310 = vmatpush.msra.mxu0 0.0
        %8311 = vmatpush.msra.mxu0 0.0
        %8312 = vmatpush.msra.mxu0 0.0
        %8313 = vmatpush.msra.mxu0 0.0
        %8314 = vmatpush.msra.mxu0 0.0
        %8315 = vmatpush.msra.mxu0 0.0
        %8316 = vmatpush.msra.mxu0 0.0
        %8317 = vmatpush.msra.mxu0 0.0
        %8318 = vmatpush.msra.mxu0 0.0
        %8319 = vmatpush.msra.mxu0 0.0
        %8320 = vmatpush.msra.mxu0 %v8211
        %8321 = vmatpush.msra.mxu0 %v8210
        %8322 = vmatpush.msra.mxu0 %v8209
        %8323 = vmatpush.msra.mxu0 %v8208
        %8324 = vmatmul.f32.gmra.mxu0 %v8213
        %v8325 = vpop.f32.mrf.mxu0
        %v8326 = vadd.f32 0.0, %v8325
        %8327 = vmatmul.f32.gmra.mxu0 %v8216
        %v8328 = vpop.f32.mrf.mxu0
        %v8329 = vadd.f32 0.0, %v8328
        %8330 = vmatmul.f32.gmra.mxu0 %v8219
        %v8331 = vpop.f32.mrf.mxu0
        %v8332 = vadd.f32 0.0, %v8331
        %8333 = vmatmul.f32.gmra.mxu0 %v8222
        %v8334 = vpop.f32.mrf.mxu0
        %v8335 = vadd.f32 0.0, %v8334
        %8336 = vmatmul.f32.gmra.mxu0 %v8225
        %v8337 = vpop.f32.mrf.mxu0
        %v8338 = vadd.f32 0.0, %v8337
        %8339 = vmatmul.f32.gmra.mxu0 %v8228
        %v8340 = vpop.f32.mrf.mxu0
        %v8341 = vadd.f32 0.0, %v8340
        %8342 = vmatmul.f32.gmra.mxu0 %v8231
        %v8343 = vpop.f32.mrf.mxu0
        %v8344 = vadd.f32 0.0, %v8343
        %8345 = vmatmul.f32.gmra.mxu0 %v8234
        %v8346 = vpop.f32.mrf.mxu0
        %v8347 = vadd.f32 0.0, %v8346
        %8348 = vmatmul.f32.gmra.mxu0 %v8237
        %v8349 = vpop.f32.mrf.mxu0
        %v8350 = vadd.f32 0.0, %v8349
        %8351 = vmatmul.f32.gmra.mxu0 %v8240
        %v8352 = vpop.f32.mrf.mxu0
        %v8353 = vadd.f32 0.0, %v8352
        %8354 = vmatmul.f32.gmra.mxu0 %v8243
        %v8355 = vpop.f32.mrf.mxu0
        %v8356 = vadd.f32 0.0, %v8355
        %8357 = vmatmul.f32.gmra.mxu0 %v8246
        %v8358 = vpop.f32.mrf.mxu0
        %v8359 = vadd.f32 0.0, %v8358
        %8360 = vmatmul.f32.gmra.mxu0 %v8249
        %v8361 = vpop.f32.mrf.mxu0
        %v8362 = vadd.f32 0.0, %v8361
        %8363 = vmatmul.f32.gmra.mxu0 %v8252
        %v8364 = vpop.f32.mrf.mxu0
        %v8365 = vadd.f32 0.0, %v8364
        %8366 = vmatmul.f32.gmra.mxu0 %v8255
        %v8367 = vpop.f32.mrf.mxu0
        %v8368 = vadd.f32 0.0, %v8367
        %8369 = vmatmul.f32.gmra.mxu0 %v8258
        %v8370 = vpop.f32.mrf.mxu0
        %v8371 = vadd.f32 0.0, %v8370
        %8372 = vmatmul.f32.gmra.mxu0 %v8261
        %v8373 = vpop.f32.mrf.mxu0
        %v8374 = vadd.f32 0.0, %v8373
        %8375 = vmatmul.f32.gmra.mxu0 %v8264
        %v8376 = vpop.f32.mrf.mxu0
        %v8377 = vadd.f32 0.0, %v8376
        %8378 = vmatmul.f32.gmra.mxu0 %v8267
        %v8379 = vpop.f32.mrf.mxu0
        %v8380 = vadd.f32 0.0, %v8379
        %8381 = vmatmul.f32.gmra.mxu0 %v8270
        %v8382 = vpop.f32.mrf.mxu0
        %v8383 = vadd.f32 0.0, %v8382
        %8384 = vmatmul.f32.gmra.mxu0 %v8273
        %v8385 = vpop.f32.mrf.mxu0
        %v8386 = vadd.f32 0.0, %v8385
        %8387 = vmatmul.f32.gmra.mxu0 %v8276
        %v8388 = vpop.f32.mrf.mxu0
        %v8389 = vadd.f32 0.0, %v8388
        %8390 = vmatmul.f32.gmra.mxu0 %v8279
        %v8391 = vpop.f32.mrf.mxu0
        %v8392 = vadd.f32 0.0, %v8391
        %8393 = vmatmul.f32.gmra.mxu0 %v8282
        %v8394 = vpop.f32.mrf.mxu0
        %v8395 = vadd.f32 0.0, %v8394
        %8396 = vmatmul.f32.gmra.mxu0 %v8285
        %v8397 = vpop.f32.mrf.mxu0
        %v8398 = vadd.f32 0.0, %v8397
        %8399 = vmatmul.f32.gmra.mxu0 %v8288
        %v8400 = vpop.f32.mrf.mxu0
        %v8401 = vadd.f32 0.0, %v8400
        %8402 = vmatmul.f32.gmra.mxu0 %v8291
        %v8403 = vpop.f32.mrf.mxu0
        %v8404 = vadd.f32 0.0, %v8403
        %8405 = vmatmul.f32.gmra.mxu0 %v8294
        %v8406 = vpop.f32.mrf.mxu0
        %v8407 = vadd.f32 0.0, %v8406
        %8408 = vmatmul.f32.gmra.mxu0 %v8297
        %v8409 = vpop.f32.mrf.mxu0
        %v8410 = vadd.f32 0.0, %v8409
        %8411 = vmatmul.f32.gmra.mxu0 %v8300
        %v8412 = vpop.f32.mrf.mxu0
        %v8413 = vadd.f32 0.0, %v8412
        %8414 = vmatmul.f32.gmra.mxu0 %v8303
        %v8415 = vpop.f32.mrf.mxu0
        %v8416 = vadd.f32 0.0, %v8415
        %8417 = vmatmul.f32.gmra.mxu0 %v8306
        %v8418 = vpop.f32.mrf.mxu0
        %v8419 = vadd.f32 0.0, %v8418
        %8420 = vdwg.mxu0
        %v8421 = vadd.f32 %v8143, %v8326
        %v8422 = vadd.f32 %v8144, %v8329
        %v8423 = vadd.f32 %v8145, %v8332
        %v8424 = vadd.f32 %v8146, %v8335
        %v8425 = vadd.f32 %v8147, %v8338
        %v8426 = vadd.f32 %v8148, %v8341
        %v8427 = vadd.f32 %v8149, %v8344
        %v8428 = vadd.f32 %v8150, %v8347
        %v8429 = vadd.f32 %v8151, %v8350
        %v8430 = vadd.f32 %v8152, %v8353
        %v8431 = vadd.f32 %v8153, %v8356
        %v8432 = vadd.f32 %v8154, %v8359
        %v8433 = vadd.f32 %v8155, %v8362
        %v8434 = vadd.f32 %v8156, %v8365
        %v8435 = vadd.f32 %v8157, %v8368
        %v8436 = vadd.f32 %v8158, %v8371
        %v8437 = vadd.f32 %v8159, %v8374
        %v8438 = vadd.f32 %v8160, %v8377
        %v8439 = vadd.f32 %v8161, %v8380
        %v8440 = vadd.f32 %v8162, %v8383
        %v8441 = vadd.f32 %v8163, %v8386
        %v8442 = vadd.f32 %v8164, %v8389
        %v8443 = vadd.f32 %v8165, %v8392
        %v8444 = vadd.f32 %v8166, %v8395
        %v8445 = vadd.f32 %v8167, %v8398
        %v8446 = vadd.f32 %v8168, %v8401
        %v8447 = vadd.f32 %v8169, %v8404
        %v8448 = vadd.f32 %v8170, %v8407
        %v8449 = vadd.f32 %v8171, %v8410
        %v8450 = vadd.f32 %v8172, %v8413
        %v8451 = vadd.f32 %v8173, %v8416
        %v8452 = vadd.f32 %v8174, %v8419
        %v8453 = vld [vmem:[%s2514 + $0x2] sm:$0xff]
        %v8454 = vld [vmem:[%s2514 + $0xa] sm:$0xff]
        %v8455 = vld [vmem:[%s2514 + $0x1a] sm:$0xff]
        %v8456 = vld [vmem:[%s2514 + $0x22] sm:$0xff]
        %v8457 = vld [vmem:[%s2514 + $0x32] sm:$0xff]
        %v8458 = vld [vmem:[%s2514 + $0x3a] sm:$0xff]
        %v8459 = vld [vmem:[%s2514 + $0x4a] sm:$0xff]
        %v8460 = vld [vmem:[%s2514 + $0x52] sm:$0xff]
        %v8461 = vld [vmem:[%s2514 + $0x62] sm:$0xff]
        %v8462 = vld [vmem:[%s2514 + $0x6a] sm:$0xff]
        %v8463 = vld [vmem:[%s2514 + $0x7a] sm:$0xff]
        %v8464 = vld [vmem:[%s2514 + $0x82] sm:$0xff]
        %v8465 = vld [vmem:[%s2514 + $0x92] sm:$0xff]
        %v8466 = vld [vmem:[%s2514 + $0x9a] sm:$0xff]
        %v8467 = vld [vmem:[%s2514 + $0xaa] sm:$0xff]
        %v8468 = vld [vmem:[%s2514 + $0xb2] sm:$0xff]
        %v8469 = vld [vmem:[%s2514 + $0xc2] sm:$0xff]
        %v8470 = vld [vmem:[%s2514 + $0xca] sm:$0xff]
        %v8471 = vld [vmem:[%s2514 + $0xda] sm:$0xff]
        %v8472 = vld [vmem:[%s2514 + $0xe2] sm:$0xff]
        %v8473 = vld [vmem:[%s2514 + $0xf2] sm:$0xff]
        %v8474 = vld [vmem:[%s2514 + $0xfa] sm:$0xff]
        %v8475 = vld [vmem:[%s2514 + $0x10a] sm:$0xff]
        %v8476 = vld [vmem:[%s2514 + $0x112] sm:$0xff]
        %v8477 = vld [vmem:[%s2514 + $0x122] sm:$0xff]
        %v8478 = vld [vmem:[%s2514 + $0x12a] sm:$0xff]
        %v8479 = vld [vmem:[%s2514 + $0x13a] sm:$0xff]
        %v8480 = vld [vmem:[%s2514 + $0x142] sm:$0xff]
        %v8481 = vld [vmem:[%s2514 + $0x152] sm:$0xff]
        %v8482 = vld [vmem:[%s2514 + $0x15a] sm:$0xff]
        %v8483 = vld [vmem:[%s2514 + $0x16a] sm:$0xff]
        %v8484 = vld [vmem:[%s2514 + $0x172] sm:$0xff]
        %s8485 = scalar_lea.vmem [#allocation6], 256
        %v8486 = vld [vmem:[%s8485] sm:$0xff]
        %v8487 = vld [vmem:[%s8485 + $0x8] sm:$0xff]
        %v8488 = vld [vmem:[%s8485 + $0x10] sm:$0xff]
        %v8489 = vld [vmem:[%s8485 + $0x18] sm:$0xff]
        %v8491 = vsel %vm3556, %v8453, 0
        %v8494 = vsel %vm3556, %v8454, 0
        %v8497 = vsel %vm3556, %v8455, 0
        %v8500 = vsel %vm3556, %v8456, 0
        %v8503 = vsel %vm3556, %v8457, 0
        %v8506 = vsel %vm3556, %v8458, 0
        %v8509 = vsel %vm3556, %v8459, 0
        %v8512 = vsel %vm3556, %v8460, 0
        %v8515 = vsel %vm3556, %v8461, 0
        %v8518 = vsel %vm3556, %v8462, 0
        %v8521 = vsel %vm3556, %v8463, 0
        %v8524 = vsel %vm3556, %v8464, 0
        %v8527 = vsel %vm3556, %v8465, 0
        %v8530 = vsel %vm3556, %v8466, 0
        %v8533 = vsel %vm3556, %v8467, 0
        %v8536 = vsel %vm3556, %v8468, 0
        %v8539 = vsel %vm3556, %v8469, 0
        %v8542 = vsel %vm3556, %v8470, 0
        %v8545 = vsel %vm3556, %v8471, 0
        %v8548 = vsel %vm3556, %v8472, 0
        %v8551 = vsel %vm3556, %v8473, 0
        %v8554 = vsel %vm3556, %v8474, 0
        %v8557 = vsel %vm3556, %v8475, 0
        %v8560 = vsel %vm3556, %v8476, 0
        %v8563 = vsel %vm3556, %v8477, 0
        %v8566 = vsel %vm3556, %v8478, 0
        %v8569 = vsel %vm3556, %v8479, 0
        %v8572 = vsel %vm3556, %v8480, 0
        %v8575 = vsel %vm3556, %v8481, 0
        %v8578 = vsel %vm3556, %v8482, 0
        %v8581 = vsel %vm3556, %v8483, 0
        %v8584 = vsel %vm3556, %v8484, 0
        %8586 = vmatpush.msra.mxu0 0.0
        %8587 = vmatpush.msra.mxu0 0.0
        %8588 = vmatpush.msra.mxu0 0.0
        %8589 = vmatpush.msra.mxu0 0.0
        %8590 = vmatpush.msra.mxu0 0.0
        %8591 = vmatpush.msra.mxu0 0.0
        %8592 = vmatpush.msra.mxu0 0.0
        %8593 = vmatpush.msra.mxu0 0.0
        %8594 = vmatpush.msra.mxu0 0.0
        %8595 = vmatpush.msra.mxu0 0.0
        %8596 = vmatpush.msra.mxu0 0.0
        %8597 = vmatpush.msra.mxu0 0.0
        %8598 = vmatpush.msra.mxu0 %v8489
        %8599 = vmatpush.msra.mxu0 %v8488
        %8600 = vmatpush.msra.mxu0 %v8487
        %8601 = vmatpush.msra.mxu0 %v8486
        %8602 = vmatmul.f32.gmra.mxu0 %v8491
        %v8603 = vpop.f32.mrf.mxu0
        %v8604 = vadd.f32 0.0, %v8603
        %8605 = vmatmul.f32.gmra.mxu0 %v8494
        %v8606 = vpop.f32.mrf.mxu0
        %v8607 = vadd.f32 0.0, %v8606
        %8608 = vmatmul.f32.gmra.mxu0 %v8497
        %v8609 = vpop.f32.mrf.mxu0
        %v8610 = vadd.f32 0.0, %v8609
        %8611 = vmatmul.f32.gmra.mxu0 %v8500
        %v8612 = vpop.f32.mrf.mxu0
        %v8613 = vadd.f32 0.0, %v8612
        %8614 = vmatmul.f32.gmra.mxu0 %v8503
        %v8615 = vpop.f32.mrf.mxu0
        %v8616 = vadd.f32 0.0, %v8615
        %8617 = vmatmul.f32.gmra.mxu0 %v8506
        %v8618 = vpop.f32.mrf.mxu0
        %v8619 = vadd.f32 0.0, %v8618
        %8620 = vmatmul.f32.gmra.mxu0 %v8509
        %v8621 = vpop.f32.mrf.mxu0
        %v8622 = vadd.f32 0.0, %v8621
        %8623 = vmatmul.f32.gmra.mxu0 %v8512
        %v8624 = vpop.f32.mrf.mxu0
        %v8625 = vadd.f32 0.0, %v8624
        %8626 = vmatmul.f32.gmra.mxu0 %v8515
        %v8627 = vpop.f32.mrf.mxu0
        %v8628 = vadd.f32 0.0, %v8627
        %8629 = vmatmul.f32.gmra.mxu0 %v8518
        %v8630 = vpop.f32.mrf.mxu0
        %v8631 = vadd.f32 0.0, %v8630
        %8632 = vmatmul.f32.gmra.mxu0 %v8521
        %v8633 = vpop.f32.mrf.mxu0
        %v8634 = vadd.f32 0.0, %v8633
        %8635 = vmatmul.f32.gmra.mxu0 %v8524
        %v8636 = vpop.f32.mrf.mxu0
        %v8637 = vadd.f32 0.0, %v8636
        %8638 = vmatmul.f32.gmra.mxu0 %v8527
        %v8639 = vpop.f32.mrf.mxu0
        %v8640 = vadd.f32 0.0, %v8639
        %8641 = vmatmul.f32.gmra.mxu0 %v8530
        %v8642 = vpop.f32.mrf.mxu0
        %v8643 = vadd.f32 0.0, %v8642
        %8644 = vmatmul.f32.gmra.mxu0 %v8533
        %v8645 = vpop.f32.mrf.mxu0
        %v8646 = vadd.f32 0.0, %v8645
        %8647 = vmatmul.f32.gmra.mxu0 %v8536
        %v8648 = vpop.f32.mrf.mxu0
        %v8649 = vadd.f32 0.0, %v8648
        %8650 = vmatmul.f32.gmra.mxu0 %v8539
        %v8651 = vpop.f32.mrf.mxu0
        %v8652 = vadd.f32 0.0, %v8651
        %8653 = vmatmul.f32.gmra.mxu0 %v8542
        %v8654 = vpop.f32.mrf.mxu0
        %v8655 = vadd.f32 0.0, %v8654
        %8656 = vmatmul.f32.gmra.mxu0 %v8545
        %v8657 = vpop.f32.mrf.mxu0
        %v8658 = vadd.f32 0.0, %v8657
        %8659 = vmatmul.f32.gmra.mxu0 %v8548
        %v8660 = vpop.f32.mrf.mxu0
        %v8661 = vadd.f32 0.0, %v8660
        %8662 = vmatmul.f32.gmra.mxu0 %v8551
        %v8663 = vpop.f32.mrf.mxu0
        %v8664 = vadd.f32 0.0, %v8663
        %8665 = vmatmul.f32.gmra.mxu0 %v8554
        %v8666 = vpop.f32.mrf.mxu0
        %v8667 = vadd.f32 0.0, %v8666
        %8668 = vmatmul.f32.gmra.mxu0 %v8557
        %v8669 = vpop.f32.mrf.mxu0
        %v8670 = vadd.f32 0.0, %v8669
        %8671 = vmatmul.f32.gmra.mxu0 %v8560
        %v8672 = vpop.f32.mrf.mxu0
        %v8673 = vadd.f32 0.0, %v8672
        %8674 = vmatmul.f32.gmra.mxu0 %v8563
        %v8675 = vpop.f32.mrf.mxu0
        %v8676 = vadd.f32 0.0, %v8675
        %8677 = vmatmul.f32.gmra.mxu0 %v8566
        %v8678 = vpop.f32.mrf.mxu0
        %v8679 = vadd.f32 0.0, %v8678
        %8680 = vmatmul.f32.gmra.mxu0 %v8569
        %v8681 = vpop.f32.mrf.mxu0
        %v8682 = vadd.f32 0.0, %v8681
        %8683 = vmatmul.f32.gmra.mxu0 %v8572
        %v8684 = vpop.f32.mrf.mxu0
        %v8685 = vadd.f32 0.0, %v8684
        %8686 = vmatmul.f32.gmra.mxu0 %v8575
        %v8687 = vpop.f32.mrf.mxu0
        %v8688 = vadd.f32 0.0, %v8687
        %8689 = vmatmul.f32.gmra.mxu0 %v8578
        %v8690 = vpop.f32.mrf.mxu0
        %v8691 = vadd.f32 0.0, %v8690
        %8692 = vmatmul.f32.gmra.mxu0 %v8581
        %v8693 = vpop.f32.mrf.mxu0
        %v8694 = vadd.f32 0.0, %v8693
        %8695 = vmatmul.f32.gmra.mxu0 %v8584
        %v8696 = vpop.f32.mrf.mxu0
        %v8697 = vadd.f32 0.0, %v8696
        %8698 = vdwg.mxu0
        %v8699 = vadd.f32 %v8421, %v8604
        %v8700 = vadd.f32 %v8422, %v8607
        %v8701 = vadd.f32 %v8423, %v8610
        %v8702 = vadd.f32 %v8424, %v8613
        %v8703 = vadd.f32 %v8425, %v8616
        %v8704 = vadd.f32 %v8426, %v8619
        %v8705 = vadd.f32 %v8427, %v8622
        %v8706 = vadd.f32 %v8428, %v8625
        %v8707 = vadd.f32 %v8429, %v8628
        %v8708 = vadd.f32 %v8430, %v8631
        %v8709 = vadd.f32 %v8431, %v8634
        %v8710 = vadd.f32 %v8432, %v8637
        %v8711 = vadd.f32 %v8433, %v8640
        %v8712 = vadd.f32 %v8434, %v8643
        %v8713 = vadd.f32 %v8435, %v8646
        %v8714 = vadd.f32 %v8436, %v8649
        %v8715 = vadd.f32 %v8437, %v8652
        %v8716 = vadd.f32 %v8438, %v8655
        %v8717 = vadd.f32 %v8439, %v8658
        %v8718 = vadd.f32 %v8440, %v8661
        %v8719 = vadd.f32 %v8441, %v8664
        %v8720 = vadd.f32 %v8442, %v8667
        %v8721 = vadd.f32 %v8443, %v8670
        %v8722 = vadd.f32 %v8444, %v8673
        %v8723 = vadd.f32 %v8445, %v8676
        %v8724 = vadd.f32 %v8446, %v8679
        %v8725 = vadd.f32 %v8447, %v8682
        %v8726 = vadd.f32 %v8448, %v8685
        %v8727 = vadd.f32 %v8449, %v8688
        %v8728 = vadd.f32 %v8450, %v8691
        %v8729 = vadd.f32 %v8451, %v8694
        %v8730 = vadd.f32 %v8452, %v8697
        %v8731 = vld [vmem:[%s13] sm:$0x1]
        %v8733 = vperm.slane %v8731, 0
        %v8735 = vadd.f32 %v8699, %v8733
        %v8736 = vadd.f32 %v8700, %v8733
        %v8737 = vadd.f32 %v8701, %v8733
        %v8738 = vadd.f32 %v8702, %v8733
        %v8739 = vadd.f32 %v8703, %v8733
        %v8740 = vadd.f32 %v8704, %v8733
        %v8741 = vadd.f32 %v8705, %v8733
        %v8742 = vadd.f32 %v8706, %v8733
        %v8743 = vadd.f32 %v8707, %v8733
        %v8744 = vadd.f32 %v8708, %v8733
        %v8745 = vadd.f32 %v8709, %v8733
        %v8746 = vadd.f32 %v8710, %v8733
        %v8747 = vadd.f32 %v8711, %v8733
        %v8748 = vadd.f32 %v8712, %v8733
        %v8749 = vadd.f32 %v8713, %v8733
        %v8750 = vadd.f32 %v8714, %v8733
        %v8751 = vadd.f32 %v8715, %v8733
        %v8752 = vadd.f32 %v8716, %v8733
        %v8753 = vadd.f32 %v8717, %v8733
        %v8754 = vadd.f32 %v8718, %v8733
        %v8755 = vadd.f32 %v8719, %v8733
        %v8756 = vadd.f32 %v8720, %v8733
        %v8757 = vadd.f32 %v8721, %v8733
        %v8758 = vadd.f32 %v8722, %v8733
        %v8759 = vadd.f32 %v8723, %v8733
        %v8760 = vadd.f32 %v8724, %v8733
        %v8761 = vadd.f32 %v8725, %v8733
        %v8762 = vadd.f32 %v8726, %v8733
        %v8763 = vadd.f32 %v8727, %v8733
        %v8764 = vadd.f32 %v8728, %v8733
        %v8765 = vadd.f32 %v8729, %v8733
        %v8766 = vadd.f32 %v8730, %v8733
        %v8767 = vadd.f32 %v6062, %v8735
        %v8768 = vadd.f32 %v6063, %v8736
        %v8769 = vadd.f32 %v6064, %v8737
        %v8770 = vadd.f32 %v6065, %v8738
        %v8771 = vadd.f32 %v6066, %v8739
        %v8772 = vadd.f32 %v6067, %v8740
        %v8773 = vadd.f32 %v6068, %v8741
        %v8774 = vadd.f32 %v6069, %v8742
        %v8775 = vadd.f32 %v6070, %v8743
        %v8776 = vadd.f32 %v6071, %v8744
        %v8777 = vadd.f32 %v6072, %v8745
        %v8778 = vadd.f32 %v6073, %v8746
        %v8779 = vadd.f32 %v6074, %v8747
        %v8780 = vadd.f32 %v6075, %v8748
        %v8781 = vadd.f32 %v6076, %v8749
        %v8782 = vadd.f32 %v6077, %v8750
        %v8783 = vadd.f32 %v6078, %v8751
        %v8784 = vadd.f32 %v6079, %v8752
        %v8785 = vadd.f32 %v6080, %v8753
        %v8786 = vadd.f32 %v6081, %v8754
        %v8787 = vadd.f32 %v6082, %v8755
        %v8788 = vadd.f32 %v6083, %v8756
        %v8789 = vadd.f32 %v6084, %v8757
        %v8790 = vadd.f32 %v6085, %v8758
        %v8791 = vadd.f32 %v6086, %v8759
        %v8792 = vadd.f32 %v6087, %v8760
        %v8793 = vadd.f32 %v6088, %v8761
        %v8794 = vadd.f32 %v6089, %v8762
        %v8795 = vadd.f32 %v6090, %v8763
        %v8796 = vadd.f32 %v6091, %v8764
        %v8797 = vadd.f32 %v6092, %v8765
        %v8798 = vadd.f32 %v6093, %v8766
        %v8799 = vld [vmem:[%s14] sm:$0x1]
        %v8801 = vperm.slane %v8799, 0
        %v8803 = vmul.f32 %v8767, %v8801
        %v8804 = vmul.f32 %v8768, %v8801
        %v8805 = vmul.f32 %v8769, %v8801
        %v8806 = vmul.f32 %v8770, %v8801
        %v8807 = vmul.f32 %v8771, %v8801
        %v8808 = vmul.f32 %v8772, %v8801
        %v8809 = vmul.f32 %v8773, %v8801
        %v8810 = vmul.f32 %v8774, %v8801
        %v8811 = vmul.f32 %v8775, %v8801
        %v8812 = vmul.f32 %v8776, %v8801
        %v8813 = vmul.f32 %v8777, %v8801
        %v8814 = vmul.f32 %v8778, %v8801
        %v8815 = vmul.f32 %v8779, %v8801
        %v8816 = vmul.f32 %v8780, %v8801
        %v8817 = vmul.f32 %v8781, %v8801
        %v8818 = vmul.f32 %v8782, %v8801
        %v8819 = vmul.f32 %v8783, %v8801
        %v8820 = vmul.f32 %v8784, %v8801
        %v8821 = vmul.f32 %v8785, %v8801
        %v8822 = vmul.f32 %v8786, %v8801
        %v8823 = vmul.f32 %v8787, %v8801
        %v8824 = vmul.f32 %v8788, %v8801
        %v8825 = vmul.f32 %v8789, %v8801
        %v8826 = vmul.f32 %v8790, %v8801
        %v8827 = vmul.f32 %v8791, %v8801
        %v8828 = vmul.f32 %v8792, %v8801
        %v8829 = vmul.f32 %v8793, %v8801
        %v8830 = vmul.f32 %v8794, %v8801
        %v8831 = vmul.f32 %v8795, %v8801
        %v8832 = vmul.f32 %v8796, %v8801
        %v8833 = vmul.f32 %v8797, %v8801
        %v8834 = vmul.f32 %v8798, %v8801
        %v8835 = vld [vmem:[%s15] sm:$0x1]
        %v8837 = vperm.slane %v8835, 0
        %v8839 = vadd.f32 %v8803, %v8837
        %v8840 = vadd.f32 %v8804, %v8837
        %v8841 = vadd.f32 %v8805, %v8837
        %v8842 = vadd.f32 %v8806, %v8837
        %v8843 = vadd.f32 %v8807, %v8837
        %v8844 = vadd.f32 %v8808, %v8837
        %v8845 = vadd.f32 %v8809, %v8837
        %v8846 = vadd.f32 %v8810, %v8837
        %v8847 = vadd.f32 %v8811, %v8837
        %v8848 = vadd.f32 %v8812, %v8837
        %v8849 = vadd.f32 %v8813, %v8837
        %v8850 = vadd.f32 %v8814, %v8837
        %v8851 = vadd.f32 %v8815, %v8837
        %v8852 = vadd.f32 %v8816, %v8837
        %v8853 = vadd.f32 %v8817, %v8837
        %v8854 = vadd.f32 %v8818, %v8837
        %v8855 = vadd.f32 %v8819, %v8837
        %v8856 = vadd.f32 %v8820, %v8837
        %v8857 = vadd.f32 %v8821, %v8837
        %v8858 = vadd.f32 %v8822, %v8837
        %v8859 = vadd.f32 %v8823, %v8837
        %v8860 = vadd.f32 %v8824, %v8837
        %v8861 = vadd.f32 %v8825, %v8837
        %v8862 = vadd.f32 %v8826, %v8837
        %v8863 = vadd.f32 %v8827, %v8837
        %v8864 = vadd.f32 %v8828, %v8837
        %v8865 = vadd.f32 %v8829, %v8837
        %v8866 = vadd.f32 %v8830, %v8837
        %v8867 = vadd.f32 %v8831, %v8837
        %v8868 = vadd.f32 %v8832, %v8837
        %v8869 = vadd.f32 %v8833, %v8837
        %v8870 = vadd.f32 %v8834, %v8837
        %vm8871 = vcmp.gt.f32.partialorder %v8839, 0.0
        %vm8872 = vcmp.gt.f32.partialorder %v8840, 0.0
        %vm8873 = vcmp.gt.f32.partialorder %v8841, 0.0
        %vm8874 = vcmp.gt.f32.partialorder %v8842, 0.0
        %vm8875 = vcmp.gt.f32.partialorder %v8843, 0.0
        %vm8876 = vcmp.gt.f32.partialorder %v8844, 0.0
        %vm8877 = vcmp.gt.f32.partialorder %v8845, 0.0
        %vm8878 = vcmp.gt.f32.partialorder %v8846, 0.0
        %vm8879 = vcmp.gt.f32.partialorder %v8847, 0.0
        %vm8880 = vcmp.gt.f32.partialorder %v8848, 0.0
        %vm8881 = vcmp.gt.f32.partialorder %v8849, 0.0
        %vm8882 = vcmp.gt.f32.partialorder %v8850, 0.0
        %vm8883 = vcmp.gt.f32.partialorder %v8851, 0.0
        %vm8884 = vcmp.gt.f32.partialorder %v8852, 0.0
        %vm8885 = vcmp.gt.f32.partialorder %v8853, 0.0
        %vm8886 = vcmp.gt.f32.partialorder %v8854, 0.0
        %vm8887 = vcmp.gt.f32.partialorder %v8855, 0.0
        %vm8888 = vcmp.gt.f32.partialorder %v8856, 0.0
        %vm8889 = vcmp.gt.f32.partialorder %v8857, 0.0
        %vm8890 = vcmp.gt.f32.partialorder %v8858, 0.0
        %vm8891 = vcmp.gt.f32.partialorder %v8859, 0.0
        %vm8892 = vcmp.gt.f32.partialorder %v8860, 0.0
        %vm8893 = vcmp.gt.f32.partialorder %v8861, 0.0
        %vm8894 = vcmp.gt.f32.partialorder %v8862, 0.0
        %vm8895 = vcmp.gt.f32.partialorder %v8863, 0.0
        %vm8896 = vcmp.gt.f32.partialorder %v8864, 0.0
        %vm8897 = vcmp.gt.f32.partialorder %v8865, 0.0
        %vm8898 = vcmp.gt.f32.partialorder %v8866, 0.0
        %vm8899 = vcmp.gt.f32.partialorder %v8867, 0.0
        %vm8900 = vcmp.gt.f32.partialorder %v8868, 0.0
        %vm8901 = vcmp.gt.f32.partialorder %v8869, 0.0
        %vm8902 = vcmp.gt.f32.partialorder %v8870, 0.0
        %v8903 = vmul.f32 %v808, %v8839
        %v8904 = vmul.f32 %v808, %v8840
        %v8905 = vmul.f32 %v808, %v8841
        %v8906 = vmul.f32 %v808, %v8842
        %v8907 = vmul.f32 %v808, %v8843
        %v8908 = vmul.f32 %v808, %v8844
        %v8909 = vmul.f32 %v808, %v8845
        %v8910 = vmul.f32 %v808, %v8846
        %v8911 = vmul.f32 %v808, %v8847
        %v8912 = vmul.f32 %v808, %v8848
        %v8913 = vmul.f32 %v808, %v8849
        %v8914 = vmul.f32 %v808, %v8850
        %v8915 = vmul.f32 %v808, %v8851
        %v8916 = vmul.f32 %v808, %v8852
        %v8917 = vmul.f32 %v808, %v8853
        %v8918 = vmul.f32 %v808, %v8854
        %v8919 = vmul.f32 %v808, %v8855
        %v8920 = vmul.f32 %v808, %v8856
        %v8921 = vmul.f32 %v808, %v8857
        %v8922 = vmul.f32 %v808, %v8858
        %v8923 = vmul.f32 %v808, %v8859
        %v8924 = vmul.f32 %v808, %v8860
        %v8925 = vmul.f32 %v808, %v8861
        %v8926 = vmul.f32 %v808, %v8862
        %v8927 = vmul.f32 %v808, %v8863
        %v8928 = vmul.f32 %v808, %v8864
        %v8929 = vmul.f32 %v808, %v8865
        %v8930 = vmul.f32 %v808, %v8866
        %v8931 = vmul.f32 %v808, %v8867
        %v8932 = vmul.f32 %v808, %v8868
        %v8933 = vmul.f32 %v808, %v8869
        %v8934 = vmul.f32 %v808, %v8870
        %v8935 = vsel %vm8871, %v8839, %v8903
        %v8936 = vsel %vm8872, %v8840, %v8904
        %v8937 = vsel %vm8873, %v8841, %v8905
        %v8938 = vsel %vm8874, %v8842, %v8906
        %v8939 = vsel %vm8875, %v8843, %v8907
        %v8940 = vsel %vm8876, %v8844, %v8908
        %v8941 = vsel %vm8877, %v8845, %v8909
        %v8942 = vsel %vm8878, %v8846, %v8910
        %v8943 = vsel %vm8879, %v8847, %v8911
        %v8944 = vsel %vm8880, %v8848, %v8912
        %v8945 = vsel %vm8881, %v8849, %v8913
        %v8946 = vsel %vm8882, %v8850, %v8914
        %v8947 = vsel %vm8883, %v8851, %v8915
        %v8948 = vsel %vm8884, %v8852, %v8916
        %v8949 = vsel %vm8885, %v8853, %v8917
        %v8950 = vsel %vm8886, %v8854, %v8918
        %v8951 = vsel %vm8887, %v8855, %v8919
        %v8952 = vsel %vm8888, %v8856, %v8920
        %v8953 = vsel %vm8889, %v8857, %v8921
        %v8954 = vsel %vm8890, %v8858, %v8922
        %v8955 = vsel %vm8891, %v8859, %v8923
        %v8956 = vsel %vm8892, %v8860, %v8924
        %v8957 = vsel %vm8893, %v8861, %v8925
        %v8958 = vsel %vm8894, %v8862, %v8926
        %v8959 = vsel %vm8895, %v8863, %v8927
        %v8960 = vsel %vm8896, %v8864, %v8928
        %v8961 = vsel %vm8897, %v8865, %v8929
        %v8962 = vsel %vm8898, %v8866, %v8930
        %v8963 = vsel %vm8899, %v8867, %v8931
        %v8964 = vsel %vm8900, %v8868, %v8932
        %v8965 = vsel %vm8901, %v8869, %v8933
        %v8966 = vsel %vm8902, %v8870, %v8934
        %8967 = vst.msk [vmem:[%s638 + $0x1] sm:$0xff] %vm3556, %v8935
        %8968 = vst.msk [vmem:[%s638 + $0x9] sm:$0xff] %vm3556, %v8936
        %8969 = vst.msk [vmem:[%s638 + $0x19] sm:$0xff] %vm3556, %v8937
        %8970 = vst.msk [vmem:[%s638 + $0x21] sm:$0xff] %vm3556, %v8938
        %8971 = vst.msk [vmem:[%s638 + $0x31] sm:$0xff] %vm3556, %v8939
        %8972 = vst.msk [vmem:[%s638 + $0x39] sm:$0xff] %vm3556, %v8940
        %8973 = vst.msk [vmem:[%s638 + $0x49] sm:$0xff] %vm3556, %v8941
        %8974 = vst.msk [vmem:[%s638 + $0x51] sm:$0xff] %vm3556, %v8942
        %8975 = vst.msk [vmem:[%s638 + $0x61] sm:$0xff] %vm3556, %v8943
        %8976 = vst.msk [vmem:[%s638 + $0x69] sm:$0xff] %vm3556, %v8944
        %8977 = vst.msk [vmem:[%s638 + $0x79] sm:$0xff] %vm3556, %v8945
        %8978 = vst.msk [vmem:[%s638 + $0x81] sm:$0xff] %vm3556, %v8946
        %8979 = vst.msk [vmem:[%s638 + $0x91] sm:$0xff] %vm3556, %v8947
        %8980 = vst.msk [vmem:[%s638 + $0x99] sm:$0xff] %vm3556, %v8948
        %8981 = vst.msk [vmem:[%s638 + $0xa9] sm:$0xff] %vm3556, %v8949
        %8982 = vst.msk [vmem:[%s638 + $0xb1] sm:$0xff] %vm3556, %v8950
        %8983 = vst.msk [vmem:[%s638 + $0xc1] sm:$0xff] %vm3556, %v8951
        %8984 = vst.msk [vmem:[%s638 + $0xc9] sm:$0xff] %vm3556, %v8952
        %8985 = vst.msk [vmem:[%s638 + $0xd9] sm:$0xff] %vm3556, %v8953
        %8986 = vst.msk [vmem:[%s638 + $0xe1] sm:$0xff] %vm3556, %v8954
        %8987 = vst.msk [vmem:[%s638 + $0xf1] sm:$0xff] %vm3556, %v8955
        %8988 = vst.msk [vmem:[%s638 + $0xf9] sm:$0xff] %vm3556, %v8956
        %8989 = vst.msk [vmem:[%s638 + $0x109] sm:$0xff] %vm3556, %v8957
        %8990 = vst.msk [vmem:[%s638 + $0x111] sm:$0xff] %vm3556, %v8958
        %8991 = vst.msk [vmem:[%s638 + $0x121] sm:$0xff] %vm3556, %v8959
        %8992 = vst.msk [vmem:[%s638 + $0x129] sm:$0xff] %vm3556, %v8960
        %8993 = vst.msk [vmem:[%s638 + $0x139] sm:$0xff] %vm3556, %v8961
        %8994 = vst.msk [vmem:[%s638 + $0x141] sm:$0xff] %vm3556, %v8962
        %8995 = vst.msk [vmem:[%s638 + $0x151] sm:$0xff] %vm3556, %v8963
        %8996 = vst.msk [vmem:[%s638 + $0x159] sm:$0xff] %vm3556, %v8964
        %8997 = vst.msk [vmem:[%s638 + $0x169] sm:$0xff] %vm3556, %v8965
        %8998 = vst.msk [vmem:[%s638 + $0x171] sm:$0xff] %vm3556, %v8966
        %v8999 = vld [vmem:[#allocation2] sm:$0xff]
        %v9000 = vld [vmem:[#allocation2 + $0x8] sm:$0xff]
        %v9001 = vld [vmem:[#allocation2 + $0x18] sm:$0xff]
        %v9002 = vld [vmem:[#allocation2 + $0x20] sm:$0xff]
        %v9003 = vld [vmem:[#allocation2 + $0x30] sm:$0xff]
        %v9004 = vld [vmem:[#allocation2 + $0x38] sm:$0xff]
        %v9005 = vld [vmem:[#allocation2 + $0x48] sm:$0xff]
        %v9006 = vld [vmem:[#allocation2 + $0x50] sm:$0xff]
        %v9007 = vld [vmem:[#allocation2 + $0x60] sm:$0xff]
        %v9008 = vld [vmem:[#allocation2 + $0x68] sm:$0xff]
        %v9009 = vld [vmem:[#allocation2 + $0x78] sm:$0xff]
        %v9010 = vld [vmem:[#allocation2 + $0x80] sm:$0xff]
        %v9011 = vld [vmem:[#allocation2 + $0x90] sm:$0xff]
        %v9012 = vld [vmem:[#allocation2 + $0x98] sm:$0xff]
        %v9013 = vld [vmem:[#allocation2 + $0xa8] sm:$0xff]
        %v9014 = vld [vmem:[#allocation2 + $0xb0] sm:$0xff]
        %v9015 = vld [vmem:[#allocation2 + $0xc0] sm:$0xff]
        %v9016 = vld [vmem:[#allocation2 + $0xc8] sm:$0xff]
        %v9017 = vld [vmem:[#allocation2 + $0xd8] sm:$0xff]
        %v9018 = vld [vmem:[#allocation2 + $0xe0] sm:$0xff]
        %v9019 = vld [vmem:[#allocation2 + $0xf0] sm:$0xff]
        %v9020 = vld [vmem:[#allocation2 + $0xf8] sm:$0xff]
        %v9021 = vld [vmem:[#allocation2 + $0x108] sm:$0xff]
        %v9022 = vld [vmem:[#allocation2 + $0x110] sm:$0xff]
        %v9023 = vld [vmem:[#allocation2 + $0x120] sm:$0xff]
        %v9024 = vld [vmem:[#allocation2 + $0x128] sm:$0xff]
        %v9025 = vld [vmem:[#allocation2 + $0x138] sm:$0xff]
        %v9026 = vld [vmem:[#allocation2 + $0x140] sm:$0xff]
        %v9027 = vld [vmem:[#allocation2 + $0x150] sm:$0xff]
        %v9028 = vld [vmem:[#allocation2 + $0x158] sm:$0xff]
        %v9029 = vld [vmem:[#allocation2 + $0x168] sm:$0xff]
        %v9030 = vld [vmem:[#allocation2 + $0x170] sm:$0xff]
        %v9031 = vld [vmem:[#allocation8] sm:$0xff]
        %v9032 = vld [vmem:[#allocation8 + $0x8] sm:$0xff]
        %v9033 = vld [vmem:[#allocation8 + $0x10] sm:$0xff]
        %v9034 = vld [vmem:[#allocation8 + $0x18] sm:$0xff]
        %v9035 = vld [vmem:[#allocation2 + $0x1] sm:$0xff]
        %v9036 = vld [vmem:[#allocation2 + $0x9] sm:$0xff]
        %v9037 = vld [vmem:[#allocation2 + $0x19] sm:$0xff]
        %v9038 = vld [vmem:[#allocation2 + $0x21] sm:$0xff]
        %v9039 = vld [vmem:[#allocation2 + $0x31] sm:$0xff]
        %v9040 = vld [vmem:[#allocation2 + $0x39] sm:$0xff]
        %v9041 = vld [vmem:[#allocation2 + $0x49] sm:$0xff]
        %v9042 = vld [vmem:[#allocation2 + $0x51] sm:$0xff]
        %v9043 = vld [vmem:[#allocation2 + $0x61] sm:$0xff]
        %v9044 = vld [vmem:[#allocation2 + $0x69] sm:$0xff]
        %v9045 = vld [vmem:[#allocation2 + $0x79] sm:$0xff]
        %v9046 = vld [vmem:[#allocation2 + $0x81] sm:$0xff]
        %v9047 = vld [vmem:[#allocation2 + $0x91] sm:$0xff]
        %v9048 = vld [vmem:[#allocation2 + $0x99] sm:$0xff]
        %v9049 = vld [vmem:[#allocation2 + $0xa9] sm:$0xff]
        %v9050 = vld [vmem:[#allocation2 + $0xb1] sm:$0xff]
        %v9051 = vld [vmem:[#allocation2 + $0xc1] sm:$0xff]
        %v9052 = vld [vmem:[#allocation2 + $0xc9] sm:$0xff]
        %v9053 = vld [vmem:[#allocation2 + $0xd9] sm:$0xff]
        %v9054 = vld [vmem:[#allocation2 + $0xe1] sm:$0xff]
        %v9055 = vld [vmem:[#allocation2 + $0xf1] sm:$0xff]
        %v9056 = vld [vmem:[#allocation2 + $0xf9] sm:$0xff]
        %v9057 = vld [vmem:[#allocation2 + $0x109] sm:$0xff]
        %v9058 = vld [vmem:[#allocation2 + $0x111] sm:$0xff]
        %v9059 = vld [vmem:[#allocation2 + $0x121] sm:$0xff]
        %v9060 = vld [vmem:[#allocation2 + $0x129] sm:$0xff]
        %v9061 = vld [vmem:[#allocation2 + $0x139] sm:$0xff]
        %v9062 = vld [vmem:[#allocation2 + $0x141] sm:$0xff]
        %v9063 = vld [vmem:[#allocation2 + $0x151] sm:$0xff]
        %v9064 = vld [vmem:[#allocation2 + $0x159] sm:$0xff]
        %v9065 = vld [vmem:[#allocation2 + $0x169] sm:$0xff]
        %v9066 = vld [vmem:[#allocation2 + $0x171] sm:$0xff]
        %s9067 = scalar_lea.vmem [#allocation8], 32
        %v9068 = vld [vmem:[%s9067] sm:$0xff]
        %v9069 = vld [vmem:[%s9067 + $0x8] sm:$0xff]
        %v9070 = vld [vmem:[%s9067 + $0x10] sm:$0xff]
        %v9071 = vld [vmem:[%s9067 + $0x18] sm:$0xff]
        %v9073 = vsel %vm3556, %v9035, 0
        %v9076 = vsel %vm3556, %v9036, 0
        %v9079 = vsel %vm3556, %v9037, 0
        %v9082 = vsel %vm3556, %v9038, 0
        %v9085 = vsel %vm3556, %v9039, 0
        %v9088 = vsel %vm3556, %v9040, 0
        %v9091 = vsel %vm3556, %v9041, 0
        %v9094 = vsel %vm3556, %v9042, 0
        %v9097 = vsel %vm3556, %v9043, 0
        %v9100 = vsel %vm3556, %v9044, 0
        %v9103 = vsel %vm3556, %v9045, 0
        %v9106 = vsel %vm3556, %v9046, 0
        %v9109 = vsel %vm3556, %v9047, 0
        %v9112 = vsel %vm3556, %v9048, 0
        %v9115 = vsel %vm3556, %v9049, 0
        %v9118 = vsel %vm3556, %v9050, 0
        %v9121 = vsel %vm3556, %v9051, 0
        %v9124 = vsel %vm3556, %v9052, 0
        %v9127 = vsel %vm3556, %v9053, 0
        %v9130 = vsel %vm3556, %v9054, 0
        %v9133 = vsel %vm3556, %v9055, 0
        %v9136 = vsel %vm3556, %v9056, 0
        %v9139 = vsel %vm3556, %v9057, 0
        %v9142 = vsel %vm3556, %v9058, 0
        %v9145 = vsel %vm3556, %v9059, 0
        %v9148 = vsel %vm3556, %v9060, 0
        %v9151 = vsel %vm3556, %v9061, 0
        %v9154 = vsel %vm3556, %v9062, 0
        %v9157 = vsel %vm3556, %v9063, 0
        %v9160 = vsel %vm3556, %v9064, 0
        %v9163 = vsel %vm3556, %v9065, 0
        %v9166 = vsel %vm3556, %v9066, 0
        %9168 = vmatpush.msra.mxu0 0.0
        %9169 = vmatpush.msra.mxu0 0.0
        %9170 = vmatpush.msra.mxu0 0.0
        %9171 = vmatpush.msra.mxu0 0.0
        %9172 = vmatpush.msra.mxu0 0.0
        %9173 = vmatpush.msra.mxu0 0.0
        %9174 = vmatpush.msra.mxu0 0.0
        %9175 = vmatpush.msra.mxu0 0.0
        %9176 = vmatpush.msra.mxu0 0.0
        %9177 = vmatpush.msra.mxu0 0.0
        %9178 = vmatpush.msra.mxu0 0.0
        %9179 = vmatpush.msra.mxu0 0.0
        %9180 = vmatpush.msra.mxu0 %v9071
        %9181 = vmatpush.msra.mxu0 %v9070
        %9182 = vmatpush.msra.mxu0 %v9069
        %9183 = vmatpush.msra.mxu0 %v9068
        %9184 = vmatmul.f32.gmra.mxu0 %v9073
        %v9185 = vpop.f32.mrf.mxu0
        %v9186 = vadd.f32 0.0, %v9185
        %9187 = vmatmul.f32.gmra.mxu0 %v9076
        %v9188 = vpop.f32.mrf.mxu0
        %v9189 = vadd.f32 0.0, %v9188
        %9190 = vmatmul.f32.gmra.mxu0 %v9079
        %v9191 = vpop.f32.mrf.mxu0
        %v9192 = vadd.f32 0.0, %v9191
        %9193 = vmatmul.f32.gmra.mxu0 %v9082
        %v9194 = vpop.f32.mrf.mxu0
        %v9195 = vadd.f32 0.0, %v9194
        %9196 = vmatmul.f32.gmra.mxu0 %v9085
        %v9197 = vpop.f32.mrf.mxu0
        %v9198 = vadd.f32 0.0, %v9197
        %9199 = vmatmul.f32.gmra.mxu0 %v9088
        %v9200 = vpop.f32.mrf.mxu0
        %v9201 = vadd.f32 0.0, %v9200
        %9202 = vmatmul.f32.gmra.mxu0 %v9091
        %v9203 = vpop.f32.mrf.mxu0
        %v9204 = vadd.f32 0.0, %v9203
        %9205 = vmatmul.f32.gmra.mxu0 %v9094
        %v9206 = vpop.f32.mrf.mxu0
        %v9207 = vadd.f32 0.0, %v9206
        %9208 = vmatmul.f32.gmra.mxu0 %v9097
        %v9209 = vpop.f32.mrf.mxu0
        %v9210 = vadd.f32 0.0, %v9209
        %9211 = vmatmul.f32.gmra.mxu0 %v9100
        %v9212 = vpop.f32.mrf.mxu0
        %v9213 = vadd.f32 0.0, %v9212
        %9214 = vmatmul.f32.gmra.mxu0 %v9103
        %v9215 = vpop.f32.mrf.mxu0
        %v9216 = vadd.f32 0.0, %v9215
        %9217 = vmatmul.f32.gmra.mxu0 %v9106
        %v9218 = vpop.f32.mrf.mxu0
        %v9219 = vadd.f32 0.0, %v9218
        %9220 = vmatmul.f32.gmra.mxu0 %v9109
        %v9221 = vpop.f32.mrf.mxu0
        %v9222 = vadd.f32 0.0, %v9221
        %9223 = vmatmul.f32.gmra.mxu0 %v9112
        %v9224 = vpop.f32.mrf.mxu0
        %v9225 = vadd.f32 0.0, %v9224
        %9226 = vmatmul.f32.gmra.mxu0 %v9115
        %v9227 = vpop.f32.mrf.mxu0
        %v9228 = vadd.f32 0.0, %v9227
        %9229 = vmatmul.f32.gmra.mxu0 %v9118
        %v9230 = vpop.f32.mrf.mxu0
        %v9231 = vadd.f32 0.0, %v9230
        %9232 = vmatmul.f32.gmra.mxu0 %v9121
        %v9233 = vpop.f32.mrf.mxu0
        %v9234 = vadd.f32 0.0, %v9233
        %9235 = vmatmul.f32.gmra.mxu0 %v9124
        %v9236 = vpop.f32.mrf.mxu0
        %v9237 = vadd.f32 0.0, %v9236
        %9238 = vmatmul.f32.gmra.mxu0 %v9127
        %v9239 = vpop.f32.mrf.mxu0
        %v9240 = vadd.f32 0.0, %v9239
        %9241 = vmatmul.f32.gmra.mxu0 %v9130
        %v9242 = vpop.f32.mrf.mxu0
        %v9243 = vadd.f32 0.0, %v9242
        %9244 = vmatmul.f32.gmra.mxu0 %v9133
        %v9245 = vpop.f32.mrf.mxu0
        %v9246 = vadd.f32 0.0, %v9245
        %9247 = vmatmul.f32.gmra.mxu0 %v9136
        %v9248 = vpop.f32.mrf.mxu0
        %v9249 = vadd.f32 0.0, %v9248
        %9250 = vmatmul.f32.gmra.mxu0 %v9139
        %v9251 = vpop.f32.mrf.mxu0
        %v9252 = vadd.f32 0.0, %v9251
        %9253 = vmatmul.f32.gmra.mxu0 %v9142
        %v9254 = vpop.f32.mrf.mxu0
        %v9255 = vadd.f32 0.0, %v9254
        %9256 = vmatmul.f32.gmra.mxu0 %v9145
        %v9257 = vpop.f32.mrf.mxu0
        %v9258 = vadd.f32 0.0, %v9257
        %9259 = vmatmul.f32.gmra.mxu0 %v9148
        %v9260 = vpop.f32.mrf.mxu0
        %v9261 = vadd.f32 0.0, %v9260
        %9262 = vmatmul.f32.gmra.mxu0 %v9151
        %v9263 = vpop.f32.mrf.mxu0
        %v9264 = vadd.f32 0.0, %v9263
        %9265 = vmatmul.f32.gmra.mxu0 %v9154
        %v9266 = vpop.f32.mrf.mxu0
        %v9267 = vadd.f32 0.0, %v9266
        %9268 = vmatmul.f32.gmra.mxu0 %v9157
        %v9269 = vpop.f32.mrf.mxu0
        %v9270 = vadd.f32 0.0, %v9269
        %9271 = vmatmul.f32.gmra.mxu0 %v9160
        %v9272 = vpop.f32.mrf.mxu0
        %v9273 = vadd.f32 0.0, %v9272
        %9274 = vmatmul.f32.gmra.mxu0 %v9163
        %v9275 = vpop.f32.mrf.mxu0
        %v9276 = vadd.f32 0.0, %v9275
        %9277 = vmatmul.f32.gmra.mxu0 %v9166
        %v9278 = vpop.f32.mrf.mxu0
        %v9279 = vadd.f32 0.0, %v9278
        %9280 = vdwg.mxu0
        %v9282 = vsel %vm3556, %v8999, 0
        %v9285 = vsel %vm3556, %v9000, 0
        %v9288 = vsel %vm3556, %v9001, 0
        %v9291 = vsel %vm3556, %v9002, 0
        %v9294 = vsel %vm3556, %v9003, 0
        %v9297 = vsel %vm3556, %v9004, 0
        %v9300 = vsel %vm3556, %v9005, 0
        %v9303 = vsel %vm3556, %v9006, 0
        %v9306 = vsel %vm3556, %v9007, 0
        %v9309 = vsel %vm3556, %v9008, 0
        %v9312 = vsel %vm3556, %v9009, 0
        %v9315 = vsel %vm3556, %v9010, 0
        %v9318 = vsel %vm3556, %v9011, 0
        %v9321 = vsel %vm3556, %v9012, 0
        %v9324 = vsel %vm3556, %v9013, 0
        %v9327 = vsel %vm3556, %v9014, 0
        %v9330 = vsel %vm3556, %v9015, 0
        %v9333 = vsel %vm3556, %v9016, 0
        %v9336 = vsel %vm3556, %v9017, 0
        %v9339 = vsel %vm3556, %v9018, 0
        %v9342 = vsel %vm3556, %v9019, 0
        %v9345 = vsel %vm3556, %v9020, 0
        %v9348 = vsel %vm3556, %v9021, 0
        %v9351 = vsel %vm3556, %v9022, 0
        %v9354 = vsel %vm3556, %v9023, 0
        %v9357 = vsel %vm3556, %v9024, 0
        %v9360 = vsel %vm3556, %v9025, 0
        %v9363 = vsel %vm3556, %v9026, 0
        %v9366 = vsel %vm3556, %v9027, 0
        %v9369 = vsel %vm3556, %v9028, 0
        %v9372 = vsel %vm3556, %v9029, 0
        %v9375 = vsel %vm3556, %v9030, 0
        %9377 = vmatpush.msra.mxu0 0.0
        %9378 = vmatpush.msra.mxu0 0.0
        %9379 = vmatpush.msra.mxu0 0.0
        %9380 = vmatpush.msra.mxu0 0.0
        %9381 = vmatpush.msra.mxu0 0.0
        %9382 = vmatpush.msra.mxu0 0.0
        %9383 = vmatpush.msra.mxu0 0.0
        %9384 = vmatpush.msra.mxu0 0.0
        %9385 = vmatpush.msra.mxu0 0.0
        %9386 = vmatpush.msra.mxu0 0.0
        %9387 = vmatpush.msra.mxu0 0.0
        %9388 = vmatpush.msra.mxu0 0.0
        %9389 = vmatpush.msra.mxu0 %v9034
        %9390 = vmatpush.msra.mxu0 %v9033
        %9391 = vmatpush.msra.mxu0 %v9032
        %9392 = vmatpush.msra.mxu0 %v9031
        %9393 = vmatmul.f32.gmra.mxu0 %v9282
        %v9394 = vpop.f32.mrf.mxu0
        %v9395 = vadd.f32 %v9186, %v9394
        %9396 = vmatmul.f32.gmra.mxu0 %v9285
        %v9397 = vpop.f32.mrf.mxu0
        %v9398 = vadd.f32 %v9189, %v9397
        %9399 = vmatmul.f32.gmra.mxu0 %v9288
        %v9400 = vpop.f32.mrf.mxu0
        %v9401 = vadd.f32 %v9192, %v9400
        %9402 = vmatmul.f32.gmra.mxu0 %v9291
        %v9403 = vpop.f32.mrf.mxu0
        %v9404 = vadd.f32 %v9195, %v9403
        %9405 = vmatmul.f32.gmra.mxu0 %v9294
        %v9406 = vpop.f32.mrf.mxu0
        %v9407 = vadd.f32 %v9198, %v9406
        %9408 = vmatmul.f32.gmra.mxu0 %v9297
        %v9409 = vpop.f32.mrf.mxu0
        %v9410 = vadd.f32 %v9201, %v9409
        %9411 = vmatmul.f32.gmra.mxu0 %v9300
        %v9412 = vpop.f32.mrf.mxu0
        %v9413 = vadd.f32 %v9204, %v9412
        %9414 = vmatmul.f32.gmra.mxu0 %v9303
        %v9415 = vpop.f32.mrf.mxu0
        %v9416 = vadd.f32 %v9207, %v9415
        %9417 = vmatmul.f32.gmra.mxu0 %v9306
        %v9418 = vpop.f32.mrf.mxu0
        %v9419 = vadd.f32 %v9210, %v9418
        %9420 = vmatmul.f32.gmra.mxu0 %v9309
        %v9421 = vpop.f32.mrf.mxu0
        %v9422 = vadd.f32 %v9213, %v9421
        %9423 = vmatmul.f32.gmra.mxu0 %v9312
        %v9424 = vpop.f32.mrf.mxu0
        %v9425 = vadd.f32 %v9216, %v9424
        %9426 = vmatmul.f32.gmra.mxu0 %v9315
        %v9427 = vpop.f32.mrf.mxu0
        %v9428 = vadd.f32 %v9219, %v9427
        %9429 = vmatmul.f32.gmra.mxu0 %v9318
        %v9430 = vpop.f32.mrf.mxu0
        %v9431 = vadd.f32 %v9222, %v9430
        %9432 = vmatmul.f32.gmra.mxu0 %v9321
        %v9433 = vpop.f32.mrf.mxu0
        %v9434 = vadd.f32 %v9225, %v9433
        %9435 = vmatmul.f32.gmra.mxu0 %v9324
        %v9436 = vpop.f32.mrf.mxu0
        %v9437 = vadd.f32 %v9228, %v9436
        %9438 = vmatmul.f32.gmra.mxu0 %v9327
        %v9439 = vpop.f32.mrf.mxu0
        %v9440 = vadd.f32 %v9231, %v9439
        %9441 = vmatmul.f32.gmra.mxu0 %v9330
        %v9442 = vpop.f32.mrf.mxu0
        %v9443 = vadd.f32 %v9234, %v9442
        %9444 = vmatmul.f32.gmra.mxu0 %v9333
        %v9445 = vpop.f32.mrf.mxu0
        %v9446 = vadd.f32 %v9237, %v9445
        %9447 = vmatmul.f32.gmra.mxu0 %v9336
        %v9448 = vpop.f32.mrf.mxu0
        %v9449 = vadd.f32 %v9240, %v9448
        %9450 = vmatmul.f32.gmra.mxu0 %v9339
        %v9451 = vpop.f32.mrf.mxu0
        %v9452 = vadd.f32 %v9243, %v9451
        %9453 = vmatmul.f32.gmra.mxu0 %v9342
        %v9454 = vpop.f32.mrf.mxu0
        %v9455 = vadd.f32 %v9246, %v9454
        %9456 = vmatmul.f32.gmra.mxu0 %v9345
        %v9457 = vpop.f32.mrf.mxu0
        %v9458 = vadd.f32 %v9249, %v9457
        %9459 = vmatmul.f32.gmra.mxu0 %v9348
        %v9460 = vpop.f32.mrf.mxu0
        %v9461 = vadd.f32 %v9252, %v9460
        %9462 = vmatmul.f32.gmra.mxu0 %v9351
        %v9463 = vpop.f32.mrf.mxu0
        %v9464 = vadd.f32 %v9255, %v9463
        %9465 = vmatmul.f32.gmra.mxu0 %v9354
        %v9466 = vpop.f32.mrf.mxu0
        %v9467 = vadd.f32 %v9258, %v9466
        %9468 = vmatmul.f32.gmra.mxu0 %v9357
        %v9469 = vpop.f32.mrf.mxu0
        %v9470 = vadd.f32 %v9261, %v9469
        %9471 = vmatmul.f32.gmra.mxu0 %v9360
        %v9472 = vpop.f32.mrf.mxu0
        %v9473 = vadd.f32 %v9264, %v9472
        %9474 = vmatmul.f32.gmra.mxu0 %v9363
        %v9475 = vpop.f32.mrf.mxu0
        %v9476 = vadd.f32 %v9267, %v9475
        %9477 = vmatmul.f32.gmra.mxu0 %v9366
        %v9478 = vpop.f32.mrf.mxu0
        %v9479 = vadd.f32 %v9270, %v9478
        %9480 = vmatmul.f32.gmra.mxu0 %v9369
        %v9481 = vpop.f32.mrf.mxu0
        %v9482 = vadd.f32 %v9273, %v9481
        %9483 = vmatmul.f32.gmra.mxu0 %v9372
        %v9484 = vpop.f32.mrf.mxu0
        %v9485 = vadd.f32 %v9276, %v9484
        %9486 = vmatmul.f32.gmra.mxu0 %v9375
        %v9487 = vpop.f32.mrf.mxu0
        %v9488 = vadd.f32 %v9279, %v9487
        %9489 = vdwg.mxu0
        %v9490 = vld [vmem:[#allocation2 + $0x2] sm:$0xff]
        %v9491 = vld [vmem:[#allocation2 + $0xa] sm:$0xff]
        %v9492 = vld [vmem:[#allocation2 + $0x1a] sm:$0xff]
        %v9493 = vld [vmem:[#allocation2 + $0x22] sm:$0xff]
        %v9494 = vld [vmem:[#allocation2 + $0x32] sm:$0xff]
        %v9495 = vld [vmem:[#allocation2 + $0x3a] sm:$0xff]
        %v9496 = vld [vmem:[#allocation2 + $0x4a] sm:$0xff]
        %v9497 = vld [vmem:[#allocation2 + $0x52] sm:$0xff]
        %v9498 = vld [vmem:[#allocation2 + $0x62] sm:$0xff]
        %v9499 = vld [vmem:[#allocation2 + $0x6a] sm:$0xff]
        %v9500 = vld [vmem:[#allocation2 + $0x7a] sm:$0xff]
        %v9501 = vld [vmem:[#allocation2 + $0x82] sm:$0xff]
        %v9502 = vld [vmem:[#allocation2 + $0x92] sm:$0xff]
        %v9503 = vld [vmem:[#allocation2 + $0x9a] sm:$0xff]
        %v9504 = vld [vmem:[#allocation2 + $0xaa] sm:$0xff]
        %v9505 = vld [vmem:[#allocation2 + $0xb2] sm:$0xff]
        %v9506 = vld [vmem:[#allocation2 + $0xc2] sm:$0xff]
        %v9507 = vld [vmem:[#allocation2 + $0xca] sm:$0xff]
        %v9508 = vld [vmem:[#allocation2 + $0xda] sm:$0xff]
        %v9509 = vld [vmem:[#allocation2 + $0xe2] sm:$0xff]
        %v9510 = vld [vmem:[#allocation2 + $0xf2] sm:$0xff]
        %v9511 = vld [vmem:[#allocation2 + $0xfa] sm:$0xff]
        %v9512 = vld [vmem:[#allocation2 + $0x10a] sm:$0xff]
        %v9513 = vld [vmem:[#allocation2 + $0x112] sm:$0xff]
        %v9514 = vld [vmem:[#allocation2 + $0x122] sm:$0xff]
        %v9515 = vld [vmem:[#allocation2 + $0x12a] sm:$0xff]
        %v9516 = vld [vmem:[#allocation2 + $0x13a] sm:$0xff]
        %v9517 = vld [vmem:[#allocation2 + $0x142] sm:$0xff]
        %v9518 = vld [vmem:[#allocation2 + $0x152] sm:$0xff]
        %v9519 = vld [vmem:[#allocation2 + $0x15a] sm:$0xff]
        %v9520 = vld [vmem:[#allocation2 + $0x16a] sm:$0xff]
        %v9521 = vld [vmem:[#allocation2 + $0x172] sm:$0xff]
        %s9522 = scalar_lea.vmem [#allocation8], 64
        %v9523 = vld [vmem:[%s9522] sm:$0xff]
        %v9524 = vld [vmem:[%s9522 + $0x8] sm:$0xff]
        %v9525 = vld [vmem:[%s9522 + $0x10] sm:$0xff]
        %v9526 = vld [vmem:[%s9522 + $0x18] sm:$0xff]
        %v9528 = vsel %vm3556, %v9490, 0
        %v9531 = vsel %vm3556, %v9491, 0
        %v9534 = vsel %vm3556, %v9492, 0
        %v9537 = vsel %vm3556, %v9493, 0
        %v9540 = vsel %vm3556, %v9494, 0
        %v9543 = vsel %vm3556, %v9495, 0
        %v9546 = vsel %vm3556, %v9496, 0
        %v9549 = vsel %vm3556, %v9497, 0
        %v9552 = vsel %vm3556, %v9498, 0
        %v9555 = vsel %vm3556, %v9499, 0
        %v9558 = vsel %vm3556, %v9500, 0
        %v9561 = vsel %vm3556, %v9501, 0
        %v9564 = vsel %vm3556, %v9502, 0
        %v9567 = vsel %vm3556, %v9503, 0
        %v9570 = vsel %vm3556, %v9504, 0
        %v9573 = vsel %vm3556, %v9505, 0
        %v9576 = vsel %vm3556, %v9506, 0
        %v9579 = vsel %vm3556, %v9507, 0
        %v9582 = vsel %vm3556, %v9508, 0
        %v9585 = vsel %vm3556, %v9509, 0
        %v9588 = vsel %vm3556, %v9510, 0
        %v9591 = vsel %vm3556, %v9511, 0
        %v9594 = vsel %vm3556, %v9512, 0
        %v9597 = vsel %vm3556, %v9513, 0
        %v9600 = vsel %vm3556, %v9514, 0
        %v9603 = vsel %vm3556, %v9515, 0
        %v9606 = vsel %vm3556, %v9516, 0
        %v9609 = vsel %vm3556, %v9517, 0
        %v9612 = vsel %vm3556, %v9518, 0
        %v9615 = vsel %vm3556, %v9519, 0
        %v9618 = vsel %vm3556, %v9520, 0
        %v9621 = vsel %vm3556, %v9521, 0
        %9623 = vmatpush.msra.mxu0 0.0
        %9624 = vmatpush.msra.mxu0 0.0
        %9625 = vmatpush.msra.mxu0 0.0
        %9626 = vmatpush.msra.mxu0 0.0
        %9627 = vmatpush.msra.mxu0 0.0
        %9628 = vmatpush.msra.mxu0 0.0
        %9629 = vmatpush.msra.mxu0 0.0
        %9630 = vmatpush.msra.mxu0 0.0
        %9631 = vmatpush.msra.mxu0 0.0
        %9632 = vmatpush.msra.mxu0 0.0
        %9633 = vmatpush.msra.mxu0 0.0
        %9634 = vmatpush.msra.mxu0 0.0
        %9635 = vmatpush.msra.mxu0 %v9526
        %9636 = vmatpush.msra.mxu0 %v9525
        %9637 = vmatpush.msra.mxu0 %v9524
        %9638 = vmatpush.msra.mxu0 %v9523
        %9639 = vmatmul.f32.gmra.mxu0 %v9528
        %v9640 = vpop.f32.mrf.mxu0
        %v9641 = vadd.f32 0.0, %v9640
        %9642 = vmatmul.f32.gmra.mxu0 %v9531
        %v9643 = vpop.f32.mrf.mxu0
        %v9644 = vadd.f32 0.0, %v9643
        %9645 = vmatmul.f32.gmra.mxu0 %v9534
        %v9646 = vpop.f32.mrf.mxu0
        %v9647 = vadd.f32 0.0, %v9646
        %9648 = vmatmul.f32.gmra.mxu0 %v9537
        %v9649 = vpop.f32.mrf.mxu0
        %v9650 = vadd.f32 0.0, %v9649
        %9651 = vmatmul.f32.gmra.mxu0 %v9540
        %v9652 = vpop.f32.mrf.mxu0
        %v9653 = vadd.f32 0.0, %v9652
        %9654 = vmatmul.f32.gmra.mxu0 %v9543
        %v9655 = vpop.f32.mrf.mxu0
        %v9656 = vadd.f32 0.0, %v9655
        %9657 = vmatmul.f32.gmra.mxu0 %v9546
        %v9658 = vpop.f32.mrf.mxu0
        %v9659 = vadd.f32 0.0, %v9658
        %9660 = vmatmul.f32.gmra.mxu0 %v9549
        %v9661 = vpop.f32.mrf.mxu0
        %v9662 = vadd.f32 0.0, %v9661
        %9663 = vmatmul.f32.gmra.mxu0 %v9552
        %v9664 = vpop.f32.mrf.mxu0
        %v9665 = vadd.f32 0.0, %v9664
        %9666 = vmatmul.f32.gmra.mxu0 %v9555
        %v9667 = vpop.f32.mrf.mxu0
        %v9668 = vadd.f32 0.0, %v9667
        %9669 = vmatmul.f32.gmra.mxu0 %v9558
        %v9670 = vpop.f32.mrf.mxu0
        %v9671 = vadd.f32 0.0, %v9670
        %9672 = vmatmul.f32.gmra.mxu0 %v9561
        %v9673 = vpop.f32.mrf.mxu0
        %v9674 = vadd.f32 0.0, %v9673
        %9675 = vmatmul.f32.gmra.mxu0 %v9564
        %v9676 = vpop.f32.mrf.mxu0
        %v9677 = vadd.f32 0.0, %v9676
        %9678 = vmatmul.f32.gmra.mxu0 %v9567
        %v9679 = vpop.f32.mrf.mxu0
        %v9680 = vadd.f32 0.0, %v9679
        %9681 = vmatmul.f32.gmra.mxu0 %v9570
        %v9682 = vpop.f32.mrf.mxu0
        %v9683 = vadd.f32 0.0, %v9682
        %9684 = vmatmul.f32.gmra.mxu0 %v9573
        %v9685 = vpop.f32.mrf.mxu0
        %v9686 = vadd.f32 0.0, %v9685
        %9687 = vmatmul.f32.gmra.mxu0 %v9576
        %v9688 = vpop.f32.mrf.mxu0
        %v9689 = vadd.f32 0.0, %v9688
        %9690 = vmatmul.f32.gmra.mxu0 %v9579
        %v9691 = vpop.f32.mrf.mxu0
        %v9692 = vadd.f32 0.0, %v9691
        %9693 = vmatmul.f32.gmra.mxu0 %v9582
        %v9694 = vpop.f32.mrf.mxu0
        %v9695 = vadd.f32 0.0, %v9694
        %9696 = vmatmul.f32.gmra.mxu0 %v9585
        %v9697 = vpop.f32.mrf.mxu0
        %v9698 = vadd.f32 0.0, %v9697
        %9699 = vmatmul.f32.gmra.mxu0 %v9588
        %v9700 = vpop.f32.mrf.mxu0
        %v9701 = vadd.f32 0.0, %v9700
        %9702 = vmatmul.f32.gmra.mxu0 %v9591
        %v9703 = vpop.f32.mrf.mxu0
        %v9704 = vadd.f32 0.0, %v9703
        %9705 = vmatmul.f32.gmra.mxu0 %v9594
        %v9706 = vpop.f32.mrf.mxu0
        %v9707 = vadd.f32 0.0, %v9706
        %9708 = vmatmul.f32.gmra.mxu0 %v9597
        %v9709 = vpop.f32.mrf.mxu0
        %v9710 = vadd.f32 0.0, %v9709
        %9711 = vmatmul.f32.gmra.mxu0 %v9600
        %v9712 = vpop.f32.mrf.mxu0
        %v9713 = vadd.f32 0.0, %v9712
        %9714 = vmatmul.f32.gmra.mxu0 %v9603
        %v9715 = vpop.f32.mrf.mxu0
        %v9716 = vadd.f32 0.0, %v9715
        %9717 = vmatmul.f32.gmra.mxu0 %v9606
        %v9718 = vpop.f32.mrf.mxu0
        %v9719 = vadd.f32 0.0, %v9718
        %9720 = vmatmul.f32.gmra.mxu0 %v9609
        %v9721 = vpop.f32.mrf.mxu0
        %v9722 = vadd.f32 0.0, %v9721
        %9723 = vmatmul.f32.gmra.mxu0 %v9612
        %v9724 = vpop.f32.mrf.mxu0
        %v9725 = vadd.f32 0.0, %v9724
        %9726 = vmatmul.f32.gmra.mxu0 %v9615
        %v9727 = vpop.f32.mrf.mxu0
        %v9728 = vadd.f32 0.0, %v9727
        %9729 = vmatmul.f32.gmra.mxu0 %v9618
        %v9730 = vpop.f32.mrf.mxu0
        %v9731 = vadd.f32 0.0, %v9730
        %9732 = vmatmul.f32.gmra.mxu0 %v9621
        %v9733 = vpop.f32.mrf.mxu0
        %v9734 = vadd.f32 0.0, %v9733
        %9735 = vdwg.mxu0
        %v9736 = vadd.f32 %v9395, %v9641
        %v9737 = vadd.f32 %v9398, %v9644
        %v9738 = vadd.f32 %v9401, %v9647
        %v9739 = vadd.f32 %v9404, %v9650
        %v9740 = vadd.f32 %v9407, %v9653
        %v9741 = vadd.f32 %v9410, %v9656
        %v9742 = vadd.f32 %v9413, %v9659
        %v9743 = vadd.f32 %v9416, %v9662
        %v9744 = vadd.f32 %v9419, %v9665
        %v9745 = vadd.f32 %v9422, %v9668
        %v9746 = vadd.f32 %v9425, %v9671
        %v9747 = vadd.f32 %v9428, %v9674
        %v9748 = vadd.f32 %v9431, %v9677
        %v9749 = vadd.f32 %v9434, %v9680
        %v9750 = vadd.f32 %v9437, %v9683
        %v9751 = vadd.f32 %v9440, %v9686
        %v9752 = vadd.f32 %v9443, %v9689
        %v9753 = vadd.f32 %v9446, %v9692
        %v9754 = vadd.f32 %v9449, %v9695
        %v9755 = vadd.f32 %v9452, %v9698
        %v9756 = vadd.f32 %v9455, %v9701
        %v9757 = vadd.f32 %v9458, %v9704
        %v9758 = vadd.f32 %v9461, %v9707
        %v9759 = vadd.f32 %v9464, %v9710
        %v9760 = vadd.f32 %v9467, %v9713
        %v9761 = vadd.f32 %v9470, %v9716
        %v9762 = vadd.f32 %v9473, %v9719
        %v9763 = vadd.f32 %v9476, %v9722
        %v9764 = vadd.f32 %v9479, %v9725
        %v9765 = vadd.f32 %v9482, %v9728
        %v9766 = vadd.f32 %v9485, %v9731
        %v9767 = vadd.f32 %v9488, %v9734
        %v9768 = vld [vmem:[%s638] sm:$0xff]
        %v9769 = vld [vmem:[%s638 + $0x8] sm:$0xff]
        %v9770 = vld [vmem:[%s638 + $0x18] sm:$0xff]
        %v9771 = vld [vmem:[%s638 + $0x20] sm:$0xff]
        %v9772 = vld [vmem:[%s638 + $0x30] sm:$0xff]
        %v9773 = vld [vmem:[%s638 + $0x38] sm:$0xff]
        %v9774 = vld [vmem:[%s638 + $0x48] sm:$0xff]
        %v9775 = vld [vmem:[%s638 + $0x50] sm:$0xff]
        %v9776 = vld [vmem:[%s638 + $0x60] sm:$0xff]
        %v9777 = vld [vmem:[%s638 + $0x68] sm:$0xff]
        %v9778 = vld [vmem:[%s638 + $0x78] sm:$0xff]
        %v9779 = vld [vmem:[%s638 + $0x80] sm:$0xff]
        %v9780 = vld [vmem:[%s638 + $0x90] sm:$0xff]
        %v9781 = vld [vmem:[%s638 + $0x98] sm:$0xff]
        %v9782 = vld [vmem:[%s638 + $0xa8] sm:$0xff]
        %v9783 = vld [vmem:[%s638 + $0xb0] sm:$0xff]
        %v9784 = vld [vmem:[%s638 + $0xc0] sm:$0xff]
        %v9785 = vld [vmem:[%s638 + $0xc8] sm:$0xff]
        %v9786 = vld [vmem:[%s638 + $0xd8] sm:$0xff]
        %v9787 = vld [vmem:[%s638 + $0xe0] sm:$0xff]
        %v9788 = vld [vmem:[%s638 + $0xf0] sm:$0xff]
        %v9789 = vld [vmem:[%s638 + $0xf8] sm:$0xff]
        %v9790 = vld [vmem:[%s638 + $0x108] sm:$0xff]
        %v9791 = vld [vmem:[%s638 + $0x110] sm:$0xff]
        %v9792 = vld [vmem:[%s638 + $0x120] sm:$0xff]
        %v9793 = vld [vmem:[%s638 + $0x128] sm:$0xff]
        %v9794 = vld [vmem:[%s638 + $0x138] sm:$0xff]
        %v9795 = vld [vmem:[%s638 + $0x140] sm:$0xff]
        %v9796 = vld [vmem:[%s638 + $0x150] sm:$0xff]
        %v9797 = vld [vmem:[%s638 + $0x158] sm:$0xff]
        %v9798 = vld [vmem:[%s638 + $0x168] sm:$0xff]
        %v9799 = vld [vmem:[%s638 + $0x170] sm:$0xff]
        %s9800 = scalar_lea.vmem [#allocation8], 96
        %v9801 = vld [vmem:[%s9800] sm:$0xff]
        %v9802 = vld [vmem:[%s9800 + $0x8] sm:$0xff]
        %v9803 = vld [vmem:[%s9800 + $0x10] sm:$0xff]
        %v9804 = vld [vmem:[%s9800 + $0x18] sm:$0xff]
        %v9806 = vsel %vm3556, %v9768, 0
        %v9809 = vsel %vm3556, %v9769, 0
        %v9812 = vsel %vm3556, %v9770, 0
        %v9815 = vsel %vm3556, %v9771, 0
        %v9818 = vsel %vm3556, %v9772, 0
        %v9821 = vsel %vm3556, %v9773, 0
        %v9824 = vsel %vm3556, %v9774, 0
        %v9827 = vsel %vm3556, %v9775, 0
        %v9830 = vsel %vm3556, %v9776, 0
        %v9833 = vsel %vm3556, %v9777, 0
        %v9836 = vsel %vm3556, %v9778, 0
        %v9839 = vsel %vm3556, %v9779, 0
        %v9842 = vsel %vm3556, %v9780, 0
        %v9845 = vsel %vm3556, %v9781, 0
        %v9848 = vsel %vm3556, %v9782, 0
        %v9851 = vsel %vm3556, %v9783, 0
        %v9854 = vsel %vm3556, %v9784, 0
        %v9857 = vsel %vm3556, %v9785, 0
        %v9860 = vsel %vm3556, %v9786, 0
        %v9863 = vsel %vm3556, %v9787, 0
        %v9866 = vsel %vm3556, %v9788, 0
        %v9869 = vsel %vm3556, %v9789, 0
        %v9872 = vsel %vm3556, %v9790, 0
        %v9875 = vsel %vm3556, %v9791, 0
        %v9878 = vsel %vm3556, %v9792, 0
        %v9881 = vsel %vm3556, %v9793, 0
        %v9884 = vsel %vm3556, %v9794, 0
        %v9887 = vsel %vm3556, %v9795, 0
        %v9890 = vsel %vm3556, %v9796, 0
        %v9893 = vsel %vm3556, %v9797, 0
        %v9896 = vsel %vm3556, %v9798, 0
        %v9899 = vsel %vm3556, %v9799, 0
        %9901 = vmatpush.msra.mxu0 0.0
        %9902 = vmatpush.msra.mxu0 0.0
        %9903 = vmatpush.msra.mxu0 0.0
        %9904 = vmatpush.msra.mxu0 0.0
        %9905 = vmatpush.msra.mxu0 0.0
        %9906 = vmatpush.msra.mxu0 0.0
        %9907 = vmatpush.msra.mxu0 0.0
        %9908 = vmatpush.msra.mxu0 0.0
        %9909 = vmatpush.msra.mxu0 0.0
        %9910 = vmatpush.msra.mxu0 0.0
        %9911 = vmatpush.msra.mxu0 0.0
        %9912 = vmatpush.msra.mxu0 0.0
        %9913 = vmatpush.msra.mxu0 %v9804
        %9914 = vmatpush.msra.mxu0 %v9803
        %9915 = vmatpush.msra.mxu0 %v9802
        %9916 = vmatpush.msra.mxu0 %v9801
        %9917 = vmatmul.f32.gmra.mxu0 %v9806
        %v9918 = vpop.f32.mrf.mxu0
        %v9919 = vadd.f32 0.0, %v9918
        %9920 = vmatmul.f32.gmra.mxu0 %v9809
        %v9921 = vpop.f32.mrf.mxu0
        %v9922 = vadd.f32 0.0, %v9921
        %9923 = vmatmul.f32.gmra.mxu0 %v9812
        %v9924 = vpop.f32.mrf.mxu0
        %v9925 = vadd.f32 0.0, %v9924
        %9926 = vmatmul.f32.gmra.mxu0 %v9815
        %v9927 = vpop.f32.mrf.mxu0
        %v9928 = vadd.f32 0.0, %v9927
        %9929 = vmatmul.f32.gmra.mxu0 %v9818
        %v9930 = vpop.f32.mrf.mxu0
        %v9931 = vadd.f32 0.0, %v9930
        %9932 = vmatmul.f32.gmra.mxu0 %v9821
        %v9933 = vpop.f32.mrf.mxu0
        %v9934 = vadd.f32 0.0, %v9933
        %9935 = vmatmul.f32.gmra.mxu0 %v9824
        %v9936 = vpop.f32.mrf.mxu0
        %v9937 = vadd.f32 0.0, %v9936
        %9938 = vmatmul.f32.gmra.mxu0 %v9827
        %v9939 = vpop.f32.mrf.mxu0
        %v9940 = vadd.f32 0.0, %v9939
        %9941 = vmatmul.f32.gmra.mxu0 %v9830
        %v9942 = vpop.f32.mrf.mxu0
        %v9943 = vadd.f32 0.0, %v9942
        %9944 = vmatmul.f32.gmra.mxu0 %v9833
        %v9945 = vpop.f32.mrf.mxu0
        %v9946 = vadd.f32 0.0, %v9945
        %9947 = vmatmul.f32.gmra.mxu0 %v9836
        %v9948 = vpop.f32.mrf.mxu0
        %v9949 = vadd.f32 0.0, %v9948
        %9950 = vmatmul.f32.gmra.mxu0 %v9839
        %v9951 = vpop.f32.mrf.mxu0
        %v9952 = vadd.f32 0.0, %v9951
        %9953 = vmatmul.f32.gmra.mxu0 %v9842
        %v9954 = vpop.f32.mrf.mxu0
        %v9955 = vadd.f32 0.0, %v9954
        %9956 = vmatmul.f32.gmra.mxu0 %v9845
        %v9957 = vpop.f32.mrf.mxu0
        %v9958 = vadd.f32 0.0, %v9957
        %9959 = vmatmul.f32.gmra.mxu0 %v9848
        %v9960 = vpop.f32.mrf.mxu0
        %v9961 = vadd.f32 0.0, %v9960
        %9962 = vmatmul.f32.gmra.mxu0 %v9851
        %v9963 = vpop.f32.mrf.mxu0
        %v9964 = vadd.f32 0.0, %v9963
        %9965 = vmatmul.f32.gmra.mxu0 %v9854
        %v9966 = vpop.f32.mrf.mxu0
        %v9967 = vadd.f32 0.0, %v9966
        %9968 = vmatmul.f32.gmra.mxu0 %v9857
        %v9969 = vpop.f32.mrf.mxu0
        %v9970 = vadd.f32 0.0, %v9969
        %9971 = vmatmul.f32.gmra.mxu0 %v9860
        %v9972 = vpop.f32.mrf.mxu0
        %v9973 = vadd.f32 0.0, %v9972
        %9974 = vmatmul.f32.gmra.mxu0 %v9863
        %v9975 = vpop.f32.mrf.mxu0
        %v9976 = vadd.f32 0.0, %v9975
        %9977 = vmatmul.f32.gmra.mxu0 %v9866
        %v9978 = vpop.f32.mrf.mxu0
        %v9979 = vadd.f32 0.0, %v9978
        %9980 = vmatmul.f32.gmra.mxu0 %v9869
        %v9981 = vpop.f32.mrf.mxu0
        %v9982 = vadd.f32 0.0, %v9981
        %9983 = vmatmul.f32.gmra.mxu0 %v9872
        %v9984 = vpop.f32.mrf.mxu0
        %v9985 = vadd.f32 0.0, %v9984
        %9986 = vmatmul.f32.gmra.mxu0 %v9875
        %v9987 = vpop.f32.mrf.mxu0
        %v9988 = vadd.f32 0.0, %v9987
        %9989 = vmatmul.f32.gmra.mxu0 %v9878
        %v9990 = vpop.f32.mrf.mxu0
        %v9991 = vadd.f32 0.0, %v9990
        %9992 = vmatmul.f32.gmra.mxu0 %v9881
        %v9993 = vpop.f32.mrf.mxu0
        %v9994 = vadd.f32 0.0, %v9993
        %9995 = vmatmul.f32.gmra.mxu0 %v9884
        %v9996 = vpop.f32.mrf.mxu0
        %v9997 = vadd.f32 0.0, %v9996
        %9998 = vmatmul.f32.gmra.mxu0 %v9887
        %v9999 = vpop.f32.mrf.mxu0
        %v10000 = vadd.f32 0.0, %v9999
        %10001 = vmatmul.f32.gmra.mxu0 %v9890
        %v10002 = vpop.f32.mrf.mxu0
        %v10003 = vadd.f32 0.0, %v10002
        %10004 = vmatmul.f32.gmra.mxu0 %v9893
        %v10005 = vpop.f32.mrf.mxu0
        %v10006 = vadd.f32 0.0, %v10005
        %10007 = vmatmul.f32.gmra.mxu0 %v9896
        %v10008 = vpop.f32.mrf.mxu0
        %v10009 = vadd.f32 0.0, %v10008
        %10010 = vmatmul.f32.gmra.mxu0 %v9899
        %v10011 = vpop.f32.mrf.mxu0
        %v10012 = vadd.f32 0.0, %v10011
        %10013 = vdwg.mxu0
        %v10014 = vadd.f32 %v9736, %v9919
        %v10015 = vadd.f32 %v9737, %v9922
        %v10016 = vadd.f32 %v9738, %v9925
        %v10017 = vadd.f32 %v9739, %v9928
        %v10018 = vadd.f32 %v9740, %v9931
        %v10019 = vadd.f32 %v9741, %v9934
        %v10020 = vadd.f32 %v9742, %v9937
        %v10021 = vadd.f32 %v9743, %v9940
        %v10022 = vadd.f32 %v9744, %v9943
        %v10023 = vadd.f32 %v9745, %v9946
        %v10024 = vadd.f32 %v9746, %v9949
        %v10025 = vadd.f32 %v9747, %v9952
        %v10026 = vadd.f32 %v9748, %v9955
        %v10027 = vadd.f32 %v9749, %v9958
        %v10028 = vadd.f32 %v9750, %v9961
        %v10029 = vadd.f32 %v9751, %v9964
        %v10030 = vadd.f32 %v9752, %v9967
        %v10031 = vadd.f32 %v9753, %v9970
        %v10032 = vadd.f32 %v9754, %v9973
        %v10033 = vadd.f32 %v9755, %v9976
        %v10034 = vadd.f32 %v9756, %v9979
        %v10035 = vadd.f32 %v9757, %v9982
        %v10036 = vadd.f32 %v9758, %v9985
        %v10037 = vadd.f32 %v9759, %v9988
        %v10038 = vadd.f32 %v9760, %v9991
        %v10039 = vadd.f32 %v9761, %v9994
        %v10040 = vadd.f32 %v9762, %v9997
        %v10041 = vadd.f32 %v9763, %v10000
        %v10042 = vadd.f32 %v9764, %v10003
        %v10043 = vadd.f32 %v9765, %v10006
        %v10044 = vadd.f32 %v9766, %v10009
        %v10045 = vadd.f32 %v9767, %v10012
        %v10046 = vld [vmem:[%s638 + $0x1] sm:$0xff]
        %v10047 = vld [vmem:[%s638 + $0x9] sm:$0xff]
        %v10048 = vld [vmem:[%s638 + $0x19] sm:$0xff]
        %v10049 = vld [vmem:[%s638 + $0x21] sm:$0xff]
        %v10050 = vld [vmem:[%s638 + $0x31] sm:$0xff]
        %v10051 = vld [vmem:[%s638 + $0x39] sm:$0xff]
        %v10052 = vld [vmem:[%s638 + $0x49] sm:$0xff]
        %v10053 = vld [vmem:[%s638 + $0x51] sm:$0xff]
        %v10054 = vld [vmem:[%s638 + $0x61] sm:$0xff]
        %v10055 = vld [vmem:[%s638 + $0x69] sm:$0xff]
        %v10056 = vld [vmem:[%s638 + $0x79] sm:$0xff]
        %v10057 = vld [vmem:[%s638 + $0x81] sm:$0xff]
        %v10058 = vld [vmem:[%s638 + $0x91] sm:$0xff]
        %v10059 = vld [vmem:[%s638 + $0x99] sm:$0xff]
        %v10060 = vld [vmem:[%s638 + $0xa9] sm:$0xff]
        %v10061 = vld [vmem:[%s638 + $0xb1] sm:$0xff]
        %v10062 = vld [vmem:[%s638 + $0xc1] sm:$0xff]
        %v10063 = vld [vmem:[%s638 + $0xc9] sm:$0xff]
        %v10064 = vld [vmem:[%s638 + $0xd9] sm:$0xff]
        %v10065 = vld [vmem:[%s638 + $0xe1] sm:$0xff]
        %v10066 = vld [vmem:[%s638 + $0xf1] sm:$0xff]
        %v10067 = vld [vmem:[%s638 + $0xf9] sm:$0xff]
        %v10068 = vld [vmem:[%s638 + $0x109] sm:$0xff]
        %v10069 = vld [vmem:[%s638 + $0x111] sm:$0xff]
        %v10070 = vld [vmem:[%s638 + $0x121] sm:$0xff]
        %v10071 = vld [vmem:[%s638 + $0x129] sm:$0xff]
        %v10072 = vld [vmem:[%s638 + $0x139] sm:$0xff]
        %v10073 = vld [vmem:[%s638 + $0x141] sm:$0xff]
        %v10074 = vld [vmem:[%s638 + $0x151] sm:$0xff]
        %v10075 = vld [vmem:[%s638 + $0x159] sm:$0xff]
        %v10076 = vld [vmem:[%s638 + $0x169] sm:$0xff]
        %v10077 = vld [vmem:[%s638 + $0x171] sm:$0xff]
        %s10078 = scalar_lea.vmem [#allocation8], 128
        %v10079 = vld [vmem:[%s10078] sm:$0xff]
        %v10080 = vld [vmem:[%s10078 + $0x8] sm:$0xff]
        %v10081 = vld [vmem:[%s10078 + $0x10] sm:$0xff]
        %v10082 = vld [vmem:[%s10078 + $0x18] sm:$0xff]
        %v10084 = vsel %vm3556, %v10046, 0
        %v10087 = vsel %vm3556, %v10047, 0
        %v10090 = vsel %vm3556, %v10048, 0
        %v10093 = vsel %vm3556, %v10049, 0
        %v10096 = vsel %vm3556, %v10050, 0
        %v10099 = vsel %vm3556, %v10051, 0
        %v10102 = vsel %vm3556, %v10052, 0
        %v10105 = vsel %vm3556, %v10053, 0
        %v10108 = vsel %vm3556, %v10054, 0
        %v10111 = vsel %vm3556, %v10055, 0
        %v10114 = vsel %vm3556, %v10056, 0
        %v10117 = vsel %vm3556, %v10057, 0
        %v10120 = vsel %vm3556, %v10058, 0
        %v10123 = vsel %vm3556, %v10059, 0
        %v10126 = vsel %vm3556, %v10060, 0
        %v10129 = vsel %vm3556, %v10061, 0
        %v10132 = vsel %vm3556, %v10062, 0
        %v10135 = vsel %vm3556, %v10063, 0
        %v10138 = vsel %vm3556, %v10064, 0
        %v10141 = vsel %vm3556, %v10065, 0
        %v10144 = vsel %vm3556, %v10066, 0
        %v10147 = vsel %vm3556, %v10067, 0
        %v10150 = vsel %vm3556, %v10068, 0
        %v10153 = vsel %vm3556, %v10069, 0
        %v10156 = vsel %vm3556, %v10070, 0
        %v10159 = vsel %vm3556, %v10071, 0
        %v10162 = vsel %vm3556, %v10072, 0
        %v10165 = vsel %vm3556, %v10073, 0
        %v10168 = vsel %vm3556, %v10074, 0
        %v10171 = vsel %vm3556, %v10075, 0
        %v10174 = vsel %vm3556, %v10076, 0
        %v10177 = vsel %vm3556, %v10077, 0
        %10179 = vmatpush.msra.mxu0 0.0
        %10180 = vmatpush.msra.mxu0 0.0
        %10181 = vmatpush.msra.mxu0 0.0
        %10182 = vmatpush.msra.mxu0 0.0
        %10183 = vmatpush.msra.mxu0 0.0
        %10184 = vmatpush.msra.mxu0 0.0
        %10185 = vmatpush.msra.mxu0 0.0
        %10186 = vmatpush.msra.mxu0 0.0
        %10187 = vmatpush.msra.mxu0 0.0
        %10188 = vmatpush.msra.mxu0 0.0
        %10189 = vmatpush.msra.mxu0 0.0
        %10190 = vmatpush.msra.mxu0 0.0
        %10191 = vmatpush.msra.mxu0 %v10082
        %10192 = vmatpush.msra.mxu0 %v10081
        %10193 = vmatpush.msra.mxu0 %v10080
        %10194 = vmatpush.msra.mxu0 %v10079
        %10195 = vmatmul.f32.gmra.mxu0 %v10084
        %v10196 = vpop.f32.mrf.mxu0
        %v10197 = vadd.f32 0.0, %v10196
        %10198 = vmatmul.f32.gmra.mxu0 %v10087
        %v10199 = vpop.f32.mrf.mxu0
        %v10200 = vadd.f32 0.0, %v10199
        %10201 = vmatmul.f32.gmra.mxu0 %v10090
        %v10202 = vpop.f32.mrf.mxu0
        %v10203 = vadd.f32 0.0, %v10202
        %10204 = vmatmul.f32.gmra.mxu0 %v10093
        %v10205 = vpop.f32.mrf.mxu0
        %v10206 = vadd.f32 0.0, %v10205
        %10207 = vmatmul.f32.gmra.mxu0 %v10096
        %v10208 = vpop.f32.mrf.mxu0
        %v10209 = vadd.f32 0.0, %v10208
        %10210 = vmatmul.f32.gmra.mxu0 %v10099
        %v10211 = vpop.f32.mrf.mxu0
        %v10212 = vadd.f32 0.0, %v10211
        %10213 = vmatmul.f32.gmra.mxu0 %v10102
        %v10214 = vpop.f32.mrf.mxu0
        %v10215 = vadd.f32 0.0, %v10214
        %10216 = vmatmul.f32.gmra.mxu0 %v10105
        %v10217 = vpop.f32.mrf.mxu0
        %v10218 = vadd.f32 0.0, %v10217
        %10219 = vmatmul.f32.gmra.mxu0 %v10108
        %v10220 = vpop.f32.mrf.mxu0
        %v10221 = vadd.f32 0.0, %v10220
        %10222 = vmatmul.f32.gmra.mxu0 %v10111
        %v10223 = vpop.f32.mrf.mxu0
        %v10224 = vadd.f32 0.0, %v10223
        %10225 = vmatmul.f32.gmra.mxu0 %v10114
        %v10226 = vpop.f32.mrf.mxu0
        %v10227 = vadd.f32 0.0, %v10226
        %10228 = vmatmul.f32.gmra.mxu0 %v10117
        %v10229 = vpop.f32.mrf.mxu0
        %v10230 = vadd.f32 0.0, %v10229
        %10231 = vmatmul.f32.gmra.mxu0 %v10120
        %v10232 = vpop.f32.mrf.mxu0
        %v10233 = vadd.f32 0.0, %v10232
        %10234 = vmatmul.f32.gmra.mxu0 %v10123
        %v10235 = vpop.f32.mrf.mxu0
        %v10236 = vadd.f32 0.0, %v10235
        %10237 = vmatmul.f32.gmra.mxu0 %v10126
        %v10238 = vpop.f32.mrf.mxu0
        %v10239 = vadd.f32 0.0, %v10238
        %10240 = vmatmul.f32.gmra.mxu0 %v10129
        %v10241 = vpop.f32.mrf.mxu0
        %v10242 = vadd.f32 0.0, %v10241
        %10243 = vmatmul.f32.gmra.mxu0 %v10132
        %v10244 = vpop.f32.mrf.mxu0
        %v10245 = vadd.f32 0.0, %v10244
        %10246 = vmatmul.f32.gmra.mxu0 %v10135
        %v10247 = vpop.f32.mrf.mxu0
        %v10248 = vadd.f32 0.0, %v10247
        %10249 = vmatmul.f32.gmra.mxu0 %v10138
        %v10250 = vpop.f32.mrf.mxu0
        %v10251 = vadd.f32 0.0, %v10250
        %10252 = vmatmul.f32.gmra.mxu0 %v10141
        %v10253 = vpop.f32.mrf.mxu0
        %v10254 = vadd.f32 0.0, %v10253
        %10255 = vmatmul.f32.gmra.mxu0 %v10144
        %v10256 = vpop.f32.mrf.mxu0
        %v10257 = vadd.f32 0.0, %v10256
        %10258 = vmatmul.f32.gmra.mxu0 %v10147
        %v10259 = vpop.f32.mrf.mxu0
        %v10260 = vadd.f32 0.0, %v10259
        %10261 = vmatmul.f32.gmra.mxu0 %v10150
        %v10262 = vpop.f32.mrf.mxu0
        %v10263 = vadd.f32 0.0, %v10262
        %10264 = vmatmul.f32.gmra.mxu0 %v10153
        %v10265 = vpop.f32.mrf.mxu0
        %v10266 = vadd.f32 0.0, %v10265
        %10267 = vmatmul.f32.gmra.mxu0 %v10156
        %v10268 = vpop.f32.mrf.mxu0
        %v10269 = vadd.f32 0.0, %v10268
        %10270 = vmatmul.f32.gmra.mxu0 %v10159
        %v10271 = vpop.f32.mrf.mxu0
        %v10272 = vadd.f32 0.0, %v10271
        %10273 = vmatmul.f32.gmra.mxu0 %v10162
        %v10274 = vpop.f32.mrf.mxu0
        %v10275 = vadd.f32 0.0, %v10274
        %10276 = vmatmul.f32.gmra.mxu0 %v10165
        %v10277 = vpop.f32.mrf.mxu0
        %v10278 = vadd.f32 0.0, %v10277
        %10279 = vmatmul.f32.gmra.mxu0 %v10168
        %v10280 = vpop.f32.mrf.mxu0
        %v10281 = vadd.f32 0.0, %v10280
        %10282 = vmatmul.f32.gmra.mxu0 %v10171
        %v10283 = vpop.f32.mrf.mxu0
        %v10284 = vadd.f32 0.0, %v10283
        %10285 = vmatmul.f32.gmra.mxu0 %v10174
        %v10286 = vpop.f32.mrf.mxu0
        %v10287 = vadd.f32 0.0, %v10286
        %10288 = vmatmul.f32.gmra.mxu0 %v10177
        %v10289 = vpop.f32.mrf.mxu0
        %v10290 = vadd.f32 0.0, %v10289
        %10291 = vdwg.mxu0
        %v10292 = vadd.f32 %v10014, %v10197
        %v10293 = vadd.f32 %v10015, %v10200
        %v10294 = vadd.f32 %v10016, %v10203
        %v10295 = vadd.f32 %v10017, %v10206
        %v10296 = vadd.f32 %v10018, %v10209
        %v10297 = vadd.f32 %v10019, %v10212
        %v10298 = vadd.f32 %v10020, %v10215
        %v10299 = vadd.f32 %v10021, %v10218
        %v10300 = vadd.f32 %v10022, %v10221
        %v10301 = vadd.f32 %v10023, %v10224
        %v10302 = vadd.f32 %v10024, %v10227
        %v10303 = vadd.f32 %v10025, %v10230
        %v10304 = vadd.f32 %v10026, %v10233
        %v10305 = vadd.f32 %v10027, %v10236
        %v10306 = vadd.f32 %v10028, %v10239
        %v10307 = vadd.f32 %v10029, %v10242
        %v10308 = vadd.f32 %v10030, %v10245
        %v10309 = vadd.f32 %v10031, %v10248
        %v10310 = vadd.f32 %v10032, %v10251
        %v10311 = vadd.f32 %v10033, %v10254
        %v10312 = vadd.f32 %v10034, %v10257
        %v10313 = vadd.f32 %v10035, %v10260
        %v10314 = vadd.f32 %v10036, %v10263
        %v10315 = vadd.f32 %v10037, %v10266
        %v10316 = vadd.f32 %v10038, %v10269
        %v10317 = vadd.f32 %v10039, %v10272
        %v10318 = vadd.f32 %v10040, %v10275
        %v10319 = vadd.f32 %v10041, %v10278
        %v10320 = vadd.f32 %v10042, %v10281
        %v10321 = vadd.f32 %v10043, %v10284
        %v10322 = vadd.f32 %v10044, %v10287
        %v10323 = vadd.f32 %v10045, %v10290
        %v10324 = vld [vmem:[%s638 + $0x2] sm:$0xff]
        %v10325 = vld [vmem:[%s638 + $0xa] sm:$0xff]
        %v10326 = vld [vmem:[%s638 + $0x1a] sm:$0xff]
        %v10327 = vld [vmem:[%s638 + $0x22] sm:$0xff]
        %v10328 = vld [vmem:[%s638 + $0x32] sm:$0xff]
        %v10329 = vld [vmem:[%s638 + $0x3a] sm:$0xff]
        %v10330 = vld [vmem:[%s638 + $0x4a] sm:$0xff]
        %v10331 = vld [vmem:[%s638 + $0x52] sm:$0xff]
        %v10332 = vld [vmem:[%s638 + $0x62] sm:$0xff]
        %v10333 = vld [vmem:[%s638 + $0x6a] sm:$0xff]
        %v10334 = vld [vmem:[%s638 + $0x7a] sm:$0xff]
        %v10335 = vld [vmem:[%s638 + $0x82] sm:$0xff]
        %v10336 = vld [vmem:[%s638 + $0x92] sm:$0xff]
        %v10337 = vld [vmem:[%s638 + $0x9a] sm:$0xff]
        %v10338 = vld [vmem:[%s638 + $0xaa] sm:$0xff]
        %v10339 = vld [vmem:[%s638 + $0xb2] sm:$0xff]
        %v10340 = vld [vmem:[%s638 + $0xc2] sm:$0xff]
        %v10341 = vld [vmem:[%s638 + $0xca] sm:$0xff]
        %v10342 = vld [vmem:[%s638 + $0xda] sm:$0xff]
        %v10343 = vld [vmem:[%s638 + $0xe2] sm:$0xff]
        %v10344 = vld [vmem:[%s638 + $0xf2] sm:$0xff]
        %v10345 = vld [vmem:[%s638 + $0xfa] sm:$0xff]
        %v10346 = vld [vmem:[%s638 + $0x10a] sm:$0xff]
        %v10347 = vld [vmem:[%s638 + $0x112] sm:$0xff]
        %v10348 = vld [vmem:[%s638 + $0x122] sm:$0xff]
        %v10349 = vld [vmem:[%s638 + $0x12a] sm:$0xff]
        %v10350 = vld [vmem:[%s638 + $0x13a] sm:$0xff]
        %v10351 = vld [vmem:[%s638 + $0x142] sm:$0xff]
        %v10352 = vld [vmem:[%s638 + $0x152] sm:$0xff]
        %v10353 = vld [vmem:[%s638 + $0x15a] sm:$0xff]
        %v10354 = vld [vmem:[%s638 + $0x16a] sm:$0xff]
        %v10355 = vld [vmem:[%s638 + $0x172] sm:$0xff]
        %s10356 = scalar_lea.vmem [#allocation8], 160
        %v10357 = vld [vmem:[%s10356] sm:$0xff]
        %v10358 = vld [vmem:[%s10356 + $0x8] sm:$0xff]
        %v10359 = vld [vmem:[%s10356 + $0x10] sm:$0xff]
        %v10360 = vld [vmem:[%s10356 + $0x18] sm:$0xff]
        %v10362 = vsel %vm3556, %v10324, 0
        %v10365 = vsel %vm3556, %v10325, 0
        %v10368 = vsel %vm3556, %v10326, 0
        %v10371 = vsel %vm3556, %v10327, 0
        %v10374 = vsel %vm3556, %v10328, 0
        %v10377 = vsel %vm3556, %v10329, 0
        %v10380 = vsel %vm3556, %v10330, 0
        %v10383 = vsel %vm3556, %v10331, 0
        %v10386 = vsel %vm3556, %v10332, 0
        %v10389 = vsel %vm3556, %v10333, 0
        %v10392 = vsel %vm3556, %v10334, 0
        %v10395 = vsel %vm3556, %v10335, 0
        %v10398 = vsel %vm3556, %v10336, 0
        %v10401 = vsel %vm3556, %v10337, 0
        %v10404 = vsel %vm3556, %v10338, 0
        %v10407 = vsel %vm3556, %v10339, 0
        %v10410 = vsel %vm3556, %v10340, 0
        %v10413 = vsel %vm3556, %v10341, 0
        %v10416 = vsel %vm3556, %v10342, 0
        %v10419 = vsel %vm3556, %v10343, 0
        %v10422 = vsel %vm3556, %v10344, 0
        %v10425 = vsel %vm3556, %v10345, 0
        %v10428 = vsel %vm3556, %v10346, 0
        %v10431 = vsel %vm3556, %v10347, 0
        %v10434 = vsel %vm3556, %v10348, 0
        %v10437 = vsel %vm3556, %v10349, 0
        %v10440 = vsel %vm3556, %v10350, 0
        %v10443 = vsel %vm3556, %v10351, 0
        %v10446 = vsel %vm3556, %v10352, 0
        %v10449 = vsel %vm3556, %v10353, 0
        %v10452 = vsel %vm3556, %v10354, 0
        %v10455 = vsel %vm3556, %v10355, 0
        %10457 = vmatpush.msra.mxu0 0.0
        %10458 = vmatpush.msra.mxu0 0.0
        %10459 = vmatpush.msra.mxu0 0.0
        %10460 = vmatpush.msra.mxu0 0.0
        %10461 = vmatpush.msra.mxu0 0.0
        %10462 = vmatpush.msra.mxu0 0.0
        %10463 = vmatpush.msra.mxu0 0.0
        %10464 = vmatpush.msra.mxu0 0.0
        %10465 = vmatpush.msra.mxu0 0.0
        %10466 = vmatpush.msra.mxu0 0.0
        %10467 = vmatpush.msra.mxu0 0.0
        %10468 = vmatpush.msra.mxu0 0.0
        %10469 = vmatpush.msra.mxu0 %v10360
        %10470 = vmatpush.msra.mxu0 %v10359
        %10471 = vmatpush.msra.mxu0 %v10358
        %10472 = vmatpush.msra.mxu0 %v10357
        %10473 = vmatmul.f32.gmra.mxu0 %v10362
        %v10474 = vpop.f32.mrf.mxu0
        %v10475 = vadd.f32 0.0, %v10474
        %10476 = vmatmul.f32.gmra.mxu0 %v10365
        %v10477 = vpop.f32.mrf.mxu0
        %v10478 = vadd.f32 0.0, %v10477
        %10479 = vmatmul.f32.gmra.mxu0 %v10368
        %v10480 = vpop.f32.mrf.mxu0
        %v10481 = vadd.f32 0.0, %v10480
        %10482 = vmatmul.f32.gmra.mxu0 %v10371
        %v10483 = vpop.f32.mrf.mxu0
        %v10484 = vadd.f32 0.0, %v10483
        %10485 = vmatmul.f32.gmra.mxu0 %v10374
        %v10486 = vpop.f32.mrf.mxu0
        %v10487 = vadd.f32 0.0, %v10486
        %10488 = vmatmul.f32.gmra.mxu0 %v10377
        %v10489 = vpop.f32.mrf.mxu0
        %v10490 = vadd.f32 0.0, %v10489
        %10491 = vmatmul.f32.gmra.mxu0 %v10380
        %v10492 = vpop.f32.mrf.mxu0
        %v10493 = vadd.f32 0.0, %v10492
        %10494 = vmatmul.f32.gmra.mxu0 %v10383
        %v10495 = vpop.f32.mrf.mxu0
        %v10496 = vadd.f32 0.0, %v10495
        %10497 = vmatmul.f32.gmra.mxu0 %v10386
        %v10498 = vpop.f32.mrf.mxu0
        %v10499 = vadd.f32 0.0, %v10498
        %10500 = vmatmul.f32.gmra.mxu0 %v10389
        %v10501 = vpop.f32.mrf.mxu0
        %v10502 = vadd.f32 0.0, %v10501
        %10503 = vmatmul.f32.gmra.mxu0 %v10392
        %v10504 = vpop.f32.mrf.mxu0
        %v10505 = vadd.f32 0.0, %v10504
        %10506 = vmatmul.f32.gmra.mxu0 %v10395
        %v10507 = vpop.f32.mrf.mxu0
        %v10508 = vadd.f32 0.0, %v10507
        %10509 = vmatmul.f32.gmra.mxu0 %v10398
        %v10510 = vpop.f32.mrf.mxu0
        %v10511 = vadd.f32 0.0, %v10510
        %10512 = vmatmul.f32.gmra.mxu0 %v10401
        %v10513 = vpop.f32.mrf.mxu0
        %v10514 = vadd.f32 0.0, %v10513
        %10515 = vmatmul.f32.gmra.mxu0 %v10404
        %v10516 = vpop.f32.mrf.mxu0
        %v10517 = vadd.f32 0.0, %v10516
        %10518 = vmatmul.f32.gmra.mxu0 %v10407
        %v10519 = vpop.f32.mrf.mxu0
        %v10520 = vadd.f32 0.0, %v10519
        %10521 = vmatmul.f32.gmra.mxu0 %v10410
        %v10522 = vpop.f32.mrf.mxu0
        %v10523 = vadd.f32 0.0, %v10522
        %10524 = vmatmul.f32.gmra.mxu0 %v10413
        %v10525 = vpop.f32.mrf.mxu0
        %v10526 = vadd.f32 0.0, %v10525
        %10527 = vmatmul.f32.gmra.mxu0 %v10416
        %v10528 = vpop.f32.mrf.mxu0
        %v10529 = vadd.f32 0.0, %v10528
        %10530 = vmatmul.f32.gmra.mxu0 %v10419
        %v10531 = vpop.f32.mrf.mxu0
        %v10532 = vadd.f32 0.0, %v10531
        %10533 = vmatmul.f32.gmra.mxu0 %v10422
        %v10534 = vpop.f32.mrf.mxu0
        %v10535 = vadd.f32 0.0, %v10534
        %10536 = vmatmul.f32.gmra.mxu0 %v10425
        %v10537 = vpop.f32.mrf.mxu0
        %v10538 = vadd.f32 0.0, %v10537
        %10539 = vmatmul.f32.gmra.mxu0 %v10428
        %v10540 = vpop.f32.mrf.mxu0
        %v10541 = vadd.f32 0.0, %v10540
        %10542 = vmatmul.f32.gmra.mxu0 %v10431
        %v10543 = vpop.f32.mrf.mxu0
        %v10544 = vadd.f32 0.0, %v10543
        %10545 = vmatmul.f32.gmra.mxu0 %v10434
        %v10546 = vpop.f32.mrf.mxu0
        %v10547 = vadd.f32 0.0, %v10546
        %10548 = vmatmul.f32.gmra.mxu0 %v10437
        %v10549 = vpop.f32.mrf.mxu0
        %v10550 = vadd.f32 0.0, %v10549
        %10551 = vmatmul.f32.gmra.mxu0 %v10440
        %v10552 = vpop.f32.mrf.mxu0
        %v10553 = vadd.f32 0.0, %v10552
        %10554 = vmatmul.f32.gmra.mxu0 %v10443
        %v10555 = vpop.f32.mrf.mxu0
        %v10556 = vadd.f32 0.0, %v10555
        %10557 = vmatmul.f32.gmra.mxu0 %v10446
        %v10558 = vpop.f32.mrf.mxu0
        %v10559 = vadd.f32 0.0, %v10558
        %10560 = vmatmul.f32.gmra.mxu0 %v10449
        %v10561 = vpop.f32.mrf.mxu0
        %v10562 = vadd.f32 0.0, %v10561
        %10563 = vmatmul.f32.gmra.mxu0 %v10452
        %v10564 = vpop.f32.mrf.mxu0
        %v10565 = vadd.f32 0.0, %v10564
        %10566 = vmatmul.f32.gmra.mxu0 %v10455
        %v10567 = vpop.f32.mrf.mxu0
        %v10568 = vadd.f32 0.0, %v10567
        %10569 = vdwg.mxu0
        %v10570 = vadd.f32 %v10292, %v10475
        %v10571 = vadd.f32 %v10293, %v10478
        %v10572 = vadd.f32 %v10294, %v10481
        %v10573 = vadd.f32 %v10295, %v10484
        %v10574 = vadd.f32 %v10296, %v10487
        %v10575 = vadd.f32 %v10297, %v10490
        %v10576 = vadd.f32 %v10298, %v10493
        %v10577 = vadd.f32 %v10299, %v10496
        %v10578 = vadd.f32 %v10300, %v10499
        %v10579 = vadd.f32 %v10301, %v10502
        %v10580 = vadd.f32 %v10302, %v10505
        %v10581 = vadd.f32 %v10303, %v10508
        %v10582 = vadd.f32 %v10304, %v10511
        %v10583 = vadd.f32 %v10305, %v10514
        %v10584 = vadd.f32 %v10306, %v10517
        %v10585 = vadd.f32 %v10307, %v10520
        %v10586 = vadd.f32 %v10308, %v10523
        %v10587 = vadd.f32 %v10309, %v10526
        %v10588 = vadd.f32 %v10310, %v10529
        %v10589 = vadd.f32 %v10311, %v10532
        %v10590 = vadd.f32 %v10312, %v10535
        %v10591 = vadd.f32 %v10313, %v10538
        %v10592 = vadd.f32 %v10314, %v10541
        %v10593 = vadd.f32 %v10315, %v10544
        %v10594 = vadd.f32 %v10316, %v10547
        %v10595 = vadd.f32 %v10317, %v10550
        %v10596 = vadd.f32 %v10318, %v10553
        %v10597 = vadd.f32 %v10319, %v10556
        %v10598 = vadd.f32 %v10320, %v10559
        %v10599 = vadd.f32 %v10321, %v10562
        %v10600 = vadd.f32 %v10322, %v10565
        %v10601 = vadd.f32 %v10323, %v10568
        %v10602 = vld [vmem:[%s2514] sm:$0xff]
        %v10603 = vld [vmem:[%s2514 + $0x8] sm:$0xff]
        %v10604 = vld [vmem:[%s2514 + $0x18] sm:$0xff]
        %v10605 = vld [vmem:[%s2514 + $0x20] sm:$0xff]
        %v10606 = vld [vmem:[%s2514 + $0x30] sm:$0xff]
        %v10607 = vld [vmem:[%s2514 + $0x38] sm:$0xff]
        %v10608 = vld [vmem:[%s2514 + $0x48] sm:$0xff]
        %v10609 = vld [vmem:[%s2514 + $0x50] sm:$0xff]
        %v10610 = vld [vmem:[%s2514 + $0x60] sm:$0xff]
        %v10611 = vld [vmem:[%s2514 + $0x68] sm:$0xff]
        %v10612 = vld [vmem:[%s2514 + $0x78] sm:$0xff]
        %v10613 = vld [vmem:[%s2514 + $0x80] sm:$0xff]
        %v10614 = vld [vmem:[%s2514 + $0x90] sm:$0xff]
        %v10615 = vld [vmem:[%s2514 + $0x98] sm:$0xff]
        %v10616 = vld [vmem:[%s2514 + $0xa8] sm:$0xff]
        %v10617 = vld [vmem:[%s2514 + $0xb0] sm:$0xff]
        %v10618 = vld [vmem:[%s2514 + $0xc0] sm:$0xff]
        %v10619 = vld [vmem:[%s2514 + $0xc8] sm:$0xff]
        %v10620 = vld [vmem:[%s2514 + $0xd8] sm:$0xff]
        %v10621 = vld [vmem:[%s2514 + $0xe0] sm:$0xff]
        %v10622 = vld [vmem:[%s2514 + $0xf0] sm:$0xff]
        %v10623 = vld [vmem:[%s2514 + $0xf8] sm:$0xff]
        %v10624 = vld [vmem:[%s2514 + $0x108] sm:$0xff]
        %v10625 = vld [vmem:[%s2514 + $0x110] sm:$0xff]
        %v10626 = vld [vmem:[%s2514 + $0x120] sm:$0xff]
        %v10627 = vld [vmem:[%s2514 + $0x128] sm:$0xff]
        %v10628 = vld [vmem:[%s2514 + $0x138] sm:$0xff]
        %v10629 = vld [vmem:[%s2514 + $0x140] sm:$0xff]
        %v10630 = vld [vmem:[%s2514 + $0x150] sm:$0xff]
        %v10631 = vld [vmem:[%s2514 + $0x158] sm:$0xff]
        %v10632 = vld [vmem:[%s2514 + $0x168] sm:$0xff]
        %v10633 = vld [vmem:[%s2514 + $0x170] sm:$0xff]
        %s10634 = scalar_lea.vmem [#allocation8], 192
        %v10635 = vld [vmem:[%s10634] sm:$0xff]
        %v10636 = vld [vmem:[%s10634 + $0x8] sm:$0xff]
        %v10637 = vld [vmem:[%s10634 + $0x10] sm:$0xff]
        %v10638 = vld [vmem:[%s10634 + $0x18] sm:$0xff]
        %v10640 = vsel %vm3556, %v10602, 0
        %v10643 = vsel %vm3556, %v10603, 0
        %v10646 = vsel %vm3556, %v10604, 0
        %v10649 = vsel %vm3556, %v10605, 0
        %v10652 = vsel %vm3556, %v10606, 0
        %v10655 = vsel %vm3556, %v10607, 0
        %v10658 = vsel %vm3556, %v10608, 0
        %v10661 = vsel %vm3556, %v10609, 0
        %v10664 = vsel %vm3556, %v10610, 0
        %v10667 = vsel %vm3556, %v10611, 0
        %v10670 = vsel %vm3556, %v10612, 0
        %v10673 = vsel %vm3556, %v10613, 0
        %v10676 = vsel %vm3556, %v10614, 0
        %v10679 = vsel %vm3556, %v10615, 0
        %v10682 = vsel %vm3556, %v10616, 0
        %v10685 = vsel %vm3556, %v10617, 0
        %v10688 = vsel %vm3556, %v10618, 0
        %v10691 = vsel %vm3556, %v10619, 0
        %v10694 = vsel %vm3556, %v10620, 0
        %v10697 = vsel %vm3556, %v10621, 0
        %v10700 = vsel %vm3556, %v10622, 0
        %v10703 = vsel %vm3556, %v10623, 0
        %v10706 = vsel %vm3556, %v10624, 0
        %v10709 = vsel %vm3556, %v10625, 0
        %v10712 = vsel %vm3556, %v10626, 0
        %v10715 = vsel %vm3556, %v10627, 0
        %v10718 = vsel %vm3556, %v10628, 0
        %v10721 = vsel %vm3556, %v10629, 0
        %v10724 = vsel %vm3556, %v10630, 0
        %v10727 = vsel %vm3556, %v10631, 0
        %v10730 = vsel %vm3556, %v10632, 0
        %v10733 = vsel %vm3556, %v10633, 0
        %10735 = vmatpush.msra.mxu0 0.0
        %10736 = vmatpush.msra.mxu0 0.0
        %10737 = vmatpush.msra.mxu0 0.0
        %10738 = vmatpush.msra.mxu0 0.0
        %10739 = vmatpush.msra.mxu0 0.0
        %10740 = vmatpush.msra.mxu0 0.0
        %10741 = vmatpush.msra.mxu0 0.0
        %10742 = vmatpush.msra.mxu0 0.0
        %10743 = vmatpush.msra.mxu0 0.0
        %10744 = vmatpush.msra.mxu0 0.0
        %10745 = vmatpush.msra.mxu0 0.0
        %10746 = vmatpush.msra.mxu0 0.0
        %10747 = vmatpush.msra.mxu0 %v10638
        %10748 = vmatpush.msra.mxu0 %v10637
        %10749 = vmatpush.msra.mxu0 %v10636
        %10750 = vmatpush.msra.mxu0 %v10635
        %10751 = vmatmul.f32.gmra.mxu0 %v10640
        %v10752 = vpop.f32.mrf.mxu0
        %v10753 = vadd.f32 0.0, %v10752
        %10754 = vmatmul.f32.gmra.mxu0 %v10643
        %v10755 = vpop.f32.mrf.mxu0
        %v10756 = vadd.f32 0.0, %v10755
        %10757 = vmatmul.f32.gmra.mxu0 %v10646
        %v10758 = vpop.f32.mrf.mxu0
        %v10759 = vadd.f32 0.0, %v10758
        %10760 = vmatmul.f32.gmra.mxu0 %v10649
        %v10761 = vpop.f32.mrf.mxu0
        %v10762 = vadd.f32 0.0, %v10761
        %10763 = vmatmul.f32.gmra.mxu0 %v10652
        %v10764 = vpop.f32.mrf.mxu0
        %v10765 = vadd.f32 0.0, %v10764
        %10766 = vmatmul.f32.gmra.mxu0 %v10655
        %v10767 = vpop.f32.mrf.mxu0
        %v10768 = vadd.f32 0.0, %v10767
        %10769 = vmatmul.f32.gmra.mxu0 %v10658
        %v10770 = vpop.f32.mrf.mxu0
        %v10771 = vadd.f32 0.0, %v10770
        %10772 = vmatmul.f32.gmra.mxu0 %v10661
        %v10773 = vpop.f32.mrf.mxu0
        %v10774 = vadd.f32 0.0, %v10773
        %10775 = vmatmul.f32.gmra.mxu0 %v10664
        %v10776 = vpop.f32.mrf.mxu0
        %v10777 = vadd.f32 0.0, %v10776
        %10778 = vmatmul.f32.gmra.mxu0 %v10667
        %v10779 = vpop.f32.mrf.mxu0
        %v10780 = vadd.f32 0.0, %v10779
        %10781 = vmatmul.f32.gmra.mxu0 %v10670
        %v10782 = vpop.f32.mrf.mxu0
        %v10783 = vadd.f32 0.0, %v10782
        %10784 = vmatmul.f32.gmra.mxu0 %v10673
        %v10785 = vpop.f32.mrf.mxu0
        %v10786 = vadd.f32 0.0, %v10785
        %10787 = vmatmul.f32.gmra.mxu0 %v10676
        %v10788 = vpop.f32.mrf.mxu0
        %v10789 = vadd.f32 0.0, %v10788
        %10790 = vmatmul.f32.gmra.mxu0 %v10679
        %v10791 = vpop.f32.mrf.mxu0
        %v10792 = vadd.f32 0.0, %v10791
        %10793 = vmatmul.f32.gmra.mxu0 %v10682
        %v10794 = vpop.f32.mrf.mxu0
        %v10795 = vadd.f32 0.0, %v10794
        %10796 = vmatmul.f32.gmra.mxu0 %v10685
        %v10797 = vpop.f32.mrf.mxu0
        %v10798 = vadd.f32 0.0, %v10797
        %10799 = vmatmul.f32.gmra.mxu0 %v10688
        %v10800 = vpop.f32.mrf.mxu0
        %v10801 = vadd.f32 0.0, %v10800
        %10802 = vmatmul.f32.gmra.mxu0 %v10691
        %v10803 = vpop.f32.mrf.mxu0
        %v10804 = vadd.f32 0.0, %v10803
        %10805 = vmatmul.f32.gmra.mxu0 %v10694
        %v10806 = vpop.f32.mrf.mxu0
        %v10807 = vadd.f32 0.0, %v10806
        %10808 = vmatmul.f32.gmra.mxu0 %v10697
        %v10809 = vpop.f32.mrf.mxu0
        %v10810 = vadd.f32 0.0, %v10809
        %10811 = vmatmul.f32.gmra.mxu0 %v10700
        %v10812 = vpop.f32.mrf.mxu0
        %v10813 = vadd.f32 0.0, %v10812
        %10814 = vmatmul.f32.gmra.mxu0 %v10703
        %v10815 = vpop.f32.mrf.mxu0
        %v10816 = vadd.f32 0.0, %v10815
        %10817 = vmatmul.f32.gmra.mxu0 %v10706
        %v10818 = vpop.f32.mrf.mxu0
        %v10819 = vadd.f32 0.0, %v10818
        %10820 = vmatmul.f32.gmra.mxu0 %v10709
        %v10821 = vpop.f32.mrf.mxu0
        %v10822 = vadd.f32 0.0, %v10821
        %10823 = vmatmul.f32.gmra.mxu0 %v10712
        %v10824 = vpop.f32.mrf.mxu0
        %v10825 = vadd.f32 0.0, %v10824
        %10826 = vmatmul.f32.gmra.mxu0 %v10715
        %v10827 = vpop.f32.mrf.mxu0
        %v10828 = vadd.f32 0.0, %v10827
        %10829 = vmatmul.f32.gmra.mxu0 %v10718
        %v10830 = vpop.f32.mrf.mxu0
        %v10831 = vadd.f32 0.0, %v10830
        %10832 = vmatmul.f32.gmra.mxu0 %v10721
        %v10833 = vpop.f32.mrf.mxu0
        %v10834 = vadd.f32 0.0, %v10833
        %10835 = vmatmul.f32.gmra.mxu0 %v10724
        %v10836 = vpop.f32.mrf.mxu0
        %v10837 = vadd.f32 0.0, %v10836
        %10838 = vmatmul.f32.gmra.mxu0 %v10727
        %v10839 = vpop.f32.mrf.mxu0
        %v10840 = vadd.f32 0.0, %v10839
        %10841 = vmatmul.f32.gmra.mxu0 %v10730
        %v10842 = vpop.f32.mrf.mxu0
        %v10843 = vadd.f32 0.0, %v10842
        %10844 = vmatmul.f32.gmra.mxu0 %v10733
        %v10845 = vpop.f32.mrf.mxu0
        %v10846 = vadd.f32 0.0, %v10845
        %10847 = vdwg.mxu0
        %v10848 = vadd.f32 %v10570, %v10753
        %v10849 = vadd.f32 %v10571, %v10756
        %v10850 = vadd.f32 %v10572, %v10759
        %v10851 = vadd.f32 %v10573, %v10762
        %v10852 = vadd.f32 %v10574, %v10765
        %v10853 = vadd.f32 %v10575, %v10768
        %v10854 = vadd.f32 %v10576, %v10771
        %v10855 = vadd.f32 %v10577, %v10774
        %v10856 = vadd.f32 %v10578, %v10777
        %v10857 = vadd.f32 %v10579, %v10780
        %v10858 = vadd.f32 %v10580, %v10783
        %v10859 = vadd.f32 %v10581, %v10786
        %v10860 = vadd.f32 %v10582, %v10789
        %v10861 = vadd.f32 %v10583, %v10792
        %v10862 = vadd.f32 %v10584, %v10795
        %v10863 = vadd.f32 %v10585, %v10798
        %v10864 = vadd.f32 %v10586, %v10801
        %v10865 = vadd.f32 %v10587, %v10804
        %v10866 = vadd.f32 %v10588, %v10807
        %v10867 = vadd.f32 %v10589, %v10810
        %v10868 = vadd.f32 %v10590, %v10813
        %v10869 = vadd.f32 %v10591, %v10816
        %v10870 = vadd.f32 %v10592, %v10819
        %v10871 = vadd.f32 %v10593, %v10822
        %v10872 = vadd.f32 %v10594, %v10825
        %v10873 = vadd.f32 %v10595, %v10828
        %v10874 = vadd.f32 %v10596, %v10831
        %v10875 = vadd.f32 %v10597, %v10834
        %v10876 = vadd.f32 %v10598, %v10837
        %v10877 = vadd.f32 %v10599, %v10840
        %v10878 = vadd.f32 %v10600, %v10843
        %v10879 = vadd.f32 %v10601, %v10846
        %v10880 = vld [vmem:[%s2514 + $0x1] sm:$0xff]
        %v10881 = vld [vmem:[%s2514 + $0x9] sm:$0xff]
        %v10882 = vld [vmem:[%s2514 + $0x19] sm:$0xff]
        %v10883 = vld [vmem:[%s2514 + $0x21] sm:$0xff]
        %v10884 = vld [vmem:[%s2514 + $0x31] sm:$0xff]
        %v10885 = vld [vmem:[%s2514 + $0x39] sm:$0xff]
        %v10886 = vld [vmem:[%s2514 + $0x49] sm:$0xff]
        %v10887 = vld [vmem:[%s2514 + $0x51] sm:$0xff]
        %v10888 = vld [vmem:[%s2514 + $0x61] sm:$0xff]
        %v10889 = vld [vmem:[%s2514 + $0x69] sm:$0xff]
        %v10890 = vld [vmem:[%s2514 + $0x79] sm:$0xff]
        %v10891 = vld [vmem:[%s2514 + $0x81] sm:$0xff]
        %v10892 = vld [vmem:[%s2514 + $0x91] sm:$0xff]
        %v10893 = vld [vmem:[%s2514 + $0x99] sm:$0xff]
        %v10894 = vld [vmem:[%s2514 + $0xa9] sm:$0xff]
        %v10895 = vld [vmem:[%s2514 + $0xb1] sm:$0xff]
        %v10896 = vld [vmem:[%s2514 + $0xc1] sm:$0xff]
        %v10897 = vld [vmem:[%s2514 + $0xc9] sm:$0xff]
        %v10898 = vld [vmem:[%s2514 + $0xd9] sm:$0xff]
        %v10899 = vld [vmem:[%s2514 + $0xe1] sm:$0xff]
        %v10900 = vld [vmem:[%s2514 + $0xf1] sm:$0xff]
        %v10901 = vld [vmem:[%s2514 + $0xf9] sm:$0xff]
        %v10902 = vld [vmem:[%s2514 + $0x109] sm:$0xff]
        %v10903 = vld [vmem:[%s2514 + $0x111] sm:$0xff]
        %v10904 = vld [vmem:[%s2514 + $0x121] sm:$0xff]
        %v10905 = vld [vmem:[%s2514 + $0x129] sm:$0xff]
        %v10906 = vld [vmem:[%s2514 + $0x139] sm:$0xff]
        %v10907 = vld [vmem:[%s2514 + $0x141] sm:$0xff]
        %v10908 = vld [vmem:[%s2514 + $0x151] sm:$0xff]
        %v10909 = vld [vmem:[%s2514 + $0x159] sm:$0xff]
        %v10910 = vld [vmem:[%s2514 + $0x169] sm:$0xff]
        %v10911 = vld [vmem:[%s2514 + $0x171] sm:$0xff]
        %s10912 = scalar_lea.vmem [#allocation8], 224
        %v10913 = vld [vmem:[%s10912] sm:$0xff]
        %v10914 = vld [vmem:[%s10912 + $0x8] sm:$0xff]
        %v10915 = vld [vmem:[%s10912 + $0x10] sm:$0xff]
        %v10916 = vld [vmem:[%s10912 + $0x18] sm:$0xff]
        %v10918 = vsel %vm3556, %v10880, 0
        %v10921 = vsel %vm3556, %v10881, 0
        %v10924 = vsel %vm3556, %v10882, 0
        %v10927 = vsel %vm3556, %v10883, 0
        %v10930 = vsel %vm3556, %v10884, 0
        %v10933 = vsel %vm3556, %v10885, 0
        %v10936 = vsel %vm3556, %v10886, 0
        %v10939 = vsel %vm3556, %v10887, 0
        %v10942 = vsel %vm3556, %v10888, 0
        %v10945 = vsel %vm3556, %v10889, 0
        %v10948 = vsel %vm3556, %v10890, 0
        %v10951 = vsel %vm3556, %v10891, 0
        %v10954 = vsel %vm3556, %v10892, 0
        %v10957 = vsel %vm3556, %v10893, 0
        %v10960 = vsel %vm3556, %v10894, 0
        %v10963 = vsel %vm3556, %v10895, 0
        %v10966 = vsel %vm3556, %v10896, 0
        %v10969 = vsel %vm3556, %v10897, 0
        %v10972 = vsel %vm3556, %v10898, 0
        %v10975 = vsel %vm3556, %v10899, 0
        %v10978 = vsel %vm3556, %v10900, 0
        %v10981 = vsel %vm3556, %v10901, 0
        %v10984 = vsel %vm3556, %v10902, 0
        %v10987 = vsel %vm3556, %v10903, 0
        %v10990 = vsel %vm3556, %v10904, 0
        %v10993 = vsel %vm3556, %v10905, 0
        %v10996 = vsel %vm3556, %v10906, 0
        %v10999 = vsel %vm3556, %v10907, 0
        %v11002 = vsel %vm3556, %v10908, 0
        %v11005 = vsel %vm3556, %v10909, 0
        %v11008 = vsel %vm3556, %v10910, 0
        %v11011 = vsel %vm3556, %v10911, 0
        %11013 = vmatpush.msra.mxu0 0.0
        %11014 = vmatpush.msra.mxu0 0.0
        %11015 = vmatpush.msra.mxu0 0.0
        %11016 = vmatpush.msra.mxu0 0.0
        %11017 = vmatpush.msra.mxu0 0.0
        %11018 = vmatpush.msra.mxu0 0.0
        %11019 = vmatpush.msra.mxu0 0.0
        %11020 = vmatpush.msra.mxu0 0.0
        %11021 = vmatpush.msra.mxu0 0.0
        %11022 = vmatpush.msra.mxu0 0.0
        %11023 = vmatpush.msra.mxu0 0.0
        %11024 = vmatpush.msra.mxu0 0.0
        %11025 = vmatpush.msra.mxu0 %v10916
        %11026 = vmatpush.msra.mxu0 %v10915
        %11027 = vmatpush.msra.mxu0 %v10914
        %11028 = vmatpush.msra.mxu0 %v10913
        %11029 = vmatmul.f32.gmra.mxu0 %v10918
        %v11030 = vpop.f32.mrf.mxu0
        %v11031 = vadd.f32 0.0, %v11030
        %11032 = vmatmul.f32.gmra.mxu0 %v10921
        %v11033 = vpop.f32.mrf.mxu0
        %v11034 = vadd.f32 0.0, %v11033
        %11035 = vmatmul.f32.gmra.mxu0 %v10924
        %v11036 = vpop.f32.mrf.mxu0
        %v11037 = vadd.f32 0.0, %v11036
        %11038 = vmatmul.f32.gmra.mxu0 %v10927
        %v11039 = vpop.f32.mrf.mxu0
        %v11040 = vadd.f32 0.0, %v11039
        %11041 = vmatmul.f32.gmra.mxu0 %v10930
        %v11042 = vpop.f32.mrf.mxu0
        %v11043 = vadd.f32 0.0, %v11042
        %11044 = vmatmul.f32.gmra.mxu0 %v10933
        %v11045 = vpop.f32.mrf.mxu0
        %v11046 = vadd.f32 0.0, %v11045
        %11047 = vmatmul.f32.gmra.mxu0 %v10936
        %v11048 = vpop.f32.mrf.mxu0
        %v11049 = vadd.f32 0.0, %v11048
        %11050 = vmatmul.f32.gmra.mxu0 %v10939
        %v11051 = vpop.f32.mrf.mxu0
        %v11052 = vadd.f32 0.0, %v11051
        %11053 = vmatmul.f32.gmra.mxu0 %v10942
        %v11054 = vpop.f32.mrf.mxu0
        %v11055 = vadd.f32 0.0, %v11054
        %11056 = vmatmul.f32.gmra.mxu0 %v10945
        %v11057 = vpop.f32.mrf.mxu0
        %v11058 = vadd.f32 0.0, %v11057
        %11059 = vmatmul.f32.gmra.mxu0 %v10948
        %v11060 = vpop.f32.mrf.mxu0
        %v11061 = vadd.f32 0.0, %v11060
        %11062 = vmatmul.f32.gmra.mxu0 %v10951
        %v11063 = vpop.f32.mrf.mxu0
        %v11064 = vadd.f32 0.0, %v11063
        %11065 = vmatmul.f32.gmra.mxu0 %v10954
        %v11066 = vpop.f32.mrf.mxu0
        %v11067 = vadd.f32 0.0, %v11066
        %11068 = vmatmul.f32.gmra.mxu0 %v10957
        %v11069 = vpop.f32.mrf.mxu0
        %v11070 = vadd.f32 0.0, %v11069
        %11071 = vmatmul.f32.gmra.mxu0 %v10960
        %v11072 = vpop.f32.mrf.mxu0
        %v11073 = vadd.f32 0.0, %v11072
        %11074 = vmatmul.f32.gmra.mxu0 %v10963
        %v11075 = vpop.f32.mrf.mxu0
        %v11076 = vadd.f32 0.0, %v11075
        %11077 = vmatmul.f32.gmra.mxu0 %v10966
        %v11078 = vpop.f32.mrf.mxu0
        %v11079 = vadd.f32 0.0, %v11078
        %11080 = vmatmul.f32.gmra.mxu0 %v10969
        %v11081 = vpop.f32.mrf.mxu0
        %v11082 = vadd.f32 0.0, %v11081
        %11083 = vmatmul.f32.gmra.mxu0 %v10972
        %v11084 = vpop.f32.mrf.mxu0
        %v11085 = vadd.f32 0.0, %v11084
        %11086 = vmatmul.f32.gmra.mxu0 %v10975
        %v11087 = vpop.f32.mrf.mxu0
        %v11088 = vadd.f32 0.0, %v11087
        %11089 = vmatmul.f32.gmra.mxu0 %v10978
        %v11090 = vpop.f32.mrf.mxu0
        %v11091 = vadd.f32 0.0, %v11090
        %11092 = vmatmul.f32.gmra.mxu0 %v10981
        %v11093 = vpop.f32.mrf.mxu0
        %v11094 = vadd.f32 0.0, %v11093
        %11095 = vmatmul.f32.gmra.mxu0 %v10984
        %v11096 = vpop.f32.mrf.mxu0
        %v11097 = vadd.f32 0.0, %v11096
        %11098 = vmatmul.f32.gmra.mxu0 %v10987
        %v11099 = vpop.f32.mrf.mxu0
        %v11100 = vadd.f32 0.0, %v11099
        %11101 = vmatmul.f32.gmra.mxu0 %v10990
        %v11102 = vpop.f32.mrf.mxu0
        %v11103 = vadd.f32 0.0, %v11102
        %11104 = vmatmul.f32.gmra.mxu0 %v10993
        %v11105 = vpop.f32.mrf.mxu0
        %v11106 = vadd.f32 0.0, %v11105
        %11107 = vmatmul.f32.gmra.mxu0 %v10996
        %v11108 = vpop.f32.mrf.mxu0
        %v11109 = vadd.f32 0.0, %v11108
        %11110 = vmatmul.f32.gmra.mxu0 %v10999
        %v11111 = vpop.f32.mrf.mxu0
        %v11112 = vadd.f32 0.0, %v11111
        %11113 = vmatmul.f32.gmra.mxu0 %v11002
        %v11114 = vpop.f32.mrf.mxu0
        %v11115 = vadd.f32 0.0, %v11114
        %11116 = vmatmul.f32.gmra.mxu0 %v11005
        %v11117 = vpop.f32.mrf.mxu0
        %v11118 = vadd.f32 0.0, %v11117
        %11119 = vmatmul.f32.gmra.mxu0 %v11008
        %v11120 = vpop.f32.mrf.mxu0
        %v11121 = vadd.f32 0.0, %v11120
        %11122 = vmatmul.f32.gmra.mxu0 %v11011
        %v11123 = vpop.f32.mrf.mxu0
        %v11124 = vadd.f32 0.0, %v11123
        %11125 = vdwg.mxu0
        %v11126 = vadd.f32 %v10848, %v11031
        %v11127 = vadd.f32 %v10849, %v11034
        %v11128 = vadd.f32 %v10850, %v11037
        %v11129 = vadd.f32 %v10851, %v11040
        %v11130 = vadd.f32 %v10852, %v11043
        %v11131 = vadd.f32 %v10853, %v11046
        %v11132 = vadd.f32 %v10854, %v11049
        %v11133 = vadd.f32 %v10855, %v11052
        %v11134 = vadd.f32 %v10856, %v11055
        %v11135 = vadd.f32 %v10857, %v11058
        %v11136 = vadd.f32 %v10858, %v11061
        %v11137 = vadd.f32 %v10859, %v11064
        %v11138 = vadd.f32 %v10860, %v11067
        %v11139 = vadd.f32 %v10861, %v11070
        %v11140 = vadd.f32 %v10862, %v11073
        %v11141 = vadd.f32 %v10863, %v11076
        %v11142 = vadd.f32 %v10864, %v11079
        %v11143 = vadd.f32 %v10865, %v11082
        %v11144 = vadd.f32 %v10866, %v11085
        %v11145 = vadd.f32 %v10867, %v11088
        %v11146 = vadd.f32 %v10868, %v11091
        %v11147 = vadd.f32 %v10869, %v11094
        %v11148 = vadd.f32 %v10870, %v11097
        %v11149 = vadd.f32 %v10871, %v11100
        %v11150 = vadd.f32 %v10872, %v11103
        %v11151 = vadd.f32 %v10873, %v11106
        %v11152 = vadd.f32 %v10874, %v11109
        %v11153 = vadd.f32 %v10875, %v11112
        %v11154 = vadd.f32 %v10876, %v11115
        %v11155 = vadd.f32 %v10877, %v11118
        %v11156 = vadd.f32 %v10878, %v11121
        %v11157 = vadd.f32 %v10879, %v11124
        %v11158 = vld [vmem:[%s2514 + $0x2] sm:$0xff]
        %v11159 = vld [vmem:[%s2514 + $0xa] sm:$0xff]
        %v11160 = vld [vmem:[%s2514 + $0x1a] sm:$0xff]
        %v11161 = vld [vmem:[%s2514 + $0x22] sm:$0xff]
        %v11162 = vld [vmem:[%s2514 + $0x32] sm:$0xff]
        %v11163 = vld [vmem:[%s2514 + $0x3a] sm:$0xff]
        %v11164 = vld [vmem:[%s2514 + $0x4a] sm:$0xff]
        %v11165 = vld [vmem:[%s2514 + $0x52] sm:$0xff]
        %v11166 = vld [vmem:[%s2514 + $0x62] sm:$0xff]
        %v11167 = vld [vmem:[%s2514 + $0x6a] sm:$0xff]
        %v11168 = vld [vmem:[%s2514 + $0x7a] sm:$0xff]
        %v11169 = vld [vmem:[%s2514 + $0x82] sm:$0xff]
        %v11170 = vld [vmem:[%s2514 + $0x92] sm:$0xff]
        %v11171 = vld [vmem:[%s2514 + $0x9a] sm:$0xff]
        %v11172 = vld [vmem:[%s2514 + $0xaa] sm:$0xff]
        %v11173 = vld [vmem:[%s2514 + $0xb2] sm:$0xff]
        %v11174 = vld [vmem:[%s2514 + $0xc2] sm:$0xff]
        %v11175 = vld [vmem:[%s2514 + $0xca] sm:$0xff]
        %v11176 = vld [vmem:[%s2514 + $0xda] sm:$0xff]
        %v11177 = vld [vmem:[%s2514 + $0xe2] sm:$0xff]
        %v11178 = vld [vmem:[%s2514 + $0xf2] sm:$0xff]
        %v11179 = vld [vmem:[%s2514 + $0xfa] sm:$0xff]
        %v11180 = vld [vmem:[%s2514 + $0x10a] sm:$0xff]
        %v11181 = vld [vmem:[%s2514 + $0x112] sm:$0xff]
        %v11182 = vld [vmem:[%s2514 + $0x122] sm:$0xff]
        %v11183 = vld [vmem:[%s2514 + $0x12a] sm:$0xff]
        %v11184 = vld [vmem:[%s2514 + $0x13a] sm:$0xff]
        %v11185 = vld [vmem:[%s2514 + $0x142] sm:$0xff]
        %v11186 = vld [vmem:[%s2514 + $0x152] sm:$0xff]
        %v11187 = vld [vmem:[%s2514 + $0x15a] sm:$0xff]
        %v11188 = vld [vmem:[%s2514 + $0x16a] sm:$0xff]
        %v11189 = vld [vmem:[%s2514 + $0x172] sm:$0xff]
        %s11190 = scalar_lea.vmem [#allocation8], 256
        %v11191 = vld [vmem:[%s11190] sm:$0xff]
        %v11192 = vld [vmem:[%s11190 + $0x8] sm:$0xff]
        %v11193 = vld [vmem:[%s11190 + $0x10] sm:$0xff]
        %v11194 = vld [vmem:[%s11190 + $0x18] sm:$0xff]
        %v11196 = vsel %vm3556, %v11158, 0
        %v11199 = vsel %vm3556, %v11159, 0
        %v11202 = vsel %vm3556, %v11160, 0
        %v11205 = vsel %vm3556, %v11161, 0
        %v11208 = vsel %vm3556, %v11162, 0
        %v11211 = vsel %vm3556, %v11163, 0
        %v11214 = vsel %vm3556, %v11164, 0
        %v11217 = vsel %vm3556, %v11165, 0
        %v11220 = vsel %vm3556, %v11166, 0
        %v11223 = vsel %vm3556, %v11167, 0
        %v11226 = vsel %vm3556, %v11168, 0
        %v11229 = vsel %vm3556, %v11169, 0
        %v11232 = vsel %vm3556, %v11170, 0
        %v11235 = vsel %vm3556, %v11171, 0
        %v11238 = vsel %vm3556, %v11172, 0
        %v11241 = vsel %vm3556, %v11173, 0
        %v11244 = vsel %vm3556, %v11174, 0
        %v11247 = vsel %vm3556, %v11175, 0
        %v11250 = vsel %vm3556, %v11176, 0
        %v11253 = vsel %vm3556, %v11177, 0
        %v11256 = vsel %vm3556, %v11178, 0
        %v11259 = vsel %vm3556, %v11179, 0
        %v11262 = vsel %vm3556, %v11180, 0
        %v11265 = vsel %vm3556, %v11181, 0
        %v11268 = vsel %vm3556, %v11182, 0
        %v11271 = vsel %vm3556, %v11183, 0
        %v11274 = vsel %vm3556, %v11184, 0
        %v11277 = vsel %vm3556, %v11185, 0
        %v11280 = vsel %vm3556, %v11186, 0
        %v11283 = vsel %vm3556, %v11187, 0
        %v11286 = vsel %vm3556, %v11188, 0
        %v11289 = vsel %vm3556, %v11189, 0
        %11291 = vmatpush.msra.mxu0 0.0
        %11292 = vmatpush.msra.mxu0 0.0
        %11293 = vmatpush.msra.mxu0 0.0
        %11294 = vmatpush.msra.mxu0 0.0
        %11295 = vmatpush.msra.mxu0 0.0
        %11296 = vmatpush.msra.mxu0 0.0
        %11297 = vmatpush.msra.mxu0 0.0
        %11298 = vmatpush.msra.mxu0 0.0
        %11299 = vmatpush.msra.mxu0 0.0
        %11300 = vmatpush.msra.mxu0 0.0
        %11301 = vmatpush.msra.mxu0 0.0
        %11302 = vmatpush.msra.mxu0 0.0
        %11303 = vmatpush.msra.mxu0 %v11194
        %11304 = vmatpush.msra.mxu0 %v11193
        %11305 = vmatpush.msra.mxu0 %v11192
        %11306 = vmatpush.msra.mxu0 %v11191
        %11307 = vmatmul.f32.gmra.mxu0 %v11196
        %v11308 = vpop.f32.mrf.mxu0
        %v11309 = vadd.f32 0.0, %v11308
        %11310 = vmatmul.f32.gmra.mxu0 %v11199
        %v11311 = vpop.f32.mrf.mxu0
        %v11312 = vadd.f32 0.0, %v11311
        %11313 = vmatmul.f32.gmra.mxu0 %v11202
        %v11314 = vpop.f32.mrf.mxu0
        %v11315 = vadd.f32 0.0, %v11314
        %11316 = vmatmul.f32.gmra.mxu0 %v11205
        %v11317 = vpop.f32.mrf.mxu0
        %v11318 = vadd.f32 0.0, %v11317
        %11319 = vmatmul.f32.gmra.mxu0 %v11208
        %v11320 = vpop.f32.mrf.mxu0
        %v11321 = vadd.f32 0.0, %v11320
        %11322 = vmatmul.f32.gmra.mxu0 %v11211
        %v11323 = vpop.f32.mrf.mxu0
        %v11324 = vadd.f32 0.0, %v11323
        %11325 = vmatmul.f32.gmra.mxu0 %v11214
        %v11326 = vpop.f32.mrf.mxu0
        %v11327 = vadd.f32 0.0, %v11326
        %11328 = vmatmul.f32.gmra.mxu0 %v11217
        %v11329 = vpop.f32.mrf.mxu0
        %v11330 = vadd.f32 0.0, %v11329
        %11331 = vmatmul.f32.gmra.mxu0 %v11220
        %v11332 = vpop.f32.mrf.mxu0
        %v11333 = vadd.f32 0.0, %v11332
        %11334 = vmatmul.f32.gmra.mxu0 %v11223
        %v11335 = vpop.f32.mrf.mxu0
        %v11336 = vadd.f32 0.0, %v11335
        %11337 = vmatmul.f32.gmra.mxu0 %v11226
        %v11338 = vpop.f32.mrf.mxu0
        %v11339 = vadd.f32 0.0, %v11338
        %11340 = vmatmul.f32.gmra.mxu0 %v11229
        %v11341 = vpop.f32.mrf.mxu0
        %v11342 = vadd.f32 0.0, %v11341
        %11343 = vmatmul.f32.gmra.mxu0 %v11232
        %v11344 = vpop.f32.mrf.mxu0
        %v11345 = vadd.f32 0.0, %v11344
        %11346 = vmatmul.f32.gmra.mxu0 %v11235
        %v11347 = vpop.f32.mrf.mxu0
        %v11348 = vadd.f32 0.0, %v11347
        %11349 = vmatmul.f32.gmra.mxu0 %v11238
        %v11350 = vpop.f32.mrf.mxu0
        %v11351 = vadd.f32 0.0, %v11350
        %11352 = vmatmul.f32.gmra.mxu0 %v11241
        %v11353 = vpop.f32.mrf.mxu0
        %v11354 = vadd.f32 0.0, %v11353
        %11355 = vmatmul.f32.gmra.mxu0 %v11244
        %v11356 = vpop.f32.mrf.mxu0
        %v11357 = vadd.f32 0.0, %v11356
        %11358 = vmatmul.f32.gmra.mxu0 %v11247
        %v11359 = vpop.f32.mrf.mxu0
        %v11360 = vadd.f32 0.0, %v11359
        %11361 = vmatmul.f32.gmra.mxu0 %v11250
        %v11362 = vpop.f32.mrf.mxu0
        %v11363 = vadd.f32 0.0, %v11362
        %11364 = vmatmul.f32.gmra.mxu0 %v11253
        %v11365 = vpop.f32.mrf.mxu0
        %v11366 = vadd.f32 0.0, %v11365
        %11367 = vmatmul.f32.gmra.mxu0 %v11256
        %v11368 = vpop.f32.mrf.mxu0
        %v11369 = vadd.f32 0.0, %v11368
        %11370 = vmatmul.f32.gmra.mxu0 %v11259
        %v11371 = vpop.f32.mrf.mxu0
        %v11372 = vadd.f32 0.0, %v11371
        %11373 = vmatmul.f32.gmra.mxu0 %v11262
        %v11374 = vpop.f32.mrf.mxu0
        %v11375 = vadd.f32 0.0, %v11374
        %11376 = vmatmul.f32.gmra.mxu0 %v11265
        %v11377 = vpop.f32.mrf.mxu0
        %v11378 = vadd.f32 0.0, %v11377
        %11379 = vmatmul.f32.gmra.mxu0 %v11268
        %v11380 = vpop.f32.mrf.mxu0
        %v11381 = vadd.f32 0.0, %v11380
        %11382 = vmatmul.f32.gmra.mxu0 %v11271
        %v11383 = vpop.f32.mrf.mxu0
        %v11384 = vadd.f32 0.0, %v11383
        %11385 = vmatmul.f32.gmra.mxu0 %v11274
        %v11386 = vpop.f32.mrf.mxu0
        %v11387 = vadd.f32 0.0, %v11386
        %11388 = vmatmul.f32.gmra.mxu0 %v11277
        %v11389 = vpop.f32.mrf.mxu0
        %v11390 = vadd.f32 0.0, %v11389
        %11391 = vmatmul.f32.gmra.mxu0 %v11280
        %v11392 = vpop.f32.mrf.mxu0
        %v11393 = vadd.f32 0.0, %v11392
        %11394 = vmatmul.f32.gmra.mxu0 %v11283
        %v11395 = vpop.f32.mrf.mxu0
        %v11396 = vadd.f32 0.0, %v11395
        %11397 = vmatmul.f32.gmra.mxu0 %v11286
        %v11398 = vpop.f32.mrf.mxu0
        %v11399 = vadd.f32 0.0, %v11398
        %11400 = vmatmul.f32.gmra.mxu0 %v11289
        %v11401 = vpop.f32.mrf.mxu0
        %v11402 = vadd.f32 0.0, %v11401
        %11403 = vdwg.mxu0
        %v11404 = vadd.f32 %v11126, %v11309
        %v11405 = vadd.f32 %v11127, %v11312
        %v11406 = vadd.f32 %v11128, %v11315
        %v11407 = vadd.f32 %v11129, %v11318
        %v11408 = vadd.f32 %v11130, %v11321
        %v11409 = vadd.f32 %v11131, %v11324
        %v11410 = vadd.f32 %v11132, %v11327
        %v11411 = vadd.f32 %v11133, %v11330
        %v11412 = vadd.f32 %v11134, %v11333
        %v11413 = vadd.f32 %v11135, %v11336
        %v11414 = vadd.f32 %v11136, %v11339
        %v11415 = vadd.f32 %v11137, %v11342
        %v11416 = vadd.f32 %v11138, %v11345
        %v11417 = vadd.f32 %v11139, %v11348
        %v11418 = vadd.f32 %v11140, %v11351
        %v11419 = vadd.f32 %v11141, %v11354
        %v11420 = vadd.f32 %v11142, %v11357
        %v11421 = vadd.f32 %v11143, %v11360
        %v11422 = vadd.f32 %v11144, %v11363
        %v11423 = vadd.f32 %v11145, %v11366
        %v11424 = vadd.f32 %v11146, %v11369
        %v11425 = vadd.f32 %v11147, %v11372
        %v11426 = vadd.f32 %v11148, %v11375
        %v11427 = vadd.f32 %v11149, %v11378
        %v11428 = vadd.f32 %v11150, %v11381
        %v11429 = vadd.f32 %v11151, %v11384
        %v11430 = vadd.f32 %v11152, %v11387
        %v11431 = vadd.f32 %v11153, %v11390
        %v11432 = vadd.f32 %v11154, %v11393
        %v11433 = vadd.f32 %v11155, %v11396
        %v11434 = vadd.f32 %v11156, %v11399
        %v11435 = vadd.f32 %v11157, %v11402
        %v11436 = vld [vmem:[%s17] sm:$0x1]
        %v11438 = vperm.slane %v11436, 0
        %v11440 = vadd.f32 %v11404, %v11438
        %v11441 = vadd.f32 %v11405, %v11438
        %v11442 = vadd.f32 %v11406, %v11438
        %v11443 = vadd.f32 %v11407, %v11438
        %v11444 = vadd.f32 %v11408, %v11438
        %v11445 = vadd.f32 %v11409, %v11438
        %v11446 = vadd.f32 %v11410, %v11438
        %v11447 = vadd.f32 %v11411, %v11438
        %v11448 = vadd.f32 %v11412, %v11438
        %v11449 = vadd.f32 %v11413, %v11438
        %v11450 = vadd.f32 %v11414, %v11438
        %v11451 = vadd.f32 %v11415, %v11438
        %v11452 = vadd.f32 %v11416, %v11438
        %v11453 = vadd.f32 %v11417, %v11438
        %v11454 = vadd.f32 %v11418, %v11438
        %v11455 = vadd.f32 %v11419, %v11438
        %v11456 = vadd.f32 %v11420, %v11438
        %v11457 = vadd.f32 %v11421, %v11438
        %v11458 = vadd.f32 %v11422, %v11438
        %v11459 = vadd.f32 %v11423, %v11438
        %v11460 = vadd.f32 %v11424, %v11438
        %v11461 = vadd.f32 %v11425, %v11438
        %v11462 = vadd.f32 %v11426, %v11438
        %v11463 = vadd.f32 %v11427, %v11438
        %v11464 = vadd.f32 %v11428, %v11438
        %v11465 = vadd.f32 %v11429, %v11438
        %v11466 = vadd.f32 %v11430, %v11438
        %v11467 = vadd.f32 %v11431, %v11438
        %v11468 = vadd.f32 %v11432, %v11438
        %v11469 = vadd.f32 %v11433, %v11438
        %v11470 = vadd.f32 %v11434, %v11438
        %v11471 = vadd.f32 %v11435, %v11438
        %v11472 = vadd.f32 %v8767, %v11440
        %v11473 = vadd.f32 %v8768, %v11441
        %v11474 = vadd.f32 %v8769, %v11442
        %v11475 = vadd.f32 %v8770, %v11443
        %v11476 = vadd.f32 %v8771, %v11444
        %v11477 = vadd.f32 %v8772, %v11445
        %v11478 = vadd.f32 %v8773, %v11446
        %v11479 = vadd.f32 %v8774, %v11447
        %v11480 = vadd.f32 %v8775, %v11448
        %v11481 = vadd.f32 %v8776, %v11449
        %v11482 = vadd.f32 %v8777, %v11450
        %v11483 = vadd.f32 %v8778, %v11451
        %v11484 = vadd.f32 %v8779, %v11452
        %v11485 = vadd.f32 %v8780, %v11453
        %v11486 = vadd.f32 %v8781, %v11454
        %v11487 = vadd.f32 %v8782, %v11455
        %v11488 = vadd.f32 %v8783, %v11456
        %v11489 = vadd.f32 %v8784, %v11457
        %v11490 = vadd.f32 %v8785, %v11458
        %v11491 = vadd.f32 %v8786, %v11459
        %v11492 = vadd.f32 %v8787, %v11460
        %v11493 = vadd.f32 %v8788, %v11461
        %v11494 = vadd.f32 %v8789, %v11462
        %v11495 = vadd.f32 %v8790, %v11463
        %v11496 = vadd.f32 %v8791, %v11464
        %v11497 = vadd.f32 %v8792, %v11465
        %v11498 = vadd.f32 %v8793, %v11466
        %v11499 = vadd.f32 %v8794, %v11467
        %v11500 = vadd.f32 %v8795, %v11468
        %v11501 = vadd.f32 %v8796, %v11469
        %v11502 = vadd.f32 %v8797, %v11470
        %v11503 = vadd.f32 %v8798, %v11471
        %11504 = vst.msk [vmem:[%s626] sm:$0xff] %vm3556, %v11472
        %11505 = vst.msk [vmem:[%s626 + $0x8] sm:$0xff] %vm3556, %v11473
        %11506 = vst.msk [vmem:[%s626 + $0x10] sm:$0xff] %vm3556, %v11474
        %11507 = vst.msk [vmem:[%s626 + $0x18] sm:$0xff] %vm3556, %v11475
        %11508 = vst.msk [vmem:[%s626 + $0x20] sm:$0xff] %vm3556, %v11476
        %11509 = vst.msk [vmem:[%s626 + $0x28] sm:$0xff] %vm3556, %v11477
        %11510 = vst.msk [vmem:[%s626 + $0x30] sm:$0xff] %vm3556, %v11478
        %11511 = vst.msk [vmem:[%s626 + $0x38] sm:$0xff] %vm3556, %v11479
        %11512 = vst.msk [vmem:[%s626 + $0x40] sm:$0xff] %vm3556, %v11480
        %11513 = vst.msk [vmem:[%s626 + $0x48] sm:$0xff] %vm3556, %v11481
        %11514 = vst.msk [vmem:[%s626 + $0x50] sm:$0xff] %vm3556, %v11482
        %11515 = vst.msk [vmem:[%s626 + $0x58] sm:$0xff] %vm3556, %v11483
        %11516 = vst.msk [vmem:[%s626 + $0x60] sm:$0xff] %vm3556, %v11484
        %11517 = vst.msk [vmem:[%s626 + $0x68] sm:$0xff] %vm3556, %v11485
        %11518 = vst.msk [vmem:[%s626 + $0x70] sm:$0xff] %vm3556, %v11486
        %11519 = vst.msk [vmem:[%s626 + $0x78] sm:$0xff] %vm3556, %v11487
        %11520 = vst.msk [vmem:[%s626 + $0x80] sm:$0xff] %vm3556, %v11488
        %11521 = vst.msk [vmem:[%s626 + $0x88] sm:$0xff] %vm3556, %v11489
        %11522 = vst.msk [vmem:[%s626 + $0x90] sm:$0xff] %vm3556, %v11490
        %11523 = vst.msk [vmem:[%s626 + $0x98] sm:$0xff] %vm3556, %v11491
        %11524 = vst.msk [vmem:[%s626 + $0xa0] sm:$0xff] %vm3556, %v11492
        %11525 = vst.msk [vmem:[%s626 + $0xa8] sm:$0xff] %vm3556, %v11493
        %11526 = vst.msk [vmem:[%s626 + $0xb0] sm:$0xff] %vm3556, %v11494
        %11527 = vst.msk [vmem:[%s626 + $0xb8] sm:$0xff] %vm3556, %v11495
        %11528 = vst.msk [vmem:[%s626 + $0xc0] sm:$0xff] %vm3556, %v11496
        %11529 = vst.msk [vmem:[%s626 + $0xc8] sm:$0xff] %vm3556, %v11497
        %11530 = vst.msk [vmem:[%s626 + $0xd0] sm:$0xff] %vm3556, %v11498
        %11531 = vst.msk [vmem:[%s626 + $0xd8] sm:$0xff] %vm3556, %v11499
        %11532 = vst.msk [vmem:[%s626 + $0xe0] sm:$0xff] %vm3556, %v11500
        %11533 = vst.msk [vmem:[%s626 + $0xe8] sm:$0xff] %vm3556, %v11501
        %11534 = vst.msk [vmem:[%s626 + $0xf0] sm:$0xff] %vm3556, %v11502
        %11535 = vst.msk [vmem:[%s626 + $0xf8] sm:$0xff] %vm3556, %v11503
        %s11536 = smul.u32 32, %s32
        %p11537 = scmp.lt.s32.totalorder %s11536, 63
        %s11538 = scalar_select %p11537, %s11536, 63
        %s11539 = smul.addr %s11538, 8
        %s11540 = scalar_lea.vmem %s18, %s11539
        // Predicated region
        $region105: #{tpu_custom_call.1} parent=91 // pred_check
          %p11541 = pneg %p433
        $region106: #{tpu_custom_call.1} parent=91 // pred_check_branch
          %11543 = sbr.rel (%p11541) target = $region108
        $region107: #{tpu_custom_call.1} parent=91 // pred_region
          %s11544 = smul.u32 32, %s32
        $region108: #{tpu_custom_call.1} parent=91 // pred_fallthru
          _
      $region92: #{tpu_custom_call.1} parent=5 // pred_fallthru
        _
      %p11545 = scmp.le.s32.totalorder 2, %s27
      // Predicated region
      $region109: #{tpu_custom_call.1} parent=5 // pred_check
        %p11546 = pneg %p11545
      $region110: #{tpu_custom_call.1} parent=5 // pred_check_branch
        %11548 = sbr.rel (%p11546) target = $region112
      $region111: #{tpu_custom_call.1} parent=5 // pred_region
        %s11549 = ssub.s32 %s27, 2
        // Predicated region
        $region113: #{tpu_custom_call.1} parent=111 // pred_check
          %p11550 = pneg %p439
        $region114: #{tpu_custom_call.1} parent=111 // pred_check_branch
          %11552 = sbr.rel (%p11550) target = $region116
        $region115: #{tpu_custom_call.1} parent=111 // pred_region
          %s11553 = smul.u32 32, %s33
          %p11554 = scmp.lt.s32.totalorder %s11553, 63
          %s11555 = scalar_select %p11554, %s11553, 63
          %s11556 = smul.addr %s11555, 8
          %s11557 = scalar_lea.vmem %s18, %s11556
        $region116: #{tpu_custom_call.1} parent=111 // pred_fallthru
          _
      $region112: #{tpu_custom_call.1} parent=5 // pred_fallthru
        _
    $region6: #{tpu_custom_call.1} parent=1 // loop_footer
      %s31 = sadd.s32 1, %s27
    $region7: #{tpu_custom_call.1} parent=1 // loop_footer_branch
      %26 = sbr.rel target = $region3
    $region8: #{tpu_custom_call.1} parent=1 // loop_exit
      _
    %11558 = vsyncpa [#allocation5], 1
    %s11559 = scalar_lea.sflag [#allocation5], 1
    %11560 = vsyncpa %s11559, 1
    %11561 = vsyncpa [#allocation7], 1

</llo_original>
